<compile_context>
chip_gen: v7x
topology: tpu7x:2x2x1
jax: 0.10.0
libtpu: 0.0.40
codegen_flags: <defaults>
</compile_context>

<pallas_src>
import jax
import jax.numpy as jnp
from jax.experimental import pallas as pl
from jax.experimental.pallas import tpu as pltpu

_EPS = 1e-5  # torch.nn.BatchNorm1d default eps

# ---- packed per-channel parameter rows (E = expanded width = 4 * C_feat) ----
_GE, _BTE = 0, 1                                   # expand BN gamma/beta
_DWW1, _GDW1, _BTDW1 = 2, 3, 4                     # DWSep1 depthwise w, depthwise BN
_GPW1, _BTPW1, _GMID1, _BTMID1 = 5, 6, 7, 8        # DWSep1 pointwise BN, mid BN 1
_DWW2, _GDW2, _BTDW2 = 9, 10, 11                   # DWSep2 depthwise w, depthwise BN
_GPW2, _BTPW2, _GMID2, _BTMID2 = 12, 13, 14, 15    # DWSep2 pointwise BN, mid BN 2
_VE_ROWS = 16                                      # multiple of 8 sublanes

_GP, _BTP, _G1, _BT1 = 0, 1, 2, 3                  # project BN, head BN
_VC_ROWS = 8


# ------------------------------- BN helpers ----------------------------------

def _stats(y):
    """Single-pass per-channel (mean, biased var) with a per-channel pivot.

    Centering about y[0] makes E[d^2]-E[d]^2 robust to non-zero means without a
    second read of the [N, E] tensor (variance is shift-invariant, so this is
    exact up to fp rounding)."""
    inv_n = 1.0 / y.shape[0]
    pivot = y[0:1, :]
    d = y - pivot
    md = jnp.sum(d, axis=0, keepdims=True) * inv_n
    msq = jnp.sum(d * d, axis=0, keepdims=True) * inv_n
    var = jnp.maximum(msq - md * md, 0.0)
    return pivot + md, var


def _bn_ss(mean, var, gamma, beta):
    """Training-mode BN as a per-channel (scale, shift): BN(y) = y*s + c."""
    s = gamma * jax.lax.rsqrt(var + _EPS)
    return s, beta - mean * s


# ------------------------------ fused kernel ----------------------------------

def _fused_irb_head_kernel(x_ref, we_ref, wpw1_ref, wpw2_ref, wp_ref,
                           w1_ref, w2t_ref, ve_ref, vc_ref, b2_ref, o_ref):
    """InvertedResidualBlock (identity shortcut) + Net head, fully fused.

    x_ref:   [N, C]     f32 features (also the residual)
    w*_ref:              bf16 weights stored transposed for `x @ W^T`
    ve_ref:  [16, E]    f32 packed per-channel params at expanded width E
    vc_ref:  [8,  C]    f32 packed per-channel params at width C
    b2_ref:  [1, ncls]  head conv2 bias (no BN follows, so it survives)
    o_ref:   [N, ncls]  f32 output (transposed to [ncls, N] in the wrapper)

    Conv biases that feed a batch-stat BN cancel exactly and are dropped.
    """
    x = x_ref[...]                      # f32, kept for the residual add
    ve = ve_ref[...]
    vc = vc_ref[...]
    r = lambda m, i: m[i:i + 1, :]      # [1, W] static row view

    # ---- expand: 1x1 conv -> BN -> ReLU ----
    y0 = jnp.dot(x.astype(jnp.bfloat16), we_ref[...],
                 preferred_element_type=jnp.float32)              # [N, E]
    m0, v0 = _stats(y0)
    s_e, c_e = _bn_ss(m0, v0, r(ve, _GE), r(ve, _BTE))
    t1 = jnp.maximum(y0 * s_e + c_e, 0.0)                         # f32, needs its own stats

    # ---- DWSep1: depthwise(k=1) -> BN -> ReLU (depthwise affine folded into BN) ----
    mt, vt = _stats(t1)
    dw1 = r(ve, _DWW1)
    s1, c1 = _bn_ss(dw1 * mt, dw1 * dw1 * vt, r(ve, _GDW1), r(ve, _BTDW1))
    a1 = jnp.maximum(t1 * (dw1 * s1) + c1, 0.0).astype(jnp.bfloat16)

    # ---- pointwise1 matmul; then [BN_pw1 -> BN_mid1 -> depthwise2 -> BN_dw2 -> ReLU]
    #      composed into a single FMA from ONE stats pass ----
    y1 = jnp.dot(a1, wpw1_ref[...], preferred_element_type=jnp.float32)
    m1, v1 = _stats(y1)
    s_a, c_a = _bn_ss(m1, v1, r(ve, _GPW1), r(ve, _BTPW1))                      # BN_pw1
    s_b, c_b = _bn_ss(r(ve, _BTPW1), s_a * s_a * v1, r(ve, _GMID1), r(ve, _BTMID1))  # mid BN1
    S_b = s_a * s_b
    C_b = c_a * s_b + c_b
    dw2 = r(ve, _DWW2)
    s_c, c_c = _bn_ss(dw2 * r(ve, _BTMID1), (dw2 * S_b) * (dw2 * S_b) * v1,
                      r(ve, _GDW2), r(ve, _BTDW2))                              # BN_dw2
    a2 = jnp.maximum(y1 * (S_b * dw2 * s_c) + (C_b * dw2 * s_c + c_c),
                     0.0).astype(jnp.bfloat16)

    # ---- pointwise2 matmul; then [BN_pw2 -> BN_mid2] composed (no ReLU) ----
    y2 = jnp.dot(a2, wpw2_ref[...], preferred_element_type=jnp.float32)
    m2, v2 = _stats(y2)
    s_d, c_d = _bn_ss(m2, v2, r(ve, _GPW2), r(ve, _BTPW2))                      # BN_pw2
    s_f, c_f = _bn_ss(r(ve, _BTPW2), s_d * s_d * v2, r(ve, _GMID2), r(ve, _BTMID2))  # mid BN2
    a3 = (y2 * (s_d * s_f) + (c_d * s_f + c_f)).astype(jnp.bfloat16)

    # ---- project: 1x1 conv -> BN, then identity shortcut + ReLU ----
    y3 = jnp.dot(a3, wp_ref[...], preferred_element_type=jnp.float32)  # [N, C]
    m3, v3 = _stats(y3)
    s_p, c_p = _bn_ss(m3, v3, r(vc, _GP), r(vc, _BTP))
    feat = jnp.maximum(y3 * s_p + c_p + x, 0.0).astype(jnp.bfloat16)

    # ---- head: conv1 -> BN -> ReLU -> conv2 ----
    y4 = jnp.dot(feat, w1_ref[...], preferred_element_type=jnp.float32)  # [N, C]
    m4, v4 = _stats(y4)
    s_1, c_1 = _bn_ss(m4, v4, r(vc, _G1), r(vc, _BT1))
    h = jnp.maximum(y4 * s_1 + c_1, 0.0).astype(jnp.bfloat16)
    out = jnp.dot(h, w2t_ref[...], preferred_element_type=jnp.float32)   # [N, ncls]
    o_ref[...] = out + b2_ref[...]


def _vmem_limit_bytes(n, c_feat, e, num_classes):
    # Resident bf16 weights + packed vectors + peak f32/bf16 activation chain,
    # with headroom.  Capped below v7x's 64 MiB physical VMEM (tightest gen).
    weight_bytes = 2 * (c_feat * e + 2 * e * e + e * c_feat +
                        c_feat * c_feat + c_feat * num_classes)
    pack_bytes = 4 * (_VE_ROWS * e + _VC_ROWS * c_feat + num_classes)
    act_bytes = n * (4 * c_feat + 3 * 4 * e + 2 * e)   # x + ~3 f32 [N,E] + bf16 [N,E]
    est = int(1.5 * (weight_bytes + pack_bytes + act_bytes)) + (4 << 20)
    return int(min(max(est, 16 << 20), 48 << 20))


def fused_forward(x, p):
    n, c_feat = x.shape
    e = p["we_t"].shape[1]
    num_classes = p["w2_t"].shape[1]

    def spec(shape):
        nd = len(shape)
        return pl.BlockSpec(shape, lambda i, nd=nd: (0,) * nd)

    args = (x, p["we_t"], p["wpw1_t"], p["wpw2_t"], p["wp_t"],
            p["w1_t"], p["w2_t"], p["ve"], p["vc"], p["b2"])
    out_nt = pl.pallas_call(
        _fused_irb_head_kernel,
        out_shape=jax.ShapeDtypeStruct((n, num_classes), jnp.float32),
        grid=(1,),
        in_specs=[spec(a.shape) for a in args],
        out_specs=spec((n, num_classes)),
        compiler_params=pltpu.CompilerParams(
            dimension_semantics=("arbitrary",),
            vmem_limit_bytes=_vmem_limit_bytes(n, c_feat, e, num_classes)),
    )(*args)
    # Tiny [N, ncls] -> [ncls, N] transpose in the wrapper (8N bytes) instead of
    # an N-proportional in-kernel XLU transpose of the [N, C] activation.
    return jnp.transpose(out_nt)


@jax.jit
def forward(x, params):
    """fp1-level features [N, C*8] -> Net output [num_classes, N]."""
    return fused_forward(x, params)


# ---------------------------- parameters --------------------------------------

def init_params(key, c_feat, num_classes, expansion=4):
    """f32 master weights in torch layout [out, in]; BN gamma=1, beta=0; conv biases 0."""
    e = c_feat * expansion
    ks = jax.random.split(key, 8)

    def kaiming(k, out_c, in_c):
        # kaiming_uniform_(mode='fan_in', nonlinearity='linear'): bound = sqrt(3/fan_in)
        bound = (3.0 / in_c) ** 0.5
        return jax.random.uniform(k, (out_c, in_c), jnp.float32, -bound, bound)

    dwb = 3.0 ** 0.5  # depthwise weight [E,1,1]: fan_in = 1
    zeros_e, ones_e = jnp.zeros((e,), jnp.float32), jnp.ones((e,), jnp.float32)
    zeros_c, ones_c = jnp.zeros((c_feat,), jnp.float32), jnp.ones((c_feat,), jnp.float32)
    return {
        "we":   kaiming(ks[0], e, c_feat),
        "dww1": jax.random.uniform(ks[1], (e,), jnp.float32, -dwb, dwb),
        "wpw1": kaiming(ks[2], e, e),
        "dww2": jax.random.uniform(ks[3], (e,), jnp.float32, -dwb, dwb),
        "wpw2": kaiming(ks[4], e, e),
        "wp":   kaiming(ks[5], c_feat, e),
        "w1":   kaiming(ks[6], c_feat, c_feat),
        "w2":   kaiming(ks[7], num_classes, c_feat),
        # conv biases (zero per initialize_weights)
        "be": zeros_e, "dwb1": zeros_e, "bpw1": zeros_e,
        "dwb2": zeros_e, "bpw2": zeros_e,
        "bp": zeros_c, "b1": zeros_c, "b2": jnp.zeros((num_classes,), jnp.float32),
        # BN affine params
        "g_e": ones_e, "bt_e": zeros_e,
        "g_dw1": ones_e, "bt_dw1": zeros_e, "g_pw1": ones_e, "bt_pw1": zeros_e,
        "g_mid1": ones_e, "bt_mid1": zeros_e,
        "g_dw2": ones_e, "bt_dw2": zeros_e, "g_pw2": ones_e, "bt_pw2": zeros_e,
        "g_mid2": ones_e, "bt_mid2": zeros_e,
        "g_p": ones_c, "bt_p": zeros_c, "g_1": ones_c, "bt_1": zeros_c,
    }


def pack_params(w):
    """Kernel-format params: bf16 transposed weights + packed f32 vectors.

    Conv biases feeding a batch-stat BN (be, dwb*, bpw*, bp, b1) cancel exactly
    through training-mode BatchNorm and are not packed."""
    e = w["we"].shape[0]
    c_feat = w["we"].shape[1]
    ve = jnp.zeros((_VE_ROWS, e), jnp.float32)
    for idx, name in ((_GE, "g_e"), (_BTE, "bt_e"),
                      (_DWW1, "dww1"), (_GDW1, "g_dw1"), (_BTDW1, "bt_dw1"),
                      (_GPW1, "g_pw1"), (_BTPW1, "bt_pw1"),
                      (_GMID1, "g_mid1"), (_BTMID1, "bt_mid1"),
                      (_DWW2, "dww2"), (_GDW2, "g_dw2"), (_BTDW2, "bt_dw2"),
                      (_GPW2, "g_pw2"), (_BTPW2, "bt_pw2"),
                      (_GMID2, "g_mid2"), (_BTMID2, "bt_mid2")):
        ve = ve.at[idx].set(w[name])
    vc = jnp.zeros((_VC_ROWS, c_feat), jnp.float32)
    for idx, name in ((_GP, "g_p"), (_BTP, "bt_p"), (_G1, "g_1"), (_BT1, "bt_1")):
        vc = vc.at[idx].set(w[name])
    return {
        "we_t":   w["we"].T.astype(jnp.bfloat16),
        "wpw1_t": w["wpw1"].T.astype(jnp.bfloat16),
        "wpw2_t": w["wpw2"].T.astype(jnp.bfloat16),
        "wp_t":   w["wp"].T.astype(jnp.bfloat16),
        "w1_t":   w["w1"].T.astype(jnp.bfloat16),
        "w2_t":   w["w2"].T.astype(jnp.bfloat16),
        "b2":     w["b2"].reshape(1, -1),
        "ve":     ve,
        "vc":     vc,
    }


# ------------------- pure-JAX f32 non-composed reference ----------------------

def reference_forward(x, w):
    """Literal (non-composed) f32 translation of the torch ops, for tolerance tests."""
    def bn(y, g, b):
        m = jnp.mean(y, axis=0, keepdims=True)
        v = jnp.mean((y - m) ** 2, axis=0, keepdims=True)
        return (y - m) * jax.lax.rsqrt(v + _EPS) * g + b

    def conv1x1(y, W, b):
        return y @ W.T + b

    y = jnp.maximum(bn(conv1x1(x, w["we"], w["be"]), w["g_e"], w["bt_e"]), 0.0)
    # DWSep1 + mid BN1
    y = y * w["dww1"] + w["dwb1"]
    y = jnp.maximum(bn(y, w["g_dw1"], w["bt_dw1"]), 0.0)
    y = bn(conv1x1(y, w["wpw1"], w["bpw1"]), w["g_pw1"], w["bt_pw1"])
    y = bn(y, w["g_mid1"], w["bt_mid1"])
    # DWSep2 + mid BN2
    y = y * w["dww2"] + w["dwb2"]
    y = jnp.maximum(bn(y, w["g_dw2"], w["bt_dw2"]), 0.0)
    y = bn(conv1x1(y, w["wpw2"], w["bpw2"]), w["g_pw2"], w["bt_pw2"])
    y = bn(y, w["g_mid2"], w["bt_mid2"])
    # project + identity shortcut + ReLU
    y = bn(conv1x1(y, w["wp"], w["bp"]), w["g_p"], w["bt_p"])
    feat = jnp.maximum(y + x, 0.0)
    # head
    h = jnp.maximum(bn(conv1x1(feat, w["w1"], w["b1"]), w["g_1"], w["bt_1"]), 0.0)
    out = conv1x1(h, w["w2"], w["b2"])      # [N, ncls]
    return out.T                            # [ncls, N]


# ----------------------------------- main --------------------------------------

if __name__ == "__main__":
    key = jax.random.PRNGKey(0)
    k_pos, k_refl, k_feat, k_param = jax.random.split(key, 4)

    N = 256            # number of points
    C = 16             # Net(C=16)
    C_FEAT = C * 8     # 128-wide features at the residual-block / head level
    NUM_CLASSES = 2

    # Net.forward interface inputs (data.x is None at the first SA level).
    pos = jax.random.normal(k_pos, (N, 3), jnp.float32)
    reflectance = jax.random.uniform(k_refl, (N,), jnp.float32)
    batch = jnp.zeros((N,), jnp.int32)

    # TODO(synk): SA/FP graph ops (KAN, knn, knn_interpolate, voxel_grid,
    # Set2Set, AttentivePointNetConv, global_max_pool, gumbel reflectance gate,
    # feature_reducer) are undefined in the source; a deterministic random
    # tensor stands in for the C*8-wide features feeding the translated path.
    fp1_features = jax.random.normal(k_feat, (N, C_FEAT), jnp.float32)

    weights_f32 = init_params(k_param, C_FEAT, NUM_CLASSES)
    params = pack_params(weights_f32)

    output = forward(fp1_features, params)       # [num_classes, N], one fused Pallas kernel
    output = jax.block_until_ready(output)

    assert output.shape == (NUM_CLASSES, N) and output.dtype == jnp.float32
    assert bool(jnp.all(jnp.isfinite(output)))

    # Tolerance test against the f32 non-composed reference (validates the
    # analytic BN/affine folding; slack covers bf16 matmul operands).
    ref = reference_forward(fp1_features, weights_f32)
    diff = jnp.abs(output - ref)
    assert float(jnp.max(diff)) < 0.3, f"max abs err {float(jnp.max(diff))}"
    assert float(jnp.mean(diff)) < 0.06, f"mean abs err {float(jnp.mean(diff))}"

    print("KERNEL_OK")
</pallas_src>

<mosaic_0001>
module attributes {stable_mosaic.version = 11 : i64} {
  func.func @_fused_irb_head_kernel(%arg0: i32, %arg1: memref<256x128xf32, #tpu.memory_space<vmem>>, %arg2: memref<128x512xbf16, #tpu.memory_space<vmem>>, %arg3: memref<512x512xbf16, #tpu.memory_space<vmem>>, %arg4: memref<512x512xbf16, #tpu.memory_space<vmem>>, %arg5: memref<512x128xbf16, #tpu.memory_space<vmem>>, %arg6: memref<128x128xbf16, #tpu.memory_space<vmem>>, %arg7: memref<128x2xbf16, #tpu.memory_space<vmem>>, %arg8: memref<16x512xf32, #tpu.memory_space<vmem>>, %arg9: memref<8x128xf32, #tpu.memory_space<vmem>>, %arg10: memref<1x2xf32, #tpu.memory_space<vmem>>, %arg11: memref<256x2xf32, #tpu.memory_space<vmem>>) attributes {dimension_semantics = [#tpu.dimension_semantics<arbitrary>], iteration_bounds = array<i64: 1>, scalar_prefetch = 0 : i64, scratch_operands = 0 : i64, tpu.core_type = #tpu.core_type<tc>, window_params = [{pipeline_mode = #tpu.pipeline_mode<synchronous>, transform_indices = @transform_0, window_bounds = array<i64: 256, 128>}, {pipeline_mode = #tpu.pipeline_mode<synchronous>, transform_indices = @transform_1, window_bounds = array<i64: 128, 512>}, {pipeline_mode = #tpu.pipeline_mode<synchronous>, transform_indices = @transform_2, window_bounds = array<i64: 512, 512>}, {pipeline_mode = #tpu.pipeline_mode<synchronous>, transform_indices = @transform_3, window_bounds = array<i64: 512, 512>}, {pipeline_mode = #tpu.pipeline_mode<synchronous>, transform_indices = @transform_4, window_bounds = array<i64: 512, 128>}, {pipeline_mode = #tpu.pipeline_mode<synchronous>, transform_indices = @transform_5, window_bounds = array<i64: 128, 128>}, {pipeline_mode = #tpu.pipeline_mode<synchronous>, transform_indices = @transform_6, window_bounds = array<i64: 128, 2>}, {pipeline_mode = #tpu.pipeline_mode<synchronous>, transform_indices = @transform_7, window_bounds = array<i64: 16, 512>}, {pipeline_mode = #tpu.pipeline_mode<synchronous>, transform_indices = @transform_8, window_bounds = array<i64: 8, 128>}, {pipeline_mode = #tpu.pipeline_mode<synchronous>, transform_indices = @transform_9, window_bounds = array<i64: 1, 2>}, {pipeline_mode = #tpu.pipeline_mode<synchronous>, transform_indices = @transform_10, window_bounds = array<i64: 256, 2>}]} {
    %c0 = arith.constant 0 : index
    %c0_0 = arith.constant 0 : index
    %0 = vector.load %arg1[%c0, %c0_0] : memref<256x128xf32, #tpu.memory_space<vmem>>, vector<256x128xf32>
    %c0_1 = arith.constant 0 : index
    %c0_2 = arith.constant 0 : index
    %1 = vector.load %arg8[%c0_1, %c0_2] : memref<16x512xf32, #tpu.memory_space<vmem>>, vector<16x512xf32>
    %c0_3 = arith.constant 0 : index
    %c0_4 = arith.constant 0 : index
    %2 = vector.load %arg9[%c0_3, %c0_4] : memref<8x128xf32, #tpu.memory_space<vmem>>, vector<8x128xf32>
    %3 = arith.truncf %0 : vector<256x128xf32> to vector<256x128xbf16>
    %c0_5 = arith.constant 0 : index
    %c0_6 = arith.constant 0 : index
    %4 = vector.load %arg2[%c0_5, %c0_6] : memref<128x512xbf16, #tpu.memory_space<vmem>>, vector<128x512xbf16>
    %cst = arith.constant dense<0.000000e+00> : vector<256x512xf32>
    %5 = tpu.matmul %3, %4, %cst {dimension_numbers = #tpu.dot_dimension_numbers<[1], [0], [0], [1], [0, 0, 1, 1], [], []>} : vector<256x128xbf16>, vector<128x512xbf16>, vector<256x512xf32> -> vector<256x512xf32>
    %6 = vector.extract_strided_slice %5 {offsets = [0, 0], sizes = [1, 512], strides = [1, 1]} : vector<256x512xf32> to vector<1x512xf32>
    %7 = vector.broadcast %6 : vector<1x512xf32> to vector<256x512xf32>
    %8 = arith.subf %5, %7 : vector<256x512xf32>
    %cst_7 = arith.constant dense<0.000000e+00> : vector<512xf32>
    %9 = vector.multi_reduction <add>, %8, %cst_7 [0] : vector<256x512xf32> to vector<512xf32>
    %10 = vector.shape_cast %9 : vector<512xf32> to vector<1x512xf32>
    %cst_8 = arith.constant 3.906250e-03 : f32
    %11 = vector.broadcast %cst_8 : f32 to vector<1x512xf32>
    %12 = arith.mulf %10, %11 : vector<1x512xf32>
    %13 = arith.mulf %8, %8 : vector<256x512xf32>
    %cst_9 = arith.constant dense<0.000000e+00> : vector<512xf32>
    %14 = vector.multi_reduction <add>, %13, %cst_9 [0] : vector<256x512xf32> to vector<512xf32>
    %15 = vector.shape_cast %14 : vector<512xf32> to vector<1x512xf32>
    %cst_10 = arith.constant 3.906250e-03 : f32
    %16 = vector.broadcast %cst_10 : f32 to vector<1x512xf32>
    %17 = arith.mulf %15, %16 : vector<1x512xf32>
    %18 = arith.mulf %12, %12 : vector<1x512xf32>
    %19 = arith.subf %17, %18 : vector<1x512xf32>
    %cst_11 = arith.constant 0.000000e+00 : f32
    %20 = vector.broadcast %cst_11 : f32 to vector<1x512xf32>
    %21 = arith.maximumf %19, %20 : vector<1x512xf32>
    %22 = arith.addf %6, %12 : vector<1x512xf32>
    %23 = vector.extract_strided_slice %1 {offsets = [0, 0], sizes = [1, 512], strides = [1, 1]} : vector<16x512xf32> to vector<1x512xf32>
    %24 = vector.extract_strided_slice %1 {offsets = [1, 0], sizes = [1, 512], strides = [1, 1]} : vector<16x512xf32> to vector<1x512xf32>
    %cst_12 = arith.constant 9.99999974E-6 : f32
    %25 = vector.broadcast %cst_12 : f32 to vector<1x512xf32>
    %26 = arith.addf %21, %25 : vector<1x512xf32>
    %27 = math.rsqrt %26 : vector<1x512xf32>
    %28 = arith.mulf %23, %27 : vector<1x512xf32>
    %29 = arith.mulf %22, %28 : vector<1x512xf32>
    %30 = arith.subf %24, %29 : vector<1x512xf32>
    %31 = vector.broadcast %28 : vector<1x512xf32> to vector<256x512xf32>
    %32 = arith.mulf %5, %31 : vector<256x512xf32>
    %33 = vector.broadcast %30 : vector<1x512xf32> to vector<256x512xf32>
    %34 = arith.addf %32, %33 : vector<256x512xf32>
    %cst_13 = arith.constant 0.000000e+00 : f32
    %35 = vector.broadcast %cst_13 : f32 to vector<256x512xf32>
    %36 = arith.maximumf %34, %35 : vector<256x512xf32>
    %37 = vector.extract_strided_slice %36 {offsets = [0, 0], sizes = [1, 512], strides = [1, 1]} : vector<256x512xf32> to vector<1x512xf32>
    %38 = vector.broadcast %37 : vector<1x512xf32> to vector<256x512xf32>
    %39 = arith.subf %36, %38 : vector<256x512xf32>
    %cst_14 = arith.constant dense<0.000000e+00> : vector<512xf32>
    %40 = vector.multi_reduction <add>, %39, %cst_14 [0] : vector<256x512xf32> to vector<512xf32>
    %41 = vector.shape_cast %40 : vector<512xf32> to vector<1x512xf32>
    %cst_15 = arith.constant 3.906250e-03 : f32
    %42 = vector.broadcast %cst_15 : f32 to vector<1x512xf32>
    %43 = arith.mulf %41, %42 : vector<1x512xf32>
    %44 = arith.mulf %39, %39 : vector<256x512xf32>
    %cst_16 = arith.constant dense<0.000000e+00> : vector<512xf32>
    %45 = vector.multi_reduction <add>, %44, %cst_16 [0] : vector<256x512xf32> to vector<512xf32>
    %46 = vector.shape_cast %45 : vector<512xf32> to vector<1x512xf32>
    %cst_17 = arith.constant 3.906250e-03 : f32
    %47 = vector.broadcast %cst_17 : f32 to vector<1x512xf32>
    %48 = arith.mulf %46, %47 : vector<1x512xf32>
    %49 = arith.mulf %43, %43 : vector<1x512xf32>
    %50 = arith.subf %48, %49 : vector<1x512xf32>
    %cst_18 = arith.constant 0.000000e+00 : f32
    %51 = vector.broadcast %cst_18 : f32 to vector<1x512xf32>
    %52 = arith.maximumf %50, %51 : vector<1x512xf32>
    %53 = arith.addf %37, %43 : vector<1x512xf32>
    %54 = vector.extract_strided_slice %1 {offsets = [2, 0], sizes = [1, 512], strides = [1, 1]} : vector<16x512xf32> to vector<1x512xf32>
    %55 = arith.mulf %54, %53 : vector<1x512xf32>
    %56 = arith.mulf %54, %54 : vector<1x512xf32>
    %57 = arith.mulf %56, %52 : vector<1x512xf32>
    %58 = vector.extract_strided_slice %1 {offsets = [3, 0], sizes = [1, 512], strides = [1, 1]} : vector<16x512xf32> to vector<1x512xf32>
    %59 = vector.extract_strided_slice %1 {offsets = [4, 0], sizes = [1, 512], strides = [1, 1]} : vector<16x512xf32> to vector<1x512xf32>
    %cst_19 = arith.constant 9.99999974E-6 : f32
    %60 = vector.broadcast %cst_19 : f32 to vector<1x512xf32>
    %61 = arith.addf %57, %60 : vector<1x512xf32>
    %62 = math.rsqrt %61 : vector<1x512xf32>
    %63 = arith.mulf %58, %62 : vector<1x512xf32>
    %64 = arith.mulf %55, %63 : vector<1x512xf32>
    %65 = arith.subf %59, %64 : vector<1x512xf32>
    %66 = arith.mulf %54, %63 : vector<1x512xf32>
    %67 = vector.broadcast %66 : vector<1x512xf32> to vector<256x512xf32>
    %68 = arith.mulf %36, %67 : vector<256x512xf32>
    %69 = vector.broadcast %65 : vector<1x512xf32> to vector<256x512xf32>
    %70 = arith.addf %68, %69 : vector<256x512xf32>
    %cst_20 = arith.constant 0.000000e+00 : f32
    %71 = vector.broadcast %cst_20 : f32 to vector<256x512xf32>
    %72 = arith.maximumf %70, %71 : vector<256x512xf32>
    %73 = arith.truncf %72 : vector<256x512xf32> to vector<256x512xbf16>
    %c0_21 = arith.constant 0 : index
    %c0_22 = arith.constant 0 : index
    %74 = vector.load %arg3[%c0_21, %c0_22] : memref<512x512xbf16, #tpu.memory_space<vmem>>, vector<512x512xbf16>
    %cst_23 = arith.constant dense<0.000000e+00> : vector<256x512xf32>
    %75 = tpu.matmul %73, %74, %cst_23 {dimension_numbers = #tpu.dot_dimension_numbers<[1], [0], [0], [1], [0, 0, 1, 1], [], []>} : vector<256x512xbf16>, vector<512x512xbf16>, vector<256x512xf32> -> vector<256x512xf32>
    %76 = vector.extract_strided_slice %75 {offsets = [0, 0], sizes = [1, 512], strides = [1, 1]} : vector<256x512xf32> to vector<1x512xf32>
    %77 = vector.broadcast %76 : vector<1x512xf32> to vector<256x512xf32>
    %78 = arith.subf %75, %77 : vector<256x512xf32>
    %cst_24 = arith.constant dense<0.000000e+00> : vector<512xf32>
    %79 = vector.multi_reduction <add>, %78, %cst_24 [0] : vector<256x512xf32> to vector<512xf32>
    %80 = vector.shape_cast %79 : vector<512xf32> to vector<1x512xf32>
    %cst_25 = arith.constant 3.906250e-03 : f32
    %81 = vector.broadcast %cst_25 : f32 to vector<1x512xf32>
    %82 = arith.mulf %80, %81 : vector<1x512xf32>
    %83 = arith.mulf %78, %78 : vector<256x512xf32>
    %cst_26 = arith.constant dense<0.000000e+00> : vector<512xf32>
    %84 = vector.multi_reduction <add>, %83, %cst_26 [0] : vector<256x512xf32> to vector<512xf32>
    %85 = vector.shape_cast %84 : vector<512xf32> to vector<1x512xf32>
    %cst_27 = arith.constant 3.906250e-03 : f32
    %86 = vector.broadcast %cst_27 : f32 to vector<1x512xf32>
    %87 = arith.mulf %85, %86 : vector<1x512xf32>
    %88 = arith.mulf %82, %82 : vector<1x512xf32>
    %89 = arith.subf %87, %88 : vector<1x512xf32>
    %cst_28 = arith.constant 0.000000e+00 : f32
    %90 = vector.broadcast %cst_28 : f32 to vector<1x512xf32>
    %91 = arith.maximumf %89, %90 : vector<1x512xf32>
    %92 = arith.addf %76, %82 : vector<1x512xf32>
    %93 = vector.extract_strided_slice %1 {offsets = [5, 0], sizes = [1, 512], strides = [1, 1]} : vector<16x512xf32> to vector<1x512xf32>
    %94 = vector.extract_strided_slice %1 {offsets = [6, 0], sizes = [1, 512], strides = [1, 1]} : vector<16x512xf32> to vector<1x512xf32>
    %cst_29 = arith.constant 9.99999974E-6 : f32
    %95 = vector.broadcast %cst_29 : f32 to vector<1x512xf32>
    %96 = arith.addf %91, %95 : vector<1x512xf32>
    %97 = math.rsqrt %96 : vector<1x512xf32>
    %98 = arith.mulf %93, %97 : vector<1x512xf32>
    %99 = arith.mulf %92, %98 : vector<1x512xf32>
    %100 = arith.subf %94, %99 : vector<1x512xf32>
    %101 = vector.extract_strided_slice %1 {offsets = [6, 0], sizes = [1, 512], strides = [1, 1]} : vector<16x512xf32> to vector<1x512xf32>
    %102 = arith.mulf %98, %98 : vector<1x512xf32>
    %103 = arith.mulf %102, %91 : vector<1x512xf32>
    %104 = vector.extract_strided_slice %1 {offsets = [7, 0], sizes = [1, 512], strides = [1, 1]} : vector<16x512xf32> to vector<1x512xf32>
    %105 = vector.extract_strided_slice %1 {offsets = [8, 0], sizes = [1, 512], strides = [1, 1]} : vector<16x512xf32> to vector<1x512xf32>
    %cst_30 = arith.constant 9.99999974E-6 : f32
    %106 = vector.broadcast %cst_30 : f32 to vector<1x512xf32>
    %107 = arith.addf %103, %106 : vector<1x512xf32>
    %108 = math.rsqrt %107 : vector<1x512xf32>
    %109 = arith.mulf %104, %108 : vector<1x512xf32>
    %110 = arith.mulf %101, %109 : vector<1x512xf32>
    %111 = arith.subf %105, %110 : vector<1x512xf32>
    %112 = arith.mulf %98, %109 : vector<1x512xf32>
    %113 = arith.mulf %100, %109 : vector<1x512xf32>
    %114 = arith.addf %113, %111 : vector<1x512xf32>
    %115 = vector.extract_strided_slice %1 {offsets = [9, 0], sizes = [1, 512], strides = [1, 1]} : vector<16x512xf32> to vector<1x512xf32>
    %116 = vector.extract_strided_slice %1 {offsets = [8, 0], sizes = [1, 512], strides = [1, 1]} : vector<16x512xf32> to vector<1x512xf32>
    %117 = arith.mulf %115, %116 : vector<1x512xf32>
    %118 = arith.mulf %115, %112 : vector<1x512xf32>
    %119 = arith.mulf %115, %112 : vector<1x512xf32>
    %120 = arith.mulf %118, %119 : vector<1x512xf32>
    %121 = arith.mulf %120, %91 : vector<1x512xf32>
    %122 = vector.extract_strided_slice %1 {offsets = [10, 0], sizes = [1, 512], strides = [1, 1]} : vector<16x512xf32> to vector<1x512xf32>
    %123 = vector.extract_strided_slice %1 {offsets = [11, 0], sizes = [1, 512], strides = [1, 1]} : vector<16x512xf32> to vector<1x512xf32>
    %cst_31 = arith.constant 9.99999974E-6 : f32
    %124 = vector.broadcast %cst_31 : f32 to vector<1x512xf32>
    %125 = arith.addf %121, %124 : vector<1x512xf32>
    %126 = math.rsqrt %125 : vector<1x512xf32>
    %127 = arith.mulf %122, %126 : vector<1x512xf32>
    %128 = arith.mulf %117, %127 : vector<1x512xf32>
    %129 = arith.subf %123, %128 : vector<1x512xf32>
    %130 = arith.mulf %112, %115 : vector<1x512xf32>
    %131 = arith.mulf %130, %127 : vector<1x512xf32>
    %132 = vector.broadcast %131 : vector<1x512xf32> to vector<256x512xf32>
    %133 = arith.mulf %75, %132 : vector<256x512xf32>
    %134 = arith.mulf %114, %115 : vector<1x512xf32>
    %135 = arith.mulf %134, %127 : vector<1x512xf32>
    %136 = arith.addf %135, %129 : vector<1x512xf32>
    %137 = vector.broadcast %136 : vector<1x512xf32> to vector<256x512xf32>
    %138 = arith.addf %133, %137 : vector<256x512xf32>
    %cst_32 = arith.constant 0.000000e+00 : f32
    %139 = vector.broadcast %cst_32 : f32 to vector<256x512xf32>
    %140 = arith.maximumf %138, %139 : vector<256x512xf32>
    %141 = arith.truncf %140 : vector<256x512xf32> to vector<256x512xbf16>
    %c0_33 = arith.constant 0 : index
    %c0_34 = arith.constant 0 : index
    %142 = vector.load %arg4[%c0_33, %c0_34] : memref<512x512xbf16, #tpu.memory_space<vmem>>, vector<512x512xbf16>
    %cst_35 = arith.constant dense<0.000000e+00> : vector<256x512xf32>
    %143 = tpu.matmul %141, %142, %cst_35 {dimension_numbers = #tpu.dot_dimension_numbers<[1], [0], [0], [1], [0, 0, 1, 1], [], []>} : vector<256x512xbf16>, vector<512x512xbf16>, vector<256x512xf32> -> vector<256x512xf32>
    %144 = vector.extract_strided_slice %143 {offsets = [0, 0], sizes = [1, 512], strides = [1, 1]} : vector<256x512xf32> to vector<1x512xf32>
    %145 = vector.broadcast %144 : vector<1x512xf32> to vector<256x512xf32>
    %146 = arith.subf %143, %145 : vector<256x512xf32>
    %cst_36 = arith.constant dense<0.000000e+00> : vector<512xf32>
    %147 = vector.multi_reduction <add>, %146, %cst_36 [0] : vector<256x512xf32> to vector<512xf32>
    %148 = vector.shape_cast %147 : vector<512xf32> to vector<1x512xf32>
    %cst_37 = arith.constant 3.906250e-03 : f32
    %149 = vector.broadcast %cst_37 : f32 to vector<1x512xf32>
    %150 = arith.mulf %148, %149 : vector<1x512xf32>
    %151 = arith.mulf %146, %146 : vector<256x512xf32>
    %cst_38 = arith.constant dense<0.000000e+00> : vector<512xf32>
    %152 = vector.multi_reduction <add>, %151, %cst_38 [0] : vector<256x512xf32> to vector<512xf32>
    %153 = vector.shape_cast %152 : vector<512xf32> to vector<1x512xf32>
    %cst_39 = arith.constant 3.906250e-03 : f32
    %154 = vector.broadcast %cst_39 : f32 to vector<1x512xf32>
    %155 = arith.mulf %153, %154 : vector<1x512xf32>
    %156 = arith.mulf %150, %150 : vector<1x512xf32>
    %157 = arith.subf %155, %156 : vector<1x512xf32>
    %cst_40 = arith.constant 0.000000e+00 : f32
    %158 = vector.broadcast %cst_40 : f32 to vector<1x512xf32>
    %159 = arith.maximumf %157, %158 : vector<1x512xf32>
    %160 = arith.addf %144, %150 : vector<1x512xf32>
    %161 = vector.extract_strided_slice %1 {offsets = [12, 0], sizes = [1, 512], strides = [1, 1]} : vector<16x512xf32> to vector<1x512xf32>
    %162 = vector.extract_strided_slice %1 {offsets = [13, 0], sizes = [1, 512], strides = [1, 1]} : vector<16x512xf32> to vector<1x512xf32>
    %cst_41 = arith.constant 9.99999974E-6 : f32
    %163 = vector.broadcast %cst_41 : f32 to vector<1x512xf32>
    %164 = arith.addf %159, %163 : vector<1x512xf32>
    %165 = math.rsqrt %164 : vector<1x512xf32>
    %166 = arith.mulf %161, %165 : vector<1x512xf32>
    %167 = arith.mulf %160, %166 : vector<1x512xf32>
    %168 = arith.subf %162, %167 : vector<1x512xf32>
    %169 = vector.extract_strided_slice %1 {offsets = [13, 0], sizes = [1, 512], strides = [1, 1]} : vector<16x512xf32> to vector<1x512xf32>
    %170 = arith.mulf %166, %166 : vector<1x512xf32>
    %171 = arith.mulf %170, %159 : vector<1x512xf32>
    %172 = vector.extract_strided_slice %1 {offsets = [14, 0], sizes = [1, 512], strides = [1, 1]} : vector<16x512xf32> to vector<1x512xf32>
    %173 = vector.extract_strided_slice %1 {offsets = [15, 0], sizes = [1, 512], strides = [1, 1]} : vector<16x512xf32> to vector<1x512xf32>
    %cst_42 = arith.constant 9.99999974E-6 : f32
    %174 = vector.broadcast %cst_42 : f32 to vector<1x512xf32>
    %175 = arith.addf %171, %174 : vector<1x512xf32>
    %176 = math.rsqrt %175 : vector<1x512xf32>
    %177 = arith.mulf %172, %176 : vector<1x512xf32>
    %178 = arith.mulf %169, %177 : vector<1x512xf32>
    %179 = arith.subf %173, %178 : vector<1x512xf32>
    %180 = arith.mulf %166, %177 : vector<1x512xf32>
    %181 = vector.broadcast %180 : vector<1x512xf32> to vector<256x512xf32>
    %182 = arith.mulf %143, %181 : vector<256x512xf32>
    %183 = arith.mulf %168, %177 : vector<1x512xf32>
    %184 = arith.addf %183, %179 : vector<1x512xf32>
    %185 = vector.broadcast %184 : vector<1x512xf32> to vector<256x512xf32>
    %186 = arith.addf %182, %185 : vector<256x512xf32>
    %187 = arith.truncf %186 : vector<256x512xf32> to vector<256x512xbf16>
    %c0_43 = arith.constant 0 : index
    %c0_44 = arith.constant 0 : index
    %188 = vector.load %arg5[%c0_43, %c0_44] : memref<512x128xbf16, #tpu.memory_space<vmem>>, vector<512x128xbf16>
    %cst_45 = arith.constant dense<0.000000e+00> : vector<256x128xf32>
    %189 = tpu.matmul %187, %188, %cst_45 {dimension_numbers = #tpu.dot_dimension_numbers<[1], [0], [0], [1], [0, 0, 1, 1], [], []>} : vector<256x512xbf16>, vector<512x128xbf16>, vector<256x128xf32> -> vector<256x128xf32>
    %190 = vector.extract_strided_slice %189 {offsets = [0, 0], sizes = [1, 128], strides = [1, 1]} : vector<256x128xf32> to vector<1x128xf32>
    %191 = vector.broadcast %190 : vector<1x128xf32> to vector<256x128xf32>
    %192 = arith.subf %189, %191 : vector<256x128xf32>
    %cst_46 = arith.constant dense<0.000000e+00> : vector<128xf32>
    %193 = vector.multi_reduction <add>, %192, %cst_46 [0] : vector<256x128xf32> to vector<128xf32>
    %194 = vector.shape_cast %193 : vector<128xf32> to vector<1x128xf32>
    %cst_47 = arith.constant 3.906250e-03 : f32
    %195 = vector.broadcast %cst_47 : f32 to vector<1x128xf32>
    %196 = arith.mulf %194, %195 : vector<1x128xf32>
    %197 = arith.mulf %192, %192 : vector<256x128xf32>
    %cst_48 = arith.constant dense<0.000000e+00> : vector<128xf32>
    %198 = vector.multi_reduction <add>, %197, %cst_48 [0] : vector<256x128xf32> to vector<128xf32>
    %199 = vector.shape_cast %198 : vector<128xf32> to vector<1x128xf32>
    %cst_49 = arith.constant 3.906250e-03 : f32
    %200 = vector.broadcast %cst_49 : f32 to vector<1x128xf32>
    %201 = arith.mulf %199, %200 : vector<1x128xf32>
    %202 = arith.mulf %196, %196 : vector<1x128xf32>
    %203 = arith.subf %201, %202 : vector<1x128xf32>
    %cst_50 = arith.constant 0.000000e+00 : f32
    %204 = vector.broadcast %cst_50 : f32 to vector<1x128xf32>
    %205 = arith.maximumf %203, %204 : vector<1x128xf32>
    %206 = arith.addf %190, %196 : vector<1x128xf32>
    %207 = vector.extract_strided_slice %2 {offsets = [0, 0], sizes = [1, 128], strides = [1, 1]} : vector<8x128xf32> to vector<1x128xf32>
    %208 = vector.extract_strided_slice %2 {offsets = [1, 0], sizes = [1, 128], strides = [1, 1]} : vector<8x128xf32> to vector<1x128xf32>
    %cst_51 = arith.constant 9.99999974E-6 : f32
    %209 = vector.broadcast %cst_51 : f32 to vector<1x128xf32>
    %210 = arith.addf %205, %209 : vector<1x128xf32>
    %211 = math.rsqrt %210 : vector<1x128xf32>
    %212 = arith.mulf %207, %211 : vector<1x128xf32>
    %213 = arith.mulf %206, %212 : vector<1x128xf32>
    %214 = arith.subf %208, %213 : vector<1x128xf32>
    %215 = vector.broadcast %212 : vector<1x128xf32> to vector<256x128xf32>
    %216 = arith.mulf %189, %215 : vector<256x128xf32>
    %217 = vector.broadcast %214 : vector<1x128xf32> to vector<256x128xf32>
    %218 = arith.addf %216, %217 : vector<256x128xf32>
    %219 = arith.addf %218, %0 : vector<256x128xf32>
    %cst_52 = arith.constant 0.000000e+00 : f32
    %220 = vector.broadcast %cst_52 : f32 to vector<256x128xf32>
    %221 = arith.maximumf %219, %220 : vector<256x128xf32>
    %222 = arith.truncf %221 : vector<256x128xf32> to vector<256x128xbf16>
    %c0_53 = arith.constant 0 : index
    %c0_54 = arith.constant 0 : index
    %223 = vector.load %arg6[%c0_53, %c0_54] : memref<128x128xbf16, #tpu.memory_space<vmem>>, vector<128x128xbf16>
    %cst_55 = arith.constant dense<0.000000e+00> : vector<256x128xf32>
    %224 = tpu.matmul %222, %223, %cst_55 {dimension_numbers = #tpu.dot_dimension_numbers<[1], [0], [0], [1], [0, 0, 1, 1], [], []>} : vector<256x128xbf16>, vector<128x128xbf16>, vector<256x128xf32> -> vector<256x128xf32>
    %225 = vector.extract_strided_slice %224 {offsets = [0, 0], sizes = [1, 128], strides = [1, 1]} : vector<256x128xf32> to vector<1x128xf32>
    %226 = vector.broadcast %225 : vector<1x128xf32> to vector<256x128xf32>
    %227 = arith.subf %224, %226 : vector<256x128xf32>
    %cst_56 = arith.constant dense<0.000000e+00> : vector<128xf32>
    %228 = vector.multi_reduction <add>, %227, %cst_56 [0] : vector<256x128xf32> to vector<128xf32>
    %229 = vector.shape_cast %228 : vector<128xf32> to vector<1x128xf32>
    %cst_57 = arith.constant 3.906250e-03 : f32
    %230 = vector.broadcast %cst_57 : f32 to vector<1x128xf32>
    %231 = arith.mulf %229, %230 : vector<1x128xf32>
    %232 = arith.mulf %227, %227 : vector<256x128xf32>
    %cst_58 = arith.constant dense<0.000000e+00> : vector<128xf32>
    %233 = vector.multi_reduction <add>, %232, %cst_58 [0] : vector<256x128xf32> to vector<128xf32>
    %234 = vector.shape_cast %233 : vector<128xf32> to vector<1x128xf32>
    %cst_59 = arith.constant 3.906250e-03 : f32
    %235 = vector.broadcast %cst_59 : f32 to vector<1x128xf32>
    %236 = arith.mulf %234, %235 : vector<1x128xf32>
    %237 = arith.mulf %231, %231 : vector<1x128xf32>
    %238 = arith.subf %236, %237 : vector<1x128xf32>
    %cst_60 = arith.constant 0.000000e+00 : f32
    %239 = vector.broadcast %cst_60 : f32 to vector<1x128xf32>
    %240 = arith.maximumf %238, %239 : vector<1x128xf32>
    %241 = arith.addf %225, %231 : vector<1x128xf32>
    %242 = vector.extract_strided_slice %2 {offsets = [2, 0], sizes = [1, 128], strides = [1, 1]} : vector<8x128xf32> to vector<1x128xf32>
    %243 = vector.extract_strided_slice %2 {offsets = [3, 0], sizes = [1, 128], strides = [1, 1]} : vector<8x128xf32> to vector<1x128xf32>
    %cst_61 = arith.constant 9.99999974E-6 : f32
    %244 = vector.broadcast %cst_61 : f32 to vector<1x128xf32>
    %245 = arith.addf %240, %244 : vector<1x128xf32>
    %246 = math.rsqrt %245 : vector<1x128xf32>
    %247 = arith.mulf %242, %246 : vector<1x128xf32>
    %248 = arith.mulf %241, %247 : vector<1x128xf32>
    %249 = arith.subf %243, %248 : vector<1x128xf32>
    %250 = vector.broadcast %247 : vector<1x128xf32> to vector<256x128xf32>
    %251 = arith.mulf %224, %250 : vector<256x128xf32>
    %252 = vector.broadcast %249 : vector<1x128xf32> to vector<256x128xf32>
    %253 = arith.addf %251, %252 : vector<256x128xf32>
    %cst_62 = arith.constant 0.000000e+00 : f32
    %254 = vector.broadcast %cst_62 : f32 to vector<256x128xf32>
    %255 = arith.maximumf %253, %254 : vector<256x128xf32>
    %256 = arith.truncf %255 : vector<256x128xf32> to vector<256x128xbf16>
    %c0_63 = arith.constant 0 : index
    %c0_64 = arith.constant 0 : index
    %257 = vector.load %arg7[%c0_63, %c0_64] : memref<128x2xbf16, #tpu.memory_space<vmem>>, vector<128x2xbf16>
    %cst_65 = arith.constant dense<0.000000e+00> : vector<256x2xf32>
    %258 = tpu.matmul %256, %257, %cst_65 {dimension_numbers = #tpu.dot_dimension_numbers<[1], [0], [0], [1], [0, 0, 1, 1], [], []>} : vector<256x128xbf16>, vector<128x2xbf16>, vector<256x2xf32> -> vector<256x2xf32>
    %c0_66 = arith.constant 0 : index
    %c0_67 = arith.constant 0 : index
    %259 = vector.load %arg10[%c0_66, %c0_67] : memref<1x2xf32, #tpu.memory_space<vmem>>, vector<1x2xf32>
    %260 = vector.broadcast %259 : vector<1x2xf32> to vector<256x2xf32>
    %261 = arith.addf %258, %260 : vector<256x2xf32>
    %c0_68 = arith.constant 0 : index
    %c0_69 = arith.constant 0 : index
    %262 = vector.load %arg11[%c0_68, %c0_69] : memref<256x2xf32, #tpu.memory_space<vmem>>, vector<256x2xf32>
    tpu.vector_store %arg11[%c0_68, %c0_69], %261 {strides = array<i32>} : memref<256x2xf32, #tpu.memory_space<vmem>>, vector<256x2xf32>,
    return
  }
  func.func @transform_0(%arg0: i32) -> (i32, i32) {
    %c0_i32 = arith.constant 0 : i32
    %c0_i32_0 = arith.constant 0 : i32
    %c0_i32_1 = arith.constant 0 : i32
    return %c0_i32, %c0_i32_0 : i32, i32
  }
  func.func @transform_1(%arg0: i32) -> (i32, i32) {
    %c0_i32 = arith.constant 0 : i32
    %c0_i32_0 = arith.constant 0 : i32
    %c0_i32_1 = arith.constant 0 : i32
    return %c0_i32, %c0_i32_0 : i32, i32
  }
  func.func @transform_2(%arg0: i32) -> (i32, i32) {
    %c0_i32 = arith.constant 0 : i32
    %c0_i32_0 = arith.constant 0 : i32
    %c0_i32_1 = arith.constant 0 : i32
    return %c0_i32, %c0_i32_0 : i32, i32
  }
  func.func @transform_3(%arg0: i32) -> (i32, i32) {
    %c0_i32 = arith.constant 0 : i32
    %c0_i32_0 = arith.constant 0 : i32
    %c0_i32_1 = arith.constant 0 : i32
    return %c0_i32, %c0_i32_0 : i32, i32
  }
  func.func @transform_4(%arg0: i32) -> (i32, i32) {
    %c0_i32 = arith.constant 0 : i32
    %c0_i32_0 = arith.constant 0 : i32
    %c0_i32_1 = arith.constant 0 : i32
    return %c0_i32, %c0_i32_0 : i32, i32
  }
  func.func @transform_5(%arg0: i32) -> (i32, i32) {
    %c0_i32 = arith.constant 0 : i32
    %c0_i32_0 = arith.constant 0 : i32
    %c0_i32_1 = arith.constant 0 : i32
    return %c0_i32, %c0_i32_0 : i32, i32
  }
  func.func @transform_6(%arg0: i32) -> (i32, i32) {
    %c0_i32 = arith.constant 0 : i32
    %c0_i32_0 = arith.constant 0 : i32
    %c0_i32_1 = arith.constant 0 : i32
    return %c0_i32, %c0_i32_0 : i32, i32
  }
  func.func @transform_7(%arg0: i32) -> (i32, i32) {
    %c0_i32 = arith.constant 0 : i32
    %c0_i32_0 = arith.constant 0 : i32
    %c0_i32_1 = arith.constant 0 : i32
    return %c0_i32, %c0_i32_0 : i32, i32
  }
  func.func @transform_8(%arg0: i32) -> (i32, i32) {
    %c0_i32 = arith.constant 0 : i32
    %c0_i32_0 = arith.constant 0 : i32
    %c0_i32_1 = arith.constant 0 : i32
    return %c0_i32, %c0_i32_0 : i32, i32
  }
  func.func @transform_9(%arg0: i32) -> (i32, i32) {
    %c0_i32 = arith.constant 0 : i32
    %c0_i32_0 = arith.constant 0 : i32
    %c0_i32_1 = arith.constant 0 : i32
    return %c0_i32, %c0_i32_0 : i32, i32
  }
  func.func @transform_10(%arg0: i32) -> (i32, i32) {
    %c0_i32 = arith.constant 0 : i32
    %c0_i32_0 = arith.constant 0 : i32
    %c0_i32_1 = arith.constant 0 : i32
    return %c0_i32, %c0_i32_0 : i32, i32
  }
}

</mosaic_0001>

<llo_original>
// kernel: forward.1
$region0: #{forward.1}
  #allocation0 [shape = 'u32[]', space=smem, size = 0x4, offset = 0x4, fixed_abs, tag = 'smem constant byte address 0x4 - core index']
  #allocation1 [shape = 'u32[144,128]{1,0:T(1,128)}', space=vmem, size = 0x12000, scoped, tag = 'internal scratch']
  %s0 = inlined_call_operand.hbm [shape: f32[256,128], index: 0, kind: input, shape index: {}]
  %s1 = inlined_call_operand.hbm [shape: bf16[128,512], index: 1, kind: input, shape index: {}]
  %s2 = inlined_call_operand.hbm [shape: bf16[512,512], index: 2, kind: input, shape index: {}]
  %s3 = inlined_call_operand.hbm [shape: bf16[512,512], index: 3, kind: input, shape index: {}]
  %s4 = inlined_call_operand.hbm [shape: bf16[512,128], index: 4, kind: input, shape index: {}]
  %s5 = inlined_call_operand.vmem [shape: bf16[128,128], index: 5, kind: input, shape index: {}]
  %s6 = inlined_call_operand.vmem [shape: bf16[128,2], index: 6, kind: input, shape index: {}]
  %s7 = inlined_call_operand.hbm [shape: f32[16,512], index: 7, kind: input, shape index: {}]
  %s8 = inlined_call_operand.vmem [shape: f32[8,128], index: 8, kind: input, shape index: {}]
  %s9 = inlined_call_operand.vmem [shape: f32[1,2], index: 9, kind: input, shape index: {}]
  %s10 = inlined_call_operand.vmem [shape: f32[256,2], index: 10, kind: output, shape index: {}]
  %s11 = sld [smem:[#allocation0]]
  $region74: #{forward.1} parent=0
    _
  %s13 = ssub.s32 1, %s11
  %s14 = scalar_select 0, %s13, %s11
  $region1: #{forward.1} parent=0
    #allocation2 [shape = 'u8[131072]{0}', space=vmem, size = 0x20000, scoped, tag = 'input window, operand 0, single buffered']
    #allocation3 [shape = 's32[1]{0}', space=sflag, size = 0x4, scoped, tag = 'scoped memory for forward.1']
    #allocation4 [shape = 'u8[131072]{0}', space=vmem, size = 0x20000, scoped, tag = 'input window, operand 1, single buffered']
    #allocation5 [shape = 's32[1]{0}', space=sflag, size = 0x4, scoped, tag = 'scoped memory for forward.1']
    #allocation6 [shape = 'u8[524288]{0}', space=vmem, size = 0x80000, scoped, tag = 'input window, operand 2, single buffered']
    #allocation7 [shape = 'u8[524288]{0}', space=vmem, size = 0x80000, scoped, tag = 'input window, operand 3, single buffered']
    #allocation8 [shape = 's32[1]{0}', space=sflag, size = 0x4, scoped, tag = 'scoped memory for forward.1']
    #allocation9 [shape = 'u8[131072]{0}', space=vmem, size = 0x20000, scoped, tag = 'input window, operand 4, single buffered']
    #allocation10 [shape = 'u8[32768]{0}', space=vmem, size = 0x8000, scoped, tag = 'input window, operand 7, single buffered']
    #allocation11 [shape = 's32[1]{0}', space=sflag, size = 0x4, scoped, tag = 'scoped memory for forward.1']
    %15 = vsyncpa [#allocation3], 0
    %16 = vsyncpa [#allocation5], 0
    %17 = vsyncpa [#allocation8], 0
    %18 = vsyncpa [#allocation11], 0
    // Predicated region
    $region2: #{forward.1} parent=1 // pred_check
      _
    $region3: #{forward.1} parent=1 // pred_check_branch
      %20 = sbr.rel (0) target = $region5
    $region4: #{forward.1} parent=1 // pred_region
      %s22 = ssub.s32 4096, 4096
      %23 = vsyncadd [#allocation3], %s22
      %s24 = sshll.u32 [#allocation2], 4
      %s25 = int_to_ptr.vmem [resolvable:$true] %s24
      %30 = dma.hbm_to_vmem [thread:$0]  %s0, 4096, %s25, [#allocation3], 128, 128, 8
    $region5: #{forward.1} parent=1 // pred_fallthru
      _
    // Predicated region
    $region6: #{forward.1} parent=1 // pred_check
      _
    $region7: #{forward.1} parent=1 // pred_check_branch
      %32 = sbr.rel (0) target = $region9
    $region8: #{forward.1} parent=1 // pred_region
      %s34 = ssub.s32 4096, 4096
      %35 = vsyncadd [#allocation5], %s34
      %s36 = sshll.u32 [#allocation4], 4
      %s37 = int_to_ptr.vmem [resolvable:$true] %s36
      %42 = dma.hbm_to_vmem [thread:$0]  %s1, 4096, %s37, [#allocation5], 256, 256, 16
    $region9: #{forward.1} parent=1 // pred_fallthru
      _
    // Predicated region
    $region10: #{forward.1} parent=1 // pred_check
      _
    $region11: #{forward.1} parent=1 // pred_check_branch
      %44 = sbr.rel (0) target = $region13
    $region12: #{forward.1} parent=1 // pred_region
      %s46 = ssub.s32 16384, 16384
      %47 = vsyncadd [#allocation5], %s46
      %s48 = sshll.u32 [#allocation6], 4
      %s49 = int_to_ptr.vmem [resolvable:$true] %s48
      %54 = dma.hbm_to_vmem [thread:$0]  %s2, 16384, %s49, [#allocation5], 256, 256, 16
    $region13: #{forward.1} parent=1 // pred_fallthru
      _
    // Predicated region
    $region14: #{forward.1} parent=1 // pred_check
      _
    $region15: #{forward.1} parent=1 // pred_check_branch
      %56 = sbr.rel (0) target = $region17
    $region16: #{forward.1} parent=1 // pred_region
      %s58 = ssub.s32 16384, 16384
      %59 = vsyncadd [#allocation8], %s58
      %s60 = sshll.u32 [#allocation7], 4
      %s61 = int_to_ptr.vmem [resolvable:$true] %s60
      %66 = dma.hbm_to_vmem [thread:$0]  %s3, 16384, %s61, [#allocation8], 256, 256, 16
    $region17: #{forward.1} parent=1 // pred_fallthru
      _
    // Predicated region
    $region18: #{forward.1} parent=1 // pred_check
      _
    $region19: #{forward.1} parent=1 // pred_check_branch
      %68 = sbr.rel (0) target = $region21
    $region20: #{forward.1} parent=1 // pred_region
      %s70 = ssub.s32 4096, 4096
      %71 = vsyncadd [#allocation8], %s70
      %s72 = sshll.u32 [#allocation9], 4
      %s73 = int_to_ptr.vmem [resolvable:$true] %s72
      %78 = dma.hbm_to_vmem [thread:$0]  %s4, 4096, %s73, [#allocation8], 64, 64, 4
    $region21: #{forward.1} parent=1 // pred_fallthru
      _
    // Predicated region
    $region22: #{forward.1} parent=1 // pred_check
      _
    $region23: #{forward.1} parent=1 // pred_check_branch
      %80 = sbr.rel (0) target = $region25
    $region24: #{forward.1} parent=1 // pred_region
      _
    $region25: #{forward.1} parent=1 // pred_fallthru
      _
    // Predicated region
    $region26: #{forward.1} parent=1 // pred_check
      _
    $region27: #{forward.1} parent=1 // pred_check_branch
      %82 = sbr.rel (0) target = $region29
    $region28: #{forward.1} parent=1 // pred_region
      _
    $region29: #{forward.1} parent=1 // pred_fallthru
      _
    // Predicated region
    $region30: #{forward.1} parent=1 // pred_check
      _
    $region31: #{forward.1} parent=1 // pred_check_branch
      %84 = sbr.rel (0) target = $region33
    $region32: #{forward.1} parent=1 // pred_region
      %s86 = ssub.s32 1024, 1024
      %87 = vsyncadd [#allocation11], %s86
      %s88 = sshll.u32 [#allocation10], 4
      %s89 = int_to_ptr.vmem [resolvable:$true] %s88
      %94 = dma.hbm_to_vmem [thread:$0]  %s7, 1024, %s89, [#allocation11], 512, 512, 32
    $region33: #{forward.1} parent=1 // pred_fallthru
      _
    // Predicated region
    $region34: #{forward.1} parent=1 // pred_check
      _
    $region35: #{forward.1} parent=1 // pred_check_branch
      %96 = sbr.rel (0) target = $region37
    $region36: #{forward.1} parent=1 // pred_region
      _
    $region37: #{forward.1} parent=1 // pred_fallthru
      _
    // Predicated region
    $region38: #{forward.1} parent=1 // pred_check
      _
    $region39: #{forward.1} parent=1 // pred_check_branch
      %98 = sbr.rel (0) target = $region41
    $region40: #{forward.1} parent=1 // pred_region
      _
    $region41: #{forward.1} parent=1 // pred_fallthru
      _
    // Predicated region
    $region42: #{forward.1} parent=1 // pred_check
      _
    $region43: #{forward.1} parent=1 // pred_check_branch
      %100 = sbr.rel (0) target = $region45
    $region44: #{forward.1} parent=1 // pred_region
      %101 = dma.done [#allocation3], 4096
    $region45: #{forward.1} parent=1 // pred_fallthru
      _
    // Predicated region
    $region46: #{forward.1} parent=1 // pred_check
      _
    $region47: #{forward.1} parent=1 // pred_check_branch
      %103 = sbr.rel (0) target = $region49
    $region48: #{forward.1} parent=1 // pred_region
      %104 = dma.done [#allocation5], 4096
    $region49: #{forward.1} parent=1 // pred_fallthru
      _
    // Predicated region
    $region50: #{forward.1} parent=1 // pred_check
      _
    $region51: #{forward.1} parent=1 // pred_check_branch
      %106 = sbr.rel (0) target = $region53
    $region52: #{forward.1} parent=1 // pred_region
      %107 = dma.done [#allocation5], 16384
    $region53: #{forward.1} parent=1 // pred_fallthru
      _
    // Predicated region
    $region54: #{forward.1} parent=1 // pred_check
      _
    $region55: #{forward.1} parent=1 // pred_check_branch
      %109 = sbr.rel (0) target = $region57
    $region56: #{forward.1} parent=1 // pred_region
      %110 = dma.done [#allocation8], 16384
    $region57: #{forward.1} parent=1 // pred_fallthru
      _
    // Predicated region
    $region58: #{forward.1} parent=1 // pred_check
      _
    $region59: #{forward.1} parent=1 // pred_check_branch
      %112 = sbr.rel (0) target = $region61
    $region60: #{forward.1} parent=1 // pred_region
      %113 = dma.done [#allocation8], 4096
    $region61: #{forward.1} parent=1 // pred_fallthru
      _
    // Predicated region
    $region62: #{forward.1} parent=1 // pred_check
      _
    $region63: #{forward.1} parent=1 // pred_check_branch
      %115 = sbr.rel (0) target = $region65
    $region64: #{forward.1} parent=1 // pred_region
      %116 = dma.done [#allocation11], 1024
    $region65: #{forward.1} parent=1 // pred_fallthru
      _
    %v118 = vld [vmem:[#allocation2] sm:$0xff]
    %v119 = vld [vmem:[#allocation2 + $0x8] sm:$0xff]
    %v120 = vld [vmem:[#allocation2 + $0x10] sm:$0xff]
    %v121 = vld [vmem:[#allocation2 + $0x18] sm:$0xff]
    %v122 = vld [vmem:[#allocation2 + $0x20] sm:$0xff]
    %v123 = vld [vmem:[#allocation2 + $0x28] sm:$0xff]
    %v124 = vld [vmem:[#allocation2 + $0x30] sm:$0xff]
    %v125 = vld [vmem:[#allocation2 + $0x38] sm:$0xff]
    %v126 = vld [vmem:[#allocation2 + $0x40] sm:$0xff]
    %v127 = vld [vmem:[#allocation2 + $0x48] sm:$0xff]
    %v128 = vld [vmem:[#allocation2 + $0x50] sm:$0xff]
    %v129 = vld [vmem:[#allocation2 + $0x58] sm:$0xff]
    %v130 = vld [vmem:[#allocation2 + $0x60] sm:$0xff]
    %v131 = vld [vmem:[#allocation2 + $0x68] sm:$0xff]
    %v132 = vld [vmem:[#allocation2 + $0x70] sm:$0xff]
    %v133 = vld [vmem:[#allocation2 + $0x78] sm:$0xff]
    %v134 = vld [vmem:[#allocation2 + $0x80] sm:$0xff]
    %v135 = vld [vmem:[#allocation2 + $0x88] sm:$0xff]
    %v136 = vld [vmem:[#allocation2 + $0x90] sm:$0xff]
    %v137 = vld [vmem:[#allocation2 + $0x98] sm:$0xff]
    %v138 = vld [vmem:[#allocation2 + $0xa0] sm:$0xff]
    %v139 = vld [vmem:[#allocation2 + $0xa8] sm:$0xff]
    %v140 = vld [vmem:[#allocation2 + $0xb0] sm:$0xff]
    %v141 = vld [vmem:[#allocation2 + $0xb8] sm:$0xff]
    %v142 = vld [vmem:[#allocation2 + $0xc0] sm:$0xff]
    %v143 = vld [vmem:[#allocation2 + $0xc8] sm:$0xff]
    %v144 = vld [vmem:[#allocation2 + $0xd0] sm:$0xff]
    %v145 = vld [vmem:[#allocation2 + $0xd8] sm:$0xff]
    %v146 = vld [vmem:[#allocation2 + $0xe0] sm:$0xff]
    %v147 = vld [vmem:[#allocation2 + $0xe8] sm:$0xff]
    %v148 = vld [vmem:[#allocation2 + $0xf0] sm:$0xff]
    %v149 = vld [vmem:[#allocation2 + $0xf8] sm:$0xff]
    %v150 = vld [vmem:[#allocation10] sm:$0xff]
    %v151 = vld [vmem:[#allocation10 + $0x8] sm:$0xff]
    %v152 = vld [vmem:[#allocation10 + $0x10] sm:$0xff]
    %v153 = vld [vmem:[#allocation10 + $0x18] sm:$0xff]
    %v154 = vld [vmem:[#allocation10 + $0x20] sm:$0xff]
    %v155 = vld [vmem:[#allocation10 + $0x28] sm:$0xff]
    %v156 = vld [vmem:[#allocation10 + $0x30] sm:$0xff]
    %v157 = vld [vmem:[#allocation10 + $0x38] sm:$0xff]
    %v158 = vld [vmem:[%s8] sm:$0xff]
    %v159 = vpack.c.bf16 %v119, %v118
    %v160 = vpack.c.bf16 %v121, %v120
    %v161 = vpack.c.bf16 %v123, %v122
    %v162 = vpack.c.bf16 %v125, %v124
    %v163 = vpack.c.bf16 %v127, %v126
    %v164 = vpack.c.bf16 %v129, %v128
    %v165 = vpack.c.bf16 %v131, %v130
    %v166 = vpack.c.bf16 %v133, %v132
    %v167 = vpack.c.bf16 %v135, %v134
    %v168 = vpack.c.bf16 %v137, %v136
    %v169 = vpack.c.bf16 %v139, %v138
    %v170 = vpack.c.bf16 %v141, %v140
    %v171 = vpack.c.bf16 %v143, %v142
    %v172 = vpack.c.bf16 %v145, %v144
    %v173 = vpack.c.bf16 %v147, %v146
    %v174 = vpack.c.bf16 %v149, %v148
    %v175 = vld [vmem:[#allocation4] sm:$0xff]
    %v176 = vld [vmem:[#allocation4 + $0x8] sm:$0xff]
    %v177 = vld [vmem:[#allocation4 + $0x10] sm:$0xff]
    %v178 = vld [vmem:[#allocation4 + $0x18] sm:$0xff]
    %v179 = vld [vmem:[#allocation4 + $0x20] sm:$0xff]
    %v180 = vld [vmem:[#allocation4 + $0x28] sm:$0xff]
    %v181 = vld [vmem:[#allocation4 + $0x30] sm:$0xff]
    %v182 = vld [vmem:[#allocation4 + $0x38] sm:$0xff]
    %v183 = vld [vmem:[#allocation4 + $0x40] sm:$0xff]
    %v184 = vld [vmem:[#allocation4 + $0x48] sm:$0xff]
    %v185 = vld [vmem:[#allocation4 + $0x50] sm:$0xff]
    %v186 = vld [vmem:[#allocation4 + $0x58] sm:$0xff]
    %v187 = vld [vmem:[#allocation4 + $0x60] sm:$0xff]
    %v188 = vld [vmem:[#allocation4 + $0x68] sm:$0xff]
    %v189 = vld [vmem:[#allocation4 + $0x70] sm:$0xff]
    %v190 = vld [vmem:[#allocation4 + $0x78] sm:$0xff]
    %v191 = vld [vmem:[#allocation4 + $0x80] sm:$0xff]
    %v192 = vld [vmem:[#allocation4 + $0x88] sm:$0xff]
    %v193 = vld [vmem:[#allocation4 + $0x90] sm:$0xff]
    %v194 = vld [vmem:[#allocation4 + $0x98] sm:$0xff]
    %v195 = vld [vmem:[#allocation4 + $0xa0] sm:$0xff]
    %v196 = vld [vmem:[#allocation4 + $0xa8] sm:$0xff]
    %v197 = vld [vmem:[#allocation4 + $0xb0] sm:$0xff]
    %v198 = vld [vmem:[#allocation4 + $0xb8] sm:$0xff]
    %v199 = vld [vmem:[#allocation4 + $0xc0] sm:$0xff]
    %v200 = vld [vmem:[#allocation4 + $0xc8] sm:$0xff]
    %v201 = vld [vmem:[#allocation4 + $0xd0] sm:$0xff]
    %v202 = vld [vmem:[#allocation4 + $0xd8] sm:$0xff]
    %v203 = vld [vmem:[#allocation4 + $0xe0] sm:$0xff]
    %v204 = vld [vmem:[#allocation4 + $0xe8] sm:$0xff]
    %v205 = vld [vmem:[#allocation4 + $0xf0] sm:$0xff]
    %v206 = vld [vmem:[#allocation4 + $0xf8] sm:$0xff]
    %v239 = vunpack.c.l.b16 %v175
    %v240 = vunpack.c.h.b16 %v175
    %v241 = vunpack.c.l.b16 %v176
    %v242 = vunpack.c.h.b16 %v176
    %v243 = vunpack.c.l.b16 %v177
    %v244 = vunpack.c.h.b16 %v177
    %v245 = vunpack.c.l.b16 %v178
    %v246 = vunpack.c.h.b16 %v178
    %v247 = vunpack.c.l.b16 %v179
    %v248 = vunpack.c.h.b16 %v179
    %v249 = vunpack.c.l.b16 %v180
    %v250 = vunpack.c.h.b16 %v180
    %v251 = vunpack.c.l.b16 %v181
    %v252 = vunpack.c.h.b16 %v181
    %v253 = vunpack.c.l.b16 %v182
    %v254 = vunpack.c.h.b16 %v182
    %v255 = vunpack.c.l.b16 %v183
    %v256 = vunpack.c.h.b16 %v183
    %v257 = vunpack.c.l.b16 %v184
    %v258 = vunpack.c.h.b16 %v184
    %v259 = vunpack.c.l.b16 %v185
    %v260 = vunpack.c.h.b16 %v185
    %v261 = vunpack.c.l.b16 %v186
    %v262 = vunpack.c.h.b16 %v186
    %v263 = vunpack.c.l.b16 %v187
    %v264 = vunpack.c.h.b16 %v187
    %v265 = vunpack.c.l.b16 %v188
    %v266 = vunpack.c.h.b16 %v188
    %v267 = vunpack.c.l.b16 %v189
    %v268 = vunpack.c.h.b16 %v189
    %v269 = vunpack.c.l.b16 %v190
    %v270 = vunpack.c.h.b16 %v190
    %v271 = vunpack.c.l.b16 %v191
    %v272 = vunpack.c.h.b16 %v191
    %v273 = vunpack.c.l.b16 %v192
    %v274 = vunpack.c.h.b16 %v192
    %v275 = vunpack.c.l.b16 %v193
    %v276 = vunpack.c.h.b16 %v193
    %v277 = vunpack.c.l.b16 %v194
    %v278 = vunpack.c.h.b16 %v194
    %v279 = vunpack.c.l.b16 %v195
    %v280 = vunpack.c.h.b16 %v195
    %v281 = vunpack.c.l.b16 %v196
    %v282 = vunpack.c.h.b16 %v196
    %v283 = vunpack.c.l.b16 %v197
    %v284 = vunpack.c.h.b16 %v197
    %v285 = vunpack.c.l.b16 %v198
    %v286 = vunpack.c.h.b16 %v198
    %v287 = vunpack.c.l.b16 %v199
    %v288 = vunpack.c.h.b16 %v199
    %v289 = vunpack.c.l.b16 %v200
    %v290 = vunpack.c.h.b16 %v200
    %v291 = vunpack.c.l.b16 %v201
    %v292 = vunpack.c.h.b16 %v201
    %v293 = vunpack.c.l.b16 %v202
    %v294 = vunpack.c.h.b16 %v202
    %v295 = vunpack.c.l.b16 %v203
    %v296 = vunpack.c.h.b16 %v203
    %v297 = vunpack.c.l.b16 %v204
    %v298 = vunpack.c.h.b16 %v204
    %v299 = vunpack.c.l.b16 %v205
    %v300 = vunpack.c.h.b16 %v205
    %v301 = vunpack.c.l.b16 %v206
    %v302 = vunpack.c.h.b16 %v206
    %v303 = vpack.c.b16 %v243, %v239
    %v304 = vpack.c.b16 %v244, %v240
    %v305 = vpack.c.b16 %v245, %v241
    %v306 = vpack.c.b16 %v246, %v242
    %v307 = vpack.c.b16 %v251, %v247
    %v308 = vpack.c.b16 %v252, %v248
    %v309 = vpack.c.b16 %v253, %v249
    %v310 = vpack.c.b16 %v254, %v250
    %v311 = vpack.c.b16 %v259, %v255
    %v312 = vpack.c.b16 %v260, %v256
    %v313 = vpack.c.b16 %v261, %v257
    %v314 = vpack.c.b16 %v262, %v258
    %v315 = vpack.c.b16 %v267, %v263
    %v316 = vpack.c.b16 %v268, %v264
    %v317 = vpack.c.b16 %v269, %v265
    %v318 = vpack.c.b16 %v270, %v266
    %v319 = vpack.c.b16 %v275, %v271
    %v320 = vpack.c.b16 %v276, %v272
    %v321 = vpack.c.b16 %v277, %v273
    %v322 = vpack.c.b16 %v278, %v274
    %v323 = vpack.c.b16 %v283, %v279
    %v324 = vpack.c.b16 %v284, %v280
    %v325 = vpack.c.b16 %v285, %v281
    %v326 = vpack.c.b16 %v286, %v282
    %v327 = vpack.c.b16 %v291, %v287
    %v328 = vpack.c.b16 %v292, %v288
    %v329 = vpack.c.b16 %v293, %v289
    %v330 = vpack.c.b16 %v294, %v290
    %v331 = vpack.c.b16 %v299, %v295
    %v332 = vpack.c.b16 %v300, %v296
    %v333 = vpack.c.b16 %v301, %v297
    %v334 = vpack.c.b16 %v302, %v298
    %367 = vmatprep.subr.bf16.mxu0 %v304
    %368 = vmatpush1.bf16.msra.mxu0 %v303
    %369 = vmatprep.subr.bf16.mxu0 %v308
    %370 = vmatpush1.bf16.msra.mxu0 %v307
    %371 = vmatprep.subr.bf16.mxu0 %v312
    %372 = vmatpush1.bf16.msra.mxu0 %v311
    %373 = vmatprep.subr.bf16.mxu0 %v316
    %374 = vmatpush1.bf16.msra.mxu0 %v315
    %375 = vmatprep.subr.bf16.mxu0 %v320
    %376 = vmatpush1.bf16.msra.mxu0 %v319
    %377 = vmatprep.subr.bf16.mxu0 %v324
    %378 = vmatpush1.bf16.msra.mxu0 %v323
    %379 = vmatprep.subr.bf16.mxu0 %v328
    %380 = vmatpush1.bf16.msra.mxu0 %v327
    %381 = vmatprep.subr.bf16.mxu0 %v332
    %382 = vmatpush1.bf16.msra.mxu0 %v331
    %383 = vmatprep.subr.bf16.mxu0 0
    %384 = vmatpush1.bf16.msra.mxu0 0
    %385 = vmatprep.subr.bf16.mxu0 0
    %386 = vmatpush1.bf16.msra.mxu0 0
    %387 = vmatprep.subr.bf16.mxu0 0
    %388 = vmatpush1.bf16.msra.mxu0 0
    %389 = vmatprep.subr.bf16.mxu0 0
    %390 = vmatpush1.bf16.msra.mxu0 0
    %391 = vmatprep.subr.bf16.mxu0 0
    %392 = vmatpush1.bf16.msra.mxu0 0
    %393 = vmatprep.subr.bf16.mxu0 0
    %394 = vmatpush1.bf16.msra.mxu0 0
    %395 = vmatprep.subr.bf16.mxu0 0
    %396 = vmatpush1.bf16.msra.mxu0 0
    %397 = vmatprep.subr.bf16.mxu0 0
    %398 = vmatpush1.bf16.msra.mxu0 0
    %399 = vmatprep.mubr.bf16.mxu0 0
    %400 = vmatmul.mubr.bf16.gmra.mrb[0].mxu0 %v159
    %v401 = vpop.f32.mrb[0].mxu0
    %v402 = vadd.f32 0.0, %v401
    %v403 = vpop.f32.mrb[0].mxu0
    %v404 = vadd.f32 0.0, %v403
    %v405 = vpop.f32.mrb[0].mxu0
    %v406 = vadd.f32 0.0, %v405
    %v407 = vpop.f32.mrb[0].mxu0
    %v408 = vadd.f32 0.0, %v407
    %409 = vmatprep.mubr.bf16.mxu0 0
    %410 = vmatmul.mubr.bf16.gmra.mrb[0].mxu0 %v160
    %v411 = vpop.f32.mrb[0].mxu0
    %v412 = vadd.f32 0.0, %v411
    %v413 = vpop.f32.mrb[0].mxu0
    %v414 = vadd.f32 0.0, %v413
    %v415 = vpop.f32.mrb[0].mxu0
    %v416 = vadd.f32 0.0, %v415
    %v417 = vpop.f32.mrb[0].mxu0
    %v418 = vadd.f32 0.0, %v417
    %419 = vmatprep.mubr.bf16.mxu0 0
    %420 = vmatmul.mubr.bf16.gmra.mrb[0].mxu0 %v161
    %v421 = vpop.f32.mrb[0].mxu0
    %v422 = vadd.f32 0.0, %v421
    %v423 = vpop.f32.mrb[0].mxu0
    %v424 = vadd.f32 0.0, %v423
    %v425 = vpop.f32.mrb[0].mxu0
    %v426 = vadd.f32 0.0, %v425
    %v427 = vpop.f32.mrb[0].mxu0
    %v428 = vadd.f32 0.0, %v427
    %429 = vmatprep.mubr.bf16.mxu0 0
    %430 = vmatmul.mubr.bf16.gmra.mrb[0].mxu0 %v162
    %v431 = vpop.f32.mrb[0].mxu0
    %v432 = vadd.f32 0.0, %v431
    %v433 = vpop.f32.mrb[0].mxu0
    %v434 = vadd.f32 0.0, %v433
    %v435 = vpop.f32.mrb[0].mxu0
    %v436 = vadd.f32 0.0, %v435
    %v437 = vpop.f32.mrb[0].mxu0
    %v438 = vadd.f32 0.0, %v437
    %439 = vmatprep.mubr.bf16.mxu0 0
    %440 = vmatmul.mubr.bf16.gmra.mrb[0].mxu0 %v163
    %v441 = vpop.f32.mrb[0].mxu0
    %v442 = vadd.f32 0.0, %v441
    %v443 = vpop.f32.mrb[0].mxu0
    %v444 = vadd.f32 0.0, %v443
    %v445 = vpop.f32.mrb[0].mxu0
    %v446 = vadd.f32 0.0, %v445
    %v447 = vpop.f32.mrb[0].mxu0
    %v448 = vadd.f32 0.0, %v447
    %449 = vmatprep.mubr.bf16.mxu0 0
    %450 = vmatmul.mubr.bf16.gmra.mrb[0].mxu0 %v164
    %v451 = vpop.f32.mrb[0].mxu0
    %v452 = vadd.f32 0.0, %v451
    %v453 = vpop.f32.mrb[0].mxu0
    %v454 = vadd.f32 0.0, %v453
    %v455 = vpop.f32.mrb[0].mxu0
    %v456 = vadd.f32 0.0, %v455
    %v457 = vpop.f32.mrb[0].mxu0
    %v458 = vadd.f32 0.0, %v457
    %459 = vmatprep.mubr.bf16.mxu0 0
    %460 = vmatmul.mubr.bf16.gmra.mrb[0].mxu0 %v165
    %v461 = vpop.f32.mrb[0].mxu0
    %v462 = vadd.f32 0.0, %v461
    %v463 = vpop.f32.mrb[0].mxu0
    %v464 = vadd.f32 0.0, %v463
    %v465 = vpop.f32.mrb[0].mxu0
    %v466 = vadd.f32 0.0, %v465
    %v467 = vpop.f32.mrb[0].mxu0
    %v468 = vadd.f32 0.0, %v467
    %469 = vmatprep.mubr.bf16.mxu0 0
    %470 = vmatmul.mubr.bf16.gmra.mrb[0].mxu0 %v166
    %v471 = vpop.f32.mrb[0].mxu0
    %v472 = vadd.f32 0.0, %v471
    %v473 = vpop.f32.mrb[0].mxu0
    %v474 = vadd.f32 0.0, %v473
    %v475 = vpop.f32.mrb[0].mxu0
    %v476 = vadd.f32 0.0, %v475
    %v477 = vpop.f32.mrb[0].mxu0
    %v478 = vadd.f32 0.0, %v477
    %479 = vmatprep.mubr.bf16.mxu0 0
    %480 = vmatmul.mubr.bf16.gmra.mrb[0].mxu0 %v167
    %v481 = vpop.f32.mrb[0].mxu0
    %v482 = vadd.f32 0.0, %v481
    %v483 = vpop.f32.mrb[0].mxu0
    %v484 = vadd.f32 0.0, %v483
    %v485 = vpop.f32.mrb[0].mxu0
    %v486 = vadd.f32 0.0, %v485
    %v487 = vpop.f32.mrb[0].mxu0
    %v488 = vadd.f32 0.0, %v487
    %489 = vmatprep.mubr.bf16.mxu0 0
    %490 = vmatmul.mubr.bf16.gmra.mrb[0].mxu0 %v168
    %v491 = vpop.f32.mrb[0].mxu0
    %v492 = vadd.f32 0.0, %v491
    %v493 = vpop.f32.mrb[0].mxu0
    %v494 = vadd.f32 0.0, %v493
    %v495 = vpop.f32.mrb[0].mxu0
    %v496 = vadd.f32 0.0, %v495
    %v497 = vpop.f32.mrb[0].mxu0
    %v498 = vadd.f32 0.0, %v497
    %499 = vmatprep.mubr.bf16.mxu0 0
    %500 = vmatmul.mubr.bf16.gmra.mrb[0].mxu0 %v169
    %v501 = vpop.f32.mrb[0].mxu0
    %v502 = vadd.f32 0.0, %v501
    %v503 = vpop.f32.mrb[0].mxu0
    %v504 = vadd.f32 0.0, %v503
    %v505 = vpop.f32.mrb[0].mxu0
    %v506 = vadd.f32 0.0, %v505
    %v507 = vpop.f32.mrb[0].mxu0
    %v508 = vadd.f32 0.0, %v507
    %509 = vmatprep.mubr.bf16.mxu0 0
    %510 = vmatmul.mubr.bf16.gmra.mrb[0].mxu0 %v170
    %v511 = vpop.f32.mrb[0].mxu0
    %v512 = vadd.f32 0.0, %v511
    %v513 = vpop.f32.mrb[0].mxu0
    %v514 = vadd.f32 0.0, %v513
    %v515 = vpop.f32.mrb[0].mxu0
    %v516 = vadd.f32 0.0, %v515
    %v517 = vpop.f32.mrb[0].mxu0
    %v518 = vadd.f32 0.0, %v517
    %519 = vmatprep.mubr.bf16.mxu0 0
    %520 = vmatmul.mubr.bf16.gmra.mrb[0].mxu0 %v171
    %v521 = vpop.f32.mrb[0].mxu0
    %v522 = vadd.f32 0.0, %v521
    %v523 = vpop.f32.mrb[0].mxu0
    %v524 = vadd.f32 0.0, %v523
    %v525 = vpop.f32.mrb[0].mxu0
    %v526 = vadd.f32 0.0, %v525
    %v527 = vpop.f32.mrb[0].mxu0
    %v528 = vadd.f32 0.0, %v527
    %529 = vmatprep.mubr.bf16.mxu0 0
    %530 = vmatmul.mubr.bf16.gmra.mrb[0].mxu0 %v172
    %v531 = vpop.f32.mrb[0].mxu0
    %v532 = vadd.f32 0.0, %v531
    %v533 = vpop.f32.mrb[0].mxu0
    %v534 = vadd.f32 0.0, %v533
    %v535 = vpop.f32.mrb[0].mxu0
    %v536 = vadd.f32 0.0, %v535
    %v537 = vpop.f32.mrb[0].mxu0
    %v538 = vadd.f32 0.0, %v537
    %539 = vmatprep.mubr.bf16.mxu0 0
    %540 = vmatmul.mubr.bf16.gmra.mrb[0].mxu0 %v173
    %v541 = vpop.f32.mrb[0].mxu0
    %v542 = vadd.f32 0.0, %v541
    %v543 = vpop.f32.mrb[0].mxu0
    %v544 = vadd.f32 0.0, %v543
    %v545 = vpop.f32.mrb[0].mxu0
    %v546 = vadd.f32 0.0, %v545
    %v547 = vpop.f32.mrb[0].mxu0
    %v548 = vadd.f32 0.0, %v547
    %549 = vmatprep.mubr.bf16.mxu0 0
    %550 = vmatmul.mubr.bf16.gmra.mrb[0].mxu0 %v174
    %v551 = vpop.f32.mrb[0].mxu0
    %v552 = vadd.f32 0.0, %v551
    %v553 = vpop.f32.mrb[0].mxu0
    %v554 = vadd.f32 0.0, %v553
    %v555 = vpop.f32.mrb[0].mxu0
    %v556 = vadd.f32 0.0, %v555
    %v557 = vpop.f32.mrb[0].mxu0
    %v558 = vadd.f32 0.0, %v557
    %559 = vdwg.mxu0
    %560 = vmatprep.subr.bf16.mxu0 %v306
    %561 = vmatpush1.bf16.msra.mxu0 %v305
    %562 = vmatprep.subr.bf16.mxu0 %v310
    %563 = vmatpush1.bf16.msra.mxu0 %v309
    %564 = vmatprep.subr.bf16.mxu0 %v314
    %565 = vmatpush1.bf16.msra.mxu0 %v313
    %566 = vmatprep.subr.bf16.mxu0 %v318
    %567 = vmatpush1.bf16.msra.mxu0 %v317
    %568 = vmatprep.subr.bf16.mxu0 %v322
    %569 = vmatpush1.bf16.msra.mxu0 %v321
    %570 = vmatprep.subr.bf16.mxu0 %v326
    %571 = vmatpush1.bf16.msra.mxu0 %v325
    %572 = vmatprep.subr.bf16.mxu0 %v330
    %573 = vmatpush1.bf16.msra.mxu0 %v329
    %574 = vmatprep.subr.bf16.mxu0 %v334
    %575 = vmatpush1.bf16.msra.mxu0 %v333
    %576 = vmatprep.subr.bf16.mxu0 0
    %577 = vmatpush1.bf16.msra.mxu0 0
    %578 = vmatprep.subr.bf16.mxu0 0
    %579 = vmatpush1.bf16.msra.mxu0 0
    %580 = vmatprep.subr.bf16.mxu0 0
    %581 = vmatpush1.bf16.msra.mxu0 0
    %582 = vmatprep.subr.bf16.mxu0 0
    %583 = vmatpush1.bf16.msra.mxu0 0
    %584 = vmatprep.subr.bf16.mxu0 0
    %585 = vmatpush1.bf16.msra.mxu0 0
    %586 = vmatprep.subr.bf16.mxu0 0
    %587 = vmatpush1.bf16.msra.mxu0 0
    %588 = vmatprep.subr.bf16.mxu0 0
    %589 = vmatpush1.bf16.msra.mxu0 0
    %590 = vmatprep.subr.bf16.mxu0 0
    %591 = vmatpush1.bf16.msra.mxu0 0
    %592 = vmatprep.mubr.bf16.mxu0 0
    %593 = vmatmul.mubr.bf16.gmra.mrb[0].mxu0 %v159
    %v594 = vpop.f32.mrb[0].mxu0
    %v595 = vadd.f32 0.0, %v594
    %v596 = vpop.f32.mrb[0].mxu0
    %v597 = vadd.f32 0.0, %v596
    %v598 = vpop.f32.mrb[0].mxu0
    %v599 = vadd.f32 0.0, %v598
    %v600 = vpop.f32.mrb[0].mxu0
    %v601 = vadd.f32 0.0, %v600
    %602 = vmatprep.mubr.bf16.mxu0 0
    %603 = vmatmul.mubr.bf16.gmra.mrb[0].mxu0 %v160
    %v604 = vpop.f32.mrb[0].mxu0
    %v605 = vadd.f32 0.0, %v604
    %v606 = vpop.f32.mrb[0].mxu0
    %v607 = vadd.f32 0.0, %v606
    %v608 = vpop.f32.mrb[0].mxu0
    %v609 = vadd.f32 0.0, %v608
    %v610 = vpop.f32.mrb[0].mxu0
    %v611 = vadd.f32 0.0, %v610
    %612 = vmatprep.mubr.bf16.mxu0 0
    %613 = vmatmul.mubr.bf16.gmra.mrb[0].mxu0 %v161
    %v614 = vpop.f32.mrb[0].mxu0
    %v615 = vadd.f32 0.0, %v614
    %v616 = vpop.f32.mrb[0].mxu0
    %v617 = vadd.f32 0.0, %v616
    %v618 = vpop.f32.mrb[0].mxu0
    %v619 = vadd.f32 0.0, %v618
    %v620 = vpop.f32.mrb[0].mxu0
    %v621 = vadd.f32 0.0, %v620
    %622 = vmatprep.mubr.bf16.mxu0 0
    %623 = vmatmul.mubr.bf16.gmra.mrb[0].mxu0 %v162
    %v624 = vpop.f32.mrb[0].mxu0
    %v625 = vadd.f32 0.0, %v624
    %v626 = vpop.f32.mrb[0].mxu0
    %v627 = vadd.f32 0.0, %v626
    %v628 = vpop.f32.mrb[0].mxu0
    %v629 = vadd.f32 0.0, %v628
    %v630 = vpop.f32.mrb[0].mxu0
    %v631 = vadd.f32 0.0, %v630
    %632 = vmatprep.mubr.bf16.mxu0 0
    %633 = vmatmul.mubr.bf16.gmra.mrb[0].mxu0 %v163
    %v634 = vpop.f32.mrb[0].mxu0
    %v635 = vadd.f32 0.0, %v634
    %v636 = vpop.f32.mrb[0].mxu0
    %v637 = vadd.f32 0.0, %v636
    %v638 = vpop.f32.mrb[0].mxu0
    %v639 = vadd.f32 0.0, %v638
    %v640 = vpop.f32.mrb[0].mxu0
    %v641 = vadd.f32 0.0, %v640
    %642 = vmatprep.mubr.bf16.mxu0 0
    %643 = vmatmul.mubr.bf16.gmra.mrb[0].mxu0 %v164
    %v644 = vpop.f32.mrb[0].mxu0
    %v645 = vadd.f32 0.0, %v644
    %v646 = vpop.f32.mrb[0].mxu0
    %v647 = vadd.f32 0.0, %v646
    %v648 = vpop.f32.mrb[0].mxu0
    %v649 = vadd.f32 0.0, %v648
    %v650 = vpop.f32.mrb[0].mxu0
    %v651 = vadd.f32 0.0, %v650
    %652 = vmatprep.mubr.bf16.mxu0 0
    %653 = vmatmul.mubr.bf16.gmra.mrb[0].mxu0 %v165
    %v654 = vpop.f32.mrb[0].mxu0
    %v655 = vadd.f32 0.0, %v654
    %v656 = vpop.f32.mrb[0].mxu0
    %v657 = vadd.f32 0.0, %v656
    %v658 = vpop.f32.mrb[0].mxu0
    %v659 = vadd.f32 0.0, %v658
    %v660 = vpop.f32.mrb[0].mxu0
    %v661 = vadd.f32 0.0, %v660
    %662 = vmatprep.mubr.bf16.mxu0 0
    %663 = vmatmul.mubr.bf16.gmra.mrb[0].mxu0 %v166
    %v664 = vpop.f32.mrb[0].mxu0
    %v665 = vadd.f32 0.0, %v664
    %v666 = vpop.f32.mrb[0].mxu0
    %v667 = vadd.f32 0.0, %v666
    %v668 = vpop.f32.mrb[0].mxu0
    %v669 = vadd.f32 0.0, %v668
    %v670 = vpop.f32.mrb[0].mxu0
    %v671 = vadd.f32 0.0, %v670
    %672 = vmatprep.mubr.bf16.mxu0 0
    %673 = vmatmul.mubr.bf16.gmra.mrb[0].mxu0 %v167
    %v674 = vpop.f32.mrb[0].mxu0
    %v675 = vadd.f32 0.0, %v674
    %v676 = vpop.f32.mrb[0].mxu0
    %v677 = vadd.f32 0.0, %v676
    %v678 = vpop.f32.mrb[0].mxu0
    %v679 = vadd.f32 0.0, %v678
    %v680 = vpop.f32.mrb[0].mxu0
    %v681 = vadd.f32 0.0, %v680
    %682 = vmatprep.mubr.bf16.mxu0 0
    %683 = vmatmul.mubr.bf16.gmra.mrb[0].mxu0 %v168
    %v684 = vpop.f32.mrb[0].mxu0
    %v685 = vadd.f32 0.0, %v684
    %v686 = vpop.f32.mrb[0].mxu0
    %v687 = vadd.f32 0.0, %v686
    %v688 = vpop.f32.mrb[0].mxu0
    %v689 = vadd.f32 0.0, %v688
    %v690 = vpop.f32.mrb[0].mxu0
    %v691 = vadd.f32 0.0, %v690
    %692 = vmatprep.mubr.bf16.mxu0 0
    %693 = vmatmul.mubr.bf16.gmra.mrb[0].mxu0 %v169
    %v694 = vpop.f32.mrb[0].mxu0
    %v695 = vadd.f32 0.0, %v694
    %v696 = vpop.f32.mrb[0].mxu0
    %v697 = vadd.f32 0.0, %v696
    %v698 = vpop.f32.mrb[0].mxu0
    %v699 = vadd.f32 0.0, %v698
    %v700 = vpop.f32.mrb[0].mxu0
    %v701 = vadd.f32 0.0, %v700
    %702 = vmatprep.mubr.bf16.mxu0 0
    %703 = vmatmul.mubr.bf16.gmra.mrb[0].mxu0 %v170
    %v704 = vpop.f32.mrb[0].mxu0
    %v705 = vadd.f32 0.0, %v704
    %v706 = vpop.f32.mrb[0].mxu0
    %v707 = vadd.f32 0.0, %v706
    %v708 = vpop.f32.mrb[0].mxu0
    %v709 = vadd.f32 0.0, %v708
    %v710 = vpop.f32.mrb[0].mxu0
    %v711 = vadd.f32 0.0, %v710
    %712 = vmatprep.mubr.bf16.mxu0 0
    %713 = vmatmul.mubr.bf16.gmra.mrb[0].mxu0 %v171
    %v714 = vpop.f32.mrb[0].mxu0
    %v715 = vadd.f32 0.0, %v714
    %v716 = vpop.f32.mrb[0].mxu0
    %v717 = vadd.f32 0.0, %v716
    %v718 = vpop.f32.mrb[0].mxu0
    %v719 = vadd.f32 0.0, %v718
    %v720 = vpop.f32.mrb[0].mxu0
    %v721 = vadd.f32 0.0, %v720
    %722 = vmatprep.mubr.bf16.mxu0 0
    %723 = vmatmul.mubr.bf16.gmra.mrb[0].mxu0 %v172
    %v724 = vpop.f32.mrb[0].mxu0
    %v725 = vadd.f32 0.0, %v724
    %v726 = vpop.f32.mrb[0].mxu0
    %v727 = vadd.f32 0.0, %v726
    %v728 = vpop.f32.mrb[0].mxu0
    %v729 = vadd.f32 0.0, %v728
    %v730 = vpop.f32.mrb[0].mxu0
    %v731 = vadd.f32 0.0, %v730
    %732 = vmatprep.mubr.bf16.mxu0 0
    %733 = vmatmul.mubr.bf16.gmra.mrb[0].mxu0 %v173
    %v734 = vpop.f32.mrb[0].mxu0
    %v735 = vadd.f32 0.0, %v734
    %v736 = vpop.f32.mrb[0].mxu0
    %v737 = vadd.f32 0.0, %v736
    %v738 = vpop.f32.mrb[0].mxu0
    %v739 = vadd.f32 0.0, %v738
    %v740 = vpop.f32.mrb[0].mxu0
    %v741 = vadd.f32 0.0, %v740
    %742 = vmatprep.mubr.bf16.mxu0 0
    %743 = vmatmul.mubr.bf16.gmra.mrb[0].mxu0 %v174
    %v744 = vpop.f32.mrb[0].mxu0
    %v745 = vadd.f32 0.0, %v744
    %v746 = vpop.f32.mrb[0].mxu0
    %v747 = vadd.f32 0.0, %v746
    %v748 = vpop.f32.mrb[0].mxu0
    %v749 = vadd.f32 0.0, %v748
    %v750 = vpop.f32.mrb[0].mxu0
    %v751 = vadd.f32 0.0, %v750
    %752 = vdwg.mxu0
    %v753 = vlaneseq
    %v754 = vshrl.u32 %v753, 7
    %v755 = vsub.s32 0, %v754
    %v756 = vrot.slane %v402, %v755
    %v757 = vlaneseq
    %v758 = vshrl.u32 %v757, 7
    %v759 = vsub.s32 0, %v758
    %v760 = vrot.slane %v404, %v759
    %v761 = vlaneseq
    %v762 = vshrl.u32 %v761, 7
    %v763 = vsub.s32 0, %v762
    %v764 = vrot.slane %v595, %v763
    %v765 = vlaneseq
    %v766 = vshrl.u32 %v765, 7
    %v767 = vsub.s32 0, %v766
    %v768 = vrot.slane %v597, %v767
    %v769 = vsub.f32 %v402, %v756
    %v770 = vsub.f32 %v404, %v760
    %v771 = vsub.f32 %v595, %v764
    %v772 = vsub.f32 %v597, %v768
    %v773 = vsub.f32 %v406, %v756
    %v774 = vsub.f32 %v408, %v760
    %v775 = vsub.f32 %v599, %v764
    %v776 = vsub.f32 %v601, %v768
    %v777 = vsub.f32 %v412, %v756
    %v778 = vsub.f32 %v414, %v760
    %v779 = vsub.f32 %v605, %v764
    %v780 = vsub.f32 %v607, %v768
    %v781 = vsub.f32 %v416, %v756
    %v782 = vsub.f32 %v418, %v760
    %v783 = vsub.f32 %v609, %v764
    %v784 = vsub.f32 %v611, %v768
    %v785 = vsub.f32 %v422, %v756
    %v786 = vsub.f32 %v424, %v760
    %v787 = vsub.f32 %v615, %v764
    %v788 = vsub.f32 %v617, %v768
    %v789 = vsub.f32 %v426, %v756
    %v790 = vsub.f32 %v428, %v760
    %v791 = vsub.f32 %v619, %v764
    %v792 = vsub.f32 %v621, %v768
    %v793 = vsub.f32 %v432, %v756
    %v794 = vsub.f32 %v434, %v760
    %v795 = vsub.f32 %v625, %v764
    %v796 = vsub.f32 %v627, %v768
    %v797 = vsub.f32 %v436, %v756
    %v798 = vsub.f32 %v438, %v760
    %v799 = vsub.f32 %v629, %v764
    %v800 = vsub.f32 %v631, %v768
    %v801 = vsub.f32 %v442, %v756
    %v802 = vsub.f32 %v444, %v760
    %v803 = vsub.f32 %v635, %v764
    %v804 = vsub.f32 %v637, %v768
    %v805 = vsub.f32 %v446, %v756
    %v806 = vsub.f32 %v448, %v760
    %v807 = vsub.f32 %v639, %v764
    %v808 = vsub.f32 %v641, %v768
    %v809 = vsub.f32 %v452, %v756
    %v810 = vsub.f32 %v454, %v760
    %v811 = vsub.f32 %v645, %v764
    %v812 = vsub.f32 %v647, %v768
    %v813 = vsub.f32 %v456, %v756
    %v814 = vsub.f32 %v458, %v760
    %v815 = vsub.f32 %v649, %v764
    %v816 = vsub.f32 %v651, %v768
    %v817 = vsub.f32 %v462, %v756
    %v818 = vsub.f32 %v464, %v760
    %v819 = vsub.f32 %v655, %v764
    %v820 = vsub.f32 %v657, %v768
    %v821 = vsub.f32 %v466, %v756
    %v822 = vsub.f32 %v468, %v760
    %v823 = vsub.f32 %v659, %v764
    %v824 = vsub.f32 %v661, %v768
    %v825 = vsub.f32 %v472, %v756
    %v826 = vsub.f32 %v474, %v760
    %v827 = vsub.f32 %v665, %v764
    %v828 = vsub.f32 %v667, %v768
    %v829 = vsub.f32 %v476, %v756
    %v830 = vsub.f32 %v478, %v760
    %v831 = vsub.f32 %v669, %v764
    %v832 = vsub.f32 %v671, %v768
    %v833 = vsub.f32 %v482, %v756
    %v834 = vsub.f32 %v484, %v760
    %v835 = vsub.f32 %v675, %v764
    %v836 = vsub.f32 %v677, %v768
    %v837 = vsub.f32 %v486, %v756
    %v838 = vsub.f32 %v488, %v760
    %v839 = vsub.f32 %v679, %v764
    %v840 = vsub.f32 %v681, %v768
    %v841 = vsub.f32 %v492, %v756
    %v842 = vsub.f32 %v494, %v760
    %v843 = vsub.f32 %v685, %v764
    %v844 = vsub.f32 %v687, %v768
    %v845 = vsub.f32 %v496, %v756
    %v846 = vsub.f32 %v498, %v760
    %v847 = vsub.f32 %v689, %v764
    %v848 = vsub.f32 %v691, %v768
    %v849 = vsub.f32 %v502, %v756
    %v850 = vsub.f32 %v504, %v760
    %v851 = vsub.f32 %v695, %v764
    %v852 = vsub.f32 %v697, %v768
    %v853 = vsub.f32 %v506, %v756
    %v854 = vsub.f32 %v508, %v760
    %v855 = vsub.f32 %v699, %v764
    %v856 = vsub.f32 %v701, %v768
    %v857 = vsub.f32 %v512, %v756
    %v858 = vsub.f32 %v514, %v760
    %v859 = vsub.f32 %v705, %v764
    %v860 = vsub.f32 %v707, %v768
    %v861 = vsub.f32 %v516, %v756
    %v862 = vsub.f32 %v518, %v760
    %v863 = vsub.f32 %v709, %v764
    %v864 = vsub.f32 %v711, %v768
    %v865 = vsub.f32 %v522, %v756
    %v866 = vsub.f32 %v524, %v760
    %v867 = vsub.f32 %v715, %v764
    %v868 = vsub.f32 %v717, %v768
    %v869 = vsub.f32 %v526, %v756
    %v870 = vsub.f32 %v528, %v760
    %v871 = vsub.f32 %v719, %v764
    %v872 = vsub.f32 %v721, %v768
    %v873 = vsub.f32 %v532, %v756
    %v874 = vsub.f32 %v534, %v760
    %v875 = vsub.f32 %v725, %v764
    %v876 = vsub.f32 %v727, %v768
    %v877 = vsub.f32 %v536, %v756
    %v878 = vsub.f32 %v538, %v760
    %v879 = vsub.f32 %v729, %v764
    %v880 = vsub.f32 %v731, %v768
    %v881 = vsub.f32 %v542, %v756
    %v882 = vsub.f32 %v544, %v760
    %v883 = vsub.f32 %v735, %v764
    %v884 = vsub.f32 %v737, %v768
    %v885 = vsub.f32 %v546, %v756
    %v886 = vsub.f32 %v548, %v760
    %v887 = vsub.f32 %v739, %v764
    %v888 = vsub.f32 %v741, %v768
    %v889 = vsub.f32 %v552, %v756
    %v890 = vsub.f32 %v554, %v760
    %v891 = vsub.f32 %v745, %v764
    %v892 = vsub.f32 %v747, %v768
    %v893 = vsub.f32 %v556, %v756
    %v894 = vsub.f32 %v558, %v760
    %v895 = vsub.f32 %v749, %v764
    %v896 = vsub.f32 %v751, %v768
    %v897 = vadd.f32 %v769, %v773
    %v898 = vadd.f32 %v897, %v777
    %v899 = vadd.f32 %v898, %v781
    %v900 = vadd.f32 %v899, %v785
    %v901 = vadd.f32 %v900, %v789
    %v902 = vadd.f32 %v901, %v793
    %v903 = vadd.f32 %v902, %v797
    %v904 = vadd.f32 %v903, %v801
    %v905 = vadd.f32 %v904, %v805
    %v906 = vadd.f32 %v905, %v809
    %v907 = vadd.f32 %v906, %v813
    %v908 = vadd.f32 %v907, %v817
    %v909 = vadd.f32 %v908, %v821
    %v910 = vadd.f32 %v909, %v825
    %v911 = vadd.f32 %v910, %v829
    %v912 = vadd.f32 %v911, %v833
    %v913 = vadd.f32 %v912, %v837
    %v914 = vadd.f32 %v913, %v841
    %v915 = vadd.f32 %v914, %v845
    %v916 = vadd.f32 %v915, %v849
    %v917 = vadd.f32 %v916, %v853
    %v918 = vadd.f32 %v917, %v857
    %v919 = vadd.f32 %v918, %v861
    %v920 = vadd.f32 %v919, %v865
    %v921 = vadd.f32 %v920, %v869
    %v922 = vadd.f32 %v921, %v873
    %v923 = vadd.f32 %v922, %v877
    %v924 = vadd.f32 %v923, %v881
    %v925 = vadd.f32 %v924, %v885
    %v926 = vadd.f32 %v925, %v889
    %v927 = vadd.f32 %v926, %v893
    %v928 = vrot.slane %v927, 4
    %v929 = vadd.f32 %v927, %v928
    %v930 = vrot.slane %v929, 2
    %v931 = vadd.f32 %v929, %v930
    %v932 = vrot.slane %v931, 1
    %v933 = vadd.f32 %v931, %v932
    %v934 = vadd.f32 %v770, %v774
    %v935 = vadd.f32 %v934, %v778
    %v936 = vadd.f32 %v935, %v782
    %v937 = vadd.f32 %v936, %v786
    %v938 = vadd.f32 %v937, %v790
    %v939 = vadd.f32 %v938, %v794
    %v940 = vadd.f32 %v939, %v798
    %v941 = vadd.f32 %v940, %v802
    %v942 = vadd.f32 %v941, %v806
    %v943 = vadd.f32 %v942, %v810
    %v944 = vadd.f32 %v943, %v814
    %v945 = vadd.f32 %v944, %v818
    %v946 = vadd.f32 %v945, %v822
    %v947 = vadd.f32 %v946, %v826
    %v948 = vadd.f32 %v947, %v830
    %v949 = vadd.f32 %v948, %v834
    %v950 = vadd.f32 %v949, %v838
    %v951 = vadd.f32 %v950, %v842
    %v952 = vadd.f32 %v951, %v846
    %v953 = vadd.f32 %v952, %v850
    %v954 = vadd.f32 %v953, %v854
    %v955 = vadd.f32 %v954, %v858
    %v956 = vadd.f32 %v955, %v862
    %v957 = vadd.f32 %v956, %v866
    %v958 = vadd.f32 %v957, %v870
    %v959 = vadd.f32 %v958, %v874
    %v960 = vadd.f32 %v959, %v878
    %v961 = vadd.f32 %v960, %v882
    %v962 = vadd.f32 %v961, %v886
    %v963 = vadd.f32 %v962, %v890
    %v964 = vadd.f32 %v963, %v894
    %v965 = vrot.slane %v964, 4
    %v966 = vadd.f32 %v964, %v965
    %v967 = vrot.slane %v966, 2
    %v968 = vadd.f32 %v966, %v967
    %v969 = vrot.slane %v968, 1
    %v970 = vadd.f32 %v968, %v969
    %v971 = vadd.f32 %v771, %v775
    %v972 = vadd.f32 %v971, %v779
    %v973 = vadd.f32 %v972, %v783
    %v974 = vadd.f32 %v973, %v787
    %v975 = vadd.f32 %v974, %v791
    %v976 = vadd.f32 %v975, %v795
    %v977 = vadd.f32 %v976, %v799
    %v978 = vadd.f32 %v977, %v803
    %v979 = vadd.f32 %v978, %v807
    %v980 = vadd.f32 %v979, %v811
    %v981 = vadd.f32 %v980, %v815
    %v982 = vadd.f32 %v981, %v819
    %v983 = vadd.f32 %v982, %v823
    %v984 = vadd.f32 %v983, %v827
    %v985 = vadd.f32 %v984, %v831
    %v986 = vadd.f32 %v985, %v835
    %v987 = vadd.f32 %v986, %v839
    %v988 = vadd.f32 %v987, %v843
    %v989 = vadd.f32 %v988, %v847
    %v990 = vadd.f32 %v989, %v851
    %v991 = vadd.f32 %v990, %v855
    %v992 = vadd.f32 %v991, %v859
    %v993 = vadd.f32 %v992, %v863
    %v994 = vadd.f32 %v993, %v867
    %v995 = vadd.f32 %v994, %v871
    %v996 = vadd.f32 %v995, %v875
    %v997 = vadd.f32 %v996, %v879
    %v998 = vadd.f32 %v997, %v883
    %v999 = vadd.f32 %v998, %v887
    %v1000 = vadd.f32 %v999, %v891
    %v1001 = vadd.f32 %v1000, %v895
    %v1002 = vrot.slane %v1001, 4
    %v1003 = vadd.f32 %v1001, %v1002
    %v1004 = vrot.slane %v1003, 2
    %v1005 = vadd.f32 %v1003, %v1004
    %v1006 = vrot.slane %v1005, 1
    %v1007 = vadd.f32 %v1005, %v1006
    %v1008 = vadd.f32 %v772, %v776
    %v1009 = vadd.f32 %v1008, %v780
    %v1010 = vadd.f32 %v1009, %v784
    %v1011 = vadd.f32 %v1010, %v788
    %v1012 = vadd.f32 %v1011, %v792
    %v1013 = vadd.f32 %v1012, %v796
    %v1014 = vadd.f32 %v1013, %v800
    %v1015 = vadd.f32 %v1014, %v804
    %v1016 = vadd.f32 %v1015, %v808
    %v1017 = vadd.f32 %v1016, %v812
    %v1018 = vadd.f32 %v1017, %v816
    %v1019 = vadd.f32 %v1018, %v820
    %v1020 = vadd.f32 %v1019, %v824
    %v1021 = vadd.f32 %v1020, %v828
    %v1022 = vadd.f32 %v1021, %v832
    %v1023 = vadd.f32 %v1022, %v836
    %v1024 = vadd.f32 %v1023, %v840
    %v1025 = vadd.f32 %v1024, %v844
    %v1026 = vadd.f32 %v1025, %v848
    %v1027 = vadd.f32 %v1026, %v852
    %v1028 = vadd.f32 %v1027, %v856
    %v1029 = vadd.f32 %v1028, %v860
    %v1030 = vadd.f32 %v1029, %v864
    %v1031 = vadd.f32 %v1030, %v868
    %v1032 = vadd.f32 %v1031, %v872
    %v1033 = vadd.f32 %v1032, %v876
    %v1034 = vadd.f32 %v1033, %v880
    %v1035 = vadd.f32 %v1034, %v884
    %v1036 = vadd.f32 %v1035, %v888
    %v1037 = vadd.f32 %v1036, %v892
    %v1038 = vadd.f32 %v1037, %v896
    %v1039 = vrot.slane %v1038, 4
    %v1040 = vadd.f32 %v1038, %v1039
    %v1041 = vrot.slane %v1040, 2
    %v1042 = vadd.f32 %v1040, %v1041
    %v1043 = vrot.slane %v1042, 1
    %v1044 = vadd.f32 %v1042, %v1043
    %v1045 = vmul.f32 %v933, 0.00390625
    %v1046 = vmul.f32 %v970, 0.00390625
    %v1047 = vmul.f32 %v1007, 0.00390625
    %v1048 = vmul.f32 %v1044, 0.00390625
    %v1049 = vmul.f32 %v769, %v769
    %v1050 = vmul.f32 %v770, %v770
    %v1051 = vmul.f32 %v771, %v771
    %v1052 = vmul.f32 %v772, %v772
    %v1053 = vmul.f32 %v773, %v773
    %v1054 = vmul.f32 %v774, %v774
    %v1055 = vmul.f32 %v775, %v775
    %v1056 = vmul.f32 %v776, %v776
    %v1057 = vmul.f32 %v777, %v777
    %v1058 = vmul.f32 %v778, %v778
    %v1059 = vmul.f32 %v779, %v779
    %v1060 = vmul.f32 %v780, %v780
    %v1061 = vmul.f32 %v781, %v781
    %v1062 = vmul.f32 %v782, %v782
    %v1063 = vmul.f32 %v783, %v783
    %v1064 = vmul.f32 %v784, %v784
    %v1065 = vmul.f32 %v785, %v785
    %v1066 = vmul.f32 %v786, %v786
    %v1067 = vmul.f32 %v787, %v787
    %v1068 = vmul.f32 %v788, %v788
    %v1069 = vmul.f32 %v789, %v789
    %v1070 = vmul.f32 %v790, %v790
    %v1071 = vmul.f32 %v791, %v791
    %v1072 = vmul.f32 %v792, %v792
    %v1073 = vmul.f32 %v793, %v793
    %v1074 = vmul.f32 %v794, %v794
    %v1075 = vmul.f32 %v795, %v795
    %v1076 = vmul.f32 %v796, %v796
    %v1077 = vmul.f32 %v797, %v797
    %v1078 = vmul.f32 %v798, %v798
    %v1079 = vmul.f32 %v799, %v799
    %v1080 = vmul.f32 %v800, %v800
    %v1081 = vmul.f32 %v801, %v801
    %v1082 = vmul.f32 %v802, %v802
    %v1083 = vmul.f32 %v803, %v803
    %v1084 = vmul.f32 %v804, %v804
    %v1085 = vmul.f32 %v805, %v805
    %v1086 = vmul.f32 %v806, %v806
    %v1087 = vmul.f32 %v807, %v807
    %v1088 = vmul.f32 %v808, %v808
    %v1089 = vmul.f32 %v809, %v809
    %v1090 = vmul.f32 %v810, %v810
    %v1091 = vmul.f32 %v811, %v811
    %v1092 = vmul.f32 %v812, %v812
    %v1093 = vmul.f32 %v813, %v813
    %v1094 = vmul.f32 %v814, %v814
    %v1095 = vmul.f32 %v815, %v815
    %v1096 = vmul.f32 %v816, %v816
    %v1097 = vmul.f32 %v817, %v817
    %v1098 = vmul.f32 %v818, %v818
    %v1099 = vmul.f32 %v819, %v819
    %v1100 = vmul.f32 %v820, %v820
    %v1101 = vmul.f32 %v821, %v821
    %v1102 = vmul.f32 %v822, %v822
    %v1103 = vmul.f32 %v823, %v823
    %v1104 = vmul.f32 %v824, %v824
    %v1105 = vmul.f32 %v825, %v825
    %v1106 = vmul.f32 %v826, %v826
    %v1107 = vmul.f32 %v827, %v827
    %v1108 = vmul.f32 %v828, %v828
    %v1109 = vmul.f32 %v829, %v829
    %v1110 = vmul.f32 %v830, %v830
    %v1111 = vmul.f32 %v831, %v831
    %v1112 = vmul.f32 %v832, %v832
    %v1113 = vmul.f32 %v833, %v833
    %v1114 = vmul.f32 %v834, %v834
    %v1115 = vmul.f32 %v835, %v835
    %v1116 = vmul.f32 %v836, %v836
    %v1117 = vmul.f32 %v837, %v837
    %v1118 = vmul.f32 %v838, %v838
    %v1119 = vmul.f32 %v839, %v839
    %v1120 = vmul.f32 %v840, %v840
    %v1121 = vmul.f32 %v841, %v841
    %v1122 = vmul.f32 %v842, %v842
    %v1123 = vmul.f32 %v843, %v843
    %v1124 = vmul.f32 %v844, %v844
    %v1125 = vmul.f32 %v845, %v845
    %v1126 = vmul.f32 %v846, %v846
    %v1127 = vmul.f32 %v847, %v847
    %v1128 = vmul.f32 %v848, %v848
    %v1129 = vmul.f32 %v849, %v849
    %v1130 = vmul.f32 %v850, %v850
    %v1131 = vmul.f32 %v851, %v851
    %v1132 = vmul.f32 %v852, %v852
    %v1133 = vmul.f32 %v853, %v853
    %v1134 = vmul.f32 %v854, %v854
    %v1135 = vmul.f32 %v855, %v855
    %v1136 = vmul.f32 %v856, %v856
    %v1137 = vmul.f32 %v857, %v857
    %v1138 = vmul.f32 %v858, %v858
    %v1139 = vmul.f32 %v859, %v859
    %v1140 = vmul.f32 %v860, %v860
    %v1141 = vmul.f32 %v861, %v861
    %v1142 = vmul.f32 %v862, %v862
    %v1143 = vmul.f32 %v863, %v863
    %v1144 = vmul.f32 %v864, %v864
    %v1145 = vmul.f32 %v865, %v865
    %v1146 = vmul.f32 %v866, %v866
    %v1147 = vmul.f32 %v867, %v867
    %v1148 = vmul.f32 %v868, %v868
    %v1149 = vmul.f32 %v869, %v869
    %v1150 = vmul.f32 %v870, %v870
    %v1151 = vmul.f32 %v871, %v871
    %v1152 = vmul.f32 %v872, %v872
    %v1153 = vmul.f32 %v873, %v873
    %v1154 = vmul.f32 %v874, %v874
    %v1155 = vmul.f32 %v875, %v875
    %v1156 = vmul.f32 %v876, %v876
    %v1157 = vmul.f32 %v877, %v877
    %v1158 = vmul.f32 %v878, %v878
    %v1159 = vmul.f32 %v879, %v879
    %v1160 = vmul.f32 %v880, %v880
    %v1161 = vmul.f32 %v881, %v881
    %v1162 = vmul.f32 %v882, %v882
    %v1163 = vmul.f32 %v883, %v883
    %v1164 = vmul.f32 %v884, %v884
    %v1165 = vmul.f32 %v885, %v885
    %v1166 = vmul.f32 %v886, %v886
    %v1167 = vmul.f32 %v887, %v887
    %v1168 = vmul.f32 %v888, %v888
    %v1169 = vmul.f32 %v889, %v889
    %v1170 = vmul.f32 %v890, %v890
    %v1171 = vmul.f32 %v891, %v891
    %v1172 = vmul.f32 %v892, %v892
    %v1173 = vmul.f32 %v893, %v893
    %v1174 = vmul.f32 %v894, %v894
    %v1175 = vmul.f32 %v895, %v895
    %v1176 = vmul.f32 %v896, %v896
    %v1177 = vadd.f32 %v1049, %v1053
    %v1178 = vadd.f32 %v1177, %v1057
    %v1179 = vadd.f32 %v1178, %v1061
    %v1180 = vadd.f32 %v1179, %v1065
    %v1181 = vadd.f32 %v1180, %v1069
    %v1182 = vadd.f32 %v1181, %v1073
    %v1183 = vadd.f32 %v1182, %v1077
    %v1184 = vadd.f32 %v1183, %v1081
    %v1185 = vadd.f32 %v1184, %v1085
    %v1186 = vadd.f32 %v1185, %v1089
    %v1187 = vadd.f32 %v1186, %v1093
    %v1188 = vadd.f32 %v1187, %v1097
    %v1189 = vadd.f32 %v1188, %v1101
    %v1190 = vadd.f32 %v1189, %v1105
    %v1191 = vadd.f32 %v1190, %v1109
    %v1192 = vadd.f32 %v1191, %v1113
    %v1193 = vadd.f32 %v1192, %v1117
    %v1194 = vadd.f32 %v1193, %v1121
    %v1195 = vadd.f32 %v1194, %v1125
    %v1196 = vadd.f32 %v1195, %v1129
    %v1197 = vadd.f32 %v1196, %v1133
    %v1198 = vadd.f32 %v1197, %v1137
    %v1199 = vadd.f32 %v1198, %v1141
    %v1200 = vadd.f32 %v1199, %v1145
    %v1201 = vadd.f32 %v1200, %v1149
    %v1202 = vadd.f32 %v1201, %v1153
    %v1203 = vadd.f32 %v1202, %v1157
    %v1204 = vadd.f32 %v1203, %v1161
    %v1205 = vadd.f32 %v1204, %v1165
    %v1206 = vadd.f32 %v1205, %v1169
    %v1207 = vadd.f32 %v1206, %v1173
    %v1208 = vrot.slane %v1207, 4
    %v1209 = vadd.f32 %v1207, %v1208
    %v1210 = vrot.slane %v1209, 2
    %v1211 = vadd.f32 %v1209, %v1210
    %v1212 = vrot.slane %v1211, 1
    %v1213 = vadd.f32 %v1211, %v1212
    %v1214 = vadd.f32 %v1050, %v1054
    %v1215 = vadd.f32 %v1214, %v1058
    %v1216 = vadd.f32 %v1215, %v1062
    %v1217 = vadd.f32 %v1216, %v1066
    %v1218 = vadd.f32 %v1217, %v1070
    %v1219 = vadd.f32 %v1218, %v1074
    %v1220 = vadd.f32 %v1219, %v1078
    %v1221 = vadd.f32 %v1220, %v1082
    %v1222 = vadd.f32 %v1221, %v1086
    %v1223 = vadd.f32 %v1222, %v1090
    %v1224 = vadd.f32 %v1223, %v1094
    %v1225 = vadd.f32 %v1224, %v1098
    %v1226 = vadd.f32 %v1225, %v1102
    %v1227 = vadd.f32 %v1226, %v1106
    %v1228 = vadd.f32 %v1227, %v1110
    %v1229 = vadd.f32 %v1228, %v1114
    %v1230 = vadd.f32 %v1229, %v1118
    %v1231 = vadd.f32 %v1230, %v1122
    %v1232 = vadd.f32 %v1231, %v1126
    %v1233 = vadd.f32 %v1232, %v1130
    %v1234 = vadd.f32 %v1233, %v1134
    %v1235 = vadd.f32 %v1234, %v1138
    %v1236 = vadd.f32 %v1235, %v1142
    %v1237 = vadd.f32 %v1236, %v1146
    %v1238 = vadd.f32 %v1237, %v1150
    %v1239 = vadd.f32 %v1238, %v1154
    %v1240 = vadd.f32 %v1239, %v1158
    %v1241 = vadd.f32 %v1240, %v1162
    %v1242 = vadd.f32 %v1241, %v1166
    %v1243 = vadd.f32 %v1242, %v1170
    %v1244 = vadd.f32 %v1243, %v1174
    %v1245 = vrot.slane %v1244, 4
    %v1246 = vadd.f32 %v1244, %v1245
    %v1247 = vrot.slane %v1246, 2
    %v1248 = vadd.f32 %v1246, %v1247
    %v1249 = vrot.slane %v1248, 1
    %v1250 = vadd.f32 %v1248, %v1249
    %v1251 = vadd.f32 %v1051, %v1055
    %v1252 = vadd.f32 %v1251, %v1059
    %v1253 = vadd.f32 %v1252, %v1063
    %v1254 = vadd.f32 %v1253, %v1067
    %v1255 = vadd.f32 %v1254, %v1071
    %v1256 = vadd.f32 %v1255, %v1075
    %v1257 = vadd.f32 %v1256, %v1079
    %v1258 = vadd.f32 %v1257, %v1083
    %v1259 = vadd.f32 %v1258, %v1087
    %v1260 = vadd.f32 %v1259, %v1091
    %v1261 = vadd.f32 %v1260, %v1095
    %v1262 = vadd.f32 %v1261, %v1099
    %v1263 = vadd.f32 %v1262, %v1103
    %v1264 = vadd.f32 %v1263, %v1107
    %v1265 = vadd.f32 %v1264, %v1111
    %v1266 = vadd.f32 %v1265, %v1115
    %v1267 = vadd.f32 %v1266, %v1119
    %v1268 = vadd.f32 %v1267, %v1123
    %v1269 = vadd.f32 %v1268, %v1127
    %v1270 = vadd.f32 %v1269, %v1131
    %v1271 = vadd.f32 %v1270, %v1135
    %v1272 = vadd.f32 %v1271, %v1139
    %v1273 = vadd.f32 %v1272, %v1143
    %v1274 = vadd.f32 %v1273, %v1147
    %v1275 = vadd.f32 %v1274, %v1151
    %v1276 = vadd.f32 %v1275, %v1155
    %v1277 = vadd.f32 %v1276, %v1159
    %v1278 = vadd.f32 %v1277, %v1163
    %v1279 = vadd.f32 %v1278, %v1167
    %v1280 = vadd.f32 %v1279, %v1171
    %v1281 = vadd.f32 %v1280, %v1175
    %v1282 = vrot.slane %v1281, 4
    %v1283 = vadd.f32 %v1281, %v1282
    %v1284 = vrot.slane %v1283, 2
    %v1285 = vadd.f32 %v1283, %v1284
    %v1286 = vrot.slane %v1285, 1
    %v1287 = vadd.f32 %v1285, %v1286
    %v1288 = vadd.f32 %v1052, %v1056
    %v1289 = vadd.f32 %v1288, %v1060
    %v1290 = vadd.f32 %v1289, %v1064
    %v1291 = vadd.f32 %v1290, %v1068
    %v1292 = vadd.f32 %v1291, %v1072
    %v1293 = vadd.f32 %v1292, %v1076
    %v1294 = vadd.f32 %v1293, %v1080
    %v1295 = vadd.f32 %v1294, %v1084
    %v1296 = vadd.f32 %v1295, %v1088
    %v1297 = vadd.f32 %v1296, %v1092
    %v1298 = vadd.f32 %v1297, %v1096
    %v1299 = vadd.f32 %v1298, %v1100
    %v1300 = vadd.f32 %v1299, %v1104
    %v1301 = vadd.f32 %v1300, %v1108
    %v1302 = vadd.f32 %v1301, %v1112
    %v1303 = vadd.f32 %v1302, %v1116
    %v1304 = vadd.f32 %v1303, %v1120
    %v1305 = vadd.f32 %v1304, %v1124
    %v1306 = vadd.f32 %v1305, %v1128
    %v1307 = vadd.f32 %v1306, %v1132
    %v1308 = vadd.f32 %v1307, %v1136
    %v1309 = vadd.f32 %v1308, %v1140
    %v1310 = vadd.f32 %v1309, %v1144
    %v1311 = vadd.f32 %v1310, %v1148
    %v1312 = vadd.f32 %v1311, %v1152
    %v1313 = vadd.f32 %v1312, %v1156
    %v1314 = vadd.f32 %v1313, %v1160
    %v1315 = vadd.f32 %v1314, %v1164
    %v1316 = vadd.f32 %v1315, %v1168
    %v1317 = vadd.f32 %v1316, %v1172
    %v1318 = vadd.f32 %v1317, %v1176
    %v1319 = vrot.slane %v1318, 4
    %v1320 = vadd.f32 %v1318, %v1319
    %v1321 = vrot.slane %v1320, 2
    %v1322 = vadd.f32 %v1320, %v1321
    %v1323 = vrot.slane %v1322, 1
    %v1324 = vadd.f32 %v1322, %v1323
    %v1325 = vmul.f32 %v1213, 0.00390625
    %v1326 = vmul.f32 %v1250, 0.00390625
    %v1327 = vmul.f32 %v1287, 0.00390625
    %v1328 = vmul.f32 %v1324, 0.00390625
    %v1329 = vmul.f32 %v1045, %v1045
    %v1330 = vmul.f32 %v1046, %v1046
    %v1331 = vmul.f32 %v1047, %v1047
    %v1332 = vmul.f32 %v1048, %v1048
    %v1333 = vsub.f32 %v1325, %v1329
    %v1334 = vsub.f32 %v1326, %v1330
    %v1335 = vsub.f32 %v1327, %v1331
    %v1336 = vsub.f32 %v1328, %v1332
    %v1337 = vmax.f32 %v1333, 0.0
    %v1338 = vmax.f32 %v1334, 0.0
    %v1339 = vmax.f32 %v1335, 0.0
    %v1340 = vmax.f32 %v1336, 0.0
    %v1341 = vadd.f32 %v402, %v1045
    %v1342 = vadd.f32 %v404, %v1046
    %v1343 = vadd.f32 %v595, %v1047
    %v1344 = vadd.f32 %v597, %v1048
    %v1345 = vadd.f32 %v1337, 1e-05
    %v1346 = vadd.f32 %v1338, 1e-05
    %v1347 = vadd.f32 %v1339, 1e-05
    %v1348 = vadd.f32 %v1340, 1e-05
    %v1349 = vrsqrt.pop %v1345
    %v1350 = vrsqrt.pop %v1346
    %v1351 = vrsqrt.pop %v1347
    %v1352 = vrsqrt.pop %v1348
    %v1353 = vmul.f32 %v150, %v1349
    %v1354 = vmul.f32 %v151, %v1350
    %v1355 = vmul.f32 %v152, %v1351
    %v1356 = vmul.f32 %v153, %v1352
    %v1357 = vmul.f32 %v1341, %v1353
    %v1358 = vmul.f32 %v1342, %v1354
    %v1359 = vmul.f32 %v1343, %v1355
    %v1360 = vmul.f32 %v1344, %v1356
    %v1365 = vrot.slane %v1357, 7
    %v1366 = vrot.slane %v1358, 7
    %v1367 = vrot.slane %v1359, 7
    %v1368 = vrot.slane %v1360, 7
    %v1373 = vsub.f32 %v150, %v1365
    %v1374 = vsub.f32 %v151, %v1366
    %v1375 = vsub.f32 %v152, %v1367
    %v1376 = vsub.f32 %v153, %v1368
    %v1377 = vlaneseq
    %v1378 = vshrl.u32 %v1377, 7
    %v1379 = vsub.s32 0, %v1378
    %v1380 = vrot.slane %v1353, %v1379
    %v1381 = vlaneseq
    %v1382 = vshrl.u32 %v1381, 7
    %v1383 = vsub.s32 0, %v1382
    %v1384 = vrot.slane %v1354, %v1383
    %v1385 = vlaneseq
    %v1386 = vshrl.u32 %v1385, 7
    %v1387 = vsub.s32 0, %v1386
    %v1388 = vrot.slane %v1355, %v1387
    %v1389 = vlaneseq
    %v1390 = vshrl.u32 %v1389, 7
    %v1391 = vsub.s32 0, %v1390
    %v1392 = vrot.slane %v1356, %v1391
    %v1393 = vmul.f32 %v402, %v1380
    %v1394 = vmul.f32 %v404, %v1384
    %v1395 = vmul.f32 %v595, %v1388
    %v1396 = vmul.f32 %v597, %v1392
    %v1397 = vmul.f32 %v406, %v1380
    %v1398 = vmul.f32 %v408, %v1384
    %v1399 = vmul.f32 %v599, %v1388
    %v1400 = vmul.f32 %v601, %v1392
    %v1401 = vmul.f32 %v412, %v1380
    %v1402 = vmul.f32 %v414, %v1384
    %v1403 = vmul.f32 %v605, %v1388
    %v1404 = vmul.f32 %v607, %v1392
    %v1405 = vmul.f32 %v416, %v1380
    %v1406 = vmul.f32 %v418, %v1384
    %v1407 = vmul.f32 %v609, %v1388
    %v1408 = vmul.f32 %v611, %v1392
    %v1409 = vmul.f32 %v422, %v1380
    %v1410 = vmul.f32 %v424, %v1384
    %v1411 = vmul.f32 %v615, %v1388
    %v1412 = vmul.f32 %v617, %v1392
    %v1413 = vmul.f32 %v426, %v1380
    %v1414 = vmul.f32 %v428, %v1384
    %v1415 = vmul.f32 %v619, %v1388
    %v1416 = vmul.f32 %v621, %v1392
    %v1417 = vmul.f32 %v432, %v1380
    %v1418 = vmul.f32 %v434, %v1384
    %v1419 = vmul.f32 %v625, %v1388
    %v1420 = vmul.f32 %v627, %v1392
    %v1421 = vmul.f32 %v436, %v1380
    %v1422 = vmul.f32 %v438, %v1384
    %v1423 = vmul.f32 %v629, %v1388
    %v1424 = vmul.f32 %v631, %v1392
    %v1425 = vmul.f32 %v442, %v1380
    %v1426 = vmul.f32 %v444, %v1384
    %v1427 = vmul.f32 %v635, %v1388
    %v1428 = vmul.f32 %v637, %v1392
    %v1429 = vmul.f32 %v446, %v1380
    %v1430 = vmul.f32 %v448, %v1384
    %v1431 = vmul.f32 %v639, %v1388
    %v1432 = vmul.f32 %v641, %v1392
    %v1433 = vmul.f32 %v452, %v1380
    %v1434 = vmul.f32 %v454, %v1384
    %v1435 = vmul.f32 %v645, %v1388
    %v1436 = vmul.f32 %v647, %v1392
    %v1437 = vmul.f32 %v456, %v1380
    %v1438 = vmul.f32 %v458, %v1384
    %v1439 = vmul.f32 %v649, %v1388
    %v1440 = vmul.f32 %v651, %v1392
    %v1441 = vmul.f32 %v462, %v1380
    %v1442 = vmul.f32 %v464, %v1384
    %v1443 = vmul.f32 %v655, %v1388
    %v1444 = vmul.f32 %v657, %v1392
    %v1445 = vmul.f32 %v466, %v1380
    %v1446 = vmul.f32 %v468, %v1384
    %v1447 = vmul.f32 %v659, %v1388
    %v1448 = vmul.f32 %v661, %v1392
    %v1449 = vmul.f32 %v472, %v1380
    %v1450 = vmul.f32 %v474, %v1384
    %v1451 = vmul.f32 %v665, %v1388
    %v1452 = vmul.f32 %v667, %v1392
    %v1453 = vmul.f32 %v476, %v1380
    %v1454 = vmul.f32 %v478, %v1384
    %v1455 = vmul.f32 %v669, %v1388
    %v1456 = vmul.f32 %v671, %v1392
    %v1457 = vmul.f32 %v482, %v1380
    %v1458 = vmul.f32 %v484, %v1384
    %v1459 = vmul.f32 %v675, %v1388
    %v1460 = vmul.f32 %v677, %v1392
    %v1461 = vmul.f32 %v486, %v1380
    %v1462 = vmul.f32 %v488, %v1384
    %v1463 = vmul.f32 %v679, %v1388
    %v1464 = vmul.f32 %v681, %v1392
    %v1465 = vmul.f32 %v492, %v1380
    %v1466 = vmul.f32 %v494, %v1384
    %v1467 = vmul.f32 %v685, %v1388
    %v1468 = vmul.f32 %v687, %v1392
    %v1469 = vmul.f32 %v496, %v1380
    %v1470 = vmul.f32 %v498, %v1384
    %v1471 = vmul.f32 %v689, %v1388
    %v1472 = vmul.f32 %v691, %v1392
    %v1473 = vmul.f32 %v502, %v1380
    %v1474 = vmul.f32 %v504, %v1384
    %v1475 = vmul.f32 %v695, %v1388
    %v1476 = vmul.f32 %v697, %v1392
    %v1477 = vmul.f32 %v506, %v1380
    %v1478 = vmul.f32 %v508, %v1384
    %v1479 = vmul.f32 %v699, %v1388
    %v1480 = vmul.f32 %v701, %v1392
    %v1481 = vmul.f32 %v512, %v1380
    %v1482 = vmul.f32 %v514, %v1384
    %v1483 = vmul.f32 %v705, %v1388
    %v1484 = vmul.f32 %v707, %v1392
    %v1485 = vmul.f32 %v516, %v1380
    %v1486 = vmul.f32 %v518, %v1384
    %v1487 = vmul.f32 %v709, %v1388
    %v1488 = vmul.f32 %v711, %v1392
    %v1489 = vmul.f32 %v522, %v1380
    %v1490 = vmul.f32 %v524, %v1384
    %v1491 = vmul.f32 %v715, %v1388
    %v1492 = vmul.f32 %v717, %v1392
    %v1493 = vmul.f32 %v526, %v1380
    %v1494 = vmul.f32 %v528, %v1384
    %v1495 = vmul.f32 %v719, %v1388
    %v1496 = vmul.f32 %v721, %v1392
    %v1497 = vmul.f32 %v532, %v1380
    %v1498 = vmul.f32 %v534, %v1384
    %v1499 = vmul.f32 %v725, %v1388
    %v1500 = vmul.f32 %v727, %v1392
    %v1501 = vmul.f32 %v536, %v1380
    %v1502 = vmul.f32 %v538, %v1384
    %v1503 = vmul.f32 %v729, %v1388
    %v1504 = vmul.f32 %v731, %v1392
    %v1505 = vmul.f32 %v542, %v1380
    %v1506 = vmul.f32 %v544, %v1384
    %v1507 = vmul.f32 %v735, %v1388
    %v1508 = vmul.f32 %v737, %v1392
    %v1509 = vmul.f32 %v546, %v1380
    %v1510 = vmul.f32 %v548, %v1384
    %v1511 = vmul.f32 %v739, %v1388
    %v1512 = vmul.f32 %v741, %v1392
    %v1513 = vmul.f32 %v552, %v1380
    %v1514 = vmul.f32 %v554, %v1384
    %v1515 = vmul.f32 %v745, %v1388
    %v1516 = vmul.f32 %v747, %v1392
    %v1517 = vmul.f32 %v556, %v1380
    %v1518 = vmul.f32 %v558, %v1384
    %v1519 = vmul.f32 %v749, %v1388
    %v1520 = vmul.f32 %v751, %v1392
    %v1521 = vlaneseq
    %v1522 = vshrl.u32 %v1521, 7
    %v1523 = vsub.s32 1, %v1522
    %v1524 = vrot.slane %v1373, %v1523
    %v1525 = vlaneseq
    %v1526 = vshrl.u32 %v1525, 7
    %v1527 = vsub.s32 1, %v1526
    %v1528 = vrot.slane %v1374, %v1527
    %v1529 = vlaneseq
    %v1530 = vshrl.u32 %v1529, 7
    %v1531 = vsub.s32 1, %v1530
    %v1532 = vrot.slane %v1375, %v1531
    %v1533 = vlaneseq
    %v1534 = vshrl.u32 %v1533, 7
    %v1535 = vsub.s32 1, %v1534
    %v1536 = vrot.slane %v1376, %v1535
    %v1537 = vadd.f32 %v1393, %v1524
    %v1538 = vadd.f32 %v1394, %v1528
    %v1539 = vadd.f32 %v1395, %v1532
    %v1540 = vadd.f32 %v1396, %v1536
    %v1541 = vadd.f32 %v1397, %v1524
    %v1542 = vadd.f32 %v1398, %v1528
    %v1543 = vadd.f32 %v1399, %v1532
    %v1544 = vadd.f32 %v1400, %v1536
    %v1545 = vadd.f32 %v1401, %v1524
    %v1546 = vadd.f32 %v1402, %v1528
    %v1547 = vadd.f32 %v1403, %v1532
    %v1548 = vadd.f32 %v1404, %v1536
    %v1549 = vadd.f32 %v1405, %v1524
    %v1550 = vadd.f32 %v1406, %v1528
    %v1551 = vadd.f32 %v1407, %v1532
    %v1552 = vadd.f32 %v1408, %v1536
    %v1553 = vadd.f32 %v1409, %v1524
    %v1554 = vadd.f32 %v1410, %v1528
    %v1555 = vadd.f32 %v1411, %v1532
    %v1556 = vadd.f32 %v1412, %v1536
    %v1557 = vadd.f32 %v1413, %v1524
    %v1558 = vadd.f32 %v1414, %v1528
    %v1559 = vadd.f32 %v1415, %v1532
    %v1560 = vadd.f32 %v1416, %v1536
    %v1561 = vadd.f32 %v1417, %v1524
    %v1562 = vadd.f32 %v1418, %v1528
    %v1563 = vadd.f32 %v1419, %v1532
    %v1564 = vadd.f32 %v1420, %v1536
    %v1565 = vadd.f32 %v1421, %v1524
    %v1566 = vadd.f32 %v1422, %v1528
    %v1567 = vadd.f32 %v1423, %v1532
    %v1568 = vadd.f32 %v1424, %v1536
    %v1569 = vadd.f32 %v1425, %v1524
    %v1570 = vadd.f32 %v1426, %v1528
    %v1571 = vadd.f32 %v1427, %v1532
    %v1572 = vadd.f32 %v1428, %v1536
    %v1573 = vadd.f32 %v1429, %v1524
    %v1574 = vadd.f32 %v1430, %v1528
    %v1575 = vadd.f32 %v1431, %v1532
    %v1576 = vadd.f32 %v1432, %v1536
    %v1577 = vadd.f32 %v1433, %v1524
    %v1578 = vadd.f32 %v1434, %v1528
    %v1579 = vadd.f32 %v1435, %v1532
    %v1580 = vadd.f32 %v1436, %v1536
    %v1581 = vadd.f32 %v1437, %v1524
    %v1582 = vadd.f32 %v1438, %v1528
    %v1583 = vadd.f32 %v1439, %v1532
    %v1584 = vadd.f32 %v1440, %v1536
    %v1585 = vadd.f32 %v1441, %v1524
    %v1586 = vadd.f32 %v1442, %v1528
    %v1587 = vadd.f32 %v1443, %v1532
    %v1588 = vadd.f32 %v1444, %v1536
    %v1589 = vadd.f32 %v1445, %v1524
    %v1590 = vadd.f32 %v1446, %v1528
    %v1591 = vadd.f32 %v1447, %v1532
    %v1592 = vadd.f32 %v1448, %v1536
    %v1593 = vadd.f32 %v1449, %v1524
    %v1594 = vadd.f32 %v1450, %v1528
    %v1595 = vadd.f32 %v1451, %v1532
    %v1596 = vadd.f32 %v1452, %v1536
    %v1597 = vadd.f32 %v1453, %v1524
    %v1598 = vadd.f32 %v1454, %v1528
    %v1599 = vadd.f32 %v1455, %v1532
    %v1600 = vadd.f32 %v1456, %v1536
    %v1601 = vadd.f32 %v1457, %v1524
    %v1602 = vadd.f32 %v1458, %v1528
    %v1603 = vadd.f32 %v1459, %v1532
    %v1604 = vadd.f32 %v1460, %v1536
    %v1605 = vadd.f32 %v1461, %v1524
    %v1606 = vadd.f32 %v1462, %v1528
    %v1607 = vadd.f32 %v1463, %v1532
    %v1608 = vadd.f32 %v1464, %v1536
    %v1609 = vadd.f32 %v1465, %v1524
    %v1610 = vadd.f32 %v1466, %v1528
    %v1611 = vadd.f32 %v1467, %v1532
    %v1612 = vadd.f32 %v1468, %v1536
    %v1613 = vadd.f32 %v1469, %v1524
    %v1614 = vadd.f32 %v1470, %v1528
    %v1615 = vadd.f32 %v1471, %v1532
    %v1616 = vadd.f32 %v1472, %v1536
    %v1617 = vadd.f32 %v1473, %v1524
    %v1618 = vadd.f32 %v1474, %v1528
    %v1619 = vadd.f32 %v1475, %v1532
    %v1620 = vadd.f32 %v1476, %v1536
    %v1621 = vadd.f32 %v1477, %v1524
    %v1622 = vadd.f32 %v1478, %v1528
    %v1623 = vadd.f32 %v1479, %v1532
    %v1624 = vadd.f32 %v1480, %v1536
    %v1625 = vadd.f32 %v1481, %v1524
    %v1626 = vadd.f32 %v1482, %v1528
    %v1627 = vadd.f32 %v1483, %v1532
    %v1628 = vadd.f32 %v1484, %v1536
    %v1629 = vadd.f32 %v1485, %v1524
    %v1630 = vadd.f32 %v1486, %v1528
    %v1631 = vadd.f32 %v1487, %v1532
    %v1632 = vadd.f32 %v1488, %v1536
    %v1633 = vadd.f32 %v1489, %v1524
    %v1634 = vadd.f32 %v1490, %v1528
    %v1635 = vadd.f32 %v1491, %v1532
    %v1636 = vadd.f32 %v1492, %v1536
    %v1637 = vadd.f32 %v1493, %v1524
    %v1638 = vadd.f32 %v1494, %v1528
    %v1639 = vadd.f32 %v1495, %v1532
    %v1640 = vadd.f32 %v1496, %v1536
    %v1641 = vadd.f32 %v1497, %v1524
    %v1642 = vadd.f32 %v1498, %v1528
    %v1643 = vadd.f32 %v1499, %v1532
    %v1644 = vadd.f32 %v1500, %v1536
    %v1645 = vadd.f32 %v1501, %v1524
    %v1646 = vadd.f32 %v1502, %v1528
    %v1647 = vadd.f32 %v1503, %v1532
    %v1648 = vadd.f32 %v1504, %v1536
    %v1649 = vadd.f32 %v1505, %v1524
    %v1650 = vadd.f32 %v1506, %v1528
    %v1651 = vadd.f32 %v1507, %v1532
    %v1652 = vadd.f32 %v1508, %v1536
    %v1653 = vadd.f32 %v1509, %v1524
    %v1654 = vadd.f32 %v1510, %v1528
    %v1655 = vadd.f32 %v1511, %v1532
    %v1656 = vadd.f32 %v1512, %v1536
    %v1657 = vadd.f32 %v1513, %v1524
    %v1658 = vadd.f32 %v1514, %v1528
    %v1659 = vadd.f32 %v1515, %v1532
    %v1660 = vadd.f32 %v1516, %v1536
    %v1661 = vadd.f32 %v1517, %v1524
    %v1662 = vadd.f32 %v1518, %v1528
    %v1663 = vadd.f32 %v1519, %v1532
    %v1664 = vadd.f32 %v1520, %v1536
    %v1665 = vmax.f32 %v1537, 0.0
    %v1666 = vmax.f32 %v1538, 0.0
    %v1667 = vmax.f32 %v1539, 0.0
    %v1668 = vmax.f32 %v1540, 0.0
    %v1669 = vmax.f32 %v1541, 0.0
    %v1670 = vmax.f32 %v1542, 0.0
    %v1671 = vmax.f32 %v1543, 0.0
    %v1672 = vmax.f32 %v1544, 0.0
    %v1673 = vmax.f32 %v1545, 0.0
    %v1674 = vmax.f32 %v1546, 0.0
    %v1675 = vmax.f32 %v1547, 0.0
    %v1676 = vmax.f32 %v1548, 0.0
    %v1677 = vmax.f32 %v1549, 0.0
    %v1678 = vmax.f32 %v1550, 0.0
    %v1679 = vmax.f32 %v1551, 0.0
    %v1680 = vmax.f32 %v1552, 0.0
    %v1681 = vmax.f32 %v1553, 0.0
    %v1682 = vmax.f32 %v1554, 0.0
    %v1683 = vmax.f32 %v1555, 0.0
    %v1684 = vmax.f32 %v1556, 0.0
    %v1685 = vmax.f32 %v1557, 0.0
    %v1686 = vmax.f32 %v1558, 0.0
    %v1687 = vmax.f32 %v1559, 0.0
    %v1688 = vmax.f32 %v1560, 0.0
    %v1689 = vmax.f32 %v1561, 0.0
    %v1690 = vmax.f32 %v1562, 0.0
    %v1691 = vmax.f32 %v1563, 0.0
    %v1692 = vmax.f32 %v1564, 0.0
    %v1693 = vmax.f32 %v1565, 0.0
    %v1694 = vmax.f32 %v1566, 0.0
    %v1695 = vmax.f32 %v1567, 0.0
    %v1696 = vmax.f32 %v1568, 0.0
    %v1697 = vmax.f32 %v1569, 0.0
    %v1698 = vmax.f32 %v1570, 0.0
    %v1699 = vmax.f32 %v1571, 0.0
    %v1700 = vmax.f32 %v1572, 0.0
    %v1701 = vmax.f32 %v1573, 0.0
    %v1702 = vmax.f32 %v1574, 0.0
    %v1703 = vmax.f32 %v1575, 0.0
    %v1704 = vmax.f32 %v1576, 0.0
    %v1705 = vmax.f32 %v1577, 0.0
    %v1706 = vmax.f32 %v1578, 0.0
    %v1707 = vmax.f32 %v1579, 0.0
    %v1708 = vmax.f32 %v1580, 0.0
    %v1709 = vmax.f32 %v1581, 0.0
    %v1710 = vmax.f32 %v1582, 0.0
    %v1711 = vmax.f32 %v1583, 0.0
    %v1712 = vmax.f32 %v1584, 0.0
    %v1713 = vmax.f32 %v1585, 0.0
    %v1714 = vmax.f32 %v1586, 0.0
    %v1715 = vmax.f32 %v1587, 0.0
    %v1716 = vmax.f32 %v1588, 0.0
    %v1717 = vmax.f32 %v1589, 0.0
    %v1718 = vmax.f32 %v1590, 0.0
    %v1719 = vmax.f32 %v1591, 0.0
    %v1720 = vmax.f32 %v1592, 0.0
    %v1721 = vmax.f32 %v1593, 0.0
    %v1722 = vmax.f32 %v1594, 0.0
    %v1723 = vmax.f32 %v1595, 0.0
    %v1724 = vmax.f32 %v1596, 0.0
    %v1725 = vmax.f32 %v1597, 0.0
    %v1726 = vmax.f32 %v1598, 0.0
    %v1727 = vmax.f32 %v1599, 0.0
    %v1728 = vmax.f32 %v1600, 0.0
    %v1729 = vmax.f32 %v1601, 0.0
    %v1730 = vmax.f32 %v1602, 0.0
    %v1731 = vmax.f32 %v1603, 0.0
    %v1732 = vmax.f32 %v1604, 0.0
    %v1733 = vmax.f32 %v1605, 0.0
    %v1734 = vmax.f32 %v1606, 0.0
    %v1735 = vmax.f32 %v1607, 0.0
    %v1736 = vmax.f32 %v1608, 0.0
    %v1737 = vmax.f32 %v1609, 0.0
    %v1738 = vmax.f32 %v1610, 0.0
    %v1739 = vmax.f32 %v1611, 0.0
    %v1740 = vmax.f32 %v1612, 0.0
    %v1741 = vmax.f32 %v1613, 0.0
    %v1742 = vmax.f32 %v1614, 0.0
    %v1743 = vmax.f32 %v1615, 0.0
    %v1744 = vmax.f32 %v1616, 0.0
    %v1745 = vmax.f32 %v1617, 0.0
    %v1746 = vmax.f32 %v1618, 0.0
    %v1747 = vmax.f32 %v1619, 0.0
    %v1748 = vmax.f32 %v1620, 0.0
    %v1749 = vmax.f32 %v1621, 0.0
    %v1750 = vmax.f32 %v1622, 0.0
    %v1751 = vmax.f32 %v1623, 0.0
    %v1752 = vmax.f32 %v1624, 0.0
    %v1753 = vmax.f32 %v1625, 0.0
    %v1754 = vmax.f32 %v1626, 0.0
    %v1755 = vmax.f32 %v1627, 0.0
    %v1756 = vmax.f32 %v1628, 0.0
    %v1757 = vmax.f32 %v1629, 0.0
    %v1758 = vmax.f32 %v1630, 0.0
    %v1759 = vmax.f32 %v1631, 0.0
    %v1760 = vmax.f32 %v1632, 0.0
    %v1761 = vmax.f32 %v1633, 0.0
    %v1762 = vmax.f32 %v1634, 0.0
    %v1763 = vmax.f32 %v1635, 0.0
    %v1764 = vmax.f32 %v1636, 0.0
    %v1765 = vmax.f32 %v1637, 0.0
    %v1766 = vmax.f32 %v1638, 0.0
    %v1767 = vmax.f32 %v1639, 0.0
    %v1768 = vmax.f32 %v1640, 0.0
    %v1769 = vmax.f32 %v1641, 0.0
    %v1770 = vmax.f32 %v1642, 0.0
    %v1771 = vmax.f32 %v1643, 0.0
    %v1772 = vmax.f32 %v1644, 0.0
    %v1773 = vmax.f32 %v1645, 0.0
    %v1774 = vmax.f32 %v1646, 0.0
    %v1775 = vmax.f32 %v1647, 0.0
    %v1776 = vmax.f32 %v1648, 0.0
    %v1777 = vmax.f32 %v1649, 0.0
    %v1778 = vmax.f32 %v1650, 0.0
    %v1779 = vmax.f32 %v1651, 0.0
    %v1780 = vmax.f32 %v1652, 0.0
    %v1781 = vmax.f32 %v1653, 0.0
    %v1782 = vmax.f32 %v1654, 0.0
    %v1783 = vmax.f32 %v1655, 0.0
    %v1784 = vmax.f32 %v1656, 0.0
    %v1785 = vmax.f32 %v1657, 0.0
    %v1786 = vmax.f32 %v1658, 0.0
    %v1787 = vmax.f32 %v1659, 0.0
    %v1788 = vmax.f32 %v1660, 0.0
    %v1789 = vmax.f32 %v1661, 0.0
    %v1790 = vmax.f32 %v1662, 0.0
    %v1791 = vmax.f32 %v1663, 0.0
    %v1792 = vmax.f32 %v1664, 0.0
    %v1793 = vlaneseq
    %v1794 = vshrl.u32 %v1793, 7
    %v1795 = vsub.s32 0, %v1794
    %v1796 = vrot.slane %v1665, %v1795
    %v1797 = vlaneseq
    %v1798 = vshrl.u32 %v1797, 7
    %v1799 = vsub.s32 0, %v1798
    %v1800 = vrot.slane %v1666, %v1799
    %v1801 = vlaneseq
    %v1802 = vshrl.u32 %v1801, 7
    %v1803 = vsub.s32 0, %v1802
    %v1804 = vrot.slane %v1667, %v1803
    %v1805 = vlaneseq
    %v1806 = vshrl.u32 %v1805, 7
    %v1807 = vsub.s32 0, %v1806
    %v1808 = vrot.slane %v1668, %v1807
    %v1809 = vsub.f32 %v1665, %v1796
    %v1810 = vsub.f32 %v1666, %v1800
    %v1811 = vsub.f32 %v1667, %v1804
    %v1812 = vsub.f32 %v1668, %v1808
    %v1813 = vsub.f32 %v1669, %v1796
    %v1814 = vsub.f32 %v1670, %v1800
    %v1815 = vsub.f32 %v1671, %v1804
    %v1816 = vsub.f32 %v1672, %v1808
    %v1817 = vsub.f32 %v1673, %v1796
    %v1818 = vsub.f32 %v1674, %v1800
    %v1819 = vsub.f32 %v1675, %v1804
    %v1820 = vsub.f32 %v1676, %v1808
    %v1821 = vsub.f32 %v1677, %v1796
    %v1822 = vsub.f32 %v1678, %v1800
    %v1823 = vsub.f32 %v1679, %v1804
    %v1824 = vsub.f32 %v1680, %v1808
    %v1825 = vsub.f32 %v1681, %v1796
    %v1826 = vsub.f32 %v1682, %v1800
    %v1827 = vsub.f32 %v1683, %v1804
    %v1828 = vsub.f32 %v1684, %v1808
    %v1829 = vsub.f32 %v1685, %v1796
    %v1830 = vsub.f32 %v1686, %v1800
    %v1831 = vsub.f32 %v1687, %v1804
    %v1832 = vsub.f32 %v1688, %v1808
    %v1833 = vsub.f32 %v1689, %v1796
    %v1834 = vsub.f32 %v1690, %v1800
    %v1835 = vsub.f32 %v1691, %v1804
    %v1836 = vsub.f32 %v1692, %v1808
    %v1837 = vsub.f32 %v1693, %v1796
    %v1838 = vsub.f32 %v1694, %v1800
    %v1839 = vsub.f32 %v1695, %v1804
    %v1840 = vsub.f32 %v1696, %v1808
    %v1841 = vsub.f32 %v1697, %v1796
    %v1842 = vsub.f32 %v1698, %v1800
    %v1843 = vsub.f32 %v1699, %v1804
    %v1844 = vsub.f32 %v1700, %v1808
    %v1845 = vsub.f32 %v1701, %v1796
    %v1846 = vsub.f32 %v1702, %v1800
    %v1847 = vsub.f32 %v1703, %v1804
    %v1848 = vsub.f32 %v1704, %v1808
    %v1849 = vsub.f32 %v1705, %v1796
    %v1850 = vsub.f32 %v1706, %v1800
    %v1851 = vsub.f32 %v1707, %v1804
    %v1852 = vsub.f32 %v1708, %v1808
    %v1853 = vsub.f32 %v1709, %v1796
    %v1854 = vsub.f32 %v1710, %v1800
    %v1855 = vsub.f32 %v1711, %v1804
    %v1856 = vsub.f32 %v1712, %v1808
    %v1857 = vsub.f32 %v1713, %v1796
    %v1858 = vsub.f32 %v1714, %v1800
    %v1859 = vsub.f32 %v1715, %v1804
    %v1860 = vsub.f32 %v1716, %v1808
    %v1861 = vsub.f32 %v1717, %v1796
    %v1862 = vsub.f32 %v1718, %v1800
    %v1863 = vsub.f32 %v1719, %v1804
    %v1864 = vsub.f32 %v1720, %v1808
    %v1865 = vsub.f32 %v1721, %v1796
    %v1866 = vsub.f32 %v1722, %v1800
    %v1867 = vsub.f32 %v1723, %v1804
    %v1868 = vsub.f32 %v1724, %v1808
    %v1869 = vsub.f32 %v1725, %v1796
    %v1870 = vsub.f32 %v1726, %v1800
    %v1871 = vsub.f32 %v1727, %v1804
    %v1872 = vsub.f32 %v1728, %v1808
    %v1873 = vsub.f32 %v1729, %v1796
    %v1874 = vsub.f32 %v1730, %v1800
    %v1875 = vsub.f32 %v1731, %v1804
    %v1876 = vsub.f32 %v1732, %v1808
    %v1877 = vsub.f32 %v1733, %v1796
    %v1878 = vsub.f32 %v1734, %v1800
    %v1879 = vsub.f32 %v1735, %v1804
    %v1880 = vsub.f32 %v1736, %v1808
    %v1881 = vsub.f32 %v1737, %v1796
    %v1882 = vsub.f32 %v1738, %v1800
    %v1883 = vsub.f32 %v1739, %v1804
    %v1884 = vsub.f32 %v1740, %v1808
    %v1885 = vsub.f32 %v1741, %v1796
    %v1886 = vsub.f32 %v1742, %v1800
    %v1887 = vsub.f32 %v1743, %v1804
    %v1888 = vsub.f32 %v1744, %v1808
    %v1889 = vsub.f32 %v1745, %v1796
    %v1890 = vsub.f32 %v1746, %v1800
    %v1891 = vsub.f32 %v1747, %v1804
    %v1892 = vsub.f32 %v1748, %v1808
    %v1893 = vsub.f32 %v1749, %v1796
    %v1894 = vsub.f32 %v1750, %v1800
    %v1895 = vsub.f32 %v1751, %v1804
    %v1896 = vsub.f32 %v1752, %v1808
    %v1897 = vsub.f32 %v1753, %v1796
    %v1898 = vsub.f32 %v1754, %v1800
    %v1899 = vsub.f32 %v1755, %v1804
    %v1900 = vsub.f32 %v1756, %v1808
    %v1901 = vsub.f32 %v1757, %v1796
    %v1902 = vsub.f32 %v1758, %v1800
    %v1903 = vsub.f32 %v1759, %v1804
    %v1904 = vsub.f32 %v1760, %v1808
    %v1905 = vsub.f32 %v1761, %v1796
    %v1906 = vsub.f32 %v1762, %v1800
    %v1907 = vsub.f32 %v1763, %v1804
    %v1908 = vsub.f32 %v1764, %v1808
    %v1909 = vsub.f32 %v1765, %v1796
    %v1910 = vsub.f32 %v1766, %v1800
    %v1911 = vsub.f32 %v1767, %v1804
    %v1912 = vsub.f32 %v1768, %v1808
    %v1913 = vsub.f32 %v1769, %v1796
    %v1914 = vsub.f32 %v1770, %v1800
    %v1915 = vsub.f32 %v1771, %v1804
    %v1916 = vsub.f32 %v1772, %v1808
    %v1917 = vsub.f32 %v1773, %v1796
    %v1918 = vsub.f32 %v1774, %v1800
    %v1919 = vsub.f32 %v1775, %v1804
    %v1920 = vsub.f32 %v1776, %v1808
    %v1921 = vsub.f32 %v1777, %v1796
    %v1922 = vsub.f32 %v1778, %v1800
    %v1923 = vsub.f32 %v1779, %v1804
    %v1924 = vsub.f32 %v1780, %v1808
    %v1925 = vsub.f32 %v1781, %v1796
    %v1926 = vsub.f32 %v1782, %v1800
    %v1927 = vsub.f32 %v1783, %v1804
    %v1928 = vsub.f32 %v1784, %v1808
    %v1929 = vsub.f32 %v1785, %v1796
    %v1930 = vsub.f32 %v1786, %v1800
    %v1931 = vsub.f32 %v1787, %v1804
    %v1932 = vsub.f32 %v1788, %v1808
    %v1933 = vsub.f32 %v1789, %v1796
    %v1934 = vsub.f32 %v1790, %v1800
    %v1935 = vsub.f32 %v1791, %v1804
    %v1936 = vsub.f32 %v1792, %v1808
    %v1937 = vadd.f32 %v1809, %v1813
    %v1938 = vadd.f32 %v1937, %v1817
    %v1939 = vadd.f32 %v1938, %v1821
    %v1940 = vadd.f32 %v1939, %v1825
    %v1941 = vadd.f32 %v1940, %v1829
    %v1942 = vadd.f32 %v1941, %v1833
    %v1943 = vadd.f32 %v1942, %v1837
    %v1944 = vadd.f32 %v1943, %v1841
    %v1945 = vadd.f32 %v1944, %v1845
    %v1946 = vadd.f32 %v1945, %v1849
    %v1947 = vadd.f32 %v1946, %v1853
    %v1948 = vadd.f32 %v1947, %v1857
    %v1949 = vadd.f32 %v1948, %v1861
    %v1950 = vadd.f32 %v1949, %v1865
    %v1951 = vadd.f32 %v1950, %v1869
    %v1952 = vadd.f32 %v1951, %v1873
    %v1953 = vadd.f32 %v1952, %v1877
    %v1954 = vadd.f32 %v1953, %v1881
    %v1955 = vadd.f32 %v1954, %v1885
    %v1956 = vadd.f32 %v1955, %v1889
    %v1957 = vadd.f32 %v1956, %v1893
    %v1958 = vadd.f32 %v1957, %v1897
    %v1959 = vadd.f32 %v1958, %v1901
    %v1960 = vadd.f32 %v1959, %v1905
    %v1961 = vadd.f32 %v1960, %v1909
    %v1962 = vadd.f32 %v1961, %v1913
    %v1963 = vadd.f32 %v1962, %v1917
    %v1964 = vadd.f32 %v1963, %v1921
    %v1965 = vadd.f32 %v1964, %v1925
    %v1966 = vadd.f32 %v1965, %v1929
    %v1967 = vadd.f32 %v1966, %v1933
    %v1968 = vrot.slane %v1967, 4
    %v1969 = vadd.f32 %v1967, %v1968
    %v1970 = vrot.slane %v1969, 2
    %v1971 = vadd.f32 %v1969, %v1970
    %v1972 = vrot.slane %v1971, 1
    %v1973 = vadd.f32 %v1971, %v1972
    %v1974 = vadd.f32 %v1810, %v1814
    %v1975 = vadd.f32 %v1974, %v1818
    %v1976 = vadd.f32 %v1975, %v1822
    %v1977 = vadd.f32 %v1976, %v1826
    %v1978 = vadd.f32 %v1977, %v1830
    %v1979 = vadd.f32 %v1978, %v1834
    %v1980 = vadd.f32 %v1979, %v1838
    %v1981 = vadd.f32 %v1980, %v1842
    %v1982 = vadd.f32 %v1981, %v1846
    %v1983 = vadd.f32 %v1982, %v1850
    %v1984 = vadd.f32 %v1983, %v1854
    %v1985 = vadd.f32 %v1984, %v1858
    %v1986 = vadd.f32 %v1985, %v1862
    %v1987 = vadd.f32 %v1986, %v1866
    %v1988 = vadd.f32 %v1987, %v1870
    %v1989 = vadd.f32 %v1988, %v1874
    %v1990 = vadd.f32 %v1989, %v1878
    %v1991 = vadd.f32 %v1990, %v1882
    %v1992 = vadd.f32 %v1991, %v1886
    %v1993 = vadd.f32 %v1992, %v1890
    %v1994 = vadd.f32 %v1993, %v1894
    %v1995 = vadd.f32 %v1994, %v1898
    %v1996 = vadd.f32 %v1995, %v1902
    %v1997 = vadd.f32 %v1996, %v1906
    %v1998 = vadd.f32 %v1997, %v1910
    %v1999 = vadd.f32 %v1998, %v1914
    %v2000 = vadd.f32 %v1999, %v1918
    %v2001 = vadd.f32 %v2000, %v1922
    %v2002 = vadd.f32 %v2001, %v1926
    %v2003 = vadd.f32 %v2002, %v1930
    %v2004 = vadd.f32 %v2003, %v1934
    %v2005 = vrot.slane %v2004, 4
    %v2006 = vadd.f32 %v2004, %v2005
    %v2007 = vrot.slane %v2006, 2
    %v2008 = vadd.f32 %v2006, %v2007
    %v2009 = vrot.slane %v2008, 1
    %v2010 = vadd.f32 %v2008, %v2009
    %v2011 = vadd.f32 %v1811, %v1815
    %v2012 = vadd.f32 %v2011, %v1819
    %v2013 = vadd.f32 %v2012, %v1823
    %v2014 = vadd.f32 %v2013, %v1827
    %v2015 = vadd.f32 %v2014, %v1831
    %v2016 = vadd.f32 %v2015, %v1835
    %v2017 = vadd.f32 %v2016, %v1839
    %v2018 = vadd.f32 %v2017, %v1843
    %v2019 = vadd.f32 %v2018, %v1847
    %v2020 = vadd.f32 %v2019, %v1851
    %v2021 = vadd.f32 %v2020, %v1855
    %v2022 = vadd.f32 %v2021, %v1859
    %v2023 = vadd.f32 %v2022, %v1863
    %v2024 = vadd.f32 %v2023, %v1867
    %v2025 = vadd.f32 %v2024, %v1871
    %v2026 = vadd.f32 %v2025, %v1875
    %v2027 = vadd.f32 %v2026, %v1879
    %v2028 = vadd.f32 %v2027, %v1883
    %v2029 = vadd.f32 %v2028, %v1887
    %v2030 = vadd.f32 %v2029, %v1891
    %v2031 = vadd.f32 %v2030, %v1895
    %v2032 = vadd.f32 %v2031, %v1899
    %v2033 = vadd.f32 %v2032, %v1903
    %v2034 = vadd.f32 %v2033, %v1907
    %v2035 = vadd.f32 %v2034, %v1911
    %v2036 = vadd.f32 %v2035, %v1915
    %v2037 = vadd.f32 %v2036, %v1919
    %v2038 = vadd.f32 %v2037, %v1923
    %v2039 = vadd.f32 %v2038, %v1927
    %v2040 = vadd.f32 %v2039, %v1931
    %v2041 = vadd.f32 %v2040, %v1935
    %v2042 = vrot.slane %v2041, 4
    %v2043 = vadd.f32 %v2041, %v2042
    %v2044 = vrot.slane %v2043, 2
    %v2045 = vadd.f32 %v2043, %v2044
    %v2046 = vrot.slane %v2045, 1
    %v2047 = vadd.f32 %v2045, %v2046
    %v2048 = vadd.f32 %v1812, %v1816
    %v2049 = vadd.f32 %v2048, %v1820
    %v2050 = vadd.f32 %v2049, %v1824
    %v2051 = vadd.f32 %v2050, %v1828
    %v2052 = vadd.f32 %v2051, %v1832
    %v2053 = vadd.f32 %v2052, %v1836
    %v2054 = vadd.f32 %v2053, %v1840
    %v2055 = vadd.f32 %v2054, %v1844
    %v2056 = vadd.f32 %v2055, %v1848
    %v2057 = vadd.f32 %v2056, %v1852
    %v2058 = vadd.f32 %v2057, %v1856
    %v2059 = vadd.f32 %v2058, %v1860
    %v2060 = vadd.f32 %v2059, %v1864
    %v2061 = vadd.f32 %v2060, %v1868
    %v2062 = vadd.f32 %v2061, %v1872
    %v2063 = vadd.f32 %v2062, %v1876
    %v2064 = vadd.f32 %v2063, %v1880
    %v2065 = vadd.f32 %v2064, %v1884
    %v2066 = vadd.f32 %v2065, %v1888
    %v2067 = vadd.f32 %v2066, %v1892
    %v2068 = vadd.f32 %v2067, %v1896
    %v2069 = vadd.f32 %v2068, %v1900
    %v2070 = vadd.f32 %v2069, %v1904
    %v2071 = vadd.f32 %v2070, %v1908
    %v2072 = vadd.f32 %v2071, %v1912
    %v2073 = vadd.f32 %v2072, %v1916
    %v2074 = vadd.f32 %v2073, %v1920
    %v2075 = vadd.f32 %v2074, %v1924
    %v2076 = vadd.f32 %v2075, %v1928
    %v2077 = vadd.f32 %v2076, %v1932
    %v2078 = vadd.f32 %v2077, %v1936
    %v2079 = vrot.slane %v2078, 4
    %v2080 = vadd.f32 %v2078, %v2079
    %v2081 = vrot.slane %v2080, 2
    %v2082 = vadd.f32 %v2080, %v2081
    %v2083 = vrot.slane %v2082, 1
    %v2084 = vadd.f32 %v2082, %v2083
    %v2085 = vmul.f32 %v1973, 0.00390625
    %v2086 = vmul.f32 %v2010, 0.00390625
    %v2087 = vmul.f32 %v2047, 0.00390625
    %v2088 = vmul.f32 %v2084, 0.00390625
    %v2089 = vmul.f32 %v1809, %v1809
    %v2090 = vmul.f32 %v1810, %v1810
    %v2091 = vmul.f32 %v1811, %v1811
    %v2092 = vmul.f32 %v1812, %v1812
    %v2093 = vmul.f32 %v1813, %v1813
    %v2094 = vmul.f32 %v1814, %v1814
    %v2095 = vmul.f32 %v1815, %v1815
    %v2096 = vmul.f32 %v1816, %v1816
    %v2097 = vmul.f32 %v1817, %v1817
    %v2098 = vmul.f32 %v1818, %v1818
    %v2099 = vmul.f32 %v1819, %v1819
    %v2100 = vmul.f32 %v1820, %v1820
    %v2101 = vmul.f32 %v1821, %v1821
    %v2102 = vmul.f32 %v1822, %v1822
    %v2103 = vmul.f32 %v1823, %v1823
    %v2104 = vmul.f32 %v1824, %v1824
    %v2105 = vmul.f32 %v1825, %v1825
    %v2106 = vmul.f32 %v1826, %v1826
    %v2107 = vmul.f32 %v1827, %v1827
    %v2108 = vmul.f32 %v1828, %v1828
    %v2109 = vmul.f32 %v1829, %v1829
    %v2110 = vmul.f32 %v1830, %v1830
    %v2111 = vmul.f32 %v1831, %v1831
    %v2112 = vmul.f32 %v1832, %v1832
    %v2113 = vmul.f32 %v1833, %v1833
    %v2114 = vmul.f32 %v1834, %v1834
    %v2115 = vmul.f32 %v1835, %v1835
    %v2116 = vmul.f32 %v1836, %v1836
    %v2117 = vmul.f32 %v1837, %v1837
    %v2118 = vmul.f32 %v1838, %v1838
    %v2119 = vmul.f32 %v1839, %v1839
    %v2120 = vmul.f32 %v1840, %v1840
    %v2121 = vmul.f32 %v1841, %v1841
    %v2122 = vmul.f32 %v1842, %v1842
    %v2123 = vmul.f32 %v1843, %v1843
    %v2124 = vmul.f32 %v1844, %v1844
    %v2125 = vmul.f32 %v1845, %v1845
    %v2126 = vmul.f32 %v1846, %v1846
    %v2127 = vmul.f32 %v1847, %v1847
    %v2128 = vmul.f32 %v1848, %v1848
    %v2129 = vmul.f32 %v1849, %v1849
    %v2130 = vmul.f32 %v1850, %v1850
    %v2131 = vmul.f32 %v1851, %v1851
    %v2132 = vmul.f32 %v1852, %v1852
    %v2133 = vmul.f32 %v1853, %v1853
    %v2134 = vmul.f32 %v1854, %v1854
    %v2135 = vmul.f32 %v1855, %v1855
    %v2136 = vmul.f32 %v1856, %v1856
    %v2137 = vmul.f32 %v1857, %v1857
    %v2138 = vmul.f32 %v1858, %v1858
    %v2139 = vmul.f32 %v1859, %v1859
    %v2140 = vmul.f32 %v1860, %v1860
    %v2141 = vmul.f32 %v1861, %v1861
    %v2142 = vmul.f32 %v1862, %v1862
    %v2143 = vmul.f32 %v1863, %v1863
    %v2144 = vmul.f32 %v1864, %v1864
    %v2145 = vmul.f32 %v1865, %v1865
    %v2146 = vmul.f32 %v1866, %v1866
    %v2147 = vmul.f32 %v1867, %v1867
    %v2148 = vmul.f32 %v1868, %v1868
    %v2149 = vmul.f32 %v1869, %v1869
    %v2150 = vmul.f32 %v1870, %v1870
    %v2151 = vmul.f32 %v1871, %v1871
    %v2152 = vmul.f32 %v1872, %v1872
    %v2153 = vmul.f32 %v1873, %v1873
    %v2154 = vmul.f32 %v1874, %v1874
    %v2155 = vmul.f32 %v1875, %v1875
    %v2156 = vmul.f32 %v1876, %v1876
    %v2157 = vmul.f32 %v1877, %v1877
    %v2158 = vmul.f32 %v1878, %v1878
    %v2159 = vmul.f32 %v1879, %v1879
    %v2160 = vmul.f32 %v1880, %v1880
    %v2161 = vmul.f32 %v1881, %v1881
    %v2162 = vmul.f32 %v1882, %v1882
    %v2163 = vmul.f32 %v1883, %v1883
    %v2164 = vmul.f32 %v1884, %v1884
    %v2165 = vmul.f32 %v1885, %v1885
    %v2166 = vmul.f32 %v1886, %v1886
    %v2167 = vmul.f32 %v1887, %v1887
    %v2168 = vmul.f32 %v1888, %v1888
    %v2169 = vmul.f32 %v1889, %v1889
    %v2170 = vmul.f32 %v1890, %v1890
    %v2171 = vmul.f32 %v1891, %v1891
    %v2172 = vmul.f32 %v1892, %v1892
    %v2173 = vmul.f32 %v1893, %v1893
    %v2174 = vmul.f32 %v1894, %v1894
    %v2175 = vmul.f32 %v1895, %v1895
    %v2176 = vmul.f32 %v1896, %v1896
    %v2177 = vmul.f32 %v1897, %v1897
    %v2178 = vmul.f32 %v1898, %v1898
    %v2179 = vmul.f32 %v1899, %v1899
    %v2180 = vmul.f32 %v1900, %v1900
    %v2181 = vmul.f32 %v1901, %v1901
    %v2182 = vmul.f32 %v1902, %v1902
    %v2183 = vmul.f32 %v1903, %v1903
    %v2184 = vmul.f32 %v1904, %v1904
    %v2185 = vmul.f32 %v1905, %v1905
    %v2186 = vmul.f32 %v1906, %v1906
    %v2187 = vmul.f32 %v1907, %v1907
    %v2188 = vmul.f32 %v1908, %v1908
    %v2189 = vmul.f32 %v1909, %v1909
    %v2190 = vmul.f32 %v1910, %v1910
    %v2191 = vmul.f32 %v1911, %v1911
    %v2192 = vmul.f32 %v1912, %v1912
    %v2193 = vmul.f32 %v1913, %v1913
    %v2194 = vmul.f32 %v1914, %v1914
    %v2195 = vmul.f32 %v1915, %v1915
    %v2196 = vmul.f32 %v1916, %v1916
    %v2197 = vmul.f32 %v1917, %v1917
    %v2198 = vmul.f32 %v1918, %v1918
    %v2199 = vmul.f32 %v1919, %v1919
    %v2200 = vmul.f32 %v1920, %v1920
    %v2201 = vmul.f32 %v1921, %v1921
    %v2202 = vmul.f32 %v1922, %v1922
    %v2203 = vmul.f32 %v1923, %v1923
    %v2204 = vmul.f32 %v1924, %v1924
    %v2205 = vmul.f32 %v1925, %v1925
    %v2206 = vmul.f32 %v1926, %v1926
    %v2207 = vmul.f32 %v1927, %v1927
    %v2208 = vmul.f32 %v1928, %v1928
    %v2209 = vmul.f32 %v1929, %v1929
    %v2210 = vmul.f32 %v1930, %v1930
    %v2211 = vmul.f32 %v1931, %v1931
    %v2212 = vmul.f32 %v1932, %v1932
    %v2213 = vmul.f32 %v1933, %v1933
    %v2214 = vmul.f32 %v1934, %v1934
    %v2215 = vmul.f32 %v1935, %v1935
    %v2216 = vmul.f32 %v1936, %v1936
    %v2217 = vadd.f32 %v2089, %v2093
    %v2218 = vadd.f32 %v2217, %v2097
    %v2219 = vadd.f32 %v2218, %v2101
    %v2220 = vadd.f32 %v2219, %v2105
    %v2221 = vadd.f32 %v2220, %v2109
    %v2222 = vadd.f32 %v2221, %v2113
    %v2223 = vadd.f32 %v2222, %v2117
    %v2224 = vadd.f32 %v2223, %v2121
    %v2225 = vadd.f32 %v2224, %v2125
    %v2226 = vadd.f32 %v2225, %v2129
    %v2227 = vadd.f32 %v2226, %v2133
    %v2228 = vadd.f32 %v2227, %v2137
    %v2229 = vadd.f32 %v2228, %v2141
    %v2230 = vadd.f32 %v2229, %v2145
    %v2231 = vadd.f32 %v2230, %v2149
    %v2232 = vadd.f32 %v2231, %v2153
    %v2233 = vadd.f32 %v2232, %v2157
    %v2234 = vadd.f32 %v2233, %v2161
    %v2235 = vadd.f32 %v2234, %v2165
    %v2236 = vadd.f32 %v2235, %v2169
    %v2237 = vadd.f32 %v2236, %v2173
    %v2238 = vadd.f32 %v2237, %v2177
    %v2239 = vadd.f32 %v2238, %v2181
    %v2240 = vadd.f32 %v2239, %v2185
    %v2241 = vadd.f32 %v2240, %v2189
    %v2242 = vadd.f32 %v2241, %v2193
    %v2243 = vadd.f32 %v2242, %v2197
    %v2244 = vadd.f32 %v2243, %v2201
    %v2245 = vadd.f32 %v2244, %v2205
    %v2246 = vadd.f32 %v2245, %v2209
    %v2247 = vadd.f32 %v2246, %v2213
    %v2248 = vrot.slane %v2247, 4
    %v2249 = vadd.f32 %v2247, %v2248
    %v2250 = vrot.slane %v2249, 2
    %v2251 = vadd.f32 %v2249, %v2250
    %v2252 = vrot.slane %v2251, 1
    %v2253 = vadd.f32 %v2251, %v2252
    %v2254 = vadd.f32 %v2090, %v2094
    %v2255 = vadd.f32 %v2254, %v2098
    %v2256 = vadd.f32 %v2255, %v2102
    %v2257 = vadd.f32 %v2256, %v2106
    %v2258 = vadd.f32 %v2257, %v2110
    %v2259 = vadd.f32 %v2258, %v2114
    %v2260 = vadd.f32 %v2259, %v2118
    %v2261 = vadd.f32 %v2260, %v2122
    %v2262 = vadd.f32 %v2261, %v2126
    %v2263 = vadd.f32 %v2262, %v2130
    %v2264 = vadd.f32 %v2263, %v2134
    %v2265 = vadd.f32 %v2264, %v2138
    %v2266 = vadd.f32 %v2265, %v2142
    %v2267 = vadd.f32 %v2266, %v2146
    %v2268 = vadd.f32 %v2267, %v2150
    %v2269 = vadd.f32 %v2268, %v2154
    %v2270 = vadd.f32 %v2269, %v2158
    %v2271 = vadd.f32 %v2270, %v2162
    %v2272 = vadd.f32 %v2271, %v2166
    %v2273 = vadd.f32 %v2272, %v2170
    %v2274 = vadd.f32 %v2273, %v2174
    %v2275 = vadd.f32 %v2274, %v2178
    %v2276 = vadd.f32 %v2275, %v2182
    %v2277 = vadd.f32 %v2276, %v2186
    %v2278 = vadd.f32 %v2277, %v2190
    %v2279 = vadd.f32 %v2278, %v2194
    %v2280 = vadd.f32 %v2279, %v2198
    %v2281 = vadd.f32 %v2280, %v2202
    %v2282 = vadd.f32 %v2281, %v2206
    %v2283 = vadd.f32 %v2282, %v2210
    %v2284 = vadd.f32 %v2283, %v2214
    %v2285 = vrot.slane %v2284, 4
    %v2286 = vadd.f32 %v2284, %v2285
    %v2287 = vrot.slane %v2286, 2
    %v2288 = vadd.f32 %v2286, %v2287
    %v2289 = vrot.slane %v2288, 1
    %v2290 = vadd.f32 %v2288, %v2289
    %v2291 = vadd.f32 %v2091, %v2095
    %v2292 = vadd.f32 %v2291, %v2099
    %v2293 = vadd.f32 %v2292, %v2103
    %v2294 = vadd.f32 %v2293, %v2107
    %v2295 = vadd.f32 %v2294, %v2111
    %v2296 = vadd.f32 %v2295, %v2115
    %v2297 = vadd.f32 %v2296, %v2119
    %v2298 = vadd.f32 %v2297, %v2123
    %v2299 = vadd.f32 %v2298, %v2127
    %v2300 = vadd.f32 %v2299, %v2131
    %v2301 = vadd.f32 %v2300, %v2135
    %v2302 = vadd.f32 %v2301, %v2139
    %v2303 = vadd.f32 %v2302, %v2143
    %v2304 = vadd.f32 %v2303, %v2147
    %v2305 = vadd.f32 %v2304, %v2151
    %v2306 = vadd.f32 %v2305, %v2155
    %v2307 = vadd.f32 %v2306, %v2159
    %v2308 = vadd.f32 %v2307, %v2163
    %v2309 = vadd.f32 %v2308, %v2167
    %v2310 = vadd.f32 %v2309, %v2171
    %v2311 = vadd.f32 %v2310, %v2175
    %v2312 = vadd.f32 %v2311, %v2179
    %v2313 = vadd.f32 %v2312, %v2183
    %v2314 = vadd.f32 %v2313, %v2187
    %v2315 = vadd.f32 %v2314, %v2191
    %v2316 = vadd.f32 %v2315, %v2195
    %v2317 = vadd.f32 %v2316, %v2199
    %v2318 = vadd.f32 %v2317, %v2203
    %v2319 = vadd.f32 %v2318, %v2207
    %v2320 = vadd.f32 %v2319, %v2211
    %v2321 = vadd.f32 %v2320, %v2215
    %v2322 = vrot.slane %v2321, 4
    %v2323 = vadd.f32 %v2321, %v2322
    %v2324 = vrot.slane %v2323, 2
    %v2325 = vadd.f32 %v2323, %v2324
    %v2326 = vrot.slane %v2325, 1
    %v2327 = vadd.f32 %v2325, %v2326
    %v2328 = vadd.f32 %v2092, %v2096
    %v2329 = vadd.f32 %v2328, %v2100
    %v2330 = vadd.f32 %v2329, %v2104
    %v2331 = vadd.f32 %v2330, %v2108
    %v2332 = vadd.f32 %v2331, %v2112
    %v2333 = vadd.f32 %v2332, %v2116
    %v2334 = vadd.f32 %v2333, %v2120
    %v2335 = vadd.f32 %v2334, %v2124
    %v2336 = vadd.f32 %v2335, %v2128
    %v2337 = vadd.f32 %v2336, %v2132
    %v2338 = vadd.f32 %v2337, %v2136
    %v2339 = vadd.f32 %v2338, %v2140
    %v2340 = vadd.f32 %v2339, %v2144
    %v2341 = vadd.f32 %v2340, %v2148
    %v2342 = vadd.f32 %v2341, %v2152
    %v2343 = vadd.f32 %v2342, %v2156
    %v2344 = vadd.f32 %v2343, %v2160
    %v2345 = vadd.f32 %v2344, %v2164
    %v2346 = vadd.f32 %v2345, %v2168
    %v2347 = vadd.f32 %v2346, %v2172
    %v2348 = vadd.f32 %v2347, %v2176
    %v2349 = vadd.f32 %v2348, %v2180
    %v2350 = vadd.f32 %v2349, %v2184
    %v2351 = vadd.f32 %v2350, %v2188
    %v2352 = vadd.f32 %v2351, %v2192
    %v2353 = vadd.f32 %v2352, %v2196
    %v2354 = vadd.f32 %v2353, %v2200
    %v2355 = vadd.f32 %v2354, %v2204
    %v2356 = vadd.f32 %v2355, %v2208
    %v2357 = vadd.f32 %v2356, %v2212
    %v2358 = vadd.f32 %v2357, %v2216
    %v2359 = vrot.slane %v2358, 4
    %v2360 = vadd.f32 %v2358, %v2359
    %v2361 = vrot.slane %v2360, 2
    %v2362 = vadd.f32 %v2360, %v2361
    %v2363 = vrot.slane %v2362, 1
    %v2364 = vadd.f32 %v2362, %v2363
    %v2365 = vmul.f32 %v2253, 0.00390625
    %v2366 = vmul.f32 %v2290, 0.00390625
    %v2367 = vmul.f32 %v2327, 0.00390625
    %v2368 = vmul.f32 %v2364, 0.00390625
    %v2369 = vmul.f32 %v2085, %v2085
    %v2370 = vmul.f32 %v2086, %v2086
    %v2371 = vmul.f32 %v2087, %v2087
    %v2372 = vmul.f32 %v2088, %v2088
    %v2373 = vsub.f32 %v2365, %v2369
    %v2374 = vsub.f32 %v2366, %v2370
    %v2375 = vsub.f32 %v2367, %v2371
    %v2376 = vsub.f32 %v2368, %v2372
    %v2377 = vmax.f32 %v2373, 0.0
    %v2378 = vmax.f32 %v2374, 0.0
    %v2379 = vmax.f32 %v2375, 0.0
    %v2380 = vmax.f32 %v2376, 0.0
    %v2381 = vadd.f32 %v1665, %v2085
    %v2382 = vadd.f32 %v1666, %v2086
    %v2383 = vadd.f32 %v1667, %v2087
    %v2384 = vadd.f32 %v1668, %v2088
    %v2389 = vrot.slane %v2381, 6
    %v2390 = vrot.slane %v2382, 6
    %v2391 = vrot.slane %v2383, 6
    %v2392 = vrot.slane %v2384, 6
    %v2397 = vmul.f32 %v150, %v2389
    %v2398 = vmul.f32 %v151, %v2390
    %v2399 = vmul.f32 %v152, %v2391
    %v2400 = vmul.f32 %v153, %v2392
    %v2401 = vmul.f32 %v150, %v150
    %v2402 = vmul.f32 %v151, %v151
    %v2403 = vmul.f32 %v152, %v152
    %v2404 = vmul.f32 %v153, %v153
    %v2405 = vmul.f32 %v2401, %v2377
    %v2406 = vmul.f32 %v2402, %v2378
    %v2407 = vmul.f32 %v2403, %v2379
    %v2408 = vmul.f32 %v2404, %v2380
    %v2409 = vadd.f32 %v2405, 1e-05
    %v2410 = vadd.f32 %v2406, 1e-05
    %v2411 = vadd.f32 %v2407, 1e-05
    %v2412 = vadd.f32 %v2408, 1e-05
    %v2413 = vrsqrt.pop %v2409
    %v2414 = vrsqrt.pop %v2410
    %v2415 = vrsqrt.pop %v2411
    %v2416 = vrsqrt.pop %v2412
    %v2421 = vrot.slane %v2413, 7
    %v2422 = vrot.slane %v2414, 7
    %v2423 = vrot.slane %v2415, 7
    %v2424 = vrot.slane %v2416, 7
    %v2429 = vmul.f32 %v150, %v2421
    %v2430 = vmul.f32 %v151, %v2422
    %v2431 = vmul.f32 %v152, %v2423
    %v2432 = vmul.f32 %v153, %v2424
    %v2437 = vrot.slane %v2429, 1
    %v2438 = vrot.slane %v2430, 1
    %v2439 = vrot.slane %v2431, 1
    %v2440 = vrot.slane %v2432, 1
    %v2445 = vmul.f32 %v2397, %v2437
    %v2446 = vmul.f32 %v2398, %v2438
    %v2447 = vmul.f32 %v2399, %v2439
    %v2448 = vmul.f32 %v2400, %v2440
    %v2453 = vrot.slane %v2445, 6
    %v2454 = vrot.slane %v2446, 6
    %v2455 = vrot.slane %v2447, 6
    %v2456 = vrot.slane %v2448, 6
    %v2461 = vsub.f32 %v150, %v2453
    %v2462 = vsub.f32 %v151, %v2454
    %v2463 = vsub.f32 %v152, %v2455
    %v2464 = vsub.f32 %v153, %v2456
    %v2465 = vmul.f32 %v150, %v2437
    %v2466 = vmul.f32 %v151, %v2438
    %v2467 = vmul.f32 %v152, %v2439
    %v2468 = vmul.f32 %v153, %v2440
    %v2469 = vlaneseq
    %v2470 = vshrl.u32 %v2469, 7
    %v2471 = vsub.s32 2, %v2470
    %v2472 = vrot.slane %v2465, %v2471
    %v2473 = vlaneseq
    %v2474 = vshrl.u32 %v2473, 7
    %v2475 = vsub.s32 2, %v2474
    %v2476 = vrot.slane %v2466, %v2475
    %v2477 = vlaneseq
    %v2478 = vshrl.u32 %v2477, 7
    %v2479 = vsub.s32 2, %v2478
    %v2480 = vrot.slane %v2467, %v2479
    %v2481 = vlaneseq
    %v2482 = vshrl.u32 %v2481, 7
    %v2483 = vsub.s32 2, %v2482
    %v2484 = vrot.slane %v2468, %v2483
    %v2485 = vmul.f32 %v1665, %v2472
    %v2486 = vmul.f32 %v1666, %v2476
    %v2487 = vmul.f32 %v1667, %v2480
    %v2488 = vmul.f32 %v1668, %v2484
    %v2489 = vmul.f32 %v1669, %v2472
    %v2490 = vmul.f32 %v1670, %v2476
    %v2491 = vmul.f32 %v1671, %v2480
    %v2492 = vmul.f32 %v1672, %v2484
    %v2493 = vmul.f32 %v1673, %v2472
    %v2494 = vmul.f32 %v1674, %v2476
    %v2495 = vmul.f32 %v1675, %v2480
    %v2496 = vmul.f32 %v1676, %v2484
    %v2497 = vmul.f32 %v1677, %v2472
    %v2498 = vmul.f32 %v1678, %v2476
    %v2499 = vmul.f32 %v1679, %v2480
    %v2500 = vmul.f32 %v1680, %v2484
    %v2501 = vmul.f32 %v1681, %v2472
    %v2502 = vmul.f32 %v1682, %v2476
    %v2503 = vmul.f32 %v1683, %v2480
    %v2504 = vmul.f32 %v1684, %v2484
    %v2505 = vmul.f32 %v1685, %v2472
    %v2506 = vmul.f32 %v1686, %v2476
    %v2507 = vmul.f32 %v1687, %v2480
    %v2508 = vmul.f32 %v1688, %v2484
    %v2509 = vmul.f32 %v1689, %v2472
    %v2510 = vmul.f32 %v1690, %v2476
    %v2511 = vmul.f32 %v1691, %v2480
    %v2512 = vmul.f32 %v1692, %v2484
    %v2513 = vmul.f32 %v1693, %v2472
    %v2514 = vmul.f32 %v1694, %v2476
    %v2515 = vmul.f32 %v1695, %v2480
    %v2516 = vmul.f32 %v1696, %v2484
    %v2517 = vmul.f32 %v1697, %v2472
    %v2518 = vmul.f32 %v1698, %v2476
    %v2519 = vmul.f32 %v1699, %v2480
    %v2520 = vmul.f32 %v1700, %v2484
    %v2521 = vmul.f32 %v1701, %v2472
    %v2522 = vmul.f32 %v1702, %v2476
    %v2523 = vmul.f32 %v1703, %v2480
    %v2524 = vmul.f32 %v1704, %v2484
    %v2525 = vmul.f32 %v1705, %v2472
    %v2526 = vmul.f32 %v1706, %v2476
    %v2527 = vmul.f32 %v1707, %v2480
    %v2528 = vmul.f32 %v1708, %v2484
    %v2529 = vmul.f32 %v1709, %v2472
    %v2530 = vmul.f32 %v1710, %v2476
    %v2531 = vmul.f32 %v1711, %v2480
    %v2532 = vmul.f32 %v1712, %v2484
    %v2533 = vmul.f32 %v1713, %v2472
    %v2534 = vmul.f32 %v1714, %v2476
    %v2535 = vmul.f32 %v1715, %v2480
    %v2536 = vmul.f32 %v1716, %v2484
    %v2537 = vmul.f32 %v1717, %v2472
    %v2538 = vmul.f32 %v1718, %v2476
    %v2539 = vmul.f32 %v1719, %v2480
    %v2540 = vmul.f32 %v1720, %v2484
    %v2541 = vmul.f32 %v1721, %v2472
    %v2542 = vmul.f32 %v1722, %v2476
    %v2543 = vmul.f32 %v1723, %v2480
    %v2544 = vmul.f32 %v1724, %v2484
    %v2545 = vmul.f32 %v1725, %v2472
    %v2546 = vmul.f32 %v1726, %v2476
    %v2547 = vmul.f32 %v1727, %v2480
    %v2548 = vmul.f32 %v1728, %v2484
    %v2549 = vmul.f32 %v1729, %v2472
    %v2550 = vmul.f32 %v1730, %v2476
    %v2551 = vmul.f32 %v1731, %v2480
    %v2552 = vmul.f32 %v1732, %v2484
    %v2553 = vmul.f32 %v1733, %v2472
    %v2554 = vmul.f32 %v1734, %v2476
    %v2555 = vmul.f32 %v1735, %v2480
    %v2556 = vmul.f32 %v1736, %v2484
    %v2557 = vmul.f32 %v1737, %v2472
    %v2558 = vmul.f32 %v1738, %v2476
    %v2559 = vmul.f32 %v1739, %v2480
    %v2560 = vmul.f32 %v1740, %v2484
    %v2561 = vmul.f32 %v1741, %v2472
    %v2562 = vmul.f32 %v1742, %v2476
    %v2563 = vmul.f32 %v1743, %v2480
    %v2564 = vmul.f32 %v1744, %v2484
    %v2565 = vmul.f32 %v1745, %v2472
    %v2566 = vmul.f32 %v1746, %v2476
    %v2567 = vmul.f32 %v1747, %v2480
    %v2568 = vmul.f32 %v1748, %v2484
    %v2569 = vmul.f32 %v1749, %v2472
    %v2570 = vmul.f32 %v1750, %v2476
    %v2571 = vmul.f32 %v1751, %v2480
    %v2572 = vmul.f32 %v1752, %v2484
    %v2573 = vmul.f32 %v1753, %v2472
    %v2574 = vmul.f32 %v1754, %v2476
    %v2575 = vmul.f32 %v1755, %v2480
    %v2576 = vmul.f32 %v1756, %v2484
    %v2577 = vmul.f32 %v1757, %v2472
    %v2578 = vmul.f32 %v1758, %v2476
    %v2579 = vmul.f32 %v1759, %v2480
    %v2580 = vmul.f32 %v1760, %v2484
    %v2581 = vmul.f32 %v1761, %v2472
    %v2582 = vmul.f32 %v1762, %v2476
    %v2583 = vmul.f32 %v1763, %v2480
    %v2584 = vmul.f32 %v1764, %v2484
    %v2585 = vmul.f32 %v1765, %v2472
    %v2586 = vmul.f32 %v1766, %v2476
    %v2587 = vmul.f32 %v1767, %v2480
    %v2588 = vmul.f32 %v1768, %v2484
    %v2589 = vmul.f32 %v1769, %v2472
    %v2590 = vmul.f32 %v1770, %v2476
    %v2591 = vmul.f32 %v1771, %v2480
    %v2592 = vmul.f32 %v1772, %v2484
    %v2593 = vmul.f32 %v1773, %v2472
    %v2594 = vmul.f32 %v1774, %v2476
    %v2595 = vmul.f32 %v1775, %v2480
    %v2596 = vmul.f32 %v1776, %v2484
    %v2597 = vmul.f32 %v1777, %v2472
    %v2598 = vmul.f32 %v1778, %v2476
    %v2599 = vmul.f32 %v1779, %v2480
    %v2600 = vmul.f32 %v1780, %v2484
    %v2601 = vmul.f32 %v1781, %v2472
    %v2602 = vmul.f32 %v1782, %v2476
    %v2603 = vmul.f32 %v1783, %v2480
    %v2604 = vmul.f32 %v1784, %v2484
    %v2605 = vmul.f32 %v1785, %v2472
    %v2606 = vmul.f32 %v1786, %v2476
    %v2607 = vmul.f32 %v1787, %v2480
    %v2608 = vmul.f32 %v1788, %v2484
    %v2609 = vmul.f32 %v1789, %v2472
    %v2610 = vmul.f32 %v1790, %v2476
    %v2611 = vmul.f32 %v1791, %v2480
    %v2612 = vmul.f32 %v1792, %v2484
    %v2613 = vlaneseq
    %v2614 = vshrl.u32 %v2613, 7
    %v2615 = vsub.s32 4, %v2614
    %v2616 = vrot.slane %v2461, %v2615
    %v2617 = vlaneseq
    %v2618 = vshrl.u32 %v2617, 7
    %v2619 = vsub.s32 4, %v2618
    %v2620 = vrot.slane %v2462, %v2619
    %v2621 = vlaneseq
    %v2622 = vshrl.u32 %v2621, 7
    %v2623 = vsub.s32 4, %v2622
    %v2624 = vrot.slane %v2463, %v2623
    %v2625 = vlaneseq
    %v2626 = vshrl.u32 %v2625, 7
    %v2627 = vsub.s32 4, %v2626
    %v2628 = vrot.slane %v2464, %v2627
    %v2629 = vadd.f32 %v2485, %v2616
    %v2630 = vadd.f32 %v2486, %v2620
    %v2631 = vadd.f32 %v2487, %v2624
    %v2632 = vadd.f32 %v2488, %v2628
    %v2633 = vadd.f32 %v2489, %v2616
    %v2634 = vadd.f32 %v2490, %v2620
    %v2635 = vadd.f32 %v2491, %v2624
    %v2636 = vadd.f32 %v2492, %v2628
    %v2637 = vadd.f32 %v2493, %v2616
    %v2638 = vadd.f32 %v2494, %v2620
    %v2639 = vadd.f32 %v2495, %v2624
    %v2640 = vadd.f32 %v2496, %v2628
    %v2641 = vadd.f32 %v2497, %v2616
    %v2642 = vadd.f32 %v2498, %v2620
    %v2643 = vadd.f32 %v2499, %v2624
    %v2644 = vadd.f32 %v2500, %v2628
    %v2645 = vadd.f32 %v2501, %v2616
    %v2646 = vadd.f32 %v2502, %v2620
    %v2647 = vadd.f32 %v2503, %v2624
    %v2648 = vadd.f32 %v2504, %v2628
    %v2649 = vadd.f32 %v2505, %v2616
    %v2650 = vadd.f32 %v2506, %v2620
    %v2651 = vadd.f32 %v2507, %v2624
    %v2652 = vadd.f32 %v2508, %v2628
    %v2653 = vadd.f32 %v2509, %v2616
    %v2654 = vadd.f32 %v2510, %v2620
    %v2655 = vadd.f32 %v2511, %v2624
    %v2656 = vadd.f32 %v2512, %v2628
    %v2657 = vadd.f32 %v2513, %v2616
    %v2658 = vadd.f32 %v2514, %v2620
    %v2659 = vadd.f32 %v2515, %v2624
    %v2660 = vadd.f32 %v2516, %v2628
    %v2661 = vadd.f32 %v2517, %v2616
    %v2662 = vadd.f32 %v2518, %v2620
    %v2663 = vadd.f32 %v2519, %v2624
    %v2664 = vadd.f32 %v2520, %v2628
    %v2665 = vadd.f32 %v2521, %v2616
    %v2666 = vadd.f32 %v2522, %v2620
    %v2667 = vadd.f32 %v2523, %v2624
    %v2668 = vadd.f32 %v2524, %v2628
    %v2669 = vadd.f32 %v2525, %v2616
    %v2670 = vadd.f32 %v2526, %v2620
    %v2671 = vadd.f32 %v2527, %v2624
    %v2672 = vadd.f32 %v2528, %v2628
    %v2673 = vadd.f32 %v2529, %v2616
    %v2674 = vadd.f32 %v2530, %v2620
    %v2675 = vadd.f32 %v2531, %v2624
    %v2676 = vadd.f32 %v2532, %v2628
    %v2677 = vadd.f32 %v2533, %v2616
    %v2678 = vadd.f32 %v2534, %v2620
    %v2679 = vadd.f32 %v2535, %v2624
    %v2680 = vadd.f32 %v2536, %v2628
    %v2681 = vadd.f32 %v2537, %v2616
    %v2682 = vadd.f32 %v2538, %v2620
    %v2683 = vadd.f32 %v2539, %v2624
    %v2684 = vadd.f32 %v2540, %v2628
    %v2685 = vadd.f32 %v2541, %v2616
    %v2686 = vadd.f32 %v2542, %v2620
    %v2687 = vadd.f32 %v2543, %v2624
    %v2688 = vadd.f32 %v2544, %v2628
    %v2689 = vadd.f32 %v2545, %v2616
    %v2690 = vadd.f32 %v2546, %v2620
    %v2691 = vadd.f32 %v2547, %v2624
    %v2692 = vadd.f32 %v2548, %v2628
    %v2693 = vadd.f32 %v2549, %v2616
    %v2694 = vadd.f32 %v2550, %v2620
    %v2695 = vadd.f32 %v2551, %v2624
    %v2696 = vadd.f32 %v2552, %v2628
    %v2697 = vadd.f32 %v2553, %v2616
    %v2698 = vadd.f32 %v2554, %v2620
    %v2699 = vadd.f32 %v2555, %v2624
    %v2700 = vadd.f32 %v2556, %v2628
    %v2701 = vadd.f32 %v2557, %v2616
    %v2702 = vadd.f32 %v2558, %v2620
    %v2703 = vadd.f32 %v2559, %v2624
    %v2704 = vadd.f32 %v2560, %v2628
    %v2705 = vadd.f32 %v2561, %v2616
    %v2706 = vadd.f32 %v2562, %v2620
    %v2707 = vadd.f32 %v2563, %v2624
    %v2708 = vadd.f32 %v2564, %v2628
    %v2709 = vadd.f32 %v2565, %v2616
    %v2710 = vadd.f32 %v2566, %v2620
    %v2711 = vadd.f32 %v2567, %v2624
    %v2712 = vadd.f32 %v2568, %v2628
    %v2713 = vadd.f32 %v2569, %v2616
    %v2714 = vadd.f32 %v2570, %v2620
    %v2715 = vadd.f32 %v2571, %v2624
    %v2716 = vadd.f32 %v2572, %v2628
    %v2717 = vadd.f32 %v2573, %v2616
    %v2718 = vadd.f32 %v2574, %v2620
    %v2719 = vadd.f32 %v2575, %v2624
    %v2720 = vadd.f32 %v2576, %v2628
    %v2721 = vadd.f32 %v2577, %v2616
    %v2722 = vadd.f32 %v2578, %v2620
    %v2723 = vadd.f32 %v2579, %v2624
    %v2724 = vadd.f32 %v2580, %v2628
    %v2725 = vadd.f32 %v2581, %v2616
    %v2726 = vadd.f32 %v2582, %v2620
    %v2727 = vadd.f32 %v2583, %v2624
    %v2728 = vadd.f32 %v2584, %v2628
    %v2729 = vadd.f32 %v2585, %v2616
    %v2730 = vadd.f32 %v2586, %v2620
    %v2731 = vadd.f32 %v2587, %v2624
    %v2732 = vadd.f32 %v2588, %v2628
    %v2733 = vadd.f32 %v2589, %v2616
    %v2734 = vadd.f32 %v2590, %v2620
    %v2735 = vadd.f32 %v2591, %v2624
    %v2736 = vadd.f32 %v2592, %v2628
    %v2737 = vadd.f32 %v2593, %v2616
    %v2738 = vadd.f32 %v2594, %v2620
    %v2739 = vadd.f32 %v2595, %v2624
    %v2740 = vadd.f32 %v2596, %v2628
    %v2741 = vadd.f32 %v2597, %v2616
    %v2742 = vadd.f32 %v2598, %v2620
    %v2743 = vadd.f32 %v2599, %v2624
    %v2744 = vadd.f32 %v2600, %v2628
    %v2745 = vadd.f32 %v2601, %v2616
    %v2746 = vadd.f32 %v2602, %v2620
    %v2747 = vadd.f32 %v2603, %v2624
    %v2748 = vadd.f32 %v2604, %v2628
    %v2749 = vadd.f32 %v2605, %v2616
    %v2750 = vadd.f32 %v2606, %v2620
    %v2751 = vadd.f32 %v2607, %v2624
    %v2752 = vadd.f32 %v2608, %v2628
    %v2753 = vadd.f32 %v2609, %v2616
    %v2754 = vadd.f32 %v2610, %v2620
    %v2755 = vadd.f32 %v2611, %v2624
    %v2756 = vadd.f32 %v2612, %v2628
    %v2757 = vmax.f32 %v2629, 0.0
    %v2758 = vmax.f32 %v2630, 0.0
    %v2759 = vmax.f32 %v2631, 0.0
    %v2760 = vmax.f32 %v2632, 0.0
    %v2761 = vmax.f32 %v2633, 0.0
    %v2762 = vmax.f32 %v2634, 0.0
    %v2763 = vmax.f32 %v2635, 0.0
    %v2764 = vmax.f32 %v2636, 0.0
    %v2765 = vmax.f32 %v2637, 0.0
    %v2766 = vmax.f32 %v2638, 0.0
    %v2767 = vmax.f32 %v2639, 0.0
    %v2768 = vmax.f32 %v2640, 0.0
    %v2769 = vmax.f32 %v2641, 0.0
    %v2770 = vmax.f32 %v2642, 0.0
    %v2771 = vmax.f32 %v2643, 0.0
    %v2772 = vmax.f32 %v2644, 0.0
    %v2773 = vmax.f32 %v2645, 0.0
    %v2774 = vmax.f32 %v2646, 0.0
    %v2775 = vmax.f32 %v2647, 0.0
    %v2776 = vmax.f32 %v2648, 0.0
    %v2777 = vmax.f32 %v2649, 0.0
    %v2778 = vmax.f32 %v2650, 0.0
    %v2779 = vmax.f32 %v2651, 0.0
    %v2780 = vmax.f32 %v2652, 0.0
    %v2781 = vmax.f32 %v2653, 0.0
    %v2782 = vmax.f32 %v2654, 0.0
    %v2783 = vmax.f32 %v2655, 0.0
    %v2784 = vmax.f32 %v2656, 0.0
    %v2785 = vmax.f32 %v2657, 0.0
    %v2786 = vmax.f32 %v2658, 0.0
    %v2787 = vmax.f32 %v2659, 0.0
    %v2788 = vmax.f32 %v2660, 0.0
    %v2789 = vmax.f32 %v2661, 0.0
    %v2790 = vmax.f32 %v2662, 0.0
    %v2791 = vmax.f32 %v2663, 0.0
    %v2792 = vmax.f32 %v2664, 0.0
    %v2793 = vmax.f32 %v2665, 0.0
    %v2794 = vmax.f32 %v2666, 0.0
    %v2795 = vmax.f32 %v2667, 0.0
    %v2796 = vmax.f32 %v2668, 0.0
    %v2797 = vmax.f32 %v2669, 0.0
    %v2798 = vmax.f32 %v2670, 0.0
    %v2799 = vmax.f32 %v2671, 0.0
    %v2800 = vmax.f32 %v2672, 0.0
    %v2801 = vmax.f32 %v2673, 0.0
    %v2802 = vmax.f32 %v2674, 0.0
    %v2803 = vmax.f32 %v2675, 0.0
    %v2804 = vmax.f32 %v2676, 0.0
    %v2805 = vmax.f32 %v2677, 0.0
    %v2806 = vmax.f32 %v2678, 0.0
    %v2807 = vmax.f32 %v2679, 0.0
    %v2808 = vmax.f32 %v2680, 0.0
    %v2809 = vmax.f32 %v2681, 0.0
    %v2810 = vmax.f32 %v2682, 0.0
    %v2811 = vmax.f32 %v2683, 0.0
    %v2812 = vmax.f32 %v2684, 0.0
    %v2813 = vmax.f32 %v2685, 0.0
    %v2814 = vmax.f32 %v2686, 0.0
    %v2815 = vmax.f32 %v2687, 0.0
    %v2816 = vmax.f32 %v2688, 0.0
    %v2817 = vmax.f32 %v2689, 0.0
    %v2818 = vmax.f32 %v2690, 0.0
    %v2819 = vmax.f32 %v2691, 0.0
    %v2820 = vmax.f32 %v2692, 0.0
    %v2821 = vmax.f32 %v2693, 0.0
    %v2822 = vmax.f32 %v2694, 0.0
    %v2823 = vmax.f32 %v2695, 0.0
    %v2824 = vmax.f32 %v2696, 0.0
    %v2825 = vmax.f32 %v2697, 0.0
    %v2826 = vmax.f32 %v2698, 0.0
    %v2827 = vmax.f32 %v2699, 0.0
    %v2828 = vmax.f32 %v2700, 0.0
    %v2829 = vmax.f32 %v2701, 0.0
    %v2830 = vmax.f32 %v2702, 0.0
    %v2831 = vmax.f32 %v2703, 0.0
    %v2832 = vmax.f32 %v2704, 0.0
    %v2833 = vmax.f32 %v2705, 0.0
    %v2834 = vmax.f32 %v2706, 0.0
    %v2835 = vmax.f32 %v2707, 0.0
    %v2836 = vmax.f32 %v2708, 0.0
    %v2837 = vmax.f32 %v2709, 0.0
    %v2838 = vmax.f32 %v2710, 0.0
    %v2839 = vmax.f32 %v2711, 0.0
    %v2840 = vmax.f32 %v2712, 0.0
    %v2841 = vmax.f32 %v2713, 0.0
    %v2842 = vmax.f32 %v2714, 0.0
    %v2843 = vmax.f32 %v2715, 0.0
    %v2844 = vmax.f32 %v2716, 0.0
    %v2845 = vmax.f32 %v2717, 0.0
    %v2846 = vmax.f32 %v2718, 0.0
    %v2847 = vmax.f32 %v2719, 0.0
    %v2848 = vmax.f32 %v2720, 0.0
    %v2849 = vmax.f32 %v2721, 0.0
    %v2850 = vmax.f32 %v2722, 0.0
    %v2851 = vmax.f32 %v2723, 0.0
    %v2852 = vmax.f32 %v2724, 0.0
    %v2853 = vmax.f32 %v2725, 0.0
    %v2854 = vmax.f32 %v2726, 0.0
    %v2855 = vmax.f32 %v2727, 0.0
    %v2856 = vmax.f32 %v2728, 0.0
    %v2857 = vmax.f32 %v2729, 0.0
    %v2858 = vmax.f32 %v2730, 0.0
    %v2859 = vmax.f32 %v2731, 0.0
    %v2860 = vmax.f32 %v2732, 0.0
    %v2861 = vmax.f32 %v2733, 0.0
    %v2862 = vmax.f32 %v2734, 0.0
    %v2863 = vmax.f32 %v2735, 0.0
    %v2864 = vmax.f32 %v2736, 0.0
    %v2865 = vmax.f32 %v2737, 0.0
    %v2866 = vmax.f32 %v2738, 0.0
    %v2867 = vmax.f32 %v2739, 0.0
    %v2868 = vmax.f32 %v2740, 0.0
    %v2869 = vmax.f32 %v2741, 0.0
    %v2870 = vmax.f32 %v2742, 0.0
    %v2871 = vmax.f32 %v2743, 0.0
    %v2872 = vmax.f32 %v2744, 0.0
    %v2873 = vmax.f32 %v2745, 0.0
    %v2874 = vmax.f32 %v2746, 0.0
    %v2875 = vmax.f32 %v2747, 0.0
    %v2876 = vmax.f32 %v2748, 0.0
    %v2877 = vmax.f32 %v2749, 0.0
    %v2878 = vmax.f32 %v2750, 0.0
    %v2879 = vmax.f32 %v2751, 0.0
    %v2880 = vmax.f32 %v2752, 0.0
    %v2881 = vmax.f32 %v2753, 0.0
    %v2882 = vmax.f32 %v2754, 0.0
    %v2883 = vmax.f32 %v2755, 0.0
    %v2884 = vmax.f32 %v2756, 0.0
    %v2885 = vpack.c.bf16 %v2761, %v2757
    %v2886 = vpack.c.bf16 %v2762, %v2758
    %v2887 = vpack.c.bf16 %v2763, %v2759
    %v2888 = vpack.c.bf16 %v2764, %v2760
    %v2889 = vpack.c.bf16 %v2769, %v2765
    %v2890 = vpack.c.bf16 %v2770, %v2766
    %v2891 = vpack.c.bf16 %v2771, %v2767
    %v2892 = vpack.c.bf16 %v2772, %v2768
    %v2893 = vpack.c.bf16 %v2777, %v2773
    %v2894 = vpack.c.bf16 %v2778, %v2774
    %v2895 = vpack.c.bf16 %v2779, %v2775
    %v2896 = vpack.c.bf16 %v2780, %v2776
    %v2897 = vpack.c.bf16 %v2785, %v2781
    %v2898 = vpack.c.bf16 %v2786, %v2782
    %v2899 = vpack.c.bf16 %v2787, %v2783
    %v2900 = vpack.c.bf16 %v2788, %v2784
    %v2901 = vpack.c.bf16 %v2793, %v2789
    %v2902 = vpack.c.bf16 %v2794, %v2790
    %v2903 = vpack.c.bf16 %v2795, %v2791
    %v2904 = vpack.c.bf16 %v2796, %v2792
    %v2905 = vpack.c.bf16 %v2801, %v2797
    %v2906 = vpack.c.bf16 %v2802, %v2798
    %v2907 = vpack.c.bf16 %v2803, %v2799
    %v2908 = vpack.c.bf16 %v2804, %v2800
    %v2909 = vpack.c.bf16 %v2809, %v2805
    %v2910 = vpack.c.bf16 %v2810, %v2806
    %v2911 = vpack.c.bf16 %v2811, %v2807
    %v2912 = vpack.c.bf16 %v2812, %v2808
    %v2913 = vpack.c.bf16 %v2817, %v2813
    %v2914 = vpack.c.bf16 %v2818, %v2814
    %v2915 = vpack.c.bf16 %v2819, %v2815
    %v2916 = vpack.c.bf16 %v2820, %v2816
    %v2917 = vpack.c.bf16 %v2825, %v2821
    %v2918 = vpack.c.bf16 %v2826, %v2822
    %v2919 = vpack.c.bf16 %v2827, %v2823
    %v2920 = vpack.c.bf16 %v2828, %v2824
    %v2921 = vpack.c.bf16 %v2833, %v2829
    %v2922 = vpack.c.bf16 %v2834, %v2830
    %v2923 = vpack.c.bf16 %v2835, %v2831
    %v2924 = vpack.c.bf16 %v2836, %v2832
    %v2925 = vpack.c.bf16 %v2841, %v2837
    %v2926 = vpack.c.bf16 %v2842, %v2838
    %v2927 = vpack.c.bf16 %v2843, %v2839
    %v2928 = vpack.c.bf16 %v2844, %v2840
    %v2929 = vpack.c.bf16 %v2849, %v2845
    %v2930 = vpack.c.bf16 %v2850, %v2846
    %v2931 = vpack.c.bf16 %v2851, %v2847
    %v2932 = vpack.c.bf16 %v2852, %v2848
    %v2933 = vpack.c.bf16 %v2857, %v2853
    %v2934 = vpack.c.bf16 %v2858, %v2854
    %v2935 = vpack.c.bf16 %v2859, %v2855
    %v2936 = vpack.c.bf16 %v2860, %v2856
    %v2937 = vpack.c.bf16 %v2865, %v2861
    %v2938 = vpack.c.bf16 %v2866, %v2862
    %v2939 = vpack.c.bf16 %v2867, %v2863
    %v2940 = vpack.c.bf16 %v2868, %v2864
    %v2941 = vpack.c.bf16 %v2873, %v2869
    %v2942 = vpack.c.bf16 %v2874, %v2870
    %v2943 = vpack.c.bf16 %v2875, %v2871
    %v2944 = vpack.c.bf16 %v2876, %v2872
    %v2945 = vpack.c.bf16 %v2881, %v2877
    %v2946 = vpack.c.bf16 %v2882, %v2878
    %v2947 = vpack.c.bf16 %v2883, %v2879
    %v2948 = vpack.c.bf16 %v2884, %v2880
    %v2949 = vld [vmem:[#allocation6] sm:$0xff]
    %v2950 = vld [vmem:[#allocation6 + $0x8] sm:$0xff]
    %v2951 = vld [vmem:[#allocation6 + $0x10] sm:$0xff]
    %v2952 = vld [vmem:[#allocation6 + $0x18] sm:$0xff]
    %v2953 = vld [vmem:[#allocation6 + $0x20] sm:$0xff]
    %v2954 = vld [vmem:[#allocation6 + $0x28] sm:$0xff]
    %v2955 = vld [vmem:[#allocation6 + $0x30] sm:$0xff]
    %v2956 = vld [vmem:[#allocation6 + $0x38] sm:$0xff]
    %v2957 = vld [vmem:[#allocation6 + $0x40] sm:$0xff]
    %v2958 = vld [vmem:[#allocation6 + $0x48] sm:$0xff]
    %v2959 = vld [vmem:[#allocation6 + $0x50] sm:$0xff]
    %v2960 = vld [vmem:[#allocation6 + $0x58] sm:$0xff]
    %v2961 = vld [vmem:[#allocation6 + $0x60] sm:$0xff]
    %v2962 = vld [vmem:[#allocation6 + $0x68] sm:$0xff]
    %v2963 = vld [vmem:[#allocation6 + $0x70] sm:$0xff]
    %v2964 = vld [vmem:[#allocation6 + $0x78] sm:$0xff]
    %v2965 = vld [vmem:[#allocation6 + $0x80] sm:$0xff]
    %v2966 = vld [vmem:[#allocation6 + $0x88] sm:$0xff]
    %v2967 = vld [vmem:[#allocation6 + $0x90] sm:$0xff]
    %v2968 = vld [vmem:[#allocation6 + $0x98] sm:$0xff]
    %v2969 = vld [vmem:[#allocation6 + $0xa0] sm:$0xff]
    %v2970 = vld [vmem:[#allocation6 + $0xa8] sm:$0xff]
    %v2971 = vld [vmem:[#allocation6 + $0xb0] sm:$0xff]
    %v2972 = vld [vmem:[#allocation6 + $0xb8] sm:$0xff]
    %v2973 = vld [vmem:[#allocation6 + $0xc0] sm:$0xff]
    %v2974 = vld [vmem:[#allocation6 + $0xc8] sm:$0xff]
    %v2975 = vld [vmem:[#allocation6 + $0xd0] sm:$0xff]
    %v2976 = vld [vmem:[#allocation6 + $0xd8] sm:$0xff]
    %v2977 = vld [vmem:[#allocation6 + $0xe0] sm:$0xff]
    %v2978 = vld [vmem:[#allocation6 + $0xe8] sm:$0xff]
    %v2979 = vld [vmem:[#allocation6 + $0xf0] sm:$0xff]
    %v2980 = vld [vmem:[#allocation6 + $0xf8] sm:$0xff]
    %v2981 = vld [vmem:[#allocation6 + $0x100] sm:$0xff]
    %v2982 = vld [vmem:[#allocation6 + $0x108] sm:$0xff]
    %v2983 = vld [vmem:[#allocation6 + $0x110] sm:$0xff]
    %v2984 = vld [vmem:[#allocation6 + $0x118] sm:$0xff]
    %v2985 = vld [vmem:[#allocation6 + $0x120] sm:$0xff]
    %v2986 = vld [vmem:[#allocation6 + $0x128] sm:$0xff]
    %v2987 = vld [vmem:[#allocation6 + $0x130] sm:$0xff]
    %v2988 = vld [vmem:[#allocation6 + $0x138] sm:$0xff]
    %v2989 = vld [vmem:[#allocation6 + $0x140] sm:$0xff]
    %v2990 = vld [vmem:[#allocation6 + $0x148] sm:$0xff]
    %v2991 = vld [vmem:[#allocation6 + $0x150] sm:$0xff]
    %v2992 = vld [vmem:[#allocation6 + $0x158] sm:$0xff]
    %v2993 = vld [vmem:[#allocation6 + $0x160] sm:$0xff]
    %v2994 = vld [vmem:[#allocation6 + $0x168] sm:$0xff]
    %v2995 = vld [vmem:[#allocation6 + $0x170] sm:$0xff]
    %v2996 = vld [vmem:[#allocation6 + $0x178] sm:$0xff]
    %v2997 = vld [vmem:[#allocation6 + $0x180] sm:$0xff]
    %v2998 = vld [vmem:[#allocation6 + $0x188] sm:$0xff]
    %v2999 = vld [vmem:[#allocation6 + $0x190] sm:$0xff]
    %v3000 = vld [vmem:[#allocation6 + $0x198] sm:$0xff]
    %v3001 = vld [vmem:[#allocation6 + $0x1a0] sm:$0xff]
    %v3002 = vld [vmem:[#allocation6 + $0x1a8] sm:$0xff]
    %v3003 = vld [vmem:[#allocation6 + $0x1b0] sm:$0xff]
    %v3004 = vld [vmem:[#allocation6 + $0x1b8] sm:$0xff]
    %v3005 = vld [vmem:[#allocation6 + $0x1c0] sm:$0xff]
    %v3006 = vld [vmem:[#allocation6 + $0x1c8] sm:$0xff]
    %v3007 = vld [vmem:[#allocation6 + $0x1d0] sm:$0xff]
    %v3008 = vld [vmem:[#allocation6 + $0x1d8] sm:$0xff]
    %v3009 = vld [vmem:[#allocation6 + $0x1e0] sm:$0xff]
    %v3010 = vld [vmem:[#allocation6 + $0x1e8] sm:$0xff]
    %v3011 = vld [vmem:[#allocation6 + $0x1f0] sm:$0xff]
    %v3012 = vld [vmem:[#allocation6 + $0x1f8] sm:$0xff]
    %v3013 = vld [vmem:[#allocation6 + $0x200] sm:$0xff]
    %v3014 = vld [vmem:[#allocation6 + $0x208] sm:$0xff]
    %v3015 = vld [vmem:[#allocation6 + $0x210] sm:$0xff]
    %v3016 = vld [vmem:[#allocation6 + $0x218] sm:$0xff]
    %v3017 = vld [vmem:[#allocation6 + $0x220] sm:$0xff]
    %v3018 = vld [vmem:[#allocation6 + $0x228] sm:$0xff]
    %v3019 = vld [vmem:[#allocation6 + $0x230] sm:$0xff]
    %v3020 = vld [vmem:[#allocation6 + $0x238] sm:$0xff]
    %v3021 = vld [vmem:[#allocation6 + $0x240] sm:$0xff]
    %v3022 = vld [vmem:[#allocation6 + $0x248] sm:$0xff]
    %v3023 = vld [vmem:[#allocation6 + $0x250] sm:$0xff]
    %v3024 = vld [vmem:[#allocation6 + $0x258] sm:$0xff]
    %v3025 = vld [vmem:[#allocation6 + $0x260] sm:$0xff]
    %v3026 = vld [vmem:[#allocation6 + $0x268] sm:$0xff]
    %v3027 = vld [vmem:[#allocation6 + $0x270] sm:$0xff]
    %v3028 = vld [vmem:[#allocation6 + $0x278] sm:$0xff]
    %v3029 = vld [vmem:[#allocation6 + $0x280] sm:$0xff]
    %v3030 = vld [vmem:[#allocation6 + $0x288] sm:$0xff]
    %v3031 = vld [vmem:[#allocation6 + $0x290] sm:$0xff]
    %v3032 = vld [vmem:[#allocation6 + $0x298] sm:$0xff]
    %v3033 = vld [vmem:[#allocation6 + $0x2a0] sm:$0xff]
    %v3034 = vld [vmem:[#allocation6 + $0x2a8] sm:$0xff]
    %v3035 = vld [vmem:[#allocation6 + $0x2b0] sm:$0xff]
    %v3036 = vld [vmem:[#allocation6 + $0x2b8] sm:$0xff]
    %v3037 = vld [vmem:[#allocation6 + $0x2c0] sm:$0xff]
    %v3038 = vld [vmem:[#allocation6 + $0x2c8] sm:$0xff]
    %v3039 = vld [vmem:[#allocation6 + $0x2d0] sm:$0xff]
    %v3040 = vld [vmem:[#allocation6 + $0x2d8] sm:$0xff]
    %v3041 = vld [vmem:[#allocation6 + $0x2e0] sm:$0xff]
    %v3042 = vld [vmem:[#allocation6 + $0x2e8] sm:$0xff]
    %v3043 = vld [vmem:[#allocation6 + $0x2f0] sm:$0xff]
    %v3044 = vld [vmem:[#allocation6 + $0x2f8] sm:$0xff]
    %v3045 = vld [vmem:[#allocation6 + $0x300] sm:$0xff]
    %v3046 = vld [vmem:[#allocation6 + $0x308] sm:$0xff]
    %v3047 = vld [vmem:[#allocation6 + $0x310] sm:$0xff]
    %v3048 = vld [vmem:[#allocation6 + $0x318] sm:$0xff]
    %v3049 = vld [vmem:[#allocation6 + $0x320] sm:$0xff]
    %v3050 = vld [vmem:[#allocation6 + $0x328] sm:$0xff]
    %v3051 = vld [vmem:[#allocation6 + $0x330] sm:$0xff]
    %v3052 = vld [vmem:[#allocation6 + $0x338] sm:$0xff]
    %v3053 = vld [vmem:[#allocation6 + $0x340] sm:$0xff]
    %v3054 = vld [vmem:[#allocation6 + $0x348] sm:$0xff]
    %v3055 = vld [vmem:[#allocation6 + $0x350] sm:$0xff]
    %v3056 = vld [vmem:[#allocation6 + $0x358] sm:$0xff]
    %v3057 = vld [vmem:[#allocation6 + $0x360] sm:$0xff]
    %v3058 = vld [vmem:[#allocation6 + $0x368] sm:$0xff]
    %v3059 = vld [vmem:[#allocation6 + $0x370] sm:$0xff]
    %v3060 = vld [vmem:[#allocation6 + $0x378] sm:$0xff]
    %v3061 = vld [vmem:[#allocation6 + $0x380] sm:$0xff]
    %v3062 = vld [vmem:[#allocation6 + $0x388] sm:$0xff]
    %v3063 = vld [vmem:[#allocation6 + $0x390] sm:$0xff]
    %v3064 = vld [vmem:[#allocation6 + $0x398] sm:$0xff]
    %v3065 = vld [vmem:[#allocation6 + $0x3a0] sm:$0xff]
    %v3066 = vld [vmem:[#allocation6 + $0x3a8] sm:$0xff]
    %v3067 = vld [vmem:[#allocation6 + $0x3b0] sm:$0xff]
    %v3068 = vld [vmem:[#allocation6 + $0x3b8] sm:$0xff]
    %v3069 = vld [vmem:[#allocation6 + $0x3c0] sm:$0xff]
    %v3070 = vld [vmem:[#allocation6 + $0x3c8] sm:$0xff]
    %v3071 = vld [vmem:[#allocation6 + $0x3d0] sm:$0xff]
    %v3072 = vld [vmem:[#allocation6 + $0x3d8] sm:$0xff]
    %v3073 = vld [vmem:[#allocation6 + $0x3e0] sm:$0xff]
    %v3074 = vld [vmem:[#allocation6 + $0x3e8] sm:$0xff]
    %v3075 = vld [vmem:[#allocation6 + $0x3f0] sm:$0xff]
    %v3076 = vld [vmem:[#allocation6 + $0x3f8] sm:$0xff]
    %v3205 = vunpack.c.l.b16 %v2949
    %v3206 = vunpack.c.h.b16 %v2949
    %v3207 = vunpack.c.l.b16 %v2950
    %v3208 = vunpack.c.h.b16 %v2950
    %v3209 = vunpack.c.l.b16 %v2951
    %v3210 = vunpack.c.h.b16 %v2951
    %v3211 = vunpack.c.l.b16 %v2952
    %v3212 = vunpack.c.h.b16 %v2952
    %v3213 = vunpack.c.l.b16 %v2953
    %v3214 = vunpack.c.h.b16 %v2953
    %v3215 = vunpack.c.l.b16 %v2954
    %v3216 = vunpack.c.h.b16 %v2954
    %v3217 = vunpack.c.l.b16 %v2955
    %v3218 = vunpack.c.h.b16 %v2955
    %v3219 = vunpack.c.l.b16 %v2956
    %v3220 = vunpack.c.h.b16 %v2956
    %v3221 = vunpack.c.l.b16 %v2957
    %v3222 = vunpack.c.h.b16 %v2957
    %v3223 = vunpack.c.l.b16 %v2958
    %v3224 = vunpack.c.h.b16 %v2958
    %v3225 = vunpack.c.l.b16 %v2959
    %v3226 = vunpack.c.h.b16 %v2959
    %v3227 = vunpack.c.l.b16 %v2960
    %v3228 = vunpack.c.h.b16 %v2960
    %v3229 = vunpack.c.l.b16 %v2961
    %v3230 = vunpack.c.h.b16 %v2961
    %v3231 = vunpack.c.l.b16 %v2962
    %v3232 = vunpack.c.h.b16 %v2962
    %v3233 = vunpack.c.l.b16 %v2963
    %v3234 = vunpack.c.h.b16 %v2963
    %v3235 = vunpack.c.l.b16 %v2964
    %v3236 = vunpack.c.h.b16 %v2964
    %v3237 = vunpack.c.l.b16 %v2965
    %v3238 = vunpack.c.h.b16 %v2965
    %v3239 = vunpack.c.l.b16 %v2966
    %v3240 = vunpack.c.h.b16 %v2966
    %v3241 = vunpack.c.l.b16 %v2967
    %v3242 = vunpack.c.h.b16 %v2967
    %v3243 = vunpack.c.l.b16 %v2968
    %v3244 = vunpack.c.h.b16 %v2968
    %v3245 = vunpack.c.l.b16 %v2969
    %v3246 = vunpack.c.h.b16 %v2969
    %v3247 = vunpack.c.l.b16 %v2970
    %v3248 = vunpack.c.h.b16 %v2970
    %v3249 = vunpack.c.l.b16 %v2971
    %v3250 = vunpack.c.h.b16 %v2971
    %v3251 = vunpack.c.l.b16 %v2972
    %v3252 = vunpack.c.h.b16 %v2972
    %v3253 = vunpack.c.l.b16 %v2973
    %v3254 = vunpack.c.h.b16 %v2973
    %v3255 = vunpack.c.l.b16 %v2974
    %v3256 = vunpack.c.h.b16 %v2974
    %v3257 = vunpack.c.l.b16 %v2975
    %v3258 = vunpack.c.h.b16 %v2975
    %v3259 = vunpack.c.l.b16 %v2976
    %v3260 = vunpack.c.h.b16 %v2976
    %v3261 = vunpack.c.l.b16 %v2977
    %v3262 = vunpack.c.h.b16 %v2977
    %v3263 = vunpack.c.l.b16 %v2978
    %v3264 = vunpack.c.h.b16 %v2978
    %v3265 = vunpack.c.l.b16 %v2979
    %v3266 = vunpack.c.h.b16 %v2979
    %v3267 = vunpack.c.l.b16 %v2980
    %v3268 = vunpack.c.h.b16 %v2980
    %v3269 = vunpack.c.l.b16 %v2981
    %v3270 = vunpack.c.h.b16 %v2981
    %v3271 = vunpack.c.l.b16 %v2982
    %v3272 = vunpack.c.h.b16 %v2982
    %v3273 = vunpack.c.l.b16 %v2983
    %v3274 = vunpack.c.h.b16 %v2983
    %v3275 = vunpack.c.l.b16 %v2984
    %v3276 = vunpack.c.h.b16 %v2984
    %v3277 = vunpack.c.l.b16 %v2985
    %v3278 = vunpack.c.h.b16 %v2985
    %v3279 = vunpack.c.l.b16 %v2986
    %v3280 = vunpack.c.h.b16 %v2986
    %v3281 = vunpack.c.l.b16 %v2987
    %v3282 = vunpack.c.h.b16 %v2987
    %v3283 = vunpack.c.l.b16 %v2988
    %v3284 = vunpack.c.h.b16 %v2988
    %v3285 = vunpack.c.l.b16 %v2989
    %v3286 = vunpack.c.h.b16 %v2989
    %v3287 = vunpack.c.l.b16 %v2990
    %v3288 = vunpack.c.h.b16 %v2990
    %v3289 = vunpack.c.l.b16 %v2991
    %v3290 = vunpack.c.h.b16 %v2991
    %v3291 = vunpack.c.l.b16 %v2992
    %v3292 = vunpack.c.h.b16 %v2992
    %v3293 = vunpack.c.l.b16 %v2993
    %v3294 = vunpack.c.h.b16 %v2993
    %v3295 = vunpack.c.l.b16 %v2994
    %v3296 = vunpack.c.h.b16 %v2994
    %v3297 = vunpack.c.l.b16 %v2995
    %v3298 = vunpack.c.h.b16 %v2995
    %v3299 = vunpack.c.l.b16 %v2996
    %v3300 = vunpack.c.h.b16 %v2996
    %v3301 = vunpack.c.l.b16 %v2997
    %v3302 = vunpack.c.h.b16 %v2997
    %v3303 = vunpack.c.l.b16 %v2998
    %v3304 = vunpack.c.h.b16 %v2998
    %v3305 = vunpack.c.l.b16 %v2999
    %v3306 = vunpack.c.h.b16 %v2999
    %v3307 = vunpack.c.l.b16 %v3000
    %v3308 = vunpack.c.h.b16 %v3000
    %v3309 = vunpack.c.l.b16 %v3001
    %v3310 = vunpack.c.h.b16 %v3001
    %v3311 = vunpack.c.l.b16 %v3002
    %v3312 = vunpack.c.h.b16 %v3002
    %v3313 = vunpack.c.l.b16 %v3003
    %v3314 = vunpack.c.h.b16 %v3003
    %v3315 = vunpack.c.l.b16 %v3004
    %v3316 = vunpack.c.h.b16 %v3004
    %v3317 = vunpack.c.l.b16 %v3005
    %v3318 = vunpack.c.h.b16 %v3005
    %v3319 = vunpack.c.l.b16 %v3006
    %v3320 = vunpack.c.h.b16 %v3006
    %v3321 = vunpack.c.l.b16 %v3007
    %v3322 = vunpack.c.h.b16 %v3007
    %v3323 = vunpack.c.l.b16 %v3008
    %v3324 = vunpack.c.h.b16 %v3008
    %v3325 = vunpack.c.l.b16 %v3009
    %v3326 = vunpack.c.h.b16 %v3009
    %v3327 = vunpack.c.l.b16 %v3010
    %v3328 = vunpack.c.h.b16 %v3010
    %v3329 = vunpack.c.l.b16 %v3011
    %v3330 = vunpack.c.h.b16 %v3011
    %v3331 = vunpack.c.l.b16 %v3012
    %v3332 = vunpack.c.h.b16 %v3012
    %v3333 = vunpack.c.l.b16 %v3013
    %v3334 = vunpack.c.h.b16 %v3013
    %v3335 = vunpack.c.l.b16 %v3014
    %v3336 = vunpack.c.h.b16 %v3014
    %v3337 = vunpack.c.l.b16 %v3015
    %v3338 = vunpack.c.h.b16 %v3015
    %v3339 = vunpack.c.l.b16 %v3016
    %v3340 = vunpack.c.h.b16 %v3016
    %v3341 = vunpack.c.l.b16 %v3017
    %v3342 = vunpack.c.h.b16 %v3017
    %v3343 = vunpack.c.l.b16 %v3018
    %v3344 = vunpack.c.h.b16 %v3018
    %v3345 = vunpack.c.l.b16 %v3019
    %v3346 = vunpack.c.h.b16 %v3019
    %v3347 = vunpack.c.l.b16 %v3020
    %v3348 = vunpack.c.h.b16 %v3020
    %v3349 = vunpack.c.l.b16 %v3021
    %v3350 = vunpack.c.h.b16 %v3021
    %v3351 = vunpack.c.l.b16 %v3022
    %v3352 = vunpack.c.h.b16 %v3022
    %v3353 = vunpack.c.l.b16 %v3023
    %v3354 = vunpack.c.h.b16 %v3023
    %v3355 = vunpack.c.l.b16 %v3024
    %v3356 = vunpack.c.h.b16 %v3024
    %v3357 = vunpack.c.l.b16 %v3025
    %v3358 = vunpack.c.h.b16 %v3025
    %v3359 = vunpack.c.l.b16 %v3026
    %v3360 = vunpack.c.h.b16 %v3026
    %v3361 = vunpack.c.l.b16 %v3027
    %v3362 = vunpack.c.h.b16 %v3027
    %v3363 = vunpack.c.l.b16 %v3028
    %v3364 = vunpack.c.h.b16 %v3028
    %v3365 = vunpack.c.l.b16 %v3029
    %v3366 = vunpack.c.h.b16 %v3029
    %v3367 = vunpack.c.l.b16 %v3030
    %v3368 = vunpack.c.h.b16 %v3030
    %v3369 = vunpack.c.l.b16 %v3031
    %v3370 = vunpack.c.h.b16 %v3031
    %v3371 = vunpack.c.l.b16 %v3032
    %v3372 = vunpack.c.h.b16 %v3032
    %v3373 = vunpack.c.l.b16 %v3033
    %v3374 = vunpack.c.h.b16 %v3033
    %v3375 = vunpack.c.l.b16 %v3034
    %v3376 = vunpack.c.h.b16 %v3034
    %v3377 = vunpack.c.l.b16 %v3035
    %v3378 = vunpack.c.h.b16 %v3035
    %v3379 = vunpack.c.l.b16 %v3036
    %v3380 = vunpack.c.h.b16 %v3036
    %v3381 = vunpack.c.l.b16 %v3037
    %v3382 = vunpack.c.h.b16 %v3037
    %v3383 = vunpack.c.l.b16 %v3038
    %v3384 = vunpack.c.h.b16 %v3038
    %v3385 = vunpack.c.l.b16 %v3039
    %v3386 = vunpack.c.h.b16 %v3039
    %v3387 = vunpack.c.l.b16 %v3040
    %v3388 = vunpack.c.h.b16 %v3040
    %v3389 = vunpack.c.l.b16 %v3041
    %v3390 = vunpack.c.h.b16 %v3041
    %v3391 = vunpack.c.l.b16 %v3042
    %v3392 = vunpack.c.h.b16 %v3042
    %v3393 = vunpack.c.l.b16 %v3043
    %v3394 = vunpack.c.h.b16 %v3043
    %v3395 = vunpack.c.l.b16 %v3044
    %v3396 = vunpack.c.h.b16 %v3044
    %v3397 = vunpack.c.l.b16 %v3045
    %v3398 = vunpack.c.h.b16 %v3045
    %v3399 = vunpack.c.l.b16 %v3046
    %v3400 = vunpack.c.h.b16 %v3046
    %v3401 = vunpack.c.l.b16 %v3047
    %v3402 = vunpack.c.h.b16 %v3047
    %v3403 = vunpack.c.l.b16 %v3048
    %v3404 = vunpack.c.h.b16 %v3048
    %v3405 = vunpack.c.l.b16 %v3049
    %v3406 = vunpack.c.h.b16 %v3049
    %v3407 = vunpack.c.l.b16 %v3050
    %v3408 = vunpack.c.h.b16 %v3050
    %v3409 = vunpack.c.l.b16 %v3051
    %v3410 = vunpack.c.h.b16 %v3051
    %v3411 = vunpack.c.l.b16 %v3052
    %v3412 = vunpack.c.h.b16 %v3052
    %v3413 = vunpack.c.l.b16 %v3053
    %v3414 = vunpack.c.h.b16 %v3053
    %v3415 = vunpack.c.l.b16 %v3054
    %v3416 = vunpack.c.h.b16 %v3054
    %v3417 = vunpack.c.l.b16 %v3055
    %v3418 = vunpack.c.h.b16 %v3055
    %v3419 = vunpack.c.l.b16 %v3056
    %v3420 = vunpack.c.h.b16 %v3056
    %v3421 = vunpack.c.l.b16 %v3057
    %v3422 = vunpack.c.h.b16 %v3057
    %v3423 = vunpack.c.l.b16 %v3058
    %v3424 = vunpack.c.h.b16 %v3058
    %v3425 = vunpack.c.l.b16 %v3059
    %v3426 = vunpack.c.h.b16 %v3059
    %v3427 = vunpack.c.l.b16 %v3060
    %v3428 = vunpack.c.h.b16 %v3060
    %v3429 = vunpack.c.l.b16 %v3061
    %v3430 = vunpack.c.h.b16 %v3061
    %v3431 = vunpack.c.l.b16 %v3062
    %v3432 = vunpack.c.h.b16 %v3062
    %v3433 = vunpack.c.l.b16 %v3063
    %v3434 = vunpack.c.h.b16 %v3063
    %v3435 = vunpack.c.l.b16 %v3064
    %v3436 = vunpack.c.h.b16 %v3064
    %v3437 = vunpack.c.l.b16 %v3065
    %v3438 = vunpack.c.h.b16 %v3065
    %v3439 = vunpack.c.l.b16 %v3066
    %v3440 = vunpack.c.h.b16 %v3066
    %v3441 = vunpack.c.l.b16 %v3067
    %v3442 = vunpack.c.h.b16 %v3067
    %v3443 = vunpack.c.l.b16 %v3068
    %v3444 = vunpack.c.h.b16 %v3068
    %v3445 = vunpack.c.l.b16 %v3069
    %v3446 = vunpack.c.h.b16 %v3069
    %v3447 = vunpack.c.l.b16 %v3070
    %v3448 = vunpack.c.h.b16 %v3070
    %v3449 = vunpack.c.l.b16 %v3071
    %v3450 = vunpack.c.h.b16 %v3071
    %v3451 = vunpack.c.l.b16 %v3072
    %v3452 = vunpack.c.h.b16 %v3072
    %v3453 = vunpack.c.l.b16 %v3073
    %v3454 = vunpack.c.h.b16 %v3073
    %v3455 = vunpack.c.l.b16 %v3074
    %v3456 = vunpack.c.h.b16 %v3074
    %v3457 = vunpack.c.l.b16 %v3075
    %v3458 = vunpack.c.h.b16 %v3075
    %v3459 = vunpack.c.l.b16 %v3076
    %v3460 = vunpack.c.h.b16 %v3076
    %v3461 = vpack.c.b16 %v3209, %v3205
    %v3462 = vpack.c.b16 %v3210, %v3206
    %v3463 = vpack.c.b16 %v3211, %v3207
    %v3464 = vpack.c.b16 %v3212, %v3208
    %v3465 = vpack.c.b16 %v3217, %v3213
    %v3466 = vpack.c.b16 %v3218, %v3214
    %v3467 = vpack.c.b16 %v3219, %v3215
    %v3468 = vpack.c.b16 %v3220, %v3216
    %v3469 = vpack.c.b16 %v3225, %v3221
    %v3470 = vpack.c.b16 %v3226, %v3222
    %v3471 = vpack.c.b16 %v3227, %v3223
    %v3472 = vpack.c.b16 %v3228, %v3224
    %v3473 = vpack.c.b16 %v3233, %v3229
    %v3474 = vpack.c.b16 %v3234, %v3230
    %v3475 = vpack.c.b16 %v3235, %v3231
    %v3476 = vpack.c.b16 %v3236, %v3232
    %v3477 = vpack.c.b16 %v3241, %v3237
    %v3478 = vpack.c.b16 %v3242, %v3238
    %v3479 = vpack.c.b16 %v3243, %v3239
    %v3480 = vpack.c.b16 %v3244, %v3240
    %v3481 = vpack.c.b16 %v3249, %v3245
    %v3482 = vpack.c.b16 %v3250, %v3246
    %v3483 = vpack.c.b16 %v3251, %v3247
    %v3484 = vpack.c.b16 %v3252, %v3248
    %v3485 = vpack.c.b16 %v3257, %v3253
    %v3486 = vpack.c.b16 %v3258, %v3254
    %v3487 = vpack.c.b16 %v3259, %v3255
    %v3488 = vpack.c.b16 %v3260, %v3256
    %v3489 = vpack.c.b16 %v3265, %v3261
    %v3490 = vpack.c.b16 %v3266, %v3262
    %v3491 = vpack.c.b16 %v3267, %v3263
    %v3492 = vpack.c.b16 %v3268, %v3264
    %v3493 = vpack.c.b16 %v3273, %v3269
    %v3494 = vpack.c.b16 %v3274, %v3270
    %v3495 = vpack.c.b16 %v3275, %v3271
    %v3496 = vpack.c.b16 %v3276, %v3272
    %v3497 = vpack.c.b16 %v3281, %v3277
    %v3498 = vpack.c.b16 %v3282, %v3278
    %v3499 = vpack.c.b16 %v3283, %v3279
    %v3500 = vpack.c.b16 %v3284, %v3280
    %v3501 = vpack.c.b16 %v3289, %v3285
    %v3502 = vpack.c.b16 %v3290, %v3286
    %v3503 = vpack.c.b16 %v3291, %v3287
    %v3504 = vpack.c.b16 %v3292, %v3288
    %v3505 = vpack.c.b16 %v3297, %v3293
    %v3506 = vpack.c.b16 %v3298, %v3294
    %v3507 = vpack.c.b16 %v3299, %v3295
    %v3508 = vpack.c.b16 %v3300, %v3296
    %v3509 = vpack.c.b16 %v3305, %v3301
    %v3510 = vpack.c.b16 %v3306, %v3302
    %v3511 = vpack.c.b16 %v3307, %v3303
    %v3512 = vpack.c.b16 %v3308, %v3304
    %v3513 = vpack.c.b16 %v3313, %v3309
    %v3514 = vpack.c.b16 %v3314, %v3310
    %v3515 = vpack.c.b16 %v3315, %v3311
    %v3516 = vpack.c.b16 %v3316, %v3312
    %v3517 = vpack.c.b16 %v3321, %v3317
    %v3518 = vpack.c.b16 %v3322, %v3318
    %v3519 = vpack.c.b16 %v3323, %v3319
    %v3520 = vpack.c.b16 %v3324, %v3320
    %v3521 = vpack.c.b16 %v3329, %v3325
    %v3522 = vpack.c.b16 %v3330, %v3326
    %v3523 = vpack.c.b16 %v3331, %v3327
    %v3524 = vpack.c.b16 %v3332, %v3328
    %v3525 = vpack.c.b16 %v3337, %v3333
    %v3526 = vpack.c.b16 %v3338, %v3334
    %v3527 = vpack.c.b16 %v3339, %v3335
    %v3528 = vpack.c.b16 %v3340, %v3336
    %v3529 = vpack.c.b16 %v3345, %v3341
    %v3530 = vpack.c.b16 %v3346, %v3342
    %v3531 = vpack.c.b16 %v3347, %v3343
    %v3532 = vpack.c.b16 %v3348, %v3344
    %v3533 = vpack.c.b16 %v3353, %v3349
    %v3534 = vpack.c.b16 %v3354, %v3350
    %v3535 = vpack.c.b16 %v3355, %v3351
    %v3536 = vpack.c.b16 %v3356, %v3352
    %v3537 = vpack.c.b16 %v3361, %v3357
    %v3538 = vpack.c.b16 %v3362, %v3358
    %v3539 = vpack.c.b16 %v3363, %v3359
    %v3540 = vpack.c.b16 %v3364, %v3360
    %v3541 = vpack.c.b16 %v3369, %v3365
    %v3542 = vpack.c.b16 %v3370, %v3366
    %v3543 = vpack.c.b16 %v3371, %v3367
    %v3544 = vpack.c.b16 %v3372, %v3368
    %v3545 = vpack.c.b16 %v3377, %v3373
    %v3546 = vpack.c.b16 %v3378, %v3374
    %v3547 = vpack.c.b16 %v3379, %v3375
    %v3548 = vpack.c.b16 %v3380, %v3376
    %v3549 = vpack.c.b16 %v3385, %v3381
    %v3550 = vpack.c.b16 %v3386, %v3382
    %v3551 = vpack.c.b16 %v3387, %v3383
    %v3552 = vpack.c.b16 %v3388, %v3384
    %v3553 = vpack.c.b16 %v3393, %v3389
    %v3554 = vpack.c.b16 %v3394, %v3390
    %v3555 = vpack.c.b16 %v3395, %v3391
    %v3556 = vpack.c.b16 %v3396, %v3392
    %v3557 = vpack.c.b16 %v3401, %v3397
    %v3558 = vpack.c.b16 %v3402, %v3398
    %v3559 = vpack.c.b16 %v3403, %v3399
    %v3560 = vpack.c.b16 %v3404, %v3400
    %v3561 = vpack.c.b16 %v3409, %v3405
    %v3562 = vpack.c.b16 %v3410, %v3406
    %v3563 = vpack.c.b16 %v3411, %v3407
    %v3564 = vpack.c.b16 %v3412, %v3408
    %v3565 = vpack.c.b16 %v3417, %v3413
    %v3566 = vpack.c.b16 %v3418, %v3414
    %v3567 = vpack.c.b16 %v3419, %v3415
    %v3568 = vpack.c.b16 %v3420, %v3416
    %v3569 = vpack.c.b16 %v3425, %v3421
    %v3570 = vpack.c.b16 %v3426, %v3422
    %v3571 = vpack.c.b16 %v3427, %v3423
    %v3572 = vpack.c.b16 %v3428, %v3424
    %v3573 = vpack.c.b16 %v3433, %v3429
    %v3574 = vpack.c.b16 %v3434, %v3430
    %v3575 = vpack.c.b16 %v3435, %v3431
    %v3576 = vpack.c.b16 %v3436, %v3432
    %v3577 = vpack.c.b16 %v3441, %v3437
    %v3578 = vpack.c.b16 %v3442, %v3438
    %v3579 = vpack.c.b16 %v3443, %v3439
    %v3580 = vpack.c.b16 %v3444, %v3440
    %v3581 = vpack.c.b16 %v3449, %v3445
    %v3582 = vpack.c.b16 %v3450, %v3446
    %v3583 = vpack.c.b16 %v3451, %v3447
    %v3584 = vpack.c.b16 %v3452, %v3448
    %v3585 = vpack.c.b16 %v3457, %v3453
    %v3586 = vpack.c.b16 %v3458, %v3454
    %v3587 = vpack.c.b16 %v3459, %v3455
    %v3588 = vpack.c.b16 %v3460, %v3456
    %3717 = vmatprep.subr.bf16.mxu0 %v3462
    %3718 = vmatpush1.bf16.msra.mxu0 %v3461
    %3719 = vmatprep.subr.bf16.mxu0 %v3466
    %3720 = vmatpush1.bf16.msra.mxu0 %v3465
    %3721 = vmatprep.subr.bf16.mxu0 %v3470
    %3722 = vmatpush1.bf16.msra.mxu0 %v3469
    %3723 = vmatprep.subr.bf16.mxu0 %v3474
    %3724 = vmatpush1.bf16.msra.mxu0 %v3473
    %3725 = vmatprep.subr.bf16.mxu0 %v3478
    %3726 = vmatpush1.bf16.msra.mxu0 %v3477
    %3727 = vmatprep.subr.bf16.mxu0 %v3482
    %3728 = vmatpush1.bf16.msra.mxu0 %v3481
    %3729 = vmatprep.subr.bf16.mxu0 %v3486
    %3730 = vmatpush1.bf16.msra.mxu0 %v3485
    %3731 = vmatprep.subr.bf16.mxu0 %v3490
    %3732 = vmatpush1.bf16.msra.mxu0 %v3489
    %3733 = vmatprep.subr.bf16.mxu0 %v3494
    %3734 = vmatpush1.bf16.msra.mxu0 %v3493
    %3735 = vmatprep.subr.bf16.mxu0 %v3498
    %3736 = vmatpush1.bf16.msra.mxu0 %v3497
    %3737 = vmatprep.subr.bf16.mxu0 %v3502
    %3738 = vmatpush1.bf16.msra.mxu0 %v3501
    %3739 = vmatprep.subr.bf16.mxu0 %v3506
    %3740 = vmatpush1.bf16.msra.mxu0 %v3505
    %3741 = vmatprep.subr.bf16.mxu0 %v3510
    %3742 = vmatpush1.bf16.msra.mxu0 %v3509
    %3743 = vmatprep.subr.bf16.mxu0 %v3514
    %3744 = vmatpush1.bf16.msra.mxu0 %v3513
    %3745 = vmatprep.subr.bf16.mxu0 %v3518
    %3746 = vmatpush1.bf16.msra.mxu0 %v3517
    %3747 = vmatprep.subr.bf16.mxu0 %v3522
    %3748 = vmatpush1.bf16.msra.mxu0 %v3521
    %3749 = vmatprep.mubr.bf16.mxu0 %v2886
    %3750 = vmatmul.mubr.bf16.gmra.mrb[0].mxu0 %v2885
    %v3751 = vpop.f32.mrb[0].mxu0
    %v3752 = vadd.f32 0.0, %v3751
    %v3753 = vpop.f32.mrb[0].mxu0
    %v3754 = vadd.f32 0.0, %v3753
    %v3755 = vpop.f32.mrb[0].mxu0
    %v3756 = vadd.f32 0.0, %v3755
    %v3757 = vpop.f32.mrb[0].mxu0
    %v3758 = vadd.f32 0.0, %v3757
    %3759 = vmatprep.mubr.bf16.mxu0 %v2890
    %3760 = vmatmul.mubr.bf16.gmra.mrb[0].mxu0 %v2889
    %v3761 = vpop.f32.mrb[0].mxu0
    %v3762 = vadd.f32 0.0, %v3761
    %v3763 = vpop.f32.mrb[0].mxu0
    %v3764 = vadd.f32 0.0, %v3763
    %v3765 = vpop.f32.mrb[0].mxu0
    %v3766 = vadd.f32 0.0, %v3765
    %v3767 = vpop.f32.mrb[0].mxu0
    %v3768 = vadd.f32 0.0, %v3767
    %3769 = vmatprep.mubr.bf16.mxu0 %v2894
    %3770 = vmatmul.mubr.bf16.gmra.mrb[0].mxu0 %v2893
    %v3771 = vpop.f32.mrb[0].mxu0
    %v3772 = vadd.f32 0.0, %v3771
    %v3773 = vpop.f32.mrb[0].mxu0
    %v3774 = vadd.f32 0.0, %v3773
    %v3775 = vpop.f32.mrb[0].mxu0
    %v3776 = vadd.f32 0.0, %v3775
    %v3777 = vpop.f32.mrb[0].mxu0
    %v3778 = vadd.f32 0.0, %v3777
    %3779 = vmatprep.mubr.bf16.mxu0 %v2898
    %3780 = vmatmul.mubr.bf16.gmra.mrb[0].mxu0 %v2897
    %v3781 = vpop.f32.mrb[0].mxu0
    %v3782 = vadd.f32 0.0, %v3781
    %v3783 = vpop.f32.mrb[0].mxu0
    %v3784 = vadd.f32 0.0, %v3783
    %v3785 = vpop.f32.mrb[0].mxu0
    %v3786 = vadd.f32 0.0, %v3785
    %v3787 = vpop.f32.mrb[0].mxu0
    %v3788 = vadd.f32 0.0, %v3787
    %3789 = vmatprep.mubr.bf16.mxu0 %v2902
    %3790 = vmatmul.mubr.bf16.gmra.mrb[0].mxu0 %v2901
    %v3791 = vpop.f32.mrb[0].mxu0
    %v3792 = vadd.f32 0.0, %v3791
    %v3793 = vpop.f32.mrb[0].mxu0
    %v3794 = vadd.f32 0.0, %v3793
    %v3795 = vpop.f32.mrb[0].mxu0
    %v3796 = vadd.f32 0.0, %v3795
    %v3797 = vpop.f32.mrb[0].mxu0
    %v3798 = vadd.f32 0.0, %v3797
    %3799 = vmatprep.mubr.bf16.mxu0 %v2906
    %3800 = vmatmul.mubr.bf16.gmra.mrb[0].mxu0 %v2905
    %v3801 = vpop.f32.mrb[0].mxu0
    %v3802 = vadd.f32 0.0, %v3801
    %v3803 = vpop.f32.mrb[0].mxu0
    %v3804 = vadd.f32 0.0, %v3803
    %v3805 = vpop.f32.mrb[0].mxu0
    %v3806 = vadd.f32 0.0, %v3805
    %v3807 = vpop.f32.mrb[0].mxu0
    %v3808 = vadd.f32 0.0, %v3807
    %3809 = vmatprep.mubr.bf16.mxu0 %v2910
    %3810 = vmatmul.mubr.bf16.gmra.mrb[0].mxu0 %v2909
    %v3811 = vpop.f32.mrb[0].mxu0
    %v3812 = vadd.f32 0.0, %v3811
    %v3813 = vpop.f32.mrb[0].mxu0
    %v3814 = vadd.f32 0.0, %v3813
    %v3815 = vpop.f32.mrb[0].mxu0
    %v3816 = vadd.f32 0.0, %v3815
    %v3817 = vpop.f32.mrb[0].mxu0
    %v3818 = vadd.f32 0.0, %v3817
    %3819 = vmatprep.mubr.bf16.mxu0 %v2914
    %3820 = vmatmul.mubr.bf16.gmra.mrb[0].mxu0 %v2913
    %v3821 = vpop.f32.mrb[0].mxu0
    %v3822 = vadd.f32 0.0, %v3821
    %v3823 = vpop.f32.mrb[0].mxu0
    %v3824 = vadd.f32 0.0, %v3823
    %v3825 = vpop.f32.mrb[0].mxu0
    %v3826 = vadd.f32 0.0, %v3825
    %v3827 = vpop.f32.mrb[0].mxu0
    %v3828 = vadd.f32 0.0, %v3827
    %3829 = vmatprep.mubr.bf16.mxu0 %v2918
    %3830 = vmatmul.mubr.bf16.gmra.mrb[0].mxu0 %v2917
    %v3831 = vpop.f32.mrb[0].mxu0
    %v3832 = vadd.f32 0.0, %v3831
    %v3833 = vpop.f32.mrb[0].mxu0
    %v3834 = vadd.f32 0.0, %v3833
    %v3835 = vpop.f32.mrb[0].mxu0
    %v3836 = vadd.f32 0.0, %v3835
    %v3837 = vpop.f32.mrb[0].mxu0
    %v3838 = vadd.f32 0.0, %v3837
    %3839 = vmatprep.mubr.bf16.mxu0 %v2922
    %3840 = vmatmul.mubr.bf16.gmra.mrb[0].mxu0 %v2921
    %v3841 = vpop.f32.mrb[0].mxu0
    %v3842 = vadd.f32 0.0, %v3841
    %v3843 = vpop.f32.mrb[0].mxu0
    %v3844 = vadd.f32 0.0, %v3843
    %v3845 = vpop.f32.mrb[0].mxu0
    %v3846 = vadd.f32 0.0, %v3845
    %v3847 = vpop.f32.mrb[0].mxu0
    %v3848 = vadd.f32 0.0, %v3847
    %3849 = vmatprep.mubr.bf16.mxu0 %v2926
    %3850 = vmatmul.mubr.bf16.gmra.mrb[0].mxu0 %v2925
    %v3851 = vpop.f32.mrb[0].mxu0
    %v3852 = vadd.f32 0.0, %v3851
    %v3853 = vpop.f32.mrb[0].mxu0
    %v3854 = vadd.f32 0.0, %v3853
    %v3855 = vpop.f32.mrb[0].mxu0
    %v3856 = vadd.f32 0.0, %v3855
    %v3857 = vpop.f32.mrb[0].mxu0
    %v3858 = vadd.f32 0.0, %v3857
    %3859 = vmatprep.mubr.bf16.mxu0 %v2930
    %3860 = vmatmul.mubr.bf16.gmra.mrb[0].mxu0 %v2929
    %v3861 = vpop.f32.mrb[0].mxu0
    %v3862 = vadd.f32 0.0, %v3861
    %v3863 = vpop.f32.mrb[0].mxu0
    %v3864 = vadd.f32 0.0, %v3863
    %v3865 = vpop.f32.mrb[0].mxu0
    %v3866 = vadd.f32 0.0, %v3865
    %v3867 = vpop.f32.mrb[0].mxu0
    %v3868 = vadd.f32 0.0, %v3867
    %3869 = vmatprep.mubr.bf16.mxu0 %v2934
    %3870 = vmatmul.mubr.bf16.gmra.mrb[0].mxu0 %v2933
    %v3871 = vpop.f32.mrb[0].mxu0
    %v3872 = vadd.f32 0.0, %v3871
    %v3873 = vpop.f32.mrb[0].mxu0
    %v3874 = vadd.f32 0.0, %v3873
    %v3875 = vpop.f32.mrb[0].mxu0
    %v3876 = vadd.f32 0.0, %v3875
    %v3877 = vpop.f32.mrb[0].mxu0
    %v3878 = vadd.f32 0.0, %v3877
    %3879 = vmatprep.mubr.bf16.mxu0 %v2938
    %3880 = vmatmul.mubr.bf16.gmra.mrb[0].mxu0 %v2937
    %v3881 = vpop.f32.mrb[0].mxu0
    %v3882 = vadd.f32 0.0, %v3881
    %v3883 = vpop.f32.mrb[0].mxu0
    %v3884 = vadd.f32 0.0, %v3883
    %v3885 = vpop.f32.mrb[0].mxu0
    %v3886 = vadd.f32 0.0, %v3885
    %v3887 = vpop.f32.mrb[0].mxu0
    %v3888 = vadd.f32 0.0, %v3887
    %3889 = vmatprep.mubr.bf16.mxu0 %v2942
    %3890 = vmatmul.mubr.bf16.gmra.mrb[0].mxu0 %v2941
    %v3891 = vpop.f32.mrb[0].mxu0
    %v3892 = vadd.f32 0.0, %v3891
    %v3893 = vpop.f32.mrb[0].mxu0
    %v3894 = vadd.f32 0.0, %v3893
    %v3895 = vpop.f32.mrb[0].mxu0
    %v3896 = vadd.f32 0.0, %v3895
    %v3897 = vpop.f32.mrb[0].mxu0
    %v3898 = vadd.f32 0.0, %v3897
    %3899 = vmatprep.mubr.bf16.mxu0 %v2946
    %3900 = vmatmul.mubr.bf16.gmra.mrb[0].mxu0 %v2945
    %v3901 = vpop.f32.mrb[0].mxu0
    %v3902 = vadd.f32 0.0, %v3901
    %v3903 = vpop.f32.mrb[0].mxu0
    %v3904 = vadd.f32 0.0, %v3903
    %v3905 = vpop.f32.mrb[0].mxu0
    %v3906 = vadd.f32 0.0, %v3905
    %v3907 = vpop.f32.mrb[0].mxu0
    %v3908 = vadd.f32 0.0, %v3907
    %3909 = vdwg.mxu0
    %3910 = vmatprep.subr.bf16.mxu0 %v3526
    %3911 = vmatpush1.bf16.msra.mxu0 %v3525
    %3912 = vmatprep.subr.bf16.mxu0 %v3530
    %3913 = vmatpush1.bf16.msra.mxu0 %v3529
    %3914 = vmatprep.subr.bf16.mxu0 %v3534
    %3915 = vmatpush1.bf16.msra.mxu0 %v3533
    %3916 = vmatprep.subr.bf16.mxu0 %v3538
    %3917 = vmatpush1.bf16.msra.mxu0 %v3537
    %3918 = vmatprep.subr.bf16.mxu0 %v3542
    %3919 = vmatpush1.bf16.msra.mxu0 %v3541
    %3920 = vmatprep.subr.bf16.mxu0 %v3546
    %3921 = vmatpush1.bf16.msra.mxu0 %v3545
    %3922 = vmatprep.subr.bf16.mxu0 %v3550
    %3923 = vmatpush1.bf16.msra.mxu0 %v3549
    %3924 = vmatprep.subr.bf16.mxu0 %v3554
    %3925 = vmatpush1.bf16.msra.mxu0 %v3553
    %3926 = vmatprep.subr.bf16.mxu0 %v3558
    %3927 = vmatpush1.bf16.msra.mxu0 %v3557
    %3928 = vmatprep.subr.bf16.mxu0 %v3562
    %3929 = vmatpush1.bf16.msra.mxu0 %v3561
    %3930 = vmatprep.subr.bf16.mxu0 %v3566
    %3931 = vmatpush1.bf16.msra.mxu0 %v3565
    %3932 = vmatprep.subr.bf16.mxu0 %v3570
    %3933 = vmatpush1.bf16.msra.mxu0 %v3569
    %3934 = vmatprep.subr.bf16.mxu0 %v3574
    %3935 = vmatpush1.bf16.msra.mxu0 %v3573
    %3936 = vmatprep.subr.bf16.mxu0 %v3578
    %3937 = vmatpush1.bf16.msra.mxu0 %v3577
    %3938 = vmatprep.subr.bf16.mxu0 %v3582
    %3939 = vmatpush1.bf16.msra.mxu0 %v3581
    %3940 = vmatprep.subr.bf16.mxu0 %v3586
    %3941 = vmatpush1.bf16.msra.mxu0 %v3585
    %3942 = vmatprep.mubr.bf16.mxu0 %v2888
    %3943 = vmatmul.mubr.bf16.gmra.mrb[0].mxu0 %v2887
    %v3944 = vpop.f32.mrb[0].mxu0
    %v3945 = vadd.f32 %v3752, %v3944
    %v3946 = vpop.f32.mrb[0].mxu0
    %v3947 = vadd.f32 %v3754, %v3946
    %v3948 = vpop.f32.mrb[0].mxu0
    %v3949 = vadd.f32 %v3756, %v3948
    %v3950 = vpop.f32.mrb[0].mxu0
    %v3951 = vadd.f32 %v3758, %v3950
    %3952 = vmatprep.mubr.bf16.mxu0 %v2892
    %3953 = vmatmul.mubr.bf16.gmra.mrb[0].mxu0 %v2891
    %v3954 = vpop.f32.mrb[0].mxu0
    %v3955 = vadd.f32 %v3762, %v3954
    %v3956 = vpop.f32.mrb[0].mxu0
    %v3957 = vadd.f32 %v3764, %v3956
    %v3958 = vpop.f32.mrb[0].mxu0
    %v3959 = vadd.f32 %v3766, %v3958
    %v3960 = vpop.f32.mrb[0].mxu0
    %v3961 = vadd.f32 %v3768, %v3960
    %3962 = vmatprep.mubr.bf16.mxu0 %v2896
    %3963 = vmatmul.mubr.bf16.gmra.mrb[0].mxu0 %v2895
    %v3964 = vpop.f32.mrb[0].mxu0
    %v3965 = vadd.f32 %v3772, %v3964
    %v3966 = vpop.f32.mrb[0].mxu0
    %v3967 = vadd.f32 %v3774, %v3966
    %v3968 = vpop.f32.mrb[0].mxu0
    %v3969 = vadd.f32 %v3776, %v3968
    %v3970 = vpop.f32.mrb[0].mxu0
    %v3971 = vadd.f32 %v3778, %v3970
    %3972 = vmatprep.mubr.bf16.mxu0 %v2900
    %3973 = vmatmul.mubr.bf16.gmra.mrb[0].mxu0 %v2899
    %v3974 = vpop.f32.mrb[0].mxu0
    %v3975 = vadd.f32 %v3782, %v3974
    %v3976 = vpop.f32.mrb[0].mxu0
    %v3977 = vadd.f32 %v3784, %v3976
    %v3978 = vpop.f32.mrb[0].mxu0
    %v3979 = vadd.f32 %v3786, %v3978
    %v3980 = vpop.f32.mrb[0].mxu0
    %v3981 = vadd.f32 %v3788, %v3980
    %3982 = vmatprep.mubr.bf16.mxu0 %v2904
    %3983 = vmatmul.mubr.bf16.gmra.mrb[0].mxu0 %v2903
    %v3984 = vpop.f32.mrb[0].mxu0
    %v3985 = vadd.f32 %v3792, %v3984
    %v3986 = vpop.f32.mrb[0].mxu0
    %v3987 = vadd.f32 %v3794, %v3986
    %v3988 = vpop.f32.mrb[0].mxu0
    %v3989 = vadd.f32 %v3796, %v3988
    %v3990 = vpop.f32.mrb[0].mxu0
    %v3991 = vadd.f32 %v3798, %v3990
    %3992 = vmatprep.mubr.bf16.mxu0 %v2908
    %3993 = vmatmul.mubr.bf16.gmra.mrb[0].mxu0 %v2907
    %v3994 = vpop.f32.mrb[0].mxu0
    %v3995 = vadd.f32 %v3802, %v3994
    %v3996 = vpop.f32.mrb[0].mxu0
    %v3997 = vadd.f32 %v3804, %v3996
    %v3998 = vpop.f32.mrb[0].mxu0
    %v3999 = vadd.f32 %v3806, %v3998
    %v4000 = vpop.f32.mrb[0].mxu0
    %v4001 = vadd.f32 %v3808, %v4000
    %4002 = vmatprep.mubr.bf16.mxu0 %v2912
    %4003 = vmatmul.mubr.bf16.gmra.mrb[0].mxu0 %v2911
    %v4004 = vpop.f32.mrb[0].mxu0
    %v4005 = vadd.f32 %v3812, %v4004
    %v4006 = vpop.f32.mrb[0].mxu0
    %v4007 = vadd.f32 %v3814, %v4006
    %v4008 = vpop.f32.mrb[0].mxu0
    %v4009 = vadd.f32 %v3816, %v4008
    %v4010 = vpop.f32.mrb[0].mxu0
    %v4011 = vadd.f32 %v3818, %v4010
    %4012 = vmatprep.mubr.bf16.mxu0 %v2916
    %4013 = vmatmul.mubr.bf16.gmra.mrb[0].mxu0 %v2915
    %v4014 = vpop.f32.mrb[0].mxu0
    %v4015 = vadd.f32 %v3822, %v4014
    %v4016 = vpop.f32.mrb[0].mxu0
    %v4017 = vadd.f32 %v3824, %v4016
    %v4018 = vpop.f32.mrb[0].mxu0
    %v4019 = vadd.f32 %v3826, %v4018
    %v4020 = vpop.f32.mrb[0].mxu0
    %v4021 = vadd.f32 %v3828, %v4020
    %4022 = vmatprep.mubr.bf16.mxu0 %v2920
    %4023 = vmatmul.mubr.bf16.gmra.mrb[0].mxu0 %v2919
    %v4024 = vpop.f32.mrb[0].mxu0
    %v4025 = vadd.f32 %v3832, %v4024
    %v4026 = vpop.f32.mrb[0].mxu0
    %v4027 = vadd.f32 %v3834, %v4026
    %v4028 = vpop.f32.mrb[0].mxu0
    %v4029 = vadd.f32 %v3836, %v4028
    %v4030 = vpop.f32.mrb[0].mxu0
    %v4031 = vadd.f32 %v3838, %v4030
    %4032 = vmatprep.mubr.bf16.mxu0 %v2924
    %4033 = vmatmul.mubr.bf16.gmra.mrb[0].mxu0 %v2923
    %v4034 = vpop.f32.mrb[0].mxu0
    %v4035 = vadd.f32 %v3842, %v4034
    %v4036 = vpop.f32.mrb[0].mxu0
    %v4037 = vadd.f32 %v3844, %v4036
    %v4038 = vpop.f32.mrb[0].mxu0
    %v4039 = vadd.f32 %v3846, %v4038
    %v4040 = vpop.f32.mrb[0].mxu0
    %v4041 = vadd.f32 %v3848, %v4040
    %4042 = vmatprep.mubr.bf16.mxu0 %v2928
    %4043 = vmatmul.mubr.bf16.gmra.mrb[0].mxu0 %v2927
    %v4044 = vpop.f32.mrb[0].mxu0
    %v4045 = vadd.f32 %v3852, %v4044
    %v4046 = vpop.f32.mrb[0].mxu0
    %v4047 = vadd.f32 %v3854, %v4046
    %v4048 = vpop.f32.mrb[0].mxu0
    %v4049 = vadd.f32 %v3856, %v4048
    %v4050 = vpop.f32.mrb[0].mxu0
    %v4051 = vadd.f32 %v3858, %v4050
    %4052 = vmatprep.mubr.bf16.mxu0 %v2932
    %4053 = vmatmul.mubr.bf16.gmra.mrb[0].mxu0 %v2931
    %v4054 = vpop.f32.mrb[0].mxu0
    %v4055 = vadd.f32 %v3862, %v4054
    %v4056 = vpop.f32.mrb[0].mxu0
    %v4057 = vadd.f32 %v3864, %v4056
    %v4058 = vpop.f32.mrb[0].mxu0
    %v4059 = vadd.f32 %v3866, %v4058
    %v4060 = vpop.f32.mrb[0].mxu0
    %v4061 = vadd.f32 %v3868, %v4060
    %4062 = vmatprep.mubr.bf16.mxu0 %v2936
    %4063 = vmatmul.mubr.bf16.gmra.mrb[0].mxu0 %v2935
    %v4064 = vpop.f32.mrb[0].mxu0
    %v4065 = vadd.f32 %v3872, %v4064
    %v4066 = vpop.f32.mrb[0].mxu0
    %v4067 = vadd.f32 %v3874, %v4066
    %v4068 = vpop.f32.mrb[0].mxu0
    %v4069 = vadd.f32 %v3876, %v4068
    %v4070 = vpop.f32.mrb[0].mxu0
    %v4071 = vadd.f32 %v3878, %v4070
    %4072 = vmatprep.mubr.bf16.mxu0 %v2940
    %4073 = vmatmul.mubr.bf16.gmra.mrb[0].mxu0 %v2939
    %v4074 = vpop.f32.mrb[0].mxu0
    %v4075 = vadd.f32 %v3882, %v4074
    %v4076 = vpop.f32.mrb[0].mxu0
    %v4077 = vadd.f32 %v3884, %v4076
    %v4078 = vpop.f32.mrb[0].mxu0
    %v4079 = vadd.f32 %v3886, %v4078
    %v4080 = vpop.f32.mrb[0].mxu0
    %v4081 = vadd.f32 %v3888, %v4080
    %4082 = vmatprep.mubr.bf16.mxu0 %v2944
    %4083 = vmatmul.mubr.bf16.gmra.mrb[0].mxu0 %v2943
    %v4084 = vpop.f32.mrb[0].mxu0
    %v4085 = vadd.f32 %v3892, %v4084
    %v4086 = vpop.f32.mrb[0].mxu0
    %v4087 = vadd.f32 %v3894, %v4086
    %v4088 = vpop.f32.mrb[0].mxu0
    %v4089 = vadd.f32 %v3896, %v4088
    %v4090 = vpop.f32.mrb[0].mxu0
    %v4091 = vadd.f32 %v3898, %v4090
    %4092 = vmatprep.mubr.bf16.mxu0 %v2948
    %4093 = vmatmul.mubr.bf16.gmra.mrb[0].mxu0 %v2947
    %v4094 = vpop.f32.mrb[0].mxu0
    %v4095 = vadd.f32 %v3902, %v4094
    %v4096 = vpop.f32.mrb[0].mxu0
    %v4097 = vadd.f32 %v3904, %v4096
    %v4098 = vpop.f32.mrb[0].mxu0
    %v4099 = vadd.f32 %v3906, %v4098
    %v4100 = vpop.f32.mrb[0].mxu0
    %v4101 = vadd.f32 %v3908, %v4100
    %4102 = vdwg.mxu0
    %4103 = vmatprep.subr.bf16.mxu0 %v3464
    %4104 = vmatpush1.bf16.msra.mxu0 %v3463
    %4105 = vmatprep.subr.bf16.mxu0 %v3468
    %4106 = vmatpush1.bf16.msra.mxu0 %v3467
    %4107 = vmatprep.subr.bf16.mxu0 %v3472
    %4108 = vmatpush1.bf16.msra.mxu0 %v3471
    %4109 = vmatprep.subr.bf16.mxu0 %v3476
    %4110 = vmatpush1.bf16.msra.mxu0 %v3475
    %4111 = vmatprep.subr.bf16.mxu0 %v3480
    %4112 = vmatpush1.bf16.msra.mxu0 %v3479
    %4113 = vmatprep.subr.bf16.mxu0 %v3484
    %4114 = vmatpush1.bf16.msra.mxu0 %v3483
    %4115 = vmatprep.subr.bf16.mxu0 %v3488
    %4116 = vmatpush1.bf16.msra.mxu0 %v3487
    %4117 = vmatprep.subr.bf16.mxu0 %v3492
    %4118 = vmatpush1.bf16.msra.mxu0 %v3491
    %4119 = vmatprep.subr.bf16.mxu0 %v3496
    %4120 = vmatpush1.bf16.msra.mxu0 %v3495
    %4121 = vmatprep.subr.bf16.mxu0 %v3500
    %4122 = vmatpush1.bf16.msra.mxu0 %v3499
    %4123 = vmatprep.subr.bf16.mxu0 %v3504
    %4124 = vmatpush1.bf16.msra.mxu0 %v3503
    %4125 = vmatprep.subr.bf16.mxu0 %v3508
    %4126 = vmatpush1.bf16.msra.mxu0 %v3507
    %4127 = vmatprep.subr.bf16.mxu0 %v3512
    %4128 = vmatpush1.bf16.msra.mxu0 %v3511
    %4129 = vmatprep.subr.bf16.mxu0 %v3516
    %4130 = vmatpush1.bf16.msra.mxu0 %v3515
    %4131 = vmatprep.subr.bf16.mxu0 %v3520
    %4132 = vmatpush1.bf16.msra.mxu0 %v3519
    %4133 = vmatprep.subr.bf16.mxu0 %v3524
    %4134 = vmatpush1.bf16.msra.mxu0 %v3523
    %4135 = vmatprep.mubr.bf16.mxu0 %v2886
    %4136 = vmatmul.mubr.bf16.gmra.mrb[0].mxu0 %v2885
    %v4137 = vpop.f32.mrb[0].mxu0
    %v4138 = vadd.f32 0.0, %v4137
    %v4139 = vpop.f32.mrb[0].mxu0
    %v4140 = vadd.f32 0.0, %v4139
    %v4141 = vpop.f32.mrb[0].mxu0
    %v4142 = vadd.f32 0.0, %v4141
    %v4143 = vpop.f32.mrb[0].mxu0
    %v4144 = vadd.f32 0.0, %v4143
    %4145 = vmatprep.mubr.bf16.mxu0 %v2890
    %4146 = vmatmul.mubr.bf16.gmra.mrb[0].mxu0 %v2889
    %v4147 = vpop.f32.mrb[0].mxu0
    %v4148 = vadd.f32 0.0, %v4147
    %v4149 = vpop.f32.mrb[0].mxu0
    %v4150 = vadd.f32 0.0, %v4149
    %v4151 = vpop.f32.mrb[0].mxu0
    %v4152 = vadd.f32 0.0, %v4151
    %v4153 = vpop.f32.mrb[0].mxu0
    %v4154 = vadd.f32 0.0, %v4153
    %4155 = vmatprep.mubr.bf16.mxu0 %v2894
    %4156 = vmatmul.mubr.bf16.gmra.mrb[0].mxu0 %v2893
    %v4157 = vpop.f32.mrb[0].mxu0
    %v4158 = vadd.f32 0.0, %v4157
    %v4159 = vpop.f32.mrb[0].mxu0
    %v4160 = vadd.f32 0.0, %v4159
    %v4161 = vpop.f32.mrb[0].mxu0
    %v4162 = vadd.f32 0.0, %v4161
    %v4163 = vpop.f32.mrb[0].mxu0
    %v4164 = vadd.f32 0.0, %v4163
    %4165 = vmatprep.mubr.bf16.mxu0 %v2898
    %4166 = vmatmul.mubr.bf16.gmra.mrb[0].mxu0 %v2897
    %v4167 = vpop.f32.mrb[0].mxu0
    %v4168 = vadd.f32 0.0, %v4167
    %v4169 = vpop.f32.mrb[0].mxu0
    %v4170 = vadd.f32 0.0, %v4169
    %v4171 = vpop.f32.mrb[0].mxu0
    %v4172 = vadd.f32 0.0, %v4171
    %v4173 = vpop.f32.mrb[0].mxu0
    %v4174 = vadd.f32 0.0, %v4173
    %4175 = vmatprep.mubr.bf16.mxu0 %v2902
    %4176 = vmatmul.mubr.bf16.gmra.mrb[0].mxu0 %v2901
    %v4177 = vpop.f32.mrb[0].mxu0
    %v4178 = vadd.f32 0.0, %v4177
    %v4179 = vpop.f32.mrb[0].mxu0
    %v4180 = vadd.f32 0.0, %v4179
    %v4181 = vpop.f32.mrb[0].mxu0
    %v4182 = vadd.f32 0.0, %v4181
    %v4183 = vpop.f32.mrb[0].mxu0
    %v4184 = vadd.f32 0.0, %v4183
    %4185 = vmatprep.mubr.bf16.mxu0 %v2906
    %4186 = vmatmul.mubr.bf16.gmra.mrb[0].mxu0 %v2905
    %v4187 = vpop.f32.mrb[0].mxu0
    %v4188 = vadd.f32 0.0, %v4187
    %v4189 = vpop.f32.mrb[0].mxu0
    %v4190 = vadd.f32 0.0, %v4189
    %v4191 = vpop.f32.mrb[0].mxu0
    %v4192 = vadd.f32 0.0, %v4191
    %v4193 = vpop.f32.mrb[0].mxu0
    %v4194 = vadd.f32 0.0, %v4193
    %4195 = vmatprep.mubr.bf16.mxu0 %v2910
    %4196 = vmatmul.mubr.bf16.gmra.mrb[0].mxu0 %v2909
    %v4197 = vpop.f32.mrb[0].mxu0
    %v4198 = vadd.f32 0.0, %v4197
    %v4199 = vpop.f32.mrb[0].mxu0
    %v4200 = vadd.f32 0.0, %v4199
    %v4201 = vpop.f32.mrb[0].mxu0
    %v4202 = vadd.f32 0.0, %v4201
    %v4203 = vpop.f32.mrb[0].mxu0
    %v4204 = vadd.f32 0.0, %v4203
    %4205 = vmatprep.mubr.bf16.mxu0 %v2914
    %4206 = vmatmul.mubr.bf16.gmra.mrb[0].mxu0 %v2913
    %v4207 = vpop.f32.mrb[0].mxu0
    %v4208 = vadd.f32 0.0, %v4207
    %v4209 = vpop.f32.mrb[0].mxu0
    %v4210 = vadd.f32 0.0, %v4209
    %v4211 = vpop.f32.mrb[0].mxu0
    %v4212 = vadd.f32 0.0, %v4211
    %v4213 = vpop.f32.mrb[0].mxu0
    %v4214 = vadd.f32 0.0, %v4213
    %4215 = vmatprep.mubr.bf16.mxu0 %v2918
    %4216 = vmatmul.mubr.bf16.gmra.mrb[0].mxu0 %v2917
    %v4217 = vpop.f32.mrb[0].mxu0
    %v4218 = vadd.f32 0.0, %v4217
    %v4219 = vpop.f32.mrb[0].mxu0
    %v4220 = vadd.f32 0.0, %v4219
    %v4221 = vpop.f32.mrb[0].mxu0
    %v4222 = vadd.f32 0.0, %v4221
    %v4223 = vpop.f32.mrb[0].mxu0
    %v4224 = vadd.f32 0.0, %v4223
    %4225 = vmatprep.mubr.bf16.mxu0 %v2922
    %4226 = vmatmul.mubr.bf16.gmra.mrb[0].mxu0 %v2921
    %v4227 = vpop.f32.mrb[0].mxu0
    %v4228 = vadd.f32 0.0, %v4227
    %v4229 = vpop.f32.mrb[0].mxu0
    %v4230 = vadd.f32 0.0, %v4229
    %v4231 = vpop.f32.mrb[0].mxu0
    %v4232 = vadd.f32 0.0, %v4231
    %v4233 = vpop.f32.mrb[0].mxu0
    %v4234 = vadd.f32 0.0, %v4233
    %4235 = vmatprep.mubr.bf16.mxu0 %v2926
    %4236 = vmatmul.mubr.bf16.gmra.mrb[0].mxu0 %v2925
    %v4237 = vpop.f32.mrb[0].mxu0
    %v4238 = vadd.f32 0.0, %v4237
    %v4239 = vpop.f32.mrb[0].mxu0
    %v4240 = vadd.f32 0.0, %v4239
    %v4241 = vpop.f32.mrb[0].mxu0
    %v4242 = vadd.f32 0.0, %v4241
    %v4243 = vpop.f32.mrb[0].mxu0
    %v4244 = vadd.f32 0.0, %v4243
    %4245 = vmatprep.mubr.bf16.mxu0 %v2930
    %4246 = vmatmul.mubr.bf16.gmra.mrb[0].mxu0 %v2929
    %v4247 = vpop.f32.mrb[0].mxu0
    %v4248 = vadd.f32 0.0, %v4247
    %v4249 = vpop.f32.mrb[0].mxu0
    %v4250 = vadd.f32 0.0, %v4249
    %v4251 = vpop.f32.mrb[0].mxu0
    %v4252 = vadd.f32 0.0, %v4251
    %v4253 = vpop.f32.mrb[0].mxu0
    %v4254 = vadd.f32 0.0, %v4253
    %4255 = vmatprep.mubr.bf16.mxu0 %v2934
    %4256 = vmatmul.mubr.bf16.gmra.mrb[0].mxu0 %v2933
    %v4257 = vpop.f32.mrb[0].mxu0
    %v4258 = vadd.f32 0.0, %v4257
    %v4259 = vpop.f32.mrb[0].mxu0
    %v4260 = vadd.f32 0.0, %v4259
    %v4261 = vpop.f32.mrb[0].mxu0
    %v4262 = vadd.f32 0.0, %v4261
    %v4263 = vpop.f32.mrb[0].mxu0
    %v4264 = vadd.f32 0.0, %v4263
    %4265 = vmatprep.mubr.bf16.mxu0 %v2938
    %4266 = vmatmul.mubr.bf16.gmra.mrb[0].mxu0 %v2937
    %v4267 = vpop.f32.mrb[0].mxu0
    %v4268 = vadd.f32 0.0, %v4267
    %v4269 = vpop.f32.mrb[0].mxu0
    %v4270 = vadd.f32 0.0, %v4269
    %v4271 = vpop.f32.mrb[0].mxu0
    %v4272 = vadd.f32 0.0, %v4271
    %v4273 = vpop.f32.mrb[0].mxu0
    %v4274 = vadd.f32 0.0, %v4273
    %4275 = vmatprep.mubr.bf16.mxu0 %v2942
    %4276 = vmatmul.mubr.bf16.gmra.mrb[0].mxu0 %v2941
    %v4277 = vpop.f32.mrb[0].mxu0
    %v4278 = vadd.f32 0.0, %v4277
    %v4279 = vpop.f32.mrb[0].mxu0
    %v4280 = vadd.f32 0.0, %v4279
    %v4281 = vpop.f32.mrb[0].mxu0
    %v4282 = vadd.f32 0.0, %v4281
    %v4283 = vpop.f32.mrb[0].mxu0
    %v4284 = vadd.f32 0.0, %v4283
    %4285 = vmatprep.mubr.bf16.mxu0 %v2946
    %4286 = vmatmul.mubr.bf16.gmra.mrb[0].mxu0 %v2945
    %v4287 = vpop.f32.mrb[0].mxu0
    %v4288 = vadd.f32 0.0, %v4287
    %v4289 = vpop.f32.mrb[0].mxu0
    %v4290 = vadd.f32 0.0, %v4289
    %v4291 = vpop.f32.mrb[0].mxu0
    %v4292 = vadd.f32 0.0, %v4291
    %v4293 = vpop.f32.mrb[0].mxu0
    %v4294 = vadd.f32 0.0, %v4293
    %4295 = vdwg.mxu0
    %4296 = vmatprep.subr.bf16.mxu0 %v3528
    %4297 = vmatpush1.bf16.msra.mxu0 %v3527
    %4298 = vmatprep.subr.bf16.mxu0 %v3532
    %4299 = vmatpush1.bf16.msra.mxu0 %v3531
    %4300 = vmatprep.subr.bf16.mxu0 %v3536
    %4301 = vmatpush1.bf16.msra.mxu0 %v3535
    %4302 = vmatprep.subr.bf16.mxu0 %v3540
    %4303 = vmatpush1.bf16.msra.mxu0 %v3539
    %4304 = vmatprep.subr.bf16.mxu0 %v3544
    %4305 = vmatpush1.bf16.msra.mxu0 %v3543
    %4306 = vmatprep.subr.bf16.mxu0 %v3548
    %4307 = vmatpush1.bf16.msra.mxu0 %v3547
    %4308 = vmatprep.subr.bf16.mxu0 %v3552
    %4309 = vmatpush1.bf16.msra.mxu0 %v3551
    %4310 = vmatprep.subr.bf16.mxu0 %v3556
    %4311 = vmatpush1.bf16.msra.mxu0 %v3555
    %4312 = vmatprep.subr.bf16.mxu0 %v3560
    %4313 = vmatpush1.bf16.msra.mxu0 %v3559
    %4314 = vmatprep.subr.bf16.mxu0 %v3564
    %4315 = vmatpush1.bf16.msra.mxu0 %v3563
    %4316 = vmatprep.subr.bf16.mxu0 %v3568
    %4317 = vmatpush1.bf16.msra.mxu0 %v3567
    %4318 = vmatprep.subr.bf16.mxu0 %v3572
    %4319 = vmatpush1.bf16.msra.mxu0 %v3571
    %4320 = vmatprep.subr.bf16.mxu0 %v3576
    %4321 = vmatpush1.bf16.msra.mxu0 %v3575
    %4322 = vmatprep.subr.bf16.mxu0 %v3580
    %4323 = vmatpush1.bf16.msra.mxu0 %v3579
    %4324 = vmatprep.subr.bf16.mxu0 %v3584
    %4325 = vmatpush1.bf16.msra.mxu0 %v3583
    %4326 = vmatprep.subr.bf16.mxu0 %v3588
    %4327 = vmatpush1.bf16.msra.mxu0 %v3587
    %4328 = vmatprep.mubr.bf16.mxu0 %v2888
    %4329 = vmatmul.mubr.bf16.gmra.mrb[0].mxu0 %v2887
    %v4330 = vpop.f32.mrb[0].mxu0
    %v4331 = vadd.f32 %v4138, %v4330
    %v4332 = vpop.f32.mrb[0].mxu0
    %v4333 = vadd.f32 %v4140, %v4332
    %v4334 = vpop.f32.mrb[0].mxu0
    %v4335 = vadd.f32 %v4142, %v4334
    %v4336 = vpop.f32.mrb[0].mxu0
    %v4337 = vadd.f32 %v4144, %v4336
    %4338 = vmatprep.mubr.bf16.mxu0 %v2892
    %4339 = vmatmul.mubr.bf16.gmra.mrb[0].mxu0 %v2891
    %v4340 = vpop.f32.mrb[0].mxu0
    %v4341 = vadd.f32 %v4148, %v4340
    %v4342 = vpop.f32.mrb[0].mxu0
    %v4343 = vadd.f32 %v4150, %v4342
    %v4344 = vpop.f32.mrb[0].mxu0
    %v4345 = vadd.f32 %v4152, %v4344
    %v4346 = vpop.f32.mrb[0].mxu0
    %v4347 = vadd.f32 %v4154, %v4346
    %4348 = vmatprep.mubr.bf16.mxu0 %v2896
    %4349 = vmatmul.mubr.bf16.gmra.mrb[0].mxu0 %v2895
    %v4350 = vpop.f32.mrb[0].mxu0
    %v4351 = vadd.f32 %v4158, %v4350
    %v4352 = vpop.f32.mrb[0].mxu0
    %v4353 = vadd.f32 %v4160, %v4352
    %v4354 = vpop.f32.mrb[0].mxu0
    %v4355 = vadd.f32 %v4162, %v4354
    %v4356 = vpop.f32.mrb[0].mxu0
    %v4357 = vadd.f32 %v4164, %v4356
    %4358 = vmatprep.mubr.bf16.mxu0 %v2900
    %4359 = vmatmul.mubr.bf16.gmra.mrb[0].mxu0 %v2899
    %v4360 = vpop.f32.mrb[0].mxu0
    %v4361 = vadd.f32 %v4168, %v4360
    %v4362 = vpop.f32.mrb[0].mxu0
    %v4363 = vadd.f32 %v4170, %v4362
    %v4364 = vpop.f32.mrb[0].mxu0
    %v4365 = vadd.f32 %v4172, %v4364
    %v4366 = vpop.f32.mrb[0].mxu0
    %v4367 = vadd.f32 %v4174, %v4366
    %4368 = vmatprep.mubr.bf16.mxu0 %v2904
    %4369 = vmatmul.mubr.bf16.gmra.mrb[0].mxu0 %v2903
    %v4370 = vpop.f32.mrb[0].mxu0
    %v4371 = vadd.f32 %v4178, %v4370
    %v4372 = vpop.f32.mrb[0].mxu0
    %v4373 = vadd.f32 %v4180, %v4372
    %v4374 = vpop.f32.mrb[0].mxu0
    %v4375 = vadd.f32 %v4182, %v4374
    %v4376 = vpop.f32.mrb[0].mxu0
    %v4377 = vadd.f32 %v4184, %v4376
    %4378 = vmatprep.mubr.bf16.mxu0 %v2908
    %4379 = vmatmul.mubr.bf16.gmra.mrb[0].mxu0 %v2907
    %v4380 = vpop.f32.mrb[0].mxu0
    %v4381 = vadd.f32 %v4188, %v4380
    %v4382 = vpop.f32.mrb[0].mxu0
    %v4383 = vadd.f32 %v4190, %v4382
    %v4384 = vpop.f32.mrb[0].mxu0
    %v4385 = vadd.f32 %v4192, %v4384
    %v4386 = vpop.f32.mrb[0].mxu0
    %v4387 = vadd.f32 %v4194, %v4386
    %4388 = vmatprep.mubr.bf16.mxu0 %v2912
    %4389 = vmatmul.mubr.bf16.gmra.mrb[0].mxu0 %v2911
    %v4390 = vpop.f32.mrb[0].mxu0
    %v4391 = vadd.f32 %v4198, %v4390
    %v4392 = vpop.f32.mrb[0].mxu0
    %v4393 = vadd.f32 %v4200, %v4392
    %v4394 = vpop.f32.mrb[0].mxu0
    %v4395 = vadd.f32 %v4202, %v4394
    %v4396 = vpop.f32.mrb[0].mxu0
    %v4397 = vadd.f32 %v4204, %v4396
    %4398 = vmatprep.mubr.bf16.mxu0 %v2916
    %4399 = vmatmul.mubr.bf16.gmra.mrb[0].mxu0 %v2915
    %v4400 = vpop.f32.mrb[0].mxu0
    %v4401 = vadd.f32 %v4208, %v4400
    %v4402 = vpop.f32.mrb[0].mxu0
    %v4403 = vadd.f32 %v4210, %v4402
    %v4404 = vpop.f32.mrb[0].mxu0
    %v4405 = vadd.f32 %v4212, %v4404
    %v4406 = vpop.f32.mrb[0].mxu0
    %v4407 = vadd.f32 %v4214, %v4406
    %4408 = vmatprep.mubr.bf16.mxu0 %v2920
    %4409 = vmatmul.mubr.bf16.gmra.mrb[0].mxu0 %v2919
    %v4410 = vpop.f32.mrb[0].mxu0
    %v4411 = vadd.f32 %v4218, %v4410
    %v4412 = vpop.f32.mrb[0].mxu0
    %v4413 = vadd.f32 %v4220, %v4412
    %v4414 = vpop.f32.mrb[0].mxu0
    %v4415 = vadd.f32 %v4222, %v4414
    %v4416 = vpop.f32.mrb[0].mxu0
    %v4417 = vadd.f32 %v4224, %v4416
    %4418 = vmatprep.mubr.bf16.mxu0 %v2924
    %4419 = vmatmul.mubr.bf16.gmra.mrb[0].mxu0 %v2923
    %v4420 = vpop.f32.mrb[0].mxu0
    %v4421 = vadd.f32 %v4228, %v4420
    %v4422 = vpop.f32.mrb[0].mxu0
    %v4423 = vadd.f32 %v4230, %v4422
    %v4424 = vpop.f32.mrb[0].mxu0
    %v4425 = vadd.f32 %v4232, %v4424
    %v4426 = vpop.f32.mrb[0].mxu0
    %v4427 = vadd.f32 %v4234, %v4426
    %4428 = vmatprep.mubr.bf16.mxu0 %v2928
    %4429 = vmatmul.mubr.bf16.gmra.mrb[0].mxu0 %v2927
    %v4430 = vpop.f32.mrb[0].mxu0
    %v4431 = vadd.f32 %v4238, %v4430
    %v4432 = vpop.f32.mrb[0].mxu0
    %v4433 = vadd.f32 %v4240, %v4432
    %v4434 = vpop.f32.mrb[0].mxu0
    %v4435 = vadd.f32 %v4242, %v4434
    %v4436 = vpop.f32.mrb[0].mxu0
    %v4437 = vadd.f32 %v4244, %v4436
    %4438 = vmatprep.mubr.bf16.mxu0 %v2932
    %4439 = vmatmul.mubr.bf16.gmra.mrb[0].mxu0 %v2931
    %v4440 = vpop.f32.mrb[0].mxu0
    %v4441 = vadd.f32 %v4248, %v4440
    %v4442 = vpop.f32.mrb[0].mxu0
    %v4443 = vadd.f32 %v4250, %v4442
    %v4444 = vpop.f32.mrb[0].mxu0
    %v4445 = vadd.f32 %v4252, %v4444
    %v4446 = vpop.f32.mrb[0].mxu0
    %v4447 = vadd.f32 %v4254, %v4446
    %4448 = vmatprep.mubr.bf16.mxu0 %v2936
    %4449 = vmatmul.mubr.bf16.gmra.mrb[0].mxu0 %v2935
    %v4450 = vpop.f32.mrb[0].mxu0
    %v4451 = vadd.f32 %v4258, %v4450
    %v4452 = vpop.f32.mrb[0].mxu0
    %v4453 = vadd.f32 %v4260, %v4452
    %v4454 = vpop.f32.mrb[0].mxu0
    %v4455 = vadd.f32 %v4262, %v4454
    %v4456 = vpop.f32.mrb[0].mxu0
    %v4457 = vadd.f32 %v4264, %v4456
    %4458 = vmatprep.mubr.bf16.mxu0 %v2940
    %4459 = vmatmul.mubr.bf16.gmra.mrb[0].mxu0 %v2939
    %v4460 = vpop.f32.mrb[0].mxu0
    %v4461 = vadd.f32 %v4268, %v4460
    %v4462 = vpop.f32.mrb[0].mxu0
    %v4463 = vadd.f32 %v4270, %v4462
    %v4464 = vpop.f32.mrb[0].mxu0
    %v4465 = vadd.f32 %v4272, %v4464
    %v4466 = vpop.f32.mrb[0].mxu0
    %v4467 = vadd.f32 %v4274, %v4466
    %4468 = vmatprep.mubr.bf16.mxu0 %v2944
    %4469 = vmatmul.mubr.bf16.gmra.mrb[0].mxu0 %v2943
    %v4470 = vpop.f32.mrb[0].mxu0
    %v4471 = vadd.f32 %v4278, %v4470
    %v4472 = vpop.f32.mrb[0].mxu0
    %v4473 = vadd.f32 %v4280, %v4472
    %v4474 = vpop.f32.mrb[0].mxu0
    %v4475 = vadd.f32 %v4282, %v4474
    %v4476 = vpop.f32.mrb[0].mxu0
    %v4477 = vadd.f32 %v4284, %v4476
    %4478 = vmatprep.mubr.bf16.mxu0 %v2948
    %4479 = vmatmul.mubr.bf16.gmra.mrb[0].mxu0 %v2947
    %v4480 = vpop.f32.mrb[0].mxu0
    %v4481 = vadd.f32 %v4288, %v4480
    %v4482 = vpop.f32.mrb[0].mxu0
    %v4483 = vadd.f32 %v4290, %v4482
    %v4484 = vpop.f32.mrb[0].mxu0
    %v4485 = vadd.f32 %v4292, %v4484
    %v4486 = vpop.f32.mrb[0].mxu0
    %v4487 = vadd.f32 %v4294, %v4486
    %4488 = vdwg.mxu0
    %v4489 = vlaneseq
    %v4490 = vshrl.u32 %v4489, 7
    %v4491 = vsub.s32 0, %v4490
    %v4492 = vrot.slane %v3945, %v4491
    %v4493 = vlaneseq
    %v4494 = vshrl.u32 %v4493, 7
    %v4495 = vsub.s32 0, %v4494
    %v4496 = vrot.slane %v3947, %v4495
    %v4497 = vlaneseq
    %v4498 = vshrl.u32 %v4497, 7
    %v4499 = vsub.s32 0, %v4498
    %v4500 = vrot.slane %v4331, %v4499
    %v4501 = vlaneseq
    %v4502 = vshrl.u32 %v4501, 7
    %v4503 = vsub.s32 0, %v4502
    %v4504 = vrot.slane %v4333, %v4503
    %v4505 = vsub.f32 %v3945, %v4492
    %v4506 = vsub.f32 %v3947, %v4496
    %v4507 = vsub.f32 %v4331, %v4500
    %v4508 = vsub.f32 %v4333, %v4504
    %v4509 = vsub.f32 %v3949, %v4492
    %v4510 = vsub.f32 %v3951, %v4496
    %v4511 = vsub.f32 %v4335, %v4500
    %v4512 = vsub.f32 %v4337, %v4504
    %v4513 = vsub.f32 %v3955, %v4492
    %v4514 = vsub.f32 %v3957, %v4496
    %v4515 = vsub.f32 %v4341, %v4500
    %v4516 = vsub.f32 %v4343, %v4504
    %v4517 = vsub.f32 %v3959, %v4492
    %v4518 = vsub.f32 %v3961, %v4496
    %v4519 = vsub.f32 %v4345, %v4500
    %v4520 = vsub.f32 %v4347, %v4504
    %v4521 = vsub.f32 %v3965, %v4492
    %v4522 = vsub.f32 %v3967, %v4496
    %v4523 = vsub.f32 %v4351, %v4500
    %v4524 = vsub.f32 %v4353, %v4504
    %v4525 = vsub.f32 %v3969, %v4492
    %v4526 = vsub.f32 %v3971, %v4496
    %v4527 = vsub.f32 %v4355, %v4500
    %v4528 = vsub.f32 %v4357, %v4504
    %v4529 = vsub.f32 %v3975, %v4492
    %v4530 = vsub.f32 %v3977, %v4496
    %v4531 = vsub.f32 %v4361, %v4500
    %v4532 = vsub.f32 %v4363, %v4504
    %v4533 = vsub.f32 %v3979, %v4492
    %v4534 = vsub.f32 %v3981, %v4496
    %v4535 = vsub.f32 %v4365, %v4500
    %v4536 = vsub.f32 %v4367, %v4504
    %v4537 = vsub.f32 %v3985, %v4492
    %v4538 = vsub.f32 %v3987, %v4496
    %v4539 = vsub.f32 %v4371, %v4500
    %v4540 = vsub.f32 %v4373, %v4504
    %v4541 = vsub.f32 %v3989, %v4492
    %v4542 = vsub.f32 %v3991, %v4496
    %v4543 = vsub.f32 %v4375, %v4500
    %v4544 = vsub.f32 %v4377, %v4504
    %v4545 = vsub.f32 %v3995, %v4492
    %v4546 = vsub.f32 %v3997, %v4496
    %v4547 = vsub.f32 %v4381, %v4500
    %v4548 = vsub.f32 %v4383, %v4504
    %v4549 = vsub.f32 %v3999, %v4492
    %v4550 = vsub.f32 %v4001, %v4496
    %v4551 = vsub.f32 %v4385, %v4500
    %v4552 = vsub.f32 %v4387, %v4504
    %v4553 = vsub.f32 %v4005, %v4492
    %v4554 = vsub.f32 %v4007, %v4496
    %v4555 = vsub.f32 %v4391, %v4500
    %v4556 = vsub.f32 %v4393, %v4504
    %v4557 = vsub.f32 %v4009, %v4492
    %v4558 = vsub.f32 %v4011, %v4496
    %v4559 = vsub.f32 %v4395, %v4500
    %v4560 = vsub.f32 %v4397, %v4504
    %v4561 = vsub.f32 %v4015, %v4492
    %v4562 = vsub.f32 %v4017, %v4496
    %v4563 = vsub.f32 %v4401, %v4500
    %v4564 = vsub.f32 %v4403, %v4504
    %v4565 = vsub.f32 %v4019, %v4492
    %v4566 = vsub.f32 %v4021, %v4496
    %v4567 = vsub.f32 %v4405, %v4500
    %v4568 = vsub.f32 %v4407, %v4504
    %v4569 = vsub.f32 %v4025, %v4492
    %v4570 = vsub.f32 %v4027, %v4496
    %v4571 = vsub.f32 %v4411, %v4500
    %v4572 = vsub.f32 %v4413, %v4504
    %v4573 = vsub.f32 %v4029, %v4492
    %v4574 = vsub.f32 %v4031, %v4496
    %v4575 = vsub.f32 %v4415, %v4500
    %v4576 = vsub.f32 %v4417, %v4504
    %v4577 = vsub.f32 %v4035, %v4492
    %v4578 = vsub.f32 %v4037, %v4496
    %v4579 = vsub.f32 %v4421, %v4500
    %v4580 = vsub.f32 %v4423, %v4504
    %v4581 = vsub.f32 %v4039, %v4492
    %v4582 = vsub.f32 %v4041, %v4496
    %v4583 = vsub.f32 %v4425, %v4500
    %v4584 = vsub.f32 %v4427, %v4504
    %v4585 = vsub.f32 %v4045, %v4492
    %v4586 = vsub.f32 %v4047, %v4496
    %v4587 = vsub.f32 %v4431, %v4500
    %v4588 = vsub.f32 %v4433, %v4504
    %v4589 = vsub.f32 %v4049, %v4492
    %v4590 = vsub.f32 %v4051, %v4496
    %v4591 = vsub.f32 %v4435, %v4500
    %v4592 = vsub.f32 %v4437, %v4504
    %v4593 = vsub.f32 %v4055, %v4492
    %v4594 = vsub.f32 %v4057, %v4496
    %v4595 = vsub.f32 %v4441, %v4500
    %v4596 = vsub.f32 %v4443, %v4504
    %v4597 = vsub.f32 %v4059, %v4492
    %v4598 = vsub.f32 %v4061, %v4496
    %v4599 = vsub.f32 %v4445, %v4500
    %v4600 = vsub.f32 %v4447, %v4504
    %v4601 = vsub.f32 %v4065, %v4492
    %v4602 = vsub.f32 %v4067, %v4496
    %v4603 = vsub.f32 %v4451, %v4500
    %v4604 = vsub.f32 %v4453, %v4504
    %v4605 = vsub.f32 %v4069, %v4492
    %v4606 = vsub.f32 %v4071, %v4496
    %v4607 = vsub.f32 %v4455, %v4500
    %v4608 = vsub.f32 %v4457, %v4504
    %v4609 = vsub.f32 %v4075, %v4492
    %v4610 = vsub.f32 %v4077, %v4496
    %v4611 = vsub.f32 %v4461, %v4500
    %v4612 = vsub.f32 %v4463, %v4504
    %v4613 = vsub.f32 %v4079, %v4492
    %v4614 = vsub.f32 %v4081, %v4496
    %v4615 = vsub.f32 %v4465, %v4500
    %v4616 = vsub.f32 %v4467, %v4504
    %v4617 = vsub.f32 %v4085, %v4492
    %v4618 = vsub.f32 %v4087, %v4496
    %v4619 = vsub.f32 %v4471, %v4500
    %v4620 = vsub.f32 %v4473, %v4504
    %v4621 = vsub.f32 %v4089, %v4492
    %v4622 = vsub.f32 %v4091, %v4496
    %v4623 = vsub.f32 %v4475, %v4500
    %v4624 = vsub.f32 %v4477, %v4504
    %v4625 = vsub.f32 %v4095, %v4492
    %v4626 = vsub.f32 %v4097, %v4496
    %v4627 = vsub.f32 %v4481, %v4500
    %v4628 = vsub.f32 %v4483, %v4504
    %v4629 = vsub.f32 %v4099, %v4492
    %v4630 = vsub.f32 %v4101, %v4496
    %v4631 = vsub.f32 %v4485, %v4500
    %v4632 = vsub.f32 %v4487, %v4504
    %v4633 = vadd.f32 %v4505, %v4509
    %v4634 = vadd.f32 %v4633, %v4513
    %v4635 = vadd.f32 %v4634, %v4517
    %v4636 = vadd.f32 %v4635, %v4521
    %v4637 = vadd.f32 %v4636, %v4525
    %v4638 = vadd.f32 %v4637, %v4529
    %v4639 = vadd.f32 %v4638, %v4533
    %v4640 = vadd.f32 %v4639, %v4537
    %v4641 = vadd.f32 %v4640, %v4541
    %v4642 = vadd.f32 %v4641, %v4545
    %v4643 = vadd.f32 %v4642, %v4549
    %v4644 = vadd.f32 %v4643, %v4553
    %v4645 = vadd.f32 %v4644, %v4557
    %v4646 = vadd.f32 %v4645, %v4561
    %v4647 = vadd.f32 %v4646, %v4565
    %v4648 = vadd.f32 %v4647, %v4569
    %v4649 = vadd.f32 %v4648, %v4573
    %v4650 = vadd.f32 %v4649, %v4577
    %v4651 = vadd.f32 %v4650, %v4581
    %v4652 = vadd.f32 %v4651, %v4585
    %v4653 = vadd.f32 %v4652, %v4589
    %v4654 = vadd.f32 %v4653, %v4593
    %v4655 = vadd.f32 %v4654, %v4597
    %v4656 = vadd.f32 %v4655, %v4601
    %v4657 = vadd.f32 %v4656, %v4605
    %v4658 = vadd.f32 %v4657, %v4609
    %v4659 = vadd.f32 %v4658, %v4613
    %v4660 = vadd.f32 %v4659, %v4617
    %v4661 = vadd.f32 %v4660, %v4621
    %v4662 = vadd.f32 %v4661, %v4625
    %v4663 = vadd.f32 %v4662, %v4629
    %v4664 = vrot.slane %v4663, 4
    %v4665 = vadd.f32 %v4663, %v4664
    %v4666 = vrot.slane %v4665, 2
    %v4667 = vadd.f32 %v4665, %v4666
    %v4668 = vrot.slane %v4667, 1
    %v4669 = vadd.f32 %v4667, %v4668
    %v4670 = vadd.f32 %v4506, %v4510
    %v4671 = vadd.f32 %v4670, %v4514
    %v4672 = vadd.f32 %v4671, %v4518
    %v4673 = vadd.f32 %v4672, %v4522
    %v4674 = vadd.f32 %v4673, %v4526
    %v4675 = vadd.f32 %v4674, %v4530
    %v4676 = vadd.f32 %v4675, %v4534
    %v4677 = vadd.f32 %v4676, %v4538
    %v4678 = vadd.f32 %v4677, %v4542
    %v4679 = vadd.f32 %v4678, %v4546
    %v4680 = vadd.f32 %v4679, %v4550
    %v4681 = vadd.f32 %v4680, %v4554
    %v4682 = vadd.f32 %v4681, %v4558
    %v4683 = vadd.f32 %v4682, %v4562
    %v4684 = vadd.f32 %v4683, %v4566
    %v4685 = vadd.f32 %v4684, %v4570
    %v4686 = vadd.f32 %v4685, %v4574
    %v4687 = vadd.f32 %v4686, %v4578
    %v4688 = vadd.f32 %v4687, %v4582
    %v4689 = vadd.f32 %v4688, %v4586
    %v4690 = vadd.f32 %v4689, %v4590
    %v4691 = vadd.f32 %v4690, %v4594
    %v4692 = vadd.f32 %v4691, %v4598
    %v4693 = vadd.f32 %v4692, %v4602
    %v4694 = vadd.f32 %v4693, %v4606
    %v4695 = vadd.f32 %v4694, %v4610
    %v4696 = vadd.f32 %v4695, %v4614
    %v4697 = vadd.f32 %v4696, %v4618
    %v4698 = vadd.f32 %v4697, %v4622
    %v4699 = vadd.f32 %v4698, %v4626
    %v4700 = vadd.f32 %v4699, %v4630
    %v4701 = vrot.slane %v4700, 4
    %v4702 = vadd.f32 %v4700, %v4701
    %v4703 = vrot.slane %v4702, 2
    %v4704 = vadd.f32 %v4702, %v4703
    %v4705 = vrot.slane %v4704, 1
    %v4706 = vadd.f32 %v4704, %v4705
    %v4707 = vadd.f32 %v4507, %v4511
    %v4708 = vadd.f32 %v4707, %v4515
    %v4709 = vadd.f32 %v4708, %v4519
    %v4710 = vadd.f32 %v4709, %v4523
    %v4711 = vadd.f32 %v4710, %v4527
    %v4712 = vadd.f32 %v4711, %v4531
    %v4713 = vadd.f32 %v4712, %v4535
    %v4714 = vadd.f32 %v4713, %v4539
    %v4715 = vadd.f32 %v4714, %v4543
    %v4716 = vadd.f32 %v4715, %v4547
    %v4717 = vadd.f32 %v4716, %v4551
    %v4718 = vadd.f32 %v4717, %v4555
    %v4719 = vadd.f32 %v4718, %v4559
    %v4720 = vadd.f32 %v4719, %v4563
    %v4721 = vadd.f32 %v4720, %v4567
    %v4722 = vadd.f32 %v4721, %v4571
    %v4723 = vadd.f32 %v4722, %v4575
    %v4724 = vadd.f32 %v4723, %v4579
    %v4725 = vadd.f32 %v4724, %v4583
    %v4726 = vadd.f32 %v4725, %v4587
    %v4727 = vadd.f32 %v4726, %v4591
    %v4728 = vadd.f32 %v4727, %v4595
    %v4729 = vadd.f32 %v4728, %v4599
    %v4730 = vadd.f32 %v4729, %v4603
    %v4731 = vadd.f32 %v4730, %v4607
    %v4732 = vadd.f32 %v4731, %v4611
    %v4733 = vadd.f32 %v4732, %v4615
    %v4734 = vadd.f32 %v4733, %v4619
    %v4735 = vadd.f32 %v4734, %v4623
    %v4736 = vadd.f32 %v4735, %v4627
    %v4737 = vadd.f32 %v4736, %v4631
    %v4738 = vrot.slane %v4737, 4
    %v4739 = vadd.f32 %v4737, %v4738
    %v4740 = vrot.slane %v4739, 2
    %v4741 = vadd.f32 %v4739, %v4740
    %v4742 = vrot.slane %v4741, 1
    %v4743 = vadd.f32 %v4741, %v4742
    %v4744 = vadd.f32 %v4508, %v4512
    %v4745 = vadd.f32 %v4744, %v4516
    %v4746 = vadd.f32 %v4745, %v4520
    %v4747 = vadd.f32 %v4746, %v4524
    %v4748 = vadd.f32 %v4747, %v4528
    %v4749 = vadd.f32 %v4748, %v4532
    %v4750 = vadd.f32 %v4749, %v4536
    %v4751 = vadd.f32 %v4750, %v4540
    %v4752 = vadd.f32 %v4751, %v4544
    %v4753 = vadd.f32 %v4752, %v4548
    %v4754 = vadd.f32 %v4753, %v4552
    %v4755 = vadd.f32 %v4754, %v4556
    %v4756 = vadd.f32 %v4755, %v4560
    %v4757 = vadd.f32 %v4756, %v4564
    %v4758 = vadd.f32 %v4757, %v4568
    %v4759 = vadd.f32 %v4758, %v4572
    %v4760 = vadd.f32 %v4759, %v4576
    %v4761 = vadd.f32 %v4760, %v4580
    %v4762 = vadd.f32 %v4761, %v4584
    %v4763 = vadd.f32 %v4762, %v4588
    %v4764 = vadd.f32 %v4763, %v4592
    %v4765 = vadd.f32 %v4764, %v4596
    %v4766 = vadd.f32 %v4765, %v4600
    %v4767 = vadd.f32 %v4766, %v4604
    %v4768 = vadd.f32 %v4767, %v4608
    %v4769 = vadd.f32 %v4768, %v4612
    %v4770 = vadd.f32 %v4769, %v4616
    %v4771 = vadd.f32 %v4770, %v4620
    %v4772 = vadd.f32 %v4771, %v4624
    %v4773 = vadd.f32 %v4772, %v4628
    %v4774 = vadd.f32 %v4773, %v4632
    %v4775 = vrot.slane %v4774, 4
    %v4776 = vadd.f32 %v4774, %v4775
    %v4777 = vrot.slane %v4776, 2
    %v4778 = vadd.f32 %v4776, %v4777
    %v4779 = vrot.slane %v4778, 1
    %v4780 = vadd.f32 %v4778, %v4779
    %v4781 = vmul.f32 %v4669, 0.00390625
    %v4782 = vmul.f32 %v4706, 0.00390625
    %v4783 = vmul.f32 %v4743, 0.00390625
    %v4784 = vmul.f32 %v4780, 0.00390625
    %v4785 = vmul.f32 %v4505, %v4505
    %v4786 = vmul.f32 %v4506, %v4506
    %v4787 = vmul.f32 %v4507, %v4507
    %v4788 = vmul.f32 %v4508, %v4508
    %v4789 = vmul.f32 %v4509, %v4509
    %v4790 = vmul.f32 %v4510, %v4510
    %v4791 = vmul.f32 %v4511, %v4511
    %v4792 = vmul.f32 %v4512, %v4512
    %v4793 = vmul.f32 %v4513, %v4513
    %v4794 = vmul.f32 %v4514, %v4514
    %v4795 = vmul.f32 %v4515, %v4515
    %v4796 = vmul.f32 %v4516, %v4516
    %v4797 = vmul.f32 %v4517, %v4517
    %v4798 = vmul.f32 %v4518, %v4518
    %v4799 = vmul.f32 %v4519, %v4519
    %v4800 = vmul.f32 %v4520, %v4520
    %v4801 = vmul.f32 %v4521, %v4521
    %v4802 = vmul.f32 %v4522, %v4522
    %v4803 = vmul.f32 %v4523, %v4523
    %v4804 = vmul.f32 %v4524, %v4524
    %v4805 = vmul.f32 %v4525, %v4525
    %v4806 = vmul.f32 %v4526, %v4526
    %v4807 = vmul.f32 %v4527, %v4527
    %v4808 = vmul.f32 %v4528, %v4528
    %v4809 = vmul.f32 %v4529, %v4529
    %v4810 = vmul.f32 %v4530, %v4530
    %v4811 = vmul.f32 %v4531, %v4531
    %v4812 = vmul.f32 %v4532, %v4532
    %v4813 = vmul.f32 %v4533, %v4533
    %v4814 = vmul.f32 %v4534, %v4534
    %v4815 = vmul.f32 %v4535, %v4535
    %v4816 = vmul.f32 %v4536, %v4536
    %v4817 = vmul.f32 %v4537, %v4537
    %v4818 = vmul.f32 %v4538, %v4538
    %v4819 = vmul.f32 %v4539, %v4539
    %v4820 = vmul.f32 %v4540, %v4540
    %v4821 = vmul.f32 %v4541, %v4541
    %v4822 = vmul.f32 %v4542, %v4542
    %v4823 = vmul.f32 %v4543, %v4543
    %v4824 = vmul.f32 %v4544, %v4544
    %v4825 = vmul.f32 %v4545, %v4545
    %v4826 = vmul.f32 %v4546, %v4546
    %v4827 = vmul.f32 %v4547, %v4547
    %v4828 = vmul.f32 %v4548, %v4548
    %v4829 = vmul.f32 %v4549, %v4549
    %v4830 = vmul.f32 %v4550, %v4550
    %v4831 = vmul.f32 %v4551, %v4551
    %v4832 = vmul.f32 %v4552, %v4552
    %v4833 = vmul.f32 %v4553, %v4553
    %v4834 = vmul.f32 %v4554, %v4554
    %v4835 = vmul.f32 %v4555, %v4555
    %v4836 = vmul.f32 %v4556, %v4556
    %v4837 = vmul.f32 %v4557, %v4557
    %v4838 = vmul.f32 %v4558, %v4558
    %v4839 = vmul.f32 %v4559, %v4559
    %v4840 = vmul.f32 %v4560, %v4560
    %v4841 = vmul.f32 %v4561, %v4561
    %v4842 = vmul.f32 %v4562, %v4562
    %v4843 = vmul.f32 %v4563, %v4563
    %v4844 = vmul.f32 %v4564, %v4564
    %v4845 = vmul.f32 %v4565, %v4565
    %v4846 = vmul.f32 %v4566, %v4566
    %v4847 = vmul.f32 %v4567, %v4567
    %v4848 = vmul.f32 %v4568, %v4568
    %v4849 = vmul.f32 %v4569, %v4569
    %v4850 = vmul.f32 %v4570, %v4570
    %v4851 = vmul.f32 %v4571, %v4571
    %v4852 = vmul.f32 %v4572, %v4572
    %v4853 = vmul.f32 %v4573, %v4573
    %v4854 = vmul.f32 %v4574, %v4574
    %v4855 = vmul.f32 %v4575, %v4575
    %v4856 = vmul.f32 %v4576, %v4576
    %v4857 = vmul.f32 %v4577, %v4577
    %v4858 = vmul.f32 %v4578, %v4578
    %v4859 = vmul.f32 %v4579, %v4579
    %v4860 = vmul.f32 %v4580, %v4580
    %v4861 = vmul.f32 %v4581, %v4581
    %v4862 = vmul.f32 %v4582, %v4582
    %v4863 = vmul.f32 %v4583, %v4583
    %v4864 = vmul.f32 %v4584, %v4584
    %v4865 = vmul.f32 %v4585, %v4585
    %v4866 = vmul.f32 %v4586, %v4586
    %v4867 = vmul.f32 %v4587, %v4587
    %v4868 = vmul.f32 %v4588, %v4588
    %v4869 = vmul.f32 %v4589, %v4589
    %v4870 = vmul.f32 %v4590, %v4590
    %v4871 = vmul.f32 %v4591, %v4591
    %v4872 = vmul.f32 %v4592, %v4592
    %v4873 = vmul.f32 %v4593, %v4593
    %v4874 = vmul.f32 %v4594, %v4594
    %v4875 = vmul.f32 %v4595, %v4595
    %v4876 = vmul.f32 %v4596, %v4596
    %v4877 = vmul.f32 %v4597, %v4597
    %v4878 = vmul.f32 %v4598, %v4598
    %v4879 = vmul.f32 %v4599, %v4599
    %v4880 = vmul.f32 %v4600, %v4600
    %v4881 = vmul.f32 %v4601, %v4601
    %v4882 = vmul.f32 %v4602, %v4602
    %v4883 = vmul.f32 %v4603, %v4603
    %v4884 = vmul.f32 %v4604, %v4604
    %v4885 = vmul.f32 %v4605, %v4605
    %v4886 = vmul.f32 %v4606, %v4606
    %v4887 = vmul.f32 %v4607, %v4607
    %v4888 = vmul.f32 %v4608, %v4608
    %v4889 = vmul.f32 %v4609, %v4609
    %v4890 = vmul.f32 %v4610, %v4610
    %v4891 = vmul.f32 %v4611, %v4611
    %v4892 = vmul.f32 %v4612, %v4612
    %v4893 = vmul.f32 %v4613, %v4613
    %v4894 = vmul.f32 %v4614, %v4614
    %v4895 = vmul.f32 %v4615, %v4615
    %v4896 = vmul.f32 %v4616, %v4616
    %v4897 = vmul.f32 %v4617, %v4617
    %v4898 = vmul.f32 %v4618, %v4618
    %v4899 = vmul.f32 %v4619, %v4619
    %v4900 = vmul.f32 %v4620, %v4620
    %v4901 = vmul.f32 %v4621, %v4621
    %v4902 = vmul.f32 %v4622, %v4622
    %v4903 = vmul.f32 %v4623, %v4623
    %v4904 = vmul.f32 %v4624, %v4624
    %v4905 = vmul.f32 %v4625, %v4625
    %v4906 = vmul.f32 %v4626, %v4626
    %v4907 = vmul.f32 %v4627, %v4627
    %v4908 = vmul.f32 %v4628, %v4628
    %v4909 = vmul.f32 %v4629, %v4629
    %v4910 = vmul.f32 %v4630, %v4630
    %v4911 = vmul.f32 %v4631, %v4631
    %v4912 = vmul.f32 %v4632, %v4632
    %v4913 = vadd.f32 %v4785, %v4789
    %v4914 = vadd.f32 %v4913, %v4793
    %v4915 = vadd.f32 %v4914, %v4797
    %v4916 = vadd.f32 %v4915, %v4801
    %v4917 = vadd.f32 %v4916, %v4805
    %v4918 = vadd.f32 %v4917, %v4809
    %v4919 = vadd.f32 %v4918, %v4813
    %v4920 = vadd.f32 %v4919, %v4817
    %v4921 = vadd.f32 %v4920, %v4821
    %v4922 = vadd.f32 %v4921, %v4825
    %v4923 = vadd.f32 %v4922, %v4829
    %v4924 = vadd.f32 %v4923, %v4833
    %v4925 = vadd.f32 %v4924, %v4837
    %v4926 = vadd.f32 %v4925, %v4841
    %v4927 = vadd.f32 %v4926, %v4845
    %v4928 = vadd.f32 %v4927, %v4849
    %v4929 = vadd.f32 %v4928, %v4853
    %v4930 = vadd.f32 %v4929, %v4857
    %v4931 = vadd.f32 %v4930, %v4861
    %v4932 = vadd.f32 %v4931, %v4865
    %v4933 = vadd.f32 %v4932, %v4869
    %v4934 = vadd.f32 %v4933, %v4873
    %v4935 = vadd.f32 %v4934, %v4877
    %v4936 = vadd.f32 %v4935, %v4881
    %v4937 = vadd.f32 %v4936, %v4885
    %v4938 = vadd.f32 %v4937, %v4889
    %v4939 = vadd.f32 %v4938, %v4893
    %v4940 = vadd.f32 %v4939, %v4897
    %v4941 = vadd.f32 %v4940, %v4901
    %v4942 = vadd.f32 %v4941, %v4905
    %v4943 = vadd.f32 %v4942, %v4909
    %v4944 = vrot.slane %v4943, 4
    %v4945 = vadd.f32 %v4943, %v4944
    %v4946 = vrot.slane %v4945, 2
    %v4947 = vadd.f32 %v4945, %v4946
    %v4948 = vrot.slane %v4947, 1
    %v4949 = vadd.f32 %v4947, %v4948
    %v4950 = vadd.f32 %v4786, %v4790
    %v4951 = vadd.f32 %v4950, %v4794
    %v4952 = vadd.f32 %v4951, %v4798
    %v4953 = vadd.f32 %v4952, %v4802
    %v4954 = vadd.f32 %v4953, %v4806
    %v4955 = vadd.f32 %v4954, %v4810
    %v4956 = vadd.f32 %v4955, %v4814
    %v4957 = vadd.f32 %v4956, %v4818
    %v4958 = vadd.f32 %v4957, %v4822
    %v4959 = vadd.f32 %v4958, %v4826
    %v4960 = vadd.f32 %v4959, %v4830
    %v4961 = vadd.f32 %v4960, %v4834
    %v4962 = vadd.f32 %v4961, %v4838
    %v4963 = vadd.f32 %v4962, %v4842
    %v4964 = vadd.f32 %v4963, %v4846
    %v4965 = vadd.f32 %v4964, %v4850
    %v4966 = vadd.f32 %v4965, %v4854
    %v4967 = vadd.f32 %v4966, %v4858
    %v4968 = vadd.f32 %v4967, %v4862
    %v4969 = vadd.f32 %v4968, %v4866
    %v4970 = vadd.f32 %v4969, %v4870
    %v4971 = vadd.f32 %v4970, %v4874
    %v4972 = vadd.f32 %v4971, %v4878
    %v4973 = vadd.f32 %v4972, %v4882
    %v4974 = vadd.f32 %v4973, %v4886
    %v4975 = vadd.f32 %v4974, %v4890
    %v4976 = vadd.f32 %v4975, %v4894
    %v4977 = vadd.f32 %v4976, %v4898
    %v4978 = vadd.f32 %v4977, %v4902
    %v4979 = vadd.f32 %v4978, %v4906
    %v4980 = vadd.f32 %v4979, %v4910
    %v4981 = vrot.slane %v4980, 4
    %v4982 = vadd.f32 %v4980, %v4981
    %v4983 = vrot.slane %v4982, 2
    %v4984 = vadd.f32 %v4982, %v4983
    %v4985 = vrot.slane %v4984, 1
    %v4986 = vadd.f32 %v4984, %v4985
    %v4987 = vadd.f32 %v4787, %v4791
    %v4988 = vadd.f32 %v4987, %v4795
    %v4989 = vadd.f32 %v4988, %v4799
    %v4990 = vadd.f32 %v4989, %v4803
    %v4991 = vadd.f32 %v4990, %v4807
    %v4992 = vadd.f32 %v4991, %v4811
    %v4993 = vadd.f32 %v4992, %v4815
    %v4994 = vadd.f32 %v4993, %v4819
    %v4995 = vadd.f32 %v4994, %v4823
    %v4996 = vadd.f32 %v4995, %v4827
    %v4997 = vadd.f32 %v4996, %v4831
    %v4998 = vadd.f32 %v4997, %v4835
    %v4999 = vadd.f32 %v4998, %v4839
    %v5000 = vadd.f32 %v4999, %v4843
    %v5001 = vadd.f32 %v5000, %v4847
    %v5002 = vadd.f32 %v5001, %v4851
    %v5003 = vadd.f32 %v5002, %v4855
    %v5004 = vadd.f32 %v5003, %v4859
    %v5005 = vadd.f32 %v5004, %v4863
    %v5006 = vadd.f32 %v5005, %v4867
    %v5007 = vadd.f32 %v5006, %v4871
    %v5008 = vadd.f32 %v5007, %v4875
    %v5009 = vadd.f32 %v5008, %v4879
    %v5010 = vadd.f32 %v5009, %v4883
    %v5011 = vadd.f32 %v5010, %v4887
    %v5012 = vadd.f32 %v5011, %v4891
    %v5013 = vadd.f32 %v5012, %v4895
    %v5014 = vadd.f32 %v5013, %v4899
    %v5015 = vadd.f32 %v5014, %v4903
    %v5016 = vadd.f32 %v5015, %v4907
    %v5017 = vadd.f32 %v5016, %v4911
    %v5018 = vrot.slane %v5017, 4
    %v5019 = vadd.f32 %v5017, %v5018
    %v5020 = vrot.slane %v5019, 2
    %v5021 = vadd.f32 %v5019, %v5020
    %v5022 = vrot.slane %v5021, 1
    %v5023 = vadd.f32 %v5021, %v5022
    %v5024 = vadd.f32 %v4788, %v4792
    %v5025 = vadd.f32 %v5024, %v4796
    %v5026 = vadd.f32 %v5025, %v4800
    %v5027 = vadd.f32 %v5026, %v4804
    %v5028 = vadd.f32 %v5027, %v4808
    %v5029 = vadd.f32 %v5028, %v4812
    %v5030 = vadd.f32 %v5029, %v4816
    %v5031 = vadd.f32 %v5030, %v4820
    %v5032 = vadd.f32 %v5031, %v4824
    %v5033 = vadd.f32 %v5032, %v4828
    %v5034 = vadd.f32 %v5033, %v4832
    %v5035 = vadd.f32 %v5034, %v4836
    %v5036 = vadd.f32 %v5035, %v4840
    %v5037 = vadd.f32 %v5036, %v4844
    %v5038 = vadd.f32 %v5037, %v4848
    %v5039 = vadd.f32 %v5038, %v4852
    %v5040 = vadd.f32 %v5039, %v4856
    %v5041 = vadd.f32 %v5040, %v4860
    %v5042 = vadd.f32 %v5041, %v4864
    %v5043 = vadd.f32 %v5042, %v4868
    %v5044 = vadd.f32 %v5043, %v4872
    %v5045 = vadd.f32 %v5044, %v4876
    %v5046 = vadd.f32 %v5045, %v4880
    %v5047 = vadd.f32 %v5046, %v4884
    %v5048 = vadd.f32 %v5047, %v4888
    %v5049 = vadd.f32 %v5048, %v4892
    %v5050 = vadd.f32 %v5049, %v4896
    %v5051 = vadd.f32 %v5050, %v4900
    %v5052 = vadd.f32 %v5051, %v4904
    %v5053 = vadd.f32 %v5052, %v4908
    %v5054 = vadd.f32 %v5053, %v4912
    %v5055 = vrot.slane %v5054, 4
    %v5056 = vadd.f32 %v5054, %v5055
    %v5057 = vrot.slane %v5056, 2
    %v5058 = vadd.f32 %v5056, %v5057
    %v5059 = vrot.slane %v5058, 1
    %v5060 = vadd.f32 %v5058, %v5059
    %v5061 = vmul.f32 %v4949, 0.00390625
    %v5062 = vmul.f32 %v4986, 0.00390625
    %v5063 = vmul.f32 %v5023, 0.00390625
    %v5064 = vmul.f32 %v5060, 0.00390625
    %v5065 = vmul.f32 %v4781, %v4781
    %v5066 = vmul.f32 %v4782, %v4782
    %v5067 = vmul.f32 %v4783, %v4783
    %v5068 = vmul.f32 %v4784, %v4784
    %v5069 = vsub.f32 %v5061, %v5065
    %v5070 = vsub.f32 %v5062, %v5066
    %v5071 = vsub.f32 %v5063, %v5067
    %v5072 = vsub.f32 %v5064, %v5068
    %v5073 = vmax.f32 %v5069, 0.0
    %v5074 = vmax.f32 %v5070, 0.0
    %v5075 = vmax.f32 %v5071, 0.0
    %v5076 = vmax.f32 %v5072, 0.0
    %v5077 = vadd.f32 %v3945, %v4781
    %v5078 = vadd.f32 %v3947, %v4782
    %v5079 = vadd.f32 %v4331, %v4783
    %v5080 = vadd.f32 %v4333, %v4784
    %v5081 = vadd.f32 %v5073, 1e-05
    %v5082 = vadd.f32 %v5074, 1e-05
    %v5083 = vadd.f32 %v5075, 1e-05
    %v5084 = vadd.f32 %v5076, 1e-05
    %v5085 = vrsqrt.pop %v5081
    %v5086 = vrsqrt.pop %v5082
    %v5087 = vrsqrt.pop %v5083
    %v5088 = vrsqrt.pop %v5084
    %v5089 = vmul.f32 %v150, %v5085
    %v5090 = vmul.f32 %v151, %v5086
    %v5091 = vmul.f32 %v152, %v5087
    %v5092 = vmul.f32 %v153, %v5088
    %v5097 = vrot.slane %v5089, 5
    %v5098 = vrot.slane %v5090, 5
    %v5099 = vrot.slane %v5091, 5
    %v5100 = vrot.slane %v5092, 5
    %v5105 = vmul.f32 %v5077, %v5097
    %v5106 = vmul.f32 %v5078, %v5098
    %v5107 = vmul.f32 %v5079, %v5099
    %v5108 = vmul.f32 %v5080, %v5100
    %v5113 = vrot.slane %v5105, 2
    %v5114 = vrot.slane %v5106, 2
    %v5115 = vrot.slane %v5107, 2
    %v5116 = vrot.slane %v5108, 2
    %v5121 = vsub.f32 %v150, %v5113
    %v5122 = vsub.f32 %v151, %v5114
    %v5123 = vsub.f32 %v152, %v5115
    %v5124 = vsub.f32 %v153, %v5116
    %v5125 = vmul.f32 %v5089, %v5089
    %v5126 = vmul.f32 %v5090, %v5090
    %v5127 = vmul.f32 %v5091, %v5091
    %v5128 = vmul.f32 %v5092, %v5092
    %v5129 = vmul.f32 %v5125, %v5073
    %v5130 = vmul.f32 %v5126, %v5074
    %v5131 = vmul.f32 %v5127, %v5075
    %v5132 = vmul.f32 %v5128, %v5076
    %v5133 = vadd.f32 %v5129, 1e-05
    %v5134 = vadd.f32 %v5130, 1e-05
    %v5135 = vadd.f32 %v5131, 1e-05
    %v5136 = vadd.f32 %v5132, 1e-05
    %v5137 = vrsqrt.pop %v5133
    %v5138 = vrsqrt.pop %v5134
    %v5139 = vrsqrt.pop %v5135
    %v5140 = vrsqrt.pop %v5136
    %v5145 = vrot.slane %v5137, 6
    %v5146 = vrot.slane %v5138, 6
    %v5147 = vrot.slane %v5139, 6
    %v5148 = vrot.slane %v5140, 6
    %v5153 = vmul.f32 %v150, %v5145
    %v5154 = vmul.f32 %v151, %v5146
    %v5155 = vmul.f32 %v152, %v5147
    %v5156 = vmul.f32 %v153, %v5148
    %v5161 = vrot.slane %v5153, 1
    %v5162 = vrot.slane %v5154, 1
    %v5163 = vrot.slane %v5155, 1
    %v5164 = vrot.slane %v5156, 1
    %v5169 = vmul.f32 %v150, %v5161
    %v5170 = vmul.f32 %v151, %v5162
    %v5171 = vmul.f32 %v152, %v5163
    %v5172 = vmul.f32 %v153, %v5164
    %v5177 = vrot.slane %v5169, 6
    %v5178 = vrot.slane %v5170, 6
    %v5179 = vrot.slane %v5171, 6
    %v5180 = vrot.slane %v5172, 6
    %v5185 = vsub.f32 %v154, %v5177
    %v5186 = vsub.f32 %v155, %v5178
    %v5187 = vsub.f32 %v156, %v5179
    %v5188 = vsub.f32 %v157, %v5180
    %v5189 = vrot.slane %v5153, 2
    %v5190 = vrot.slane %v5154, 2
    %v5191 = vrot.slane %v5155, 2
    %v5192 = vrot.slane %v5156, 2
    %v5197 = vmul.f32 %v5089, %v5189
    %v5198 = vmul.f32 %v5090, %v5190
    %v5199 = vmul.f32 %v5091, %v5191
    %v5200 = vmul.f32 %v5092, %v5192
    %v5201 = vmul.f32 %v5121, %v5161
    %v5202 = vmul.f32 %v5122, %v5162
    %v5203 = vmul.f32 %v5123, %v5163
    %v5204 = vmul.f32 %v5124, %v5164
    %v5209 = vrot.slane %v5185, 2
    %v5210 = vrot.slane %v5186, 2
    %v5211 = vrot.slane %v5187, 2
    %v5212 = vrot.slane %v5188, 2
    %v5217 = vadd.f32 %v5201, %v5209
    %v5218 = vadd.f32 %v5202, %v5210
    %v5219 = vadd.f32 %v5203, %v5211
    %v5220 = vadd.f32 %v5204, %v5212
    %v5225 = vrot.slane %v154, 7
    %v5226 = vrot.slane %v155, 7
    %v5227 = vrot.slane %v156, 7
    %v5228 = vrot.slane %v157, 7
    %v5233 = vmul.f32 %v154, %v5225
    %v5234 = vmul.f32 %v155, %v5226
    %v5235 = vmul.f32 %v156, %v5227
    %v5236 = vmul.f32 %v157, %v5228
    %v5241 = vrot.slane %v5197, 4
    %v5242 = vrot.slane %v5198, 4
    %v5243 = vrot.slane %v5199, 4
    %v5244 = vrot.slane %v5200, 4
    %v5249 = vmul.f32 %v154, %v5241
    %v5250 = vmul.f32 %v155, %v5242
    %v5251 = vmul.f32 %v156, %v5243
    %v5252 = vmul.f32 %v157, %v5244
    %v5253 = vmul.f32 %v5249, %v5249
    %v5254 = vmul.f32 %v5250, %v5250
    %v5255 = vmul.f32 %v5251, %v5251
    %v5256 = vmul.f32 %v5252, %v5252
    %v5257 = vmul.f32 %v5253, %v5073
    %v5258 = vmul.f32 %v5254, %v5074
    %v5259 = vmul.f32 %v5255, %v5075
    %v5260 = vmul.f32 %v5256, %v5076
    %v5261 = vadd.f32 %v5257, 1e-05
    %v5262 = vadd.f32 %v5258, 1e-05
    %v5263 = vadd.f32 %v5259, 1e-05
    %v5264 = vadd.f32 %v5260, 1e-05
    %v5265 = vrsqrt.pop %v5261
    %v5266 = vrsqrt.pop %v5262
    %v5267 = vrsqrt.pop %v5263
    %v5268 = vrsqrt.pop %v5264
    %v5273 = vrot.slane %v5265, 7
    %v5274 = vrot.slane %v5266, 7
    %v5275 = vrot.slane %v5267, 7
    %v5276 = vrot.slane %v5268, 7
    %v5281 = vmul.f32 %v154, %v5273
    %v5282 = vmul.f32 %v155, %v5274
    %v5283 = vmul.f32 %v156, %v5275
    %v5284 = vmul.f32 %v157, %v5276
    %v5289 = vrot.slane %v5281, 1
    %v5290 = vrot.slane %v5282, 1
    %v5291 = vrot.slane %v5283, 1
    %v5292 = vrot.slane %v5284, 1
    %v5297 = vmul.f32 %v5233, %v5289
    %v5298 = vmul.f32 %v5234, %v5290
    %v5299 = vmul.f32 %v5235, %v5291
    %v5300 = vmul.f32 %v5236, %v5292
    %v5305 = vrot.slane %v5297, 6
    %v5306 = vrot.slane %v5298, 6
    %v5307 = vrot.slane %v5299, 6
    %v5308 = vrot.slane %v5300, 6
    %v5313 = vsub.f32 %v154, %v5305
    %v5314 = vsub.f32 %v155, %v5306
    %v5315 = vsub.f32 %v156, %v5307
    %v5316 = vsub.f32 %v157, %v5308
    %v5317 = vmul.f32 %v5249, %v5289
    %v5318 = vmul.f32 %v5250, %v5290
    %v5319 = vmul.f32 %v5251, %v5291
    %v5320 = vmul.f32 %v5252, %v5292
    %v5321 = vlaneseq
    %v5322 = vshrl.u32 %v5321, 7
    %v5323 = vsub.s32 1, %v5322
    %v5324 = vrot.slane %v5317, %v5323
    %v5325 = vlaneseq
    %v5326 = vshrl.u32 %v5325, 7
    %v5327 = vsub.s32 1, %v5326
    %v5328 = vrot.slane %v5318, %v5327
    %v5329 = vlaneseq
    %v5330 = vshrl.u32 %v5329, 7
    %v5331 = vsub.s32 1, %v5330
    %v5332 = vrot.slane %v5319, %v5331
    %v5333 = vlaneseq
    %v5334 = vshrl.u32 %v5333, 7
    %v5335 = vsub.s32 1, %v5334
    %v5336 = vrot.slane %v5320, %v5335
    %v5337 = vmul.f32 %v3945, %v5324
    %v5338 = vmul.f32 %v3947, %v5328
    %v5339 = vmul.f32 %v4331, %v5332
    %v5340 = vmul.f32 %v4333, %v5336
    %v5341 = vmul.f32 %v3949, %v5324
    %v5342 = vmul.f32 %v3951, %v5328
    %v5343 = vmul.f32 %v4335, %v5332
    %v5344 = vmul.f32 %v4337, %v5336
    %v5345 = vmul.f32 %v3955, %v5324
    %v5346 = vmul.f32 %v3957, %v5328
    %v5347 = vmul.f32 %v4341, %v5332
    %v5348 = vmul.f32 %v4343, %v5336
    %v5349 = vmul.f32 %v3959, %v5324
    %v5350 = vmul.f32 %v3961, %v5328
    %v5351 = vmul.f32 %v4345, %v5332
    %v5352 = vmul.f32 %v4347, %v5336
    %v5353 = vmul.f32 %v3965, %v5324
    %v5354 = vmul.f32 %v3967, %v5328
    %v5355 = vmul.f32 %v4351, %v5332
    %v5356 = vmul.f32 %v4353, %v5336
    %v5357 = vmul.f32 %v3969, %v5324
    %v5358 = vmul.f32 %v3971, %v5328
    %v5359 = vmul.f32 %v4355, %v5332
    %v5360 = vmul.f32 %v4357, %v5336
    %v5361 = vmul.f32 %v3975, %v5324
    %v5362 = vmul.f32 %v3977, %v5328
    %v5363 = vmul.f32 %v4361, %v5332
    %v5364 = vmul.f32 %v4363, %v5336
    %v5365 = vmul.f32 %v3979, %v5324
    %v5366 = vmul.f32 %v3981, %v5328
    %v5367 = vmul.f32 %v4365, %v5332
    %v5368 = vmul.f32 %v4367, %v5336
    %v5369 = vmul.f32 %v3985, %v5324
    %v5370 = vmul.f32 %v3987, %v5328
    %v5371 = vmul.f32 %v4371, %v5332
    %v5372 = vmul.f32 %v4373, %v5336
    %v5373 = vmul.f32 %v3989, %v5324
    %v5374 = vmul.f32 %v3991, %v5328
    %v5375 = vmul.f32 %v4375, %v5332
    %v5376 = vmul.f32 %v4377, %v5336
    %v5377 = vmul.f32 %v3995, %v5324
    %v5378 = vmul.f32 %v3997, %v5328
    %v5379 = vmul.f32 %v4381, %v5332
    %v5380 = vmul.f32 %v4383, %v5336
    %v5381 = vmul.f32 %v3999, %v5324
    %v5382 = vmul.f32 %v4001, %v5328
    %v5383 = vmul.f32 %v4385, %v5332
    %v5384 = vmul.f32 %v4387, %v5336
    %v5385 = vmul.f32 %v4005, %v5324
    %v5386 = vmul.f32 %v4007, %v5328
    %v5387 = vmul.f32 %v4391, %v5332
    %v5388 = vmul.f32 %v4393, %v5336
    %v5389 = vmul.f32 %v4009, %v5324
    %v5390 = vmul.f32 %v4011, %v5328
    %v5391 = vmul.f32 %v4395, %v5332
    %v5392 = vmul.f32 %v4397, %v5336
    %v5393 = vmul.f32 %v4015, %v5324
    %v5394 = vmul.f32 %v4017, %v5328
    %v5395 = vmul.f32 %v4401, %v5332
    %v5396 = vmul.f32 %v4403, %v5336
    %v5397 = vmul.f32 %v4019, %v5324
    %v5398 = vmul.f32 %v4021, %v5328
    %v5399 = vmul.f32 %v4405, %v5332
    %v5400 = vmul.f32 %v4407, %v5336
    %v5401 = vmul.f32 %v4025, %v5324
    %v5402 = vmul.f32 %v4027, %v5328
    %v5403 = vmul.f32 %v4411, %v5332
    %v5404 = vmul.f32 %v4413, %v5336
    %v5405 = vmul.f32 %v4029, %v5324
    %v5406 = vmul.f32 %v4031, %v5328
    %v5407 = vmul.f32 %v4415, %v5332
    %v5408 = vmul.f32 %v4417, %v5336
    %v5409 = vmul.f32 %v4035, %v5324
    %v5410 = vmul.f32 %v4037, %v5328
    %v5411 = vmul.f32 %v4421, %v5332
    %v5412 = vmul.f32 %v4423, %v5336
    %v5413 = vmul.f32 %v4039, %v5324
    %v5414 = vmul.f32 %v4041, %v5328
    %v5415 = vmul.f32 %v4425, %v5332
    %v5416 = vmul.f32 %v4427, %v5336
    %v5417 = vmul.f32 %v4045, %v5324
    %v5418 = vmul.f32 %v4047, %v5328
    %v5419 = vmul.f32 %v4431, %v5332
    %v5420 = vmul.f32 %v4433, %v5336
    %v5421 = vmul.f32 %v4049, %v5324
    %v5422 = vmul.f32 %v4051, %v5328
    %v5423 = vmul.f32 %v4435, %v5332
    %v5424 = vmul.f32 %v4437, %v5336
    %v5425 = vmul.f32 %v4055, %v5324
    %v5426 = vmul.f32 %v4057, %v5328
    %v5427 = vmul.f32 %v4441, %v5332
    %v5428 = vmul.f32 %v4443, %v5336
    %v5429 = vmul.f32 %v4059, %v5324
    %v5430 = vmul.f32 %v4061, %v5328
    %v5431 = vmul.f32 %v4445, %v5332
    %v5432 = vmul.f32 %v4447, %v5336
    %v5433 = vmul.f32 %v4065, %v5324
    %v5434 = vmul.f32 %v4067, %v5328
    %v5435 = vmul.f32 %v4451, %v5332
    %v5436 = vmul.f32 %v4453, %v5336
    %v5437 = vmul.f32 %v4069, %v5324
    %v5438 = vmul.f32 %v4071, %v5328
    %v5439 = vmul.f32 %v4455, %v5332
    %v5440 = vmul.f32 %v4457, %v5336
    %v5441 = vmul.f32 %v4075, %v5324
    %v5442 = vmul.f32 %v4077, %v5328
    %v5443 = vmul.f32 %v4461, %v5332
    %v5444 = vmul.f32 %v4463, %v5336
    %v5445 = vmul.f32 %v4079, %v5324
    %v5446 = vmul.f32 %v4081, %v5328
    %v5447 = vmul.f32 %v4465, %v5332
    %v5448 = vmul.f32 %v4467, %v5336
    %v5449 = vmul.f32 %v4085, %v5324
    %v5450 = vmul.f32 %v4087, %v5328
    %v5451 = vmul.f32 %v4471, %v5332
    %v5452 = vmul.f32 %v4473, %v5336
    %v5453 = vmul.f32 %v4089, %v5324
    %v5454 = vmul.f32 %v4091, %v5328
    %v5455 = vmul.f32 %v4475, %v5332
    %v5456 = vmul.f32 %v4477, %v5336
    %v5457 = vmul.f32 %v4095, %v5324
    %v5458 = vmul.f32 %v4097, %v5328
    %v5459 = vmul.f32 %v4481, %v5332
    %v5460 = vmul.f32 %v4483, %v5336
    %v5461 = vmul.f32 %v4099, %v5324
    %v5462 = vmul.f32 %v4101, %v5328
    %v5463 = vmul.f32 %v4485, %v5332
    %v5464 = vmul.f32 %v4487, %v5336
    %v5465 = vrot.slane %v154, 3
    %v5466 = vrot.slane %v155, 3
    %v5467 = vrot.slane %v156, 3
    %v5468 = vrot.slane %v157, 3
    %v5473 = vmul.f32 %v5217, %v5465
    %v5474 = vmul.f32 %v5218, %v5466
    %v5475 = vmul.f32 %v5219, %v5467
    %v5476 = vmul.f32 %v5220, %v5468
    %v5477 = vrot.slane %v5281, 4
    %v5478 = vrot.slane %v5282, 4
    %v5479 = vrot.slane %v5283, 4
    %v5480 = vrot.slane %v5284, 4
    %v5485 = vmul.f32 %v5473, %v5477
    %v5486 = vmul.f32 %v5474, %v5478
    %v5487 = vmul.f32 %v5475, %v5479
    %v5488 = vmul.f32 %v5476, %v5480
    %v5493 = vrot.slane %v5313, 5
    %v5494 = vrot.slane %v5314, 5
    %v5495 = vrot.slane %v5315, 5
    %v5496 = vrot.slane %v5316, 5
    %v5501 = vadd.f32 %v5485, %v5493
    %v5502 = vadd.f32 %v5486, %v5494
    %v5503 = vadd.f32 %v5487, %v5495
    %v5504 = vadd.f32 %v5488, %v5496
    %v5505 = vlaneseq
    %v5506 = vshrl.u32 %v5505, 7
    %v5507 = vsub.s32 6, %v5506
    %v5508 = vrot.slane %v5501, %v5507
    %v5509 = vlaneseq
    %v5510 = vshrl.u32 %v5509, 7
    %v5511 = vsub.s32 6, %v5510
    %v5512 = vrot.slane %v5502, %v5511
    %v5513 = vlaneseq
    %v5514 = vshrl.u32 %v5513, 7
    %v5515 = vsub.s32 6, %v5514
    %v5516 = vrot.slane %v5503, %v5515
    %v5517 = vlaneseq
    %v5518 = vshrl.u32 %v5517, 7
    %v5519 = vsub.s32 6, %v5518
    %v5520 = vrot.slane %v5504, %v5519
    %v5521 = vadd.f32 %v5337, %v5508
    %v5522 = vadd.f32 %v5338, %v5512
    %v5523 = vadd.f32 %v5339, %v5516
    %v5524 = vadd.f32 %v5340, %v5520
    %v5525 = vadd.f32 %v5341, %v5508
    %v5526 = vadd.f32 %v5342, %v5512
    %v5527 = vadd.f32 %v5343, %v5516
    %v5528 = vadd.f32 %v5344, %v5520
    %v5529 = vadd.f32 %v5345, %v5508
    %v5530 = vadd.f32 %v5346, %v5512
    %v5531 = vadd.f32 %v5347, %v5516
    %v5532 = vadd.f32 %v5348, %v5520
    %v5533 = vadd.f32 %v5349, %v5508
    %v5534 = vadd.f32 %v5350, %v5512
    %v5535 = vadd.f32 %v5351, %v5516
    %v5536 = vadd.f32 %v5352, %v5520
    %v5537 = vadd.f32 %v5353, %v5508
    %v5538 = vadd.f32 %v5354, %v5512
    %v5539 = vadd.f32 %v5355, %v5516
    %v5540 = vadd.f32 %v5356, %v5520
    %v5541 = vadd.f32 %v5357, %v5508
    %v5542 = vadd.f32 %v5358, %v5512
    %v5543 = vadd.f32 %v5359, %v5516
    %v5544 = vadd.f32 %v5360, %v5520
    %v5545 = vadd.f32 %v5361, %v5508
    %v5546 = vadd.f32 %v5362, %v5512
    %v5547 = vadd.f32 %v5363, %v5516
    %v5548 = vadd.f32 %v5364, %v5520
    %v5549 = vadd.f32 %v5365, %v5508
    %v5550 = vadd.f32 %v5366, %v5512
    %v5551 = vadd.f32 %v5367, %v5516
    %v5552 = vadd.f32 %v5368, %v5520
    %v5553 = vadd.f32 %v5369, %v5508
    %v5554 = vadd.f32 %v5370, %v5512
    %v5555 = vadd.f32 %v5371, %v5516
    %v5556 = vadd.f32 %v5372, %v5520
    %v5557 = vadd.f32 %v5373, %v5508
    %v5558 = vadd.f32 %v5374, %v5512
    %v5559 = vadd.f32 %v5375, %v5516
    %v5560 = vadd.f32 %v5376, %v5520
    %v5561 = vadd.f32 %v5377, %v5508
    %v5562 = vadd.f32 %v5378, %v5512
    %v5563 = vadd.f32 %v5379, %v5516
    %v5564 = vadd.f32 %v5380, %v5520
    %v5565 = vadd.f32 %v5381, %v5508
    %v5566 = vadd.f32 %v5382, %v5512
    %v5567 = vadd.f32 %v5383, %v5516
    %v5568 = vadd.f32 %v5384, %v5520
    %v5569 = vadd.f32 %v5385, %v5508
    %v5570 = vadd.f32 %v5386, %v5512
    %v5571 = vadd.f32 %v5387, %v5516
    %v5572 = vadd.f32 %v5388, %v5520
    %v5573 = vadd.f32 %v5389, %v5508
    %v5574 = vadd.f32 %v5390, %v5512
    %v5575 = vadd.f32 %v5391, %v5516
    %v5576 = vadd.f32 %v5392, %v5520
    %v5577 = vadd.f32 %v5393, %v5508
    %v5578 = vadd.f32 %v5394, %v5512
    %v5579 = vadd.f32 %v5395, %v5516
    %v5580 = vadd.f32 %v5396, %v5520
    %v5581 = vadd.f32 %v5397, %v5508
    %v5582 = vadd.f32 %v5398, %v5512
    %v5583 = vadd.f32 %v5399, %v5516
    %v5584 = vadd.f32 %v5400, %v5520
    %v5585 = vadd.f32 %v5401, %v5508
    %v5586 = vadd.f32 %v5402, %v5512
    %v5587 = vadd.f32 %v5403, %v5516
    %v5588 = vadd.f32 %v5404, %v5520
    %v5589 = vadd.f32 %v5405, %v5508
    %v5590 = vadd.f32 %v5406, %v5512
    %v5591 = vadd.f32 %v5407, %v5516
    %v5592 = vadd.f32 %v5408, %v5520
    %v5593 = vadd.f32 %v5409, %v5508
    %v5594 = vadd.f32 %v5410, %v5512
    %v5595 = vadd.f32 %v5411, %v5516
    %v5596 = vadd.f32 %v5412, %v5520
    %v5597 = vadd.f32 %v5413, %v5508
    %v5598 = vadd.f32 %v5414, %v5512
    %v5599 = vadd.f32 %v5415, %v5516
    %v5600 = vadd.f32 %v5416, %v5520
    %v5601 = vadd.f32 %v5417, %v5508
    %v5602 = vadd.f32 %v5418, %v5512
    %v5603 = vadd.f32 %v5419, %v5516
    %v5604 = vadd.f32 %v5420, %v5520
    %v5605 = vadd.f32 %v5421, %v5508
    %v5606 = vadd.f32 %v5422, %v5512
    %v5607 = vadd.f32 %v5423, %v5516
    %v5608 = vadd.f32 %v5424, %v5520
    %v5609 = vadd.f32 %v5425, %v5508
    %v5610 = vadd.f32 %v5426, %v5512
    %v5611 = vadd.f32 %v5427, %v5516
    %v5612 = vadd.f32 %v5428, %v5520
    %v5613 = vadd.f32 %v5429, %v5508
    %v5614 = vadd.f32 %v5430, %v5512
    %v5615 = vadd.f32 %v5431, %v5516
    %v5616 = vadd.f32 %v5432, %v5520
    %v5617 = vadd.f32 %v5433, %v5508
    %v5618 = vadd.f32 %v5434, %v5512
    %v5619 = vadd.f32 %v5435, %v5516
    %v5620 = vadd.f32 %v5436, %v5520
    %v5621 = vadd.f32 %v5437, %v5508
    %v5622 = vadd.f32 %v5438, %v5512
    %v5623 = vadd.f32 %v5439, %v5516
    %v5624 = vadd.f32 %v5440, %v5520
    %v5625 = vadd.f32 %v5441, %v5508
    %v5626 = vadd.f32 %v5442, %v5512
    %v5627 = vadd.f32 %v5443, %v5516
    %v5628 = vadd.f32 %v5444, %v5520
    %v5629 = vadd.f32 %v5445, %v5508
    %v5630 = vadd.f32 %v5446, %v5512
    %v5631 = vadd.f32 %v5447, %v5516
    %v5632 = vadd.f32 %v5448, %v5520
    %v5633 = vadd.f32 %v5449, %v5508
    %v5634 = vadd.f32 %v5450, %v5512
    %v5635 = vadd.f32 %v5451, %v5516
    %v5636 = vadd.f32 %v5452, %v5520
    %v5637 = vadd.f32 %v5453, %v5508
    %v5638 = vadd.f32 %v5454, %v5512
    %v5639 = vadd.f32 %v5455, %v5516
    %v5640 = vadd.f32 %v5456, %v5520
    %v5641 = vadd.f32 %v5457, %v5508
    %v5642 = vadd.f32 %v5458, %v5512
    %v5643 = vadd.f32 %v5459, %v5516
    %v5644 = vadd.f32 %v5460, %v5520
    %v5645 = vadd.f32 %v5461, %v5508
    %v5646 = vadd.f32 %v5462, %v5512
    %v5647 = vadd.f32 %v5463, %v5516
    %v5648 = vadd.f32 %v5464, %v5520
    %v5649 = vmax.f32 %v5521, 0.0
    %v5650 = vmax.f32 %v5522, 0.0
    %v5651 = vmax.f32 %v5523, 0.0
    %v5652 = vmax.f32 %v5524, 0.0
    %v5653 = vmax.f32 %v5525, 0.0
    %v5654 = vmax.f32 %v5526, 0.0
    %v5655 = vmax.f32 %v5527, 0.0
    %v5656 = vmax.f32 %v5528, 0.0
    %v5657 = vmax.f32 %v5529, 0.0
    %v5658 = vmax.f32 %v5530, 0.0
    %v5659 = vmax.f32 %v5531, 0.0
    %v5660 = vmax.f32 %v5532, 0.0
    %v5661 = vmax.f32 %v5533, 0.0
    %v5662 = vmax.f32 %v5534, 0.0
    %v5663 = vmax.f32 %v5535, 0.0
    %v5664 = vmax.f32 %v5536, 0.0
    %v5665 = vmax.f32 %v5537, 0.0
    %v5666 = vmax.f32 %v5538, 0.0
    %v5667 = vmax.f32 %v5539, 0.0
    %v5668 = vmax.f32 %v5540, 0.0
    %v5669 = vmax.f32 %v5541, 0.0
    %v5670 = vmax.f32 %v5542, 0.0
    %v5671 = vmax.f32 %v5543, 0.0
    %v5672 = vmax.f32 %v5544, 0.0
    %v5673 = vmax.f32 %v5545, 0.0
    %v5674 = vmax.f32 %v5546, 0.0
    %v5675 = vmax.f32 %v5547, 0.0
    %v5676 = vmax.f32 %v5548, 0.0
    %v5677 = vmax.f32 %v5549, 0.0
    %v5678 = vmax.f32 %v5550, 0.0
    %v5679 = vmax.f32 %v5551, 0.0
    %v5680 = vmax.f32 %v5552, 0.0
    %v5681 = vmax.f32 %v5553, 0.0
    %v5682 = vmax.f32 %v5554, 0.0
    %v5683 = vmax.f32 %v5555, 0.0
    %v5684 = vmax.f32 %v5556, 0.0
    %v5685 = vmax.f32 %v5557, 0.0
    %v5686 = vmax.f32 %v5558, 0.0
    %v5687 = vmax.f32 %v5559, 0.0
    %v5688 = vmax.f32 %v5560, 0.0
    %v5689 = vmax.f32 %v5561, 0.0
    %v5690 = vmax.f32 %v5562, 0.0
    %v5691 = vmax.f32 %v5563, 0.0
    %v5692 = vmax.f32 %v5564, 0.0
    %v5693 = vmax.f32 %v5565, 0.0
    %v5694 = vmax.f32 %v5566, 0.0
    %v5695 = vmax.f32 %v5567, 0.0
    %v5696 = vmax.f32 %v5568, 0.0
    %v5697 = vmax.f32 %v5569, 0.0
    %v5698 = vmax.f32 %v5570, 0.0
    %v5699 = vmax.f32 %v5571, 0.0
    %v5700 = vmax.f32 %v5572, 0.0
    %v5701 = vmax.f32 %v5573, 0.0
    %v5702 = vmax.f32 %v5574, 0.0
    %v5703 = vmax.f32 %v5575, 0.0
    %v5704 = vmax.f32 %v5576, 0.0
    %v5705 = vmax.f32 %v5577, 0.0
    %v5706 = vmax.f32 %v5578, 0.0
    %v5707 = vmax.f32 %v5579, 0.0
    %v5708 = vmax.f32 %v5580, 0.0
    %v5709 = vmax.f32 %v5581, 0.0
    %v5710 = vmax.f32 %v5582, 0.0
    %v5711 = vmax.f32 %v5583, 0.0
    %v5712 = vmax.f32 %v5584, 0.0
    %v5713 = vmax.f32 %v5585, 0.0
    %v5714 = vmax.f32 %v5586, 0.0
    %v5715 = vmax.f32 %v5587, 0.0
    %v5716 = vmax.f32 %v5588, 0.0
    %v5717 = vmax.f32 %v5589, 0.0
    %v5718 = vmax.f32 %v5590, 0.0
    %v5719 = vmax.f32 %v5591, 0.0
    %v5720 = vmax.f32 %v5592, 0.0
    %v5721 = vmax.f32 %v5593, 0.0
    %v5722 = vmax.f32 %v5594, 0.0
    %v5723 = vmax.f32 %v5595, 0.0
    %v5724 = vmax.f32 %v5596, 0.0
    %v5725 = vmax.f32 %v5597, 0.0
    %v5726 = vmax.f32 %v5598, 0.0
    %v5727 = vmax.f32 %v5599, 0.0
    %v5728 = vmax.f32 %v5600, 0.0
    %v5729 = vmax.f32 %v5601, 0.0
    %v5730 = vmax.f32 %v5602, 0.0
    %v5731 = vmax.f32 %v5603, 0.0
    %v5732 = vmax.f32 %v5604, 0.0
    %v5733 = vmax.f32 %v5605, 0.0
    %v5734 = vmax.f32 %v5606, 0.0
    %v5735 = vmax.f32 %v5607, 0.0
    %v5736 = vmax.f32 %v5608, 0.0
    %v5737 = vmax.f32 %v5609, 0.0
    %v5738 = vmax.f32 %v5610, 0.0
    %v5739 = vmax.f32 %v5611, 0.0
    %v5740 = vmax.f32 %v5612, 0.0
    %v5741 = vmax.f32 %v5613, 0.0
    %v5742 = vmax.f32 %v5614, 0.0
    %v5743 = vmax.f32 %v5615, 0.0
    %v5744 = vmax.f32 %v5616, 0.0
    %v5745 = vmax.f32 %v5617, 0.0
    %v5746 = vmax.f32 %v5618, 0.0
    %v5747 = vmax.f32 %v5619, 0.0
    %v5748 = vmax.f32 %v5620, 0.0
    %v5749 = vmax.f32 %v5621, 0.0
    %v5750 = vmax.f32 %v5622, 0.0
    %v5751 = vmax.f32 %v5623, 0.0
    %v5752 = vmax.f32 %v5624, 0.0
    %v5753 = vmax.f32 %v5625, 0.0
    %v5754 = vmax.f32 %v5626, 0.0
    %v5755 = vmax.f32 %v5627, 0.0
    %v5756 = vmax.f32 %v5628, 0.0
    %v5757 = vmax.f32 %v5629, 0.0
    %v5758 = vmax.f32 %v5630, 0.0
    %v5759 = vmax.f32 %v5631, 0.0
    %v5760 = vmax.f32 %v5632, 0.0
    %v5761 = vmax.f32 %v5633, 0.0
    %v5762 = vmax.f32 %v5634, 0.0
    %v5763 = vmax.f32 %v5635, 0.0
    %v5764 = vmax.f32 %v5636, 0.0
    %v5765 = vmax.f32 %v5637, 0.0
    %v5766 = vmax.f32 %v5638, 0.0
    %v5767 = vmax.f32 %v5639, 0.0
    %v5768 = vmax.f32 %v5640, 0.0
    %v5769 = vmax.f32 %v5641, 0.0
    %v5770 = vmax.f32 %v5642, 0.0
    %v5771 = vmax.f32 %v5643, 0.0
    %v5772 = vmax.f32 %v5644, 0.0
    %v5773 = vmax.f32 %v5645, 0.0
    %v5774 = vmax.f32 %v5646, 0.0
    %v5775 = vmax.f32 %v5647, 0.0
    %v5776 = vmax.f32 %v5648, 0.0
    %v5777 = vpack.c.bf16 %v5653, %v5649
    %v5778 = vpack.c.bf16 %v5654, %v5650
    %v5779 = vpack.c.bf16 %v5655, %v5651
    %v5780 = vpack.c.bf16 %v5656, %v5652
    %v5781 = vpack.c.bf16 %v5661, %v5657
    %v5782 = vpack.c.bf16 %v5662, %v5658
    %v5783 = vpack.c.bf16 %v5663, %v5659
    %v5784 = vpack.c.bf16 %v5664, %v5660
    %v5785 = vpack.c.bf16 %v5669, %v5665
    %v5786 = vpack.c.bf16 %v5670, %v5666
    %v5787 = vpack.c.bf16 %v5671, %v5667
    %v5788 = vpack.c.bf16 %v5672, %v5668
    %v5789 = vpack.c.bf16 %v5677, %v5673
    %v5790 = vpack.c.bf16 %v5678, %v5674
    %v5791 = vpack.c.bf16 %v5679, %v5675
    %v5792 = vpack.c.bf16 %v5680, %v5676
    %v5793 = vpack.c.bf16 %v5685, %v5681
    %v5794 = vpack.c.bf16 %v5686, %v5682
    %v5795 = vpack.c.bf16 %v5687, %v5683
    %v5796 = vpack.c.bf16 %v5688, %v5684
    %v5797 = vpack.c.bf16 %v5693, %v5689
    %v5798 = vpack.c.bf16 %v5694, %v5690
    %v5799 = vpack.c.bf16 %v5695, %v5691
    %v5800 = vpack.c.bf16 %v5696, %v5692
    %v5801 = vpack.c.bf16 %v5701, %v5697
    %v5802 = vpack.c.bf16 %v5702, %v5698
    %v5803 = vpack.c.bf16 %v5703, %v5699
    %v5804 = vpack.c.bf16 %v5704, %v5700
    %v5805 = vpack.c.bf16 %v5709, %v5705
    %v5806 = vpack.c.bf16 %v5710, %v5706
    %v5807 = vpack.c.bf16 %v5711, %v5707
    %v5808 = vpack.c.bf16 %v5712, %v5708
    %v5809 = vpack.c.bf16 %v5717, %v5713
    %v5810 = vpack.c.bf16 %v5718, %v5714
    %v5811 = vpack.c.bf16 %v5719, %v5715
    %v5812 = vpack.c.bf16 %v5720, %v5716
    %v5813 = vpack.c.bf16 %v5725, %v5721
    %v5814 = vpack.c.bf16 %v5726, %v5722
    %v5815 = vpack.c.bf16 %v5727, %v5723
    %v5816 = vpack.c.bf16 %v5728, %v5724
    %v5817 = vpack.c.bf16 %v5733, %v5729
    %v5818 = vpack.c.bf16 %v5734, %v5730
    %v5819 = vpack.c.bf16 %v5735, %v5731
    %v5820 = vpack.c.bf16 %v5736, %v5732
    %v5821 = vpack.c.bf16 %v5741, %v5737
    %v5822 = vpack.c.bf16 %v5742, %v5738
    %v5823 = vpack.c.bf16 %v5743, %v5739
    %v5824 = vpack.c.bf16 %v5744, %v5740
    %v5825 = vpack.c.bf16 %v5749, %v5745
    %v5826 = vpack.c.bf16 %v5750, %v5746
    %v5827 = vpack.c.bf16 %v5751, %v5747
    %v5828 = vpack.c.bf16 %v5752, %v5748
    %v5829 = vpack.c.bf16 %v5757, %v5753
    %v5830 = vpack.c.bf16 %v5758, %v5754
    %v5831 = vpack.c.bf16 %v5759, %v5755
    %v5832 = vpack.c.bf16 %v5760, %v5756
    %v5833 = vpack.c.bf16 %v5765, %v5761
    %v5834 = vpack.c.bf16 %v5766, %v5762
    %v5835 = vpack.c.bf16 %v5767, %v5763
    %v5836 = vpack.c.bf16 %v5768, %v5764
    %v5837 = vpack.c.bf16 %v5773, %v5769
    %v5838 = vpack.c.bf16 %v5774, %v5770
    %v5839 = vpack.c.bf16 %v5775, %v5771
    %v5840 = vpack.c.bf16 %v5776, %v5772
    %v5841 = vld [vmem:[#allocation7] sm:$0xff]
    %v5842 = vld [vmem:[#allocation7 + $0x8] sm:$0xff]
    %v5843 = vld [vmem:[#allocation7 + $0x10] sm:$0xff]
    %v5844 = vld [vmem:[#allocation7 + $0x18] sm:$0xff]
    %v5845 = vld [vmem:[#allocation7 + $0x20] sm:$0xff]
    %v5846 = vld [vmem:[#allocation7 + $0x28] sm:$0xff]
    %v5847 = vld [vmem:[#allocation7 + $0x30] sm:$0xff]
    %v5848 = vld [vmem:[#allocation7 + $0x38] sm:$0xff]
    %v5849 = vld [vmem:[#allocation7 + $0x40] sm:$0xff]
    %v5850 = vld [vmem:[#allocation7 + $0x48] sm:$0xff]
    %v5851 = vld [vmem:[#allocation7 + $0x50] sm:$0xff]
    %v5852 = vld [vmem:[#allocation7 + $0x58] sm:$0xff]
    %v5853 = vld [vmem:[#allocation7 + $0x60] sm:$0xff]
    %v5854 = vld [vmem:[#allocation7 + $0x68] sm:$0xff]
    %v5855 = vld [vmem:[#allocation7 + $0x70] sm:$0xff]
    %v5856 = vld [vmem:[#allocation7 + $0x78] sm:$0xff]
    %v5857 = vld [vmem:[#allocation7 + $0x80] sm:$0xff]
    %v5858 = vld [vmem:[#allocation7 + $0x88] sm:$0xff]
    %v5859 = vld [vmem:[#allocation7 + $0x90] sm:$0xff]
    %v5860 = vld [vmem:[#allocation7 + $0x98] sm:$0xff]
    %v5861 = vld [vmem:[#allocation7 + $0xa0] sm:$0xff]
    %v5862 = vld [vmem:[#allocation7 + $0xa8] sm:$0xff]
    %v5863 = vld [vmem:[#allocation7 + $0xb0] sm:$0xff]
    %v5864 = vld [vmem:[#allocation7 + $0xb8] sm:$0xff]
    %v5865 = vld [vmem:[#allocation7 + $0xc0] sm:$0xff]
    %v5866 = vld [vmem:[#allocation7 + $0xc8] sm:$0xff]
    %v5867 = vld [vmem:[#allocation7 + $0xd0] sm:$0xff]
    %v5868 = vld [vmem:[#allocation7 + $0xd8] sm:$0xff]
    %v5869 = vld [vmem:[#allocation7 + $0xe0] sm:$0xff]
    %v5870 = vld [vmem:[#allocation7 + $0xe8] sm:$0xff]
    %v5871 = vld [vmem:[#allocation7 + $0xf0] sm:$0xff]
    %v5872 = vld [vmem:[#allocation7 + $0xf8] sm:$0xff]
    %v5873 = vld [vmem:[#allocation7 + $0x100] sm:$0xff]
    %v5874 = vld [vmem:[#allocation7 + $0x108] sm:$0xff]
    %v5875 = vld [vmem:[#allocation7 + $0x110] sm:$0xff]
    %v5876 = vld [vmem:[#allocation7 + $0x118] sm:$0xff]
    %v5877 = vld [vmem:[#allocation7 + $0x120] sm:$0xff]
    %v5878 = vld [vmem:[#allocation7 + $0x128] sm:$0xff]
    %v5879 = vld [vmem:[#allocation7 + $0x130] sm:$0xff]
    %v5880 = vld [vmem:[#allocation7 + $0x138] sm:$0xff]
    %v5881 = vld [vmem:[#allocation7 + $0x140] sm:$0xff]
    %v5882 = vld [vmem:[#allocation7 + $0x148] sm:$0xff]
    %v5883 = vld [vmem:[#allocation7 + $0x150] sm:$0xff]
    %v5884 = vld [vmem:[#allocation7 + $0x158] sm:$0xff]
    %v5885 = vld [vmem:[#allocation7 + $0x160] sm:$0xff]
    %v5886 = vld [vmem:[#allocation7 + $0x168] sm:$0xff]
    %v5887 = vld [vmem:[#allocation7 + $0x170] sm:$0xff]
    %v5888 = vld [vmem:[#allocation7 + $0x178] sm:$0xff]
    %v5889 = vld [vmem:[#allocation7 + $0x180] sm:$0xff]
    %v5890 = vld [vmem:[#allocation7 + $0x188] sm:$0xff]
    %v5891 = vld [vmem:[#allocation7 + $0x190] sm:$0xff]
    %v5892 = vld [vmem:[#allocation7 + $0x198] sm:$0xff]
    %v5893 = vld [vmem:[#allocation7 + $0x1a0] sm:$0xff]
    %v5894 = vld [vmem:[#allocation7 + $0x1a8] sm:$0xff]
    %v5895 = vld [vmem:[#allocation7 + $0x1b0] sm:$0xff]
    %v5896 = vld [vmem:[#allocation7 + $0x1b8] sm:$0xff]
    %v5897 = vld [vmem:[#allocation7 + $0x1c0] sm:$0xff]
    %v5898 = vld [vmem:[#allocation7 + $0x1c8] sm:$0xff]
    %v5899 = vld [vmem:[#allocation7 + $0x1d0] sm:$0xff]
    %v5900 = vld [vmem:[#allocation7 + $0x1d8] sm:$0xff]
    %v5901 = vld [vmem:[#allocation7 + $0x1e0] sm:$0xff]
    %v5902 = vld [vmem:[#allocation7 + $0x1e8] sm:$0xff]
    %v5903 = vld [vmem:[#allocation7 + $0x1f0] sm:$0xff]
    %v5904 = vld [vmem:[#allocation7 + $0x1f8] sm:$0xff]
    %v5905 = vld [vmem:[#allocation7 + $0x200] sm:$0xff]
    %v5906 = vld [vmem:[#allocation7 + $0x208] sm:$0xff]
    %v5907 = vld [vmem:[#allocation7 + $0x210] sm:$0xff]
    %v5908 = vld [vmem:[#allocation7 + $0x218] sm:$0xff]
    %v5909 = vld [vmem:[#allocation7 + $0x220] sm:$0xff]
    %v5910 = vld [vmem:[#allocation7 + $0x228] sm:$0xff]
    %v5911 = vld [vmem:[#allocation7 + $0x230] sm:$0xff]
    %v5912 = vld [vmem:[#allocation7 + $0x238] sm:$0xff]
    %v5913 = vld [vmem:[#allocation7 + $0x240] sm:$0xff]
    %v5914 = vld [vmem:[#allocation7 + $0x248] sm:$0xff]
    %v5915 = vld [vmem:[#allocation7 + $0x250] sm:$0xff]
    %v5916 = vld [vmem:[#allocation7 + $0x258] sm:$0xff]
    %v5917 = vld [vmem:[#allocation7 + $0x260] sm:$0xff]
    %v5918 = vld [vmem:[#allocation7 + $0x268] sm:$0xff]
    %v5919 = vld [vmem:[#allocation7 + $0x270] sm:$0xff]
    %v5920 = vld [vmem:[#allocation7 + $0x278] sm:$0xff]
    %v5921 = vld [vmem:[#allocation7 + $0x280] sm:$0xff]
    %v5922 = vld [vmem:[#allocation7 + $0x288] sm:$0xff]
    %v5923 = vld [vmem:[#allocation7 + $0x290] sm:$0xff]
    %v5924 = vld [vmem:[#allocation7 + $0x298] sm:$0xff]
    %v5925 = vld [vmem:[#allocation7 + $0x2a0] sm:$0xff]
    %v5926 = vld [vmem:[#allocation7 + $0x2a8] sm:$0xff]
    %v5927 = vld [vmem:[#allocation7 + $0x2b0] sm:$0xff]
    %v5928 = vld [vmem:[#allocation7 + $0x2b8] sm:$0xff]
    %v5929 = vld [vmem:[#allocation7 + $0x2c0] sm:$0xff]
    %v5930 = vld [vmem:[#allocation7 + $0x2c8] sm:$0xff]
    %v5931 = vld [vmem:[#allocation7 + $0x2d0] sm:$0xff]
    %v5932 = vld [vmem:[#allocation7 + $0x2d8] sm:$0xff]
    %v5933 = vld [vmem:[#allocation7 + $0x2e0] sm:$0xff]
    %v5934 = vld [vmem:[#allocation7 + $0x2e8] sm:$0xff]
    %v5935 = vld [vmem:[#allocation7 + $0x2f0] sm:$0xff]
    %v5936 = vld [vmem:[#allocation7 + $0x2f8] sm:$0xff]
    %v5937 = vld [vmem:[#allocation7 + $0x300] sm:$0xff]
    %v5938 = vld [vmem:[#allocation7 + $0x308] sm:$0xff]
    %v5939 = vld [vmem:[#allocation7 + $0x310] sm:$0xff]
    %v5940 = vld [vmem:[#allocation7 + $0x318] sm:$0xff]
    %v5941 = vld [vmem:[#allocation7 + $0x320] sm:$0xff]
    %v5942 = vld [vmem:[#allocation7 + $0x328] sm:$0xff]
    %v5943 = vld [vmem:[#allocation7 + $0x330] sm:$0xff]
    %v5944 = vld [vmem:[#allocation7 + $0x338] sm:$0xff]
    %v5945 = vld [vmem:[#allocation7 + $0x340] sm:$0xff]
    %v5946 = vld [vmem:[#allocation7 + $0x348] sm:$0xff]
    %v5947 = vld [vmem:[#allocation7 + $0x350] sm:$0xff]
    %v5948 = vld [vmem:[#allocation7 + $0x358] sm:$0xff]
    %v5949 = vld [vmem:[#allocation7 + $0x360] sm:$0xff]
    %v5950 = vld [vmem:[#allocation7 + $0x368] sm:$0xff]
    %v5951 = vld [vmem:[#allocation7 + $0x370] sm:$0xff]
    %v5952 = vld [vmem:[#allocation7 + $0x378] sm:$0xff]
    %v5953 = vld [vmem:[#allocation7 + $0x380] sm:$0xff]
    %v5954 = vld [vmem:[#allocation7 + $0x388] sm:$0xff]
    %v5955 = vld [vmem:[#allocation7 + $0x390] sm:$0xff]
    %v5956 = vld [vmem:[#allocation7 + $0x398] sm:$0xff]
    %v5957 = vld [vmem:[#allocation7 + $0x3a0] sm:$0xff]
    %v5958 = vld [vmem:[#allocation7 + $0x3a8] sm:$0xff]
    %v5959 = vld [vmem:[#allocation7 + $0x3b0] sm:$0xff]
    %v5960 = vld [vmem:[#allocation7 + $0x3b8] sm:$0xff]
    %v5961 = vld [vmem:[#allocation7 + $0x3c0] sm:$0xff]
    %v5962 = vld [vmem:[#allocation7 + $0x3c8] sm:$0xff]
    %v5963 = vld [vmem:[#allocation7 + $0x3d0] sm:$0xff]
    %v5964 = vld [vmem:[#allocation7 + $0x3d8] sm:$0xff]
    %v5965 = vld [vmem:[#allocation7 + $0x3e0] sm:$0xff]
    %v5966 = vld [vmem:[#allocation7 + $0x3e8] sm:$0xff]
    %v5967 = vld [vmem:[#allocation7 + $0x3f0] sm:$0xff]
    %v5968 = vld [vmem:[#allocation7 + $0x3f8] sm:$0xff]
    %v6097 = vunpack.c.l.b16 %v5841
    %v6098 = vunpack.c.h.b16 %v5841
    %v6099 = vunpack.c.l.b16 %v5842
    %v6100 = vunpack.c.h.b16 %v5842
    %v6101 = vunpack.c.l.b16 %v5843
    %v6102 = vunpack.c.h.b16 %v5843
    %v6103 = vunpack.c.l.b16 %v5844
    %v6104 = vunpack.c.h.b16 %v5844
    %v6105 = vunpack.c.l.b16 %v5845
    %v6106 = vunpack.c.h.b16 %v5845
    %v6107 = vunpack.c.l.b16 %v5846
    %v6108 = vunpack.c.h.b16 %v5846
    %v6109 = vunpack.c.l.b16 %v5847
    %v6110 = vunpack.c.h.b16 %v5847
    %v6111 = vunpack.c.l.b16 %v5848
    %v6112 = vunpack.c.h.b16 %v5848
    %v6113 = vunpack.c.l.b16 %v5849
    %v6114 = vunpack.c.h.b16 %v5849
    %v6115 = vunpack.c.l.b16 %v5850
    %v6116 = vunpack.c.h.b16 %v5850
    %v6117 = vunpack.c.l.b16 %v5851
    %v6118 = vunpack.c.h.b16 %v5851
    %v6119 = vunpack.c.l.b16 %v5852
    %v6120 = vunpack.c.h.b16 %v5852
    %v6121 = vunpack.c.l.b16 %v5853
    %v6122 = vunpack.c.h.b16 %v5853
    %v6123 = vunpack.c.l.b16 %v5854
    %v6124 = vunpack.c.h.b16 %v5854
    %v6125 = vunpack.c.l.b16 %v5855
    %v6126 = vunpack.c.h.b16 %v5855
    %v6127 = vunpack.c.l.b16 %v5856
    %v6128 = vunpack.c.h.b16 %v5856
    %v6129 = vunpack.c.l.b16 %v5857
    %v6130 = vunpack.c.h.b16 %v5857
    %v6131 = vunpack.c.l.b16 %v5858
    %v6132 = vunpack.c.h.b16 %v5858
    %v6133 = vunpack.c.l.b16 %v5859
    %v6134 = vunpack.c.h.b16 %v5859
    %v6135 = vunpack.c.l.b16 %v5860
    %v6136 = vunpack.c.h.b16 %v5860
    %v6137 = vunpack.c.l.b16 %v5861
    %v6138 = vunpack.c.h.b16 %v5861
    %v6139 = vunpack.c.l.b16 %v5862
    %v6140 = vunpack.c.h.b16 %v5862
    %v6141 = vunpack.c.l.b16 %v5863
    %v6142 = vunpack.c.h.b16 %v5863
    %v6143 = vunpack.c.l.b16 %v5864
    %v6144 = vunpack.c.h.b16 %v5864
    %v6145 = vunpack.c.l.b16 %v5865
    %v6146 = vunpack.c.h.b16 %v5865
    %v6147 = vunpack.c.l.b16 %v5866
    %v6148 = vunpack.c.h.b16 %v5866
    %v6149 = vunpack.c.l.b16 %v5867
    %v6150 = vunpack.c.h.b16 %v5867
    %v6151 = vunpack.c.l.b16 %v5868
    %v6152 = vunpack.c.h.b16 %v5868
    %v6153 = vunpack.c.l.b16 %v5869
    %v6154 = vunpack.c.h.b16 %v5869
    %v6155 = vunpack.c.l.b16 %v5870
    %v6156 = vunpack.c.h.b16 %v5870
    %v6157 = vunpack.c.l.b16 %v5871
    %v6158 = vunpack.c.h.b16 %v5871
    %v6159 = vunpack.c.l.b16 %v5872
    %v6160 = vunpack.c.h.b16 %v5872
    %v6161 = vunpack.c.l.b16 %v5873
    %v6162 = vunpack.c.h.b16 %v5873
    %v6163 = vunpack.c.l.b16 %v5874
    %v6164 = vunpack.c.h.b16 %v5874
    %v6165 = vunpack.c.l.b16 %v5875
    %v6166 = vunpack.c.h.b16 %v5875
    %v6167 = vunpack.c.l.b16 %v5876
    %v6168 = vunpack.c.h.b16 %v5876
    %v6169 = vunpack.c.l.b16 %v5877
    %v6170 = vunpack.c.h.b16 %v5877
    %v6171 = vunpack.c.l.b16 %v5878
    %v6172 = vunpack.c.h.b16 %v5878
    %v6173 = vunpack.c.l.b16 %v5879
    %v6174 = vunpack.c.h.b16 %v5879
    %v6175 = vunpack.c.l.b16 %v5880
    %v6176 = vunpack.c.h.b16 %v5880
    %v6177 = vunpack.c.l.b16 %v5881
    %v6178 = vunpack.c.h.b16 %v5881
    %v6179 = vunpack.c.l.b16 %v5882
    %v6180 = vunpack.c.h.b16 %v5882
    %v6181 = vunpack.c.l.b16 %v5883
    %v6182 = vunpack.c.h.b16 %v5883
    %v6183 = vunpack.c.l.b16 %v5884
    %v6184 = vunpack.c.h.b16 %v5884
    %v6185 = vunpack.c.l.b16 %v5885
    %v6186 = vunpack.c.h.b16 %v5885
    %v6187 = vunpack.c.l.b16 %v5886
    %v6188 = vunpack.c.h.b16 %v5886
    %v6189 = vunpack.c.l.b16 %v5887
    %v6190 = vunpack.c.h.b16 %v5887
    %v6191 = vunpack.c.l.b16 %v5888
    %v6192 = vunpack.c.h.b16 %v5888
    %v6193 = vunpack.c.l.b16 %v5889
    %v6194 = vunpack.c.h.b16 %v5889
    %v6195 = vunpack.c.l.b16 %v5890
    %v6196 = vunpack.c.h.b16 %v5890
    %v6197 = vunpack.c.l.b16 %v5891
    %v6198 = vunpack.c.h.b16 %v5891
    %v6199 = vunpack.c.l.b16 %v5892
    %v6200 = vunpack.c.h.b16 %v5892
    %v6201 = vunpack.c.l.b16 %v5893
    %v6202 = vunpack.c.h.b16 %v5893
    %v6203 = vunpack.c.l.b16 %v5894
    %v6204 = vunpack.c.h.b16 %v5894
    %v6205 = vunpack.c.l.b16 %v5895
    %v6206 = vunpack.c.h.b16 %v5895
    %v6207 = vunpack.c.l.b16 %v5896
    %v6208 = vunpack.c.h.b16 %v5896
    %v6209 = vunpack.c.l.b16 %v5897
    %v6210 = vunpack.c.h.b16 %v5897
    %v6211 = vunpack.c.l.b16 %v5898
    %v6212 = vunpack.c.h.b16 %v5898
    %v6213 = vunpack.c.l.b16 %v5899
    %v6214 = vunpack.c.h.b16 %v5899
    %v6215 = vunpack.c.l.b16 %v5900
    %v6216 = vunpack.c.h.b16 %v5900
    %v6217 = vunpack.c.l.b16 %v5901
    %v6218 = vunpack.c.h.b16 %v5901
    %v6219 = vunpack.c.l.b16 %v5902
    %v6220 = vunpack.c.h.b16 %v5902
    %v6221 = vunpack.c.l.b16 %v5903
    %v6222 = vunpack.c.h.b16 %v5903
    %v6223 = vunpack.c.l.b16 %v5904
    %v6224 = vunpack.c.h.b16 %v5904
    %v6225 = vunpack.c.l.b16 %v5905
    %v6226 = vunpack.c.h.b16 %v5905
    %v6227 = vunpack.c.l.b16 %v5906
    %v6228 = vunpack.c.h.b16 %v5906
    %v6229 = vunpack.c.l.b16 %v5907
    %v6230 = vunpack.c.h.b16 %v5907
    %v6231 = vunpack.c.l.b16 %v5908
    %v6232 = vunpack.c.h.b16 %v5908
    %v6233 = vunpack.c.l.b16 %v5909
    %v6234 = vunpack.c.h.b16 %v5909
    %v6235 = vunpack.c.l.b16 %v5910
    %v6236 = vunpack.c.h.b16 %v5910
    %v6237 = vunpack.c.l.b16 %v5911
    %v6238 = vunpack.c.h.b16 %v5911
    %v6239 = vunpack.c.l.b16 %v5912
    %v6240 = vunpack.c.h.b16 %v5912
    %v6241 = vunpack.c.l.b16 %v5913
    %v6242 = vunpack.c.h.b16 %v5913
    %v6243 = vunpack.c.l.b16 %v5914
    %v6244 = vunpack.c.h.b16 %v5914
    %v6245 = vunpack.c.l.b16 %v5915
    %v6246 = vunpack.c.h.b16 %v5915
    %v6247 = vunpack.c.l.b16 %v5916
    %v6248 = vunpack.c.h.b16 %v5916
    %v6249 = vunpack.c.l.b16 %v5917
    %v6250 = vunpack.c.h.b16 %v5917
    %v6251 = vunpack.c.l.b16 %v5918
    %v6252 = vunpack.c.h.b16 %v5918
    %v6253 = vunpack.c.l.b16 %v5919
    %v6254 = vunpack.c.h.b16 %v5919
    %v6255 = vunpack.c.l.b16 %v5920
    %v6256 = vunpack.c.h.b16 %v5920
    %v6257 = vunpack.c.l.b16 %v5921
    %v6258 = vunpack.c.h.b16 %v5921
    %v6259 = vunpack.c.l.b16 %v5922
    %v6260 = vunpack.c.h.b16 %v5922
    %v6261 = vunpack.c.l.b16 %v5923
    %v6262 = vunpack.c.h.b16 %v5923
    %v6263 = vunpack.c.l.b16 %v5924
    %v6264 = vunpack.c.h.b16 %v5924
    %v6265 = vunpack.c.l.b16 %v5925
    %v6266 = vunpack.c.h.b16 %v5925
    %v6267 = vunpack.c.l.b16 %v5926
    %v6268 = vunpack.c.h.b16 %v5926
    %v6269 = vunpack.c.l.b16 %v5927
    %v6270 = vunpack.c.h.b16 %v5927
    %v6271 = vunpack.c.l.b16 %v5928
    %v6272 = vunpack.c.h.b16 %v5928
    %v6273 = vunpack.c.l.b16 %v5929
    %v6274 = vunpack.c.h.b16 %v5929
    %v6275 = vunpack.c.l.b16 %v5930
    %v6276 = vunpack.c.h.b16 %v5930
    %v6277 = vunpack.c.l.b16 %v5931
    %v6278 = vunpack.c.h.b16 %v5931
    %v6279 = vunpack.c.l.b16 %v5932
    %v6280 = vunpack.c.h.b16 %v5932
    %v6281 = vunpack.c.l.b16 %v5933
    %v6282 = vunpack.c.h.b16 %v5933
    %v6283 = vunpack.c.l.b16 %v5934
    %v6284 = vunpack.c.h.b16 %v5934
    %v6285 = vunpack.c.l.b16 %v5935
    %v6286 = vunpack.c.h.b16 %v5935
    %v6287 = vunpack.c.l.b16 %v5936
    %v6288 = vunpack.c.h.b16 %v5936
    %v6289 = vunpack.c.l.b16 %v5937
    %v6290 = vunpack.c.h.b16 %v5937
    %v6291 = vunpack.c.l.b16 %v5938
    %v6292 = vunpack.c.h.b16 %v5938
    %v6293 = vunpack.c.l.b16 %v5939
    %v6294 = vunpack.c.h.b16 %v5939
    %v6295 = vunpack.c.l.b16 %v5940
    %v6296 = vunpack.c.h.b16 %v5940
    %v6297 = vunpack.c.l.b16 %v5941
    %v6298 = vunpack.c.h.b16 %v5941
    %v6299 = vunpack.c.l.b16 %v5942
    %v6300 = vunpack.c.h.b16 %v5942
    %v6301 = vunpack.c.l.b16 %v5943
    %v6302 = vunpack.c.h.b16 %v5943
    %v6303 = vunpack.c.l.b16 %v5944
    %v6304 = vunpack.c.h.b16 %v5944
    %v6305 = vunpack.c.l.b16 %v5945
    %v6306 = vunpack.c.h.b16 %v5945
    %v6307 = vunpack.c.l.b16 %v5946
    %v6308 = vunpack.c.h.b16 %v5946
    %v6309 = vunpack.c.l.b16 %v5947
    %v6310 = vunpack.c.h.b16 %v5947
    %v6311 = vunpack.c.l.b16 %v5948
    %v6312 = vunpack.c.h.b16 %v5948
    %v6313 = vunpack.c.l.b16 %v5949
    %v6314 = vunpack.c.h.b16 %v5949
    %v6315 = vunpack.c.l.b16 %v5950
    %v6316 = vunpack.c.h.b16 %v5950
    %v6317 = vunpack.c.l.b16 %v5951
    %v6318 = vunpack.c.h.b16 %v5951
    %v6319 = vunpack.c.l.b16 %v5952
    %v6320 = vunpack.c.h.b16 %v5952
    %v6321 = vunpack.c.l.b16 %v5953
    %v6322 = vunpack.c.h.b16 %v5953
    %v6323 = vunpack.c.l.b16 %v5954
    %v6324 = vunpack.c.h.b16 %v5954
    %v6325 = vunpack.c.l.b16 %v5955
    %v6326 = vunpack.c.h.b16 %v5955
    %v6327 = vunpack.c.l.b16 %v5956
    %v6328 = vunpack.c.h.b16 %v5956
    %v6329 = vunpack.c.l.b16 %v5957
    %v6330 = vunpack.c.h.b16 %v5957
    %v6331 = vunpack.c.l.b16 %v5958
    %v6332 = vunpack.c.h.b16 %v5958
    %v6333 = vunpack.c.l.b16 %v5959
    %v6334 = vunpack.c.h.b16 %v5959
    %v6335 = vunpack.c.l.b16 %v5960
    %v6336 = vunpack.c.h.b16 %v5960
    %v6337 = vunpack.c.l.b16 %v5961
    %v6338 = vunpack.c.h.b16 %v5961
    %v6339 = vunpack.c.l.b16 %v5962
    %v6340 = vunpack.c.h.b16 %v5962
    %v6341 = vunpack.c.l.b16 %v5963
    %v6342 = vunpack.c.h.b16 %v5963
    %v6343 = vunpack.c.l.b16 %v5964
    %v6344 = vunpack.c.h.b16 %v5964
    %v6345 = vunpack.c.l.b16 %v5965
    %v6346 = vunpack.c.h.b16 %v5965
    %v6347 = vunpack.c.l.b16 %v5966
    %v6348 = vunpack.c.h.b16 %v5966
    %v6349 = vunpack.c.l.b16 %v5967
    %v6350 = vunpack.c.h.b16 %v5967
    %v6351 = vunpack.c.l.b16 %v5968
    %v6352 = vunpack.c.h.b16 %v5968
    %v6353 = vpack.c.b16 %v6101, %v6097
    %v6354 = vpack.c.b16 %v6102, %v6098
    %v6355 = vpack.c.b16 %v6103, %v6099
    %v6356 = vpack.c.b16 %v6104, %v6100
    %v6357 = vpack.c.b16 %v6109, %v6105
    %v6358 = vpack.c.b16 %v6110, %v6106
    %v6359 = vpack.c.b16 %v6111, %v6107
    %v6360 = vpack.c.b16 %v6112, %v6108
    %v6361 = vpack.c.b16 %v6117, %v6113
    %v6362 = vpack.c.b16 %v6118, %v6114
    %v6363 = vpack.c.b16 %v6119, %v6115
    %v6364 = vpack.c.b16 %v6120, %v6116
    %v6365 = vpack.c.b16 %v6125, %v6121
    %v6366 = vpack.c.b16 %v6126, %v6122
    %v6367 = vpack.c.b16 %v6127, %v6123
    %v6368 = vpack.c.b16 %v6128, %v6124
    %v6369 = vpack.c.b16 %v6133, %v6129
    %v6370 = vpack.c.b16 %v6134, %v6130
    %v6371 = vpack.c.b16 %v6135, %v6131
    %v6372 = vpack.c.b16 %v6136, %v6132
    %v6373 = vpack.c.b16 %v6141, %v6137
    %v6374 = vpack.c.b16 %v6142, %v6138
    %v6375 = vpack.c.b16 %v6143, %v6139
    %v6376 = vpack.c.b16 %v6144, %v6140
    %v6377 = vpack.c.b16 %v6149, %v6145
    %v6378 = vpack.c.b16 %v6150, %v6146
    %v6379 = vpack.c.b16 %v6151, %v6147
    %v6380 = vpack.c.b16 %v6152, %v6148
    %v6381 = vpack.c.b16 %v6157, %v6153
    %v6382 = vpack.c.b16 %v6158, %v6154
    %v6383 = vpack.c.b16 %v6159, %v6155
    %v6384 = vpack.c.b16 %v6160, %v6156
    %v6385 = vpack.c.b16 %v6165, %v6161
    %v6386 = vpack.c.b16 %v6166, %v6162
    %v6387 = vpack.c.b16 %v6167, %v6163
    %v6388 = vpack.c.b16 %v6168, %v6164
    %v6389 = vpack.c.b16 %v6173, %v6169
    %v6390 = vpack.c.b16 %v6174, %v6170
    %v6391 = vpack.c.b16 %v6175, %v6171
    %v6392 = vpack.c.b16 %v6176, %v6172
    %v6393 = vpack.c.b16 %v6181, %v6177
    %v6394 = vpack.c.b16 %v6182, %v6178
    %v6395 = vpack.c.b16 %v6183, %v6179
    %v6396 = vpack.c.b16 %v6184, %v6180
    %v6397 = vpack.c.b16 %v6189, %v6185
    %v6398 = vpack.c.b16 %v6190, %v6186
    %v6399 = vpack.c.b16 %v6191, %v6187
    %v6400 = vpack.c.b16 %v6192, %v6188
    %v6401 = vpack.c.b16 %v6197, %v6193
    %v6402 = vpack.c.b16 %v6198, %v6194
    %v6403 = vpack.c.b16 %v6199, %v6195
    %v6404 = vpack.c.b16 %v6200, %v6196
    %v6405 = vpack.c.b16 %v6205, %v6201
    %v6406 = vpack.c.b16 %v6206, %v6202
    %v6407 = vpack.c.b16 %v6207, %v6203
    %v6408 = vpack.c.b16 %v6208, %v6204
    %v6409 = vpack.c.b16 %v6213, %v6209
    %v6410 = vpack.c.b16 %v6214, %v6210
    %v6411 = vpack.c.b16 %v6215, %v6211
    %v6412 = vpack.c.b16 %v6216, %v6212
    %v6413 = vpack.c.b16 %v6221, %v6217
    %v6414 = vpack.c.b16 %v6222, %v6218
    %v6415 = vpack.c.b16 %v6223, %v6219
    %v6416 = vpack.c.b16 %v6224, %v6220
    %v6417 = vpack.c.b16 %v6229, %v6225
    %v6418 = vpack.c.b16 %v6230, %v6226
    %v6419 = vpack.c.b16 %v6231, %v6227
    %v6420 = vpack.c.b16 %v6232, %v6228
    %v6421 = vpack.c.b16 %v6237, %v6233
    %v6422 = vpack.c.b16 %v6238, %v6234
    %v6423 = vpack.c.b16 %v6239, %v6235
    %v6424 = vpack.c.b16 %v6240, %v6236
    %v6425 = vpack.c.b16 %v6245, %v6241
    %v6426 = vpack.c.b16 %v6246, %v6242
    %v6427 = vpack.c.b16 %v6247, %v6243
    %v6428 = vpack.c.b16 %v6248, %v6244
    %v6429 = vpack.c.b16 %v6253, %v6249
    %v6430 = vpack.c.b16 %v6254, %v6250
    %v6431 = vpack.c.b16 %v6255, %v6251
    %v6432 = vpack.c.b16 %v6256, %v6252
    %v6433 = vpack.c.b16 %v6261, %v6257
    %v6434 = vpack.c.b16 %v6262, %v6258
    %v6435 = vpack.c.b16 %v6263, %v6259
    %v6436 = vpack.c.b16 %v6264, %v6260
    %v6437 = vpack.c.b16 %v6269, %v6265
    %v6438 = vpack.c.b16 %v6270, %v6266
    %v6439 = vpack.c.b16 %v6271, %v6267
    %v6440 = vpack.c.b16 %v6272, %v6268
    %v6441 = vpack.c.b16 %v6277, %v6273
    %v6442 = vpack.c.b16 %v6278, %v6274
    %v6443 = vpack.c.b16 %v6279, %v6275
    %v6444 = vpack.c.b16 %v6280, %v6276
    %v6445 = vpack.c.b16 %v6285, %v6281
    %v6446 = vpack.c.b16 %v6286, %v6282
    %v6447 = vpack.c.b16 %v6287, %v6283
    %v6448 = vpack.c.b16 %v6288, %v6284
    %v6449 = vpack.c.b16 %v6293, %v6289
    %v6450 = vpack.c.b16 %v6294, %v6290
    %v6451 = vpack.c.b16 %v6295, %v6291
    %v6452 = vpack.c.b16 %v6296, %v6292
    %v6453 = vpack.c.b16 %v6301, %v6297
    %v6454 = vpack.c.b16 %v6302, %v6298
    %v6455 = vpack.c.b16 %v6303, %v6299
    %v6456 = vpack.c.b16 %v6304, %v6300
    %v6457 = vpack.c.b16 %v6309, %v6305
    %v6458 = vpack.c.b16 %v6310, %v6306
    %v6459 = vpack.c.b16 %v6311, %v6307
    %v6460 = vpack.c.b16 %v6312, %v6308
    %v6461 = vpack.c.b16 %v6317, %v6313
    %v6462 = vpack.c.b16 %v6318, %v6314
    %v6463 = vpack.c.b16 %v6319, %v6315
    %v6464 = vpack.c.b16 %v6320, %v6316
    %v6465 = vpack.c.b16 %v6325, %v6321
    %v6466 = vpack.c.b16 %v6326, %v6322
    %v6467 = vpack.c.b16 %v6327, %v6323
    %v6468 = vpack.c.b16 %v6328, %v6324
    %v6469 = vpack.c.b16 %v6333, %v6329
    %v6470 = vpack.c.b16 %v6334, %v6330
    %v6471 = vpack.c.b16 %v6335, %v6331
    %v6472 = vpack.c.b16 %v6336, %v6332
    %v6473 = vpack.c.b16 %v6341, %v6337
    %v6474 = vpack.c.b16 %v6342, %v6338
    %v6475 = vpack.c.b16 %v6343, %v6339
    %v6476 = vpack.c.b16 %v6344, %v6340
    %v6477 = vpack.c.b16 %v6349, %v6345
    %v6478 = vpack.c.b16 %v6350, %v6346
    %v6479 = vpack.c.b16 %v6351, %v6347
    %v6480 = vpack.c.b16 %v6352, %v6348
    %6609 = vmatprep.subr.bf16.mxu0 %v6354
    %6610 = vmatpush1.bf16.msra.mxu0 %v6353
    %6611 = vmatprep.subr.bf16.mxu0 %v6358
    %6612 = vmatpush1.bf16.msra.mxu0 %v6357
    %6613 = vmatprep.subr.bf16.mxu0 %v6362
    %6614 = vmatpush1.bf16.msra.mxu0 %v6361
    %6615 = vmatprep.subr.bf16.mxu0 %v6366
    %6616 = vmatpush1.bf16.msra.mxu0 %v6365
    %6617 = vmatprep.subr.bf16.mxu0 %v6370
    %6618 = vmatpush1.bf16.msra.mxu0 %v6369
    %6619 = vmatprep.subr.bf16.mxu0 %v6374
    %6620 = vmatpush1.bf16.msra.mxu0 %v6373
    %6621 = vmatprep.subr.bf16.mxu0 %v6378
    %6622 = vmatpush1.bf16.msra.mxu0 %v6377
    %6623 = vmatprep.subr.bf16.mxu0 %v6382
    %6624 = vmatpush1.bf16.msra.mxu0 %v6381
    %6625 = vmatprep.subr.bf16.mxu0 %v6386
    %6626 = vmatpush1.bf16.msra.mxu0 %v6385
    %6627 = vmatprep.subr.bf16.mxu0 %v6390
    %6628 = vmatpush1.bf16.msra.mxu0 %v6389
    %6629 = vmatprep.subr.bf16.mxu0 %v6394
    %6630 = vmatpush1.bf16.msra.mxu0 %v6393
    %6631 = vmatprep.subr.bf16.mxu0 %v6398
    %6632 = vmatpush1.bf16.msra.mxu0 %v6397
    %6633 = vmatprep.subr.bf16.mxu0 %v6402
    %6634 = vmatpush1.bf16.msra.mxu0 %v6401
    %6635 = vmatprep.subr.bf16.mxu0 %v6406
    %6636 = vmatpush1.bf16.msra.mxu0 %v6405
    %6637 = vmatprep.subr.bf16.mxu0 %v6410
    %6638 = vmatpush1.bf16.msra.mxu0 %v6409
    %6639 = vmatprep.subr.bf16.mxu0 %v6414
    %6640 = vmatpush1.bf16.msra.mxu0 %v6413
    %6641 = vmatprep.mubr.bf16.mxu0 %v5778
    %6642 = vmatmul.mubr.bf16.gmra.mrb[0].mxu0 %v5777
    %v6643 = vpop.f32.mrb[0].mxu0
    %v6644 = vadd.f32 0.0, %v6643
    %v6645 = vpop.f32.mrb[0].mxu0
    %v6646 = vadd.f32 0.0, %v6645
    %v6647 = vpop.f32.mrb[0].mxu0
    %v6648 = vadd.f32 0.0, %v6647
    %v6649 = vpop.f32.mrb[0].mxu0
    %v6650 = vadd.f32 0.0, %v6649
    %6651 = vmatprep.mubr.bf16.mxu0 %v5782
    %6652 = vmatmul.mubr.bf16.gmra.mrb[0].mxu0 %v5781
    %v6653 = vpop.f32.mrb[0].mxu0
    %v6654 = vadd.f32 0.0, %v6653
    %v6655 = vpop.f32.mrb[0].mxu0
    %v6656 = vadd.f32 0.0, %v6655
    %v6657 = vpop.f32.mrb[0].mxu0
    %v6658 = vadd.f32 0.0, %v6657
    %v6659 = vpop.f32.mrb[0].mxu0
    %v6660 = vadd.f32 0.0, %v6659
    %6661 = vmatprep.mubr.bf16.mxu0 %v5786
    %6662 = vmatmul.mubr.bf16.gmra.mrb[0].mxu0 %v5785
    %v6663 = vpop.f32.mrb[0].mxu0
    %v6664 = vadd.f32 0.0, %v6663
    %v6665 = vpop.f32.mrb[0].mxu0
    %v6666 = vadd.f32 0.0, %v6665
    %v6667 = vpop.f32.mrb[0].mxu0
    %v6668 = vadd.f32 0.0, %v6667
    %v6669 = vpop.f32.mrb[0].mxu0
    %v6670 = vadd.f32 0.0, %v6669
    %6671 = vmatprep.mubr.bf16.mxu0 %v5790
    %6672 = vmatmul.mubr.bf16.gmra.mrb[0].mxu0 %v5789
    %v6673 = vpop.f32.mrb[0].mxu0
    %v6674 = vadd.f32 0.0, %v6673
    %v6675 = vpop.f32.mrb[0].mxu0
    %v6676 = vadd.f32 0.0, %v6675
    %v6677 = vpop.f32.mrb[0].mxu0
    %v6678 = vadd.f32 0.0, %v6677
    %v6679 = vpop.f32.mrb[0].mxu0
    %v6680 = vadd.f32 0.0, %v6679
    %6681 = vmatprep.mubr.bf16.mxu0 %v5794
    %6682 = vmatmul.mubr.bf16.gmra.mrb[0].mxu0 %v5793
    %v6683 = vpop.f32.mrb[0].mxu0
    %v6684 = vadd.f32 0.0, %v6683
    %v6685 = vpop.f32.mrb[0].mxu0
    %v6686 = vadd.f32 0.0, %v6685
    %v6687 = vpop.f32.mrb[0].mxu0
    %v6688 = vadd.f32 0.0, %v6687
    %v6689 = vpop.f32.mrb[0].mxu0
    %v6690 = vadd.f32 0.0, %v6689
    %6691 = vmatprep.mubr.bf16.mxu0 %v5798
    %6692 = vmatmul.mubr.bf16.gmra.mrb[0].mxu0 %v5797
    %v6693 = vpop.f32.mrb[0].mxu0
    %v6694 = vadd.f32 0.0, %v6693
    %v6695 = vpop.f32.mrb[0].mxu0
    %v6696 = vadd.f32 0.0, %v6695
    %v6697 = vpop.f32.mrb[0].mxu0
    %v6698 = vadd.f32 0.0, %v6697
    %v6699 = vpop.f32.mrb[0].mxu0
    %v6700 = vadd.f32 0.0, %v6699
    %6701 = vmatprep.mubr.bf16.mxu0 %v5802
    %6702 = vmatmul.mubr.bf16.gmra.mrb[0].mxu0 %v5801
    %v6703 = vpop.f32.mrb[0].mxu0
    %v6704 = vadd.f32 0.0, %v6703
    %v6705 = vpop.f32.mrb[0].mxu0
    %v6706 = vadd.f32 0.0, %v6705
    %v6707 = vpop.f32.mrb[0].mxu0
    %v6708 = vadd.f32 0.0, %v6707
    %v6709 = vpop.f32.mrb[0].mxu0
    %v6710 = vadd.f32 0.0, %v6709
    %6711 = vmatprep.mubr.bf16.mxu0 %v5806
    %6712 = vmatmul.mubr.bf16.gmra.mrb[0].mxu0 %v5805
    %v6713 = vpop.f32.mrb[0].mxu0
    %v6714 = vadd.f32 0.0, %v6713
    %v6715 = vpop.f32.mrb[0].mxu0
    %v6716 = vadd.f32 0.0, %v6715
    %v6717 = vpop.f32.mrb[0].mxu0
    %v6718 = vadd.f32 0.0, %v6717
    %v6719 = vpop.f32.mrb[0].mxu0
    %v6720 = vadd.f32 0.0, %v6719
    %6721 = vmatprep.mubr.bf16.mxu0 %v5810
    %6722 = vmatmul.mubr.bf16.gmra.mrb[0].mxu0 %v5809
    %v6723 = vpop.f32.mrb[0].mxu0
    %v6724 = vadd.f32 0.0, %v6723
    %v6725 = vpop.f32.mrb[0].mxu0
    %v6726 = vadd.f32 0.0, %v6725
    %v6727 = vpop.f32.mrb[0].mxu0
    %v6728 = vadd.f32 0.0, %v6727
    %v6729 = vpop.f32.mrb[0].mxu0
    %v6730 = vadd.f32 0.0, %v6729
    %6731 = vmatprep.mubr.bf16.mxu0 %v5814
    %6732 = vmatmul.mubr.bf16.gmra.mrb[0].mxu0 %v5813
    %v6733 = vpop.f32.mrb[0].mxu0
    %v6734 = vadd.f32 0.0, %v6733
    %v6735 = vpop.f32.mrb[0].mxu0
    %v6736 = vadd.f32 0.0, %v6735
    %v6737 = vpop.f32.mrb[0].mxu0
    %v6738 = vadd.f32 0.0, %v6737
    %v6739 = vpop.f32.mrb[0].mxu0
    %v6740 = vadd.f32 0.0, %v6739
    %6741 = vmatprep.mubr.bf16.mxu0 %v5818
    %6742 = vmatmul.mubr.bf16.gmra.mrb[0].mxu0 %v5817
    %v6743 = vpop.f32.mrb[0].mxu0
    %v6744 = vadd.f32 0.0, %v6743
    %v6745 = vpop.f32.mrb[0].mxu0
    %v6746 = vadd.f32 0.0, %v6745
    %v6747 = vpop.f32.mrb[0].mxu0
    %v6748 = vadd.f32 0.0, %v6747
    %v6749 = vpop.f32.mrb[0].mxu0
    %v6750 = vadd.f32 0.0, %v6749
    %6751 = vmatprep.mubr.bf16.mxu0 %v5822
    %6752 = vmatmul.mubr.bf16.gmra.mrb[0].mxu0 %v5821
    %v6753 = vpop.f32.mrb[0].mxu0
    %v6754 = vadd.f32 0.0, %v6753
    %v6755 = vpop.f32.mrb[0].mxu0
    %v6756 = vadd.f32 0.0, %v6755
    %v6757 = vpop.f32.mrb[0].mxu0
    %v6758 = vadd.f32 0.0, %v6757
    %v6759 = vpop.f32.mrb[0].mxu0
    %v6760 = vadd.f32 0.0, %v6759
    %6761 = vmatprep.mubr.bf16.mxu0 %v5826
    %6762 = vmatmul.mubr.bf16.gmra.mrb[0].mxu0 %v5825
    %v6763 = vpop.f32.mrb[0].mxu0
    %v6764 = vadd.f32 0.0, %v6763
    %v6765 = vpop.f32.mrb[0].mxu0
    %v6766 = vadd.f32 0.0, %v6765
    %v6767 = vpop.f32.mrb[0].mxu0
    %v6768 = vadd.f32 0.0, %v6767
    %v6769 = vpop.f32.mrb[0].mxu0
    %v6770 = vadd.f32 0.0, %v6769
    %6771 = vmatprep.mubr.bf16.mxu0 %v5830
    %6772 = vmatmul.mubr.bf16.gmra.mrb[0].mxu0 %v5829
    %v6773 = vpop.f32.mrb[0].mxu0
    %v6774 = vadd.f32 0.0, %v6773
    %v6775 = vpop.f32.mrb[0].mxu0
    %v6776 = vadd.f32 0.0, %v6775
    %v6777 = vpop.f32.mrb[0].mxu0
    %v6778 = vadd.f32 0.0, %v6777
    %v6779 = vpop.f32.mrb[0].mxu0
    %v6780 = vadd.f32 0.0, %v6779
    %6781 = vmatprep.mubr.bf16.mxu0 %v5834
    %6782 = vmatmul.mubr.bf16.gmra.mrb[0].mxu0 %v5833
    %v6783 = vpop.f32.mrb[0].mxu0
    %v6784 = vadd.f32 0.0, %v6783
    %v6785 = vpop.f32.mrb[0].mxu0
    %v6786 = vadd.f32 0.0, %v6785
    %v6787 = vpop.f32.mrb[0].mxu0
    %v6788 = vadd.f32 0.0, %v6787
    %v6789 = vpop.f32.mrb[0].mxu0
    %v6790 = vadd.f32 0.0, %v6789
    %6791 = vmatprep.mubr.bf16.mxu0 %v5838
    %6792 = vmatmul.mubr.bf16.gmra.mrb[0].mxu0 %v5837
    %v6793 = vpop.f32.mrb[0].mxu0
    %v6794 = vadd.f32 0.0, %v6793
    %v6795 = vpop.f32.mrb[0].mxu0
    %v6796 = vadd.f32 0.0, %v6795
    %v6797 = vpop.f32.mrb[0].mxu0
    %v6798 = vadd.f32 0.0, %v6797
    %v6799 = vpop.f32.mrb[0].mxu0
    %v6800 = vadd.f32 0.0, %v6799
    %6801 = vdwg.mxu0
    %6802 = vmatprep.subr.bf16.mxu0 %v6418
    %6803 = vmatpush1.bf16.msra.mxu0 %v6417
    %6804 = vmatprep.subr.bf16.mxu0 %v6422
    %6805 = vmatpush1.bf16.msra.mxu0 %v6421
    %6806 = vmatprep.subr.bf16.mxu0 %v6426
    %6807 = vmatpush1.bf16.msra.mxu0 %v6425
    %6808 = vmatprep.subr.bf16.mxu0 %v6430
    %6809 = vmatpush1.bf16.msra.mxu0 %v6429
    %6810 = vmatprep.subr.bf16.mxu0 %v6434
    %6811 = vmatpush1.bf16.msra.mxu0 %v6433
    %6812 = vmatprep.subr.bf16.mxu0 %v6438
    %6813 = vmatpush1.bf16.msra.mxu0 %v6437
    %6814 = vmatprep.subr.bf16.mxu0 %v6442
    %6815 = vmatpush1.bf16.msra.mxu0 %v6441
    %6816 = vmatprep.subr.bf16.mxu0 %v6446
    %6817 = vmatpush1.bf16.msra.mxu0 %v6445
    %6818 = vmatprep.subr.bf16.mxu0 %v6450
    %6819 = vmatpush1.bf16.msra.mxu0 %v6449
    %6820 = vmatprep.subr.bf16.mxu0 %v6454
    %6821 = vmatpush1.bf16.msra.mxu0 %v6453
    %6822 = vmatprep.subr.bf16.mxu0 %v6458
    %6823 = vmatpush1.bf16.msra.mxu0 %v6457
    %6824 = vmatprep.subr.bf16.mxu0 %v6462
    %6825 = vmatpush1.bf16.msra.mxu0 %v6461
    %6826 = vmatprep.subr.bf16.mxu0 %v6466
    %6827 = vmatpush1.bf16.msra.mxu0 %v6465
    %6828 = vmatprep.subr.bf16.mxu0 %v6470
    %6829 = vmatpush1.bf16.msra.mxu0 %v6469
    %6830 = vmatprep.subr.bf16.mxu0 %v6474
    %6831 = vmatpush1.bf16.msra.mxu0 %v6473
    %6832 = vmatprep.subr.bf16.mxu0 %v6478
    %6833 = vmatpush1.bf16.msra.mxu0 %v6477
    %6834 = vmatprep.mubr.bf16.mxu0 %v5780
    %6835 = vmatmul.mubr.bf16.gmra.mrb[0].mxu0 %v5779
    %v6836 = vpop.f32.mrb[0].mxu0
    %v6837 = vadd.f32 %v6644, %v6836
    %v6838 = vpop.f32.mrb[0].mxu0
    %v6839 = vadd.f32 %v6646, %v6838
    %v6840 = vpop.f32.mrb[0].mxu0
    %v6841 = vadd.f32 %v6648, %v6840
    %v6842 = vpop.f32.mrb[0].mxu0
    %v6843 = vadd.f32 %v6650, %v6842
    %6844 = vmatprep.mubr.bf16.mxu0 %v5784
    %6845 = vmatmul.mubr.bf16.gmra.mrb[0].mxu0 %v5783
    %v6846 = vpop.f32.mrb[0].mxu0
    %v6847 = vadd.f32 %v6654, %v6846
    %v6848 = vpop.f32.mrb[0].mxu0
    %v6849 = vadd.f32 %v6656, %v6848
    %v6850 = vpop.f32.mrb[0].mxu0
    %v6851 = vadd.f32 %v6658, %v6850
    %v6852 = vpop.f32.mrb[0].mxu0
    %v6853 = vadd.f32 %v6660, %v6852
    %6854 = vmatprep.mubr.bf16.mxu0 %v5788
    %6855 = vmatmul.mubr.bf16.gmra.mrb[0].mxu0 %v5787
    %v6856 = vpop.f32.mrb[0].mxu0
    %v6857 = vadd.f32 %v6664, %v6856
    %v6858 = vpop.f32.mrb[0].mxu0
    %v6859 = vadd.f32 %v6666, %v6858
    %v6860 = vpop.f32.mrb[0].mxu0
    %v6861 = vadd.f32 %v6668, %v6860
    %v6862 = vpop.f32.mrb[0].mxu0
    %v6863 = vadd.f32 %v6670, %v6862
    %6864 = vmatprep.mubr.bf16.mxu0 %v5792
    %6865 = vmatmul.mubr.bf16.gmra.mrb[0].mxu0 %v5791
    %v6866 = vpop.f32.mrb[0].mxu0
    %v6867 = vadd.f32 %v6674, %v6866
    %v6868 = vpop.f32.mrb[0].mxu0
    %v6869 = vadd.f32 %v6676, %v6868
    %v6870 = vpop.f32.mrb[0].mxu0
    %v6871 = vadd.f32 %v6678, %v6870
    %v6872 = vpop.f32.mrb[0].mxu0
    %v6873 = vadd.f32 %v6680, %v6872
    %6874 = vmatprep.mubr.bf16.mxu0 %v5796
    %6875 = vmatmul.mubr.bf16.gmra.mrb[0].mxu0 %v5795
    %v6876 = vpop.f32.mrb[0].mxu0
    %v6877 = vadd.f32 %v6684, %v6876
    %v6878 = vpop.f32.mrb[0].mxu0
    %v6879 = vadd.f32 %v6686, %v6878
    %v6880 = vpop.f32.mrb[0].mxu0
    %v6881 = vadd.f32 %v6688, %v6880
    %v6882 = vpop.f32.mrb[0].mxu0
    %v6883 = vadd.f32 %v6690, %v6882
    %6884 = vmatprep.mubr.bf16.mxu0 %v5800
    %6885 = vmatmul.mubr.bf16.gmra.mrb[0].mxu0 %v5799
    %v6886 = vpop.f32.mrb[0].mxu0
    %v6887 = vadd.f32 %v6694, %v6886
    %v6888 = vpop.f32.mrb[0].mxu0
    %v6889 = vadd.f32 %v6696, %v6888
    %v6890 = vpop.f32.mrb[0].mxu0
    %v6891 = vadd.f32 %v6698, %v6890
    %v6892 = vpop.f32.mrb[0].mxu0
    %v6893 = vadd.f32 %v6700, %v6892
    %6894 = vmatprep.mubr.bf16.mxu0 %v5804
    %6895 = vmatmul.mubr.bf16.gmra.mrb[0].mxu0 %v5803
    %v6896 = vpop.f32.mrb[0].mxu0
    %v6897 = vadd.f32 %v6704, %v6896
    %v6898 = vpop.f32.mrb[0].mxu0
    %v6899 = vadd.f32 %v6706, %v6898
    %v6900 = vpop.f32.mrb[0].mxu0
    %v6901 = vadd.f32 %v6708, %v6900
    %v6902 = vpop.f32.mrb[0].mxu0
    %v6903 = vadd.f32 %v6710, %v6902
    %6904 = vmatprep.mubr.bf16.mxu0 %v5808
    %6905 = vmatmul.mubr.bf16.gmra.mrb[0].mxu0 %v5807
    %v6906 = vpop.f32.mrb[0].mxu0
    %v6907 = vadd.f32 %v6714, %v6906
    %v6908 = vpop.f32.mrb[0].mxu0
    %v6909 = vadd.f32 %v6716, %v6908
    %v6910 = vpop.f32.mrb[0].mxu0
    %v6911 = vadd.f32 %v6718, %v6910
    %v6912 = vpop.f32.mrb[0].mxu0
    %v6913 = vadd.f32 %v6720, %v6912
    %6914 = vmatprep.mubr.bf16.mxu0 %v5812
    %6915 = vmatmul.mubr.bf16.gmra.mrb[0].mxu0 %v5811
    %v6916 = vpop.f32.mrb[0].mxu0
    %v6917 = vadd.f32 %v6724, %v6916
    %v6918 = vpop.f32.mrb[0].mxu0
    %v6919 = vadd.f32 %v6726, %v6918
    %v6920 = vpop.f32.mrb[0].mxu0
    %v6921 = vadd.f32 %v6728, %v6920
    %v6922 = vpop.f32.mrb[0].mxu0
    %v6923 = vadd.f32 %v6730, %v6922
    %6924 = vmatprep.mubr.bf16.mxu0 %v5816
    %6925 = vmatmul.mubr.bf16.gmra.mrb[0].mxu0 %v5815
    %v6926 = vpop.f32.mrb[0].mxu0
    %v6927 = vadd.f32 %v6734, %v6926
    %v6928 = vpop.f32.mrb[0].mxu0
    %v6929 = vadd.f32 %v6736, %v6928
    %v6930 = vpop.f32.mrb[0].mxu0
    %v6931 = vadd.f32 %v6738, %v6930
    %v6932 = vpop.f32.mrb[0].mxu0
    %v6933 = vadd.f32 %v6740, %v6932
    %6934 = vmatprep.mubr.bf16.mxu0 %v5820
    %6935 = vmatmul.mubr.bf16.gmra.mrb[0].mxu0 %v5819
    %v6936 = vpop.f32.mrb[0].mxu0
    %v6937 = vadd.f32 %v6744, %v6936
    %v6938 = vpop.f32.mrb[0].mxu0
    %v6939 = vadd.f32 %v6746, %v6938
    %v6940 = vpop.f32.mrb[0].mxu0
    %v6941 = vadd.f32 %v6748, %v6940
    %v6942 = vpop.f32.mrb[0].mxu0
    %v6943 = vadd.f32 %v6750, %v6942
    %6944 = vmatprep.mubr.bf16.mxu0 %v5824
    %6945 = vmatmul.mubr.bf16.gmra.mrb[0].mxu0 %v5823
    %v6946 = vpop.f32.mrb[0].mxu0
    %v6947 = vadd.f32 %v6754, %v6946
    %v6948 = vpop.f32.mrb[0].mxu0
    %v6949 = vadd.f32 %v6756, %v6948
    %v6950 = vpop.f32.mrb[0].mxu0
    %v6951 = vadd.f32 %v6758, %v6950
    %v6952 = vpop.f32.mrb[0].mxu0
    %v6953 = vadd.f32 %v6760, %v6952
    %6954 = vmatprep.mubr.bf16.mxu0 %v5828
    %6955 = vmatmul.mubr.bf16.gmra.mrb[0].mxu0 %v5827
    %v6956 = vpop.f32.mrb[0].mxu0
    %v6957 = vadd.f32 %v6764, %v6956
    %v6958 = vpop.f32.mrb[0].mxu0
    %v6959 = vadd.f32 %v6766, %v6958
    %v6960 = vpop.f32.mrb[0].mxu0
    %v6961 = vadd.f32 %v6768, %v6960
    %v6962 = vpop.f32.mrb[0].mxu0
    %v6963 = vadd.f32 %v6770, %v6962
    %6964 = vmatprep.mubr.bf16.mxu0 %v5832
    %6965 = vmatmul.mubr.bf16.gmra.mrb[0].mxu0 %v5831
    %v6966 = vpop.f32.mrb[0].mxu0
    %v6967 = vadd.f32 %v6774, %v6966
    %v6968 = vpop.f32.mrb[0].mxu0
    %v6969 = vadd.f32 %v6776, %v6968
    %v6970 = vpop.f32.mrb[0].mxu0
    %v6971 = vadd.f32 %v6778, %v6970
    %v6972 = vpop.f32.mrb[0].mxu0
    %v6973 = vadd.f32 %v6780, %v6972
    %6974 = vmatprep.mubr.bf16.mxu0 %v5836
    %6975 = vmatmul.mubr.bf16.gmra.mrb[0].mxu0 %v5835
    %v6976 = vpop.f32.mrb[0].mxu0
    %v6977 = vadd.f32 %v6784, %v6976
    %v6978 = vpop.f32.mrb[0].mxu0
    %v6979 = vadd.f32 %v6786, %v6978
    %v6980 = vpop.f32.mrb[0].mxu0
    %v6981 = vadd.f32 %v6788, %v6980
    %v6982 = vpop.f32.mrb[0].mxu0
    %v6983 = vadd.f32 %v6790, %v6982
    %6984 = vmatprep.mubr.bf16.mxu0 %v5840
    %6985 = vmatmul.mubr.bf16.gmra.mrb[0].mxu0 %v5839
    %v6986 = vpop.f32.mrb[0].mxu0
    %v6987 = vadd.f32 %v6794, %v6986
    %v6988 = vpop.f32.mrb[0].mxu0
    %v6989 = vadd.f32 %v6796, %v6988
    %v6990 = vpop.f32.mrb[0].mxu0
    %v6991 = vadd.f32 %v6798, %v6990
    %v6992 = vpop.f32.mrb[0].mxu0
    %v6993 = vadd.f32 %v6800, %v6992
    %6994 = vdwg.mxu0
    %6995 = vmatprep.subr.bf16.mxu0 %v6356
    %6996 = vmatpush1.bf16.msra.mxu0 %v6355
    %6997 = vmatprep.subr.bf16.mxu0 %v6360
    %6998 = vmatpush1.bf16.msra.mxu0 %v6359
    %6999 = vmatprep.subr.bf16.mxu0 %v6364
    %7000 = vmatpush1.bf16.msra.mxu0 %v6363
    %7001 = vmatprep.subr.bf16.mxu0 %v6368
    %7002 = vmatpush1.bf16.msra.mxu0 %v6367
    %7003 = vmatprep.subr.bf16.mxu0 %v6372
    %7004 = vmatpush1.bf16.msra.mxu0 %v6371
    %7005 = vmatprep.subr.bf16.mxu0 %v6376
    %7006 = vmatpush1.bf16.msra.mxu0 %v6375
    %7007 = vmatprep.subr.bf16.mxu0 %v6380
    %7008 = vmatpush1.bf16.msra.mxu0 %v6379
    %7009 = vmatprep.subr.bf16.mxu0 %v6384
    %7010 = vmatpush1.bf16.msra.mxu0 %v6383
    %7011 = vmatprep.subr.bf16.mxu0 %v6388
    %7012 = vmatpush1.bf16.msra.mxu0 %v6387
    %7013 = vmatprep.subr.bf16.mxu0 %v6392
    %7014 = vmatpush1.bf16.msra.mxu0 %v6391
    %7015 = vmatprep.subr.bf16.mxu0 %v6396
    %7016 = vmatpush1.bf16.msra.mxu0 %v6395
    %7017 = vmatprep.subr.bf16.mxu0 %v6400
    %7018 = vmatpush1.bf16.msra.mxu0 %v6399
    %7019 = vmatprep.subr.bf16.mxu0 %v6404
    %7020 = vmatpush1.bf16.msra.mxu0 %v6403
    %7021 = vmatprep.subr.bf16.mxu0 %v6408
    %7022 = vmatpush1.bf16.msra.mxu0 %v6407
    %7023 = vmatprep.subr.bf16.mxu0 %v6412
    %7024 = vmatpush1.bf16.msra.mxu0 %v6411
    %7025 = vmatprep.subr.bf16.mxu0 %v6416
    %7026 = vmatpush1.bf16.msra.mxu0 %v6415
    %7027 = vmatprep.mubr.bf16.mxu0 %v5778
    %7028 = vmatmul.mubr.bf16.gmra.mrb[0].mxu0 %v5777
    %v7029 = vpop.f32.mrb[0].mxu0
    %v7030 = vadd.f32 0.0, %v7029
    %v7031 = vpop.f32.mrb[0].mxu0
    %v7032 = vadd.f32 0.0, %v7031
    %v7033 = vpop.f32.mrb[0].mxu0
    %v7034 = vadd.f32 0.0, %v7033
    %v7035 = vpop.f32.mrb[0].mxu0
    %v7036 = vadd.f32 0.0, %v7035
    %7037 = vmatprep.mubr.bf16.mxu0 %v5782
    %7038 = vmatmul.mubr.bf16.gmra.mrb[0].mxu0 %v5781
    %v7039 = vpop.f32.mrb[0].mxu0
    %v7040 = vadd.f32 0.0, %v7039
    %v7041 = vpop.f32.mrb[0].mxu0
    %v7042 = vadd.f32 0.0, %v7041
    %v7043 = vpop.f32.mrb[0].mxu0
    %v7044 = vadd.f32 0.0, %v7043
    %v7045 = vpop.f32.mrb[0].mxu0
    %v7046 = vadd.f32 0.0, %v7045
    %7047 = vmatprep.mubr.bf16.mxu0 %v5786
    %7048 = vmatmul.mubr.bf16.gmra.mrb[0].mxu0 %v5785
    %v7049 = vpop.f32.mrb[0].mxu0
    %v7050 = vadd.f32 0.0, %v7049
    %v7051 = vpop.f32.mrb[0].mxu0
    %v7052 = vadd.f32 0.0, %v7051
    %v7053 = vpop.f32.mrb[0].mxu0
    %v7054 = vadd.f32 0.0, %v7053
    %v7055 = vpop.f32.mrb[0].mxu0
    %v7056 = vadd.f32 0.0, %v7055
    %7057 = vmatprep.mubr.bf16.mxu0 %v5790
    %7058 = vmatmul.mubr.bf16.gmra.mrb[0].mxu0 %v5789
    %v7059 = vpop.f32.mrb[0].mxu0
    %v7060 = vadd.f32 0.0, %v7059
    %v7061 = vpop.f32.mrb[0].mxu0
    %v7062 = vadd.f32 0.0, %v7061
    %v7063 = vpop.f32.mrb[0].mxu0
    %v7064 = vadd.f32 0.0, %v7063
    %v7065 = vpop.f32.mrb[0].mxu0
    %v7066 = vadd.f32 0.0, %v7065
    %7067 = vmatprep.mubr.bf16.mxu0 %v5794
    %7068 = vmatmul.mubr.bf16.gmra.mrb[0].mxu0 %v5793
    %v7069 = vpop.f32.mrb[0].mxu0
    %v7070 = vadd.f32 0.0, %v7069
    %v7071 = vpop.f32.mrb[0].mxu0
    %v7072 = vadd.f32 0.0, %v7071
    %v7073 = vpop.f32.mrb[0].mxu0
    %v7074 = vadd.f32 0.0, %v7073
    %v7075 = vpop.f32.mrb[0].mxu0
    %v7076 = vadd.f32 0.0, %v7075
    %7077 = vmatprep.mubr.bf16.mxu0 %v5798
    %7078 = vmatmul.mubr.bf16.gmra.mrb[0].mxu0 %v5797
    %v7079 = vpop.f32.mrb[0].mxu0
    %v7080 = vadd.f32 0.0, %v7079
    %v7081 = vpop.f32.mrb[0].mxu0
    %v7082 = vadd.f32 0.0, %v7081
    %v7083 = vpop.f32.mrb[0].mxu0
    %v7084 = vadd.f32 0.0, %v7083
    %v7085 = vpop.f32.mrb[0].mxu0
    %v7086 = vadd.f32 0.0, %v7085
    %7087 = vmatprep.mubr.bf16.mxu0 %v5802
    %7088 = vmatmul.mubr.bf16.gmra.mrb[0].mxu0 %v5801
    %v7089 = vpop.f32.mrb[0].mxu0
    %v7090 = vadd.f32 0.0, %v7089
    %v7091 = vpop.f32.mrb[0].mxu0
    %v7092 = vadd.f32 0.0, %v7091
    %v7093 = vpop.f32.mrb[0].mxu0
    %v7094 = vadd.f32 0.0, %v7093
    %v7095 = vpop.f32.mrb[0].mxu0
    %v7096 = vadd.f32 0.0, %v7095
    %7097 = vmatprep.mubr.bf16.mxu0 %v5806
    %7098 = vmatmul.mubr.bf16.gmra.mrb[0].mxu0 %v5805
    %v7099 = vpop.f32.mrb[0].mxu0
    %v7100 = vadd.f32 0.0, %v7099
    %v7101 = vpop.f32.mrb[0].mxu0
    %v7102 = vadd.f32 0.0, %v7101
    %v7103 = vpop.f32.mrb[0].mxu0
    %v7104 = vadd.f32 0.0, %v7103
    %v7105 = vpop.f32.mrb[0].mxu0
    %v7106 = vadd.f32 0.0, %v7105
    %7107 = vmatprep.mubr.bf16.mxu0 %v5810
    %7108 = vmatmul.mubr.bf16.gmra.mrb[0].mxu0 %v5809
    %v7109 = vpop.f32.mrb[0].mxu0
    %v7110 = vadd.f32 0.0, %v7109
    %v7111 = vpop.f32.mrb[0].mxu0
    %v7112 = vadd.f32 0.0, %v7111
    %v7113 = vpop.f32.mrb[0].mxu0
    %v7114 = vadd.f32 0.0, %v7113
    %v7115 = vpop.f32.mrb[0].mxu0
    %v7116 = vadd.f32 0.0, %v7115
    %7117 = vmatprep.mubr.bf16.mxu0 %v5814
    %7118 = vmatmul.mubr.bf16.gmra.mrb[0].mxu0 %v5813
    %v7119 = vpop.f32.mrb[0].mxu0
    %v7120 = vadd.f32 0.0, %v7119
    %v7121 = vpop.f32.mrb[0].mxu0
    %v7122 = vadd.f32 0.0, %v7121
    %v7123 = vpop.f32.mrb[0].mxu0
    %v7124 = vadd.f32 0.0, %v7123
    %v7125 = vpop.f32.mrb[0].mxu0
    %v7126 = vadd.f32 0.0, %v7125
    %7127 = vmatprep.mubr.bf16.mxu0 %v5818
    %7128 = vmatmul.mubr.bf16.gmra.mrb[0].mxu0 %v5817
    %v7129 = vpop.f32.mrb[0].mxu0
    %v7130 = vadd.f32 0.0, %v7129
    %v7131 = vpop.f32.mrb[0].mxu0
    %v7132 = vadd.f32 0.0, %v7131
    %v7133 = vpop.f32.mrb[0].mxu0
    %v7134 = vadd.f32 0.0, %v7133
    %v7135 = vpop.f32.mrb[0].mxu0
    %v7136 = vadd.f32 0.0, %v7135
    %7137 = vmatprep.mubr.bf16.mxu0 %v5822
    %7138 = vmatmul.mubr.bf16.gmra.mrb[0].mxu0 %v5821
    %v7139 = vpop.f32.mrb[0].mxu0
    %v7140 = vadd.f32 0.0, %v7139
    %v7141 = vpop.f32.mrb[0].mxu0
    %v7142 = vadd.f32 0.0, %v7141
    %v7143 = vpop.f32.mrb[0].mxu0
    %v7144 = vadd.f32 0.0, %v7143
    %v7145 = vpop.f32.mrb[0].mxu0
    %v7146 = vadd.f32 0.0, %v7145
    %7147 = vmatprep.mubr.bf16.mxu0 %v5826
    %7148 = vmatmul.mubr.bf16.gmra.mrb[0].mxu0 %v5825
    %v7149 = vpop.f32.mrb[0].mxu0
    %v7150 = vadd.f32 0.0, %v7149
    %v7151 = vpop.f32.mrb[0].mxu0
    %v7152 = vadd.f32 0.0, %v7151
    %v7153 = vpop.f32.mrb[0].mxu0
    %v7154 = vadd.f32 0.0, %v7153
    %v7155 = vpop.f32.mrb[0].mxu0
    %v7156 = vadd.f32 0.0, %v7155
    %7157 = vmatprep.mubr.bf16.mxu0 %v5830
    %7158 = vmatmul.mubr.bf16.gmra.mrb[0].mxu0 %v5829
    %v7159 = vpop.f32.mrb[0].mxu0
    %v7160 = vadd.f32 0.0, %v7159
    %v7161 = vpop.f32.mrb[0].mxu0
    %v7162 = vadd.f32 0.0, %v7161
    %v7163 = vpop.f32.mrb[0].mxu0
    %v7164 = vadd.f32 0.0, %v7163
    %v7165 = vpop.f32.mrb[0].mxu0
    %v7166 = vadd.f32 0.0, %v7165
    %7167 = vmatprep.mubr.bf16.mxu0 %v5834
    %7168 = vmatmul.mubr.bf16.gmra.mrb[0].mxu0 %v5833
    %v7169 = vpop.f32.mrb[0].mxu0
    %v7170 = vadd.f32 0.0, %v7169
    %v7171 = vpop.f32.mrb[0].mxu0
    %v7172 = vadd.f32 0.0, %v7171
    %v7173 = vpop.f32.mrb[0].mxu0
    %v7174 = vadd.f32 0.0, %v7173
    %v7175 = vpop.f32.mrb[0].mxu0
    %v7176 = vadd.f32 0.0, %v7175
    %7177 = vmatprep.mubr.bf16.mxu0 %v5838
    %7178 = vmatmul.mubr.bf16.gmra.mrb[0].mxu0 %v5837
    %v7179 = vpop.f32.mrb[0].mxu0
    %v7180 = vadd.f32 0.0, %v7179
    %v7181 = vpop.f32.mrb[0].mxu0
    %v7182 = vadd.f32 0.0, %v7181
    %v7183 = vpop.f32.mrb[0].mxu0
    %v7184 = vadd.f32 0.0, %v7183
    %v7185 = vpop.f32.mrb[0].mxu0
    %v7186 = vadd.f32 0.0, %v7185
    %7187 = vdwg.mxu0
    %7188 = vmatprep.subr.bf16.mxu0 %v6420
    %7189 = vmatpush1.bf16.msra.mxu0 %v6419
    %7190 = vmatprep.subr.bf16.mxu0 %v6424
    %7191 = vmatpush1.bf16.msra.mxu0 %v6423
    %7192 = vmatprep.subr.bf16.mxu0 %v6428
    %7193 = vmatpush1.bf16.msra.mxu0 %v6427
    %7194 = vmatprep.subr.bf16.mxu0 %v6432
    %7195 = vmatpush1.bf16.msra.mxu0 %v6431
    %7196 = vmatprep.subr.bf16.mxu0 %v6436
    %7197 = vmatpush1.bf16.msra.mxu0 %v6435
    %7198 = vmatprep.subr.bf16.mxu0 %v6440
    %7199 = vmatpush1.bf16.msra.mxu0 %v6439
    %7200 = vmatprep.subr.bf16.mxu0 %v6444
    %7201 = vmatpush1.bf16.msra.mxu0 %v6443
    %7202 = vmatprep.subr.bf16.mxu0 %v6448
    %7203 = vmatpush1.bf16.msra.mxu0 %v6447
    %7204 = vmatprep.subr.bf16.mxu0 %v6452
    %7205 = vmatpush1.bf16.msra.mxu0 %v6451
    %7206 = vmatprep.subr.bf16.mxu0 %v6456
    %7207 = vmatpush1.bf16.msra.mxu0 %v6455
    %7208 = vmatprep.subr.bf16.mxu0 %v6460
    %7209 = vmatpush1.bf16.msra.mxu0 %v6459
    %7210 = vmatprep.subr.bf16.mxu0 %v6464
    %7211 = vmatpush1.bf16.msra.mxu0 %v6463
    %7212 = vmatprep.subr.bf16.mxu0 %v6468
    %7213 = vmatpush1.bf16.msra.mxu0 %v6467
    %7214 = vmatprep.subr.bf16.mxu0 %v6472
    %7215 = vmatpush1.bf16.msra.mxu0 %v6471
    %7216 = vmatprep.subr.bf16.mxu0 %v6476
    %7217 = vmatpush1.bf16.msra.mxu0 %v6475
    %7218 = vmatprep.subr.bf16.mxu0 %v6480
    %7219 = vmatpush1.bf16.msra.mxu0 %v6479
    %7220 = vmatprep.mubr.bf16.mxu0 %v5780
    %7221 = vmatmul.mubr.bf16.gmra.mrb[0].mxu0 %v5779
    %v7222 = vpop.f32.mrb[0].mxu0
    %v7223 = vadd.f32 %v7030, %v7222
    %v7224 = vpop.f32.mrb[0].mxu0
    %v7225 = vadd.f32 %v7032, %v7224
    %v7226 = vpop.f32.mrb[0].mxu0
    %v7227 = vadd.f32 %v7034, %v7226
    %v7228 = vpop.f32.mrb[0].mxu0
    %v7229 = vadd.f32 %v7036, %v7228
    %7230 = vmatprep.mubr.bf16.mxu0 %v5784
    %7231 = vmatmul.mubr.bf16.gmra.mrb[0].mxu0 %v5783
    %v7232 = vpop.f32.mrb[0].mxu0
    %v7233 = vadd.f32 %v7040, %v7232
    %v7234 = vpop.f32.mrb[0].mxu0
    %v7235 = vadd.f32 %v7042, %v7234
    %v7236 = vpop.f32.mrb[0].mxu0
    %v7237 = vadd.f32 %v7044, %v7236
    %v7238 = vpop.f32.mrb[0].mxu0
    %v7239 = vadd.f32 %v7046, %v7238
    %7240 = vmatprep.mubr.bf16.mxu0 %v5788
    %7241 = vmatmul.mubr.bf16.gmra.mrb[0].mxu0 %v5787
    %v7242 = vpop.f32.mrb[0].mxu0
    %v7243 = vadd.f32 %v7050, %v7242
    %v7244 = vpop.f32.mrb[0].mxu0
    %v7245 = vadd.f32 %v7052, %v7244
    %v7246 = vpop.f32.mrb[0].mxu0
    %v7247 = vadd.f32 %v7054, %v7246
    %v7248 = vpop.f32.mrb[0].mxu0
    %v7249 = vadd.f32 %v7056, %v7248
    %7250 = vmatprep.mubr.bf16.mxu0 %v5792
    %7251 = vmatmul.mubr.bf16.gmra.mrb[0].mxu0 %v5791
    %v7252 = vpop.f32.mrb[0].mxu0
    %v7253 = vadd.f32 %v7060, %v7252
    %v7254 = vpop.f32.mrb[0].mxu0
    %v7255 = vadd.f32 %v7062, %v7254
    %v7256 = vpop.f32.mrb[0].mxu0
    %v7257 = vadd.f32 %v7064, %v7256
    %v7258 = vpop.f32.mrb[0].mxu0
    %v7259 = vadd.f32 %v7066, %v7258
    %7260 = vmatprep.mubr.bf16.mxu0 %v5796
    %7261 = vmatmul.mubr.bf16.gmra.mrb[0].mxu0 %v5795
    %v7262 = vpop.f32.mrb[0].mxu0
    %v7263 = vadd.f32 %v7070, %v7262
    %v7264 = vpop.f32.mrb[0].mxu0
    %v7265 = vadd.f32 %v7072, %v7264
    %v7266 = vpop.f32.mrb[0].mxu0
    %v7267 = vadd.f32 %v7074, %v7266
    %v7268 = vpop.f32.mrb[0].mxu0
    %v7269 = vadd.f32 %v7076, %v7268
    %7270 = vmatprep.mubr.bf16.mxu0 %v5800
    %7271 = vmatmul.mubr.bf16.gmra.mrb[0].mxu0 %v5799
    %v7272 = vpop.f32.mrb[0].mxu0
    %v7273 = vadd.f32 %v7080, %v7272
    %v7274 = vpop.f32.mrb[0].mxu0
    %v7275 = vadd.f32 %v7082, %v7274
    %v7276 = vpop.f32.mrb[0].mxu0
    %v7277 = vadd.f32 %v7084, %v7276
    %v7278 = vpop.f32.mrb[0].mxu0
    %v7279 = vadd.f32 %v7086, %v7278
    %7280 = vmatprep.mubr.bf16.mxu0 %v5804
    %7281 = vmatmul.mubr.bf16.gmra.mrb[0].mxu0 %v5803
    %v7282 = vpop.f32.mrb[0].mxu0
    %v7283 = vadd.f32 %v7090, %v7282
    %v7284 = vpop.f32.mrb[0].mxu0
    %v7285 = vadd.f32 %v7092, %v7284
    %v7286 = vpop.f32.mrb[0].mxu0
    %v7287 = vadd.f32 %v7094, %v7286
    %v7288 = vpop.f32.mrb[0].mxu0
    %v7289 = vadd.f32 %v7096, %v7288
    %7290 = vmatprep.mubr.bf16.mxu0 %v5808
    %7291 = vmatmul.mubr.bf16.gmra.mrb[0].mxu0 %v5807
    %v7292 = vpop.f32.mrb[0].mxu0
    %v7293 = vadd.f32 %v7100, %v7292
    %v7294 = vpop.f32.mrb[0].mxu0
    %v7295 = vadd.f32 %v7102, %v7294
    %v7296 = vpop.f32.mrb[0].mxu0
    %v7297 = vadd.f32 %v7104, %v7296
    %v7298 = vpop.f32.mrb[0].mxu0
    %v7299 = vadd.f32 %v7106, %v7298
    %7300 = vmatprep.mubr.bf16.mxu0 %v5812
    %7301 = vmatmul.mubr.bf16.gmra.mrb[0].mxu0 %v5811
    %v7302 = vpop.f32.mrb[0].mxu0
    %v7303 = vadd.f32 %v7110, %v7302
    %v7304 = vpop.f32.mrb[0].mxu0
    %v7305 = vadd.f32 %v7112, %v7304
    %v7306 = vpop.f32.mrb[0].mxu0
    %v7307 = vadd.f32 %v7114, %v7306
    %v7308 = vpop.f32.mrb[0].mxu0
    %v7309 = vadd.f32 %v7116, %v7308
    %7310 = vmatprep.mubr.bf16.mxu0 %v5816
    %7311 = vmatmul.mubr.bf16.gmra.mrb[0].mxu0 %v5815
    %v7312 = vpop.f32.mrb[0].mxu0
    %v7313 = vadd.f32 %v7120, %v7312
    %v7314 = vpop.f32.mrb[0].mxu0
    %v7315 = vadd.f32 %v7122, %v7314
    %v7316 = vpop.f32.mrb[0].mxu0
    %v7317 = vadd.f32 %v7124, %v7316
    %v7318 = vpop.f32.mrb[0].mxu0
    %v7319 = vadd.f32 %v7126, %v7318
    %7320 = vmatprep.mubr.bf16.mxu0 %v5820
    %7321 = vmatmul.mubr.bf16.gmra.mrb[0].mxu0 %v5819
    %v7322 = vpop.f32.mrb[0].mxu0
    %v7323 = vadd.f32 %v7130, %v7322
    %v7324 = vpop.f32.mrb[0].mxu0
    %v7325 = vadd.f32 %v7132, %v7324
    %v7326 = vpop.f32.mrb[0].mxu0
    %v7327 = vadd.f32 %v7134, %v7326
    %v7328 = vpop.f32.mrb[0].mxu0
    %v7329 = vadd.f32 %v7136, %v7328
    %7330 = vmatprep.mubr.bf16.mxu0 %v5824
    %7331 = vmatmul.mubr.bf16.gmra.mrb[0].mxu0 %v5823
    %v7332 = vpop.f32.mrb[0].mxu0
    %v7333 = vadd.f32 %v7140, %v7332
    %v7334 = vpop.f32.mrb[0].mxu0
    %v7335 = vadd.f32 %v7142, %v7334
    %v7336 = vpop.f32.mrb[0].mxu0
    %v7337 = vadd.f32 %v7144, %v7336
    %v7338 = vpop.f32.mrb[0].mxu0
    %v7339 = vadd.f32 %v7146, %v7338
    %7340 = vmatprep.mubr.bf16.mxu0 %v5828
    %7341 = vmatmul.mubr.bf16.gmra.mrb[0].mxu0 %v5827
    %v7342 = vpop.f32.mrb[0].mxu0
    %v7343 = vadd.f32 %v7150, %v7342
    %v7344 = vpop.f32.mrb[0].mxu0
    %v7345 = vadd.f32 %v7152, %v7344
    %v7346 = vpop.f32.mrb[0].mxu0
    %v7347 = vadd.f32 %v7154, %v7346
    %v7348 = vpop.f32.mrb[0].mxu0
    %v7349 = vadd.f32 %v7156, %v7348
    %7350 = vmatprep.mubr.bf16.mxu0 %v5832
    %7351 = vmatmul.mubr.bf16.gmra.mrb[0].mxu0 %v5831
    %v7352 = vpop.f32.mrb[0].mxu0
    %v7353 = vadd.f32 %v7160, %v7352
    %v7354 = vpop.f32.mrb[0].mxu0
    %v7355 = vadd.f32 %v7162, %v7354
    %v7356 = vpop.f32.mrb[0].mxu0
    %v7357 = vadd.f32 %v7164, %v7356
    %v7358 = vpop.f32.mrb[0].mxu0
    %v7359 = vadd.f32 %v7166, %v7358
    %7360 = vmatprep.mubr.bf16.mxu0 %v5836
    %7361 = vmatmul.mubr.bf16.gmra.mrb[0].mxu0 %v5835
    %v7362 = vpop.f32.mrb[0].mxu0
    %v7363 = vadd.f32 %v7170, %v7362
    %v7364 = vpop.f32.mrb[0].mxu0
    %v7365 = vadd.f32 %v7172, %v7364
    %v7366 = vpop.f32.mrb[0].mxu0
    %v7367 = vadd.f32 %v7174, %v7366
    %v7368 = vpop.f32.mrb[0].mxu0
    %v7369 = vadd.f32 %v7176, %v7368
    %7370 = vmatprep.mubr.bf16.mxu0 %v5840
    %7371 = vmatmul.mubr.bf16.gmra.mrb[0].mxu0 %v5839
    %v7372 = vpop.f32.mrb[0].mxu0
    %v7373 = vadd.f32 %v7180, %v7372
    %v7374 = vpop.f32.mrb[0].mxu0
    %v7375 = vadd.f32 %v7182, %v7374
    %v7376 = vpop.f32.mrb[0].mxu0
    %v7377 = vadd.f32 %v7184, %v7376
    %v7378 = vpop.f32.mrb[0].mxu0
    %v7379 = vadd.f32 %v7186, %v7378
    %7380 = vdwg.mxu0
    %v7381 = vlaneseq
    %v7382 = vshrl.u32 %v7381, 7
    %v7383 = vsub.s32 0, %v7382
    %v7384 = vrot.slane %v6837, %v7383
    %v7385 = vlaneseq
    %v7386 = vshrl.u32 %v7385, 7
    %v7387 = vsub.s32 0, %v7386
    %v7388 = vrot.slane %v6839, %v7387
    %v7389 = vlaneseq
    %v7390 = vshrl.u32 %v7389, 7
    %v7391 = vsub.s32 0, %v7390
    %v7392 = vrot.slane %v7223, %v7391
    %v7393 = vlaneseq
    %v7394 = vshrl.u32 %v7393, 7
    %v7395 = vsub.s32 0, %v7394
    %v7396 = vrot.slane %v7225, %v7395
    %v7397 = vsub.f32 %v6837, %v7384
    %v7398 = vsub.f32 %v6839, %v7388
    %v7399 = vsub.f32 %v7223, %v7392
    %v7400 = vsub.f32 %v7225, %v7396
    %v7401 = vsub.f32 %v6841, %v7384
    %v7402 = vsub.f32 %v6843, %v7388
    %v7403 = vsub.f32 %v7227, %v7392
    %v7404 = vsub.f32 %v7229, %v7396
    %v7405 = vsub.f32 %v6847, %v7384
    %v7406 = vsub.f32 %v6849, %v7388
    %v7407 = vsub.f32 %v7233, %v7392
    %v7408 = vsub.f32 %v7235, %v7396
    %v7409 = vsub.f32 %v6851, %v7384
    %v7410 = vsub.f32 %v6853, %v7388
    %v7411 = vsub.f32 %v7237, %v7392
    %v7412 = vsub.f32 %v7239, %v7396
    %v7413 = vsub.f32 %v6857, %v7384
    %v7414 = vsub.f32 %v6859, %v7388
    %v7415 = vsub.f32 %v7243, %v7392
    %v7416 = vsub.f32 %v7245, %v7396
    %v7417 = vsub.f32 %v6861, %v7384
    %v7418 = vsub.f32 %v6863, %v7388
    %v7419 = vsub.f32 %v7247, %v7392
    %v7420 = vsub.f32 %v7249, %v7396
    %v7421 = vsub.f32 %v6867, %v7384
    %v7422 = vsub.f32 %v6869, %v7388
    %v7423 = vsub.f32 %v7253, %v7392
    %v7424 = vsub.f32 %v7255, %v7396
    %v7425 = vsub.f32 %v6871, %v7384
    %v7426 = vsub.f32 %v6873, %v7388
    %v7427 = vsub.f32 %v7257, %v7392
    %v7428 = vsub.f32 %v7259, %v7396
    %v7429 = vsub.f32 %v6877, %v7384
    %v7430 = vsub.f32 %v6879, %v7388
    %v7431 = vsub.f32 %v7263, %v7392
    %v7432 = vsub.f32 %v7265, %v7396
    %v7433 = vsub.f32 %v6881, %v7384
    %v7434 = vsub.f32 %v6883, %v7388
    %v7435 = vsub.f32 %v7267, %v7392
    %v7436 = vsub.f32 %v7269, %v7396
    %v7437 = vsub.f32 %v6887, %v7384
    %v7438 = vsub.f32 %v6889, %v7388
    %v7439 = vsub.f32 %v7273, %v7392
    %v7440 = vsub.f32 %v7275, %v7396
    %v7441 = vsub.f32 %v6891, %v7384
    %v7442 = vsub.f32 %v6893, %v7388
    %v7443 = vsub.f32 %v7277, %v7392
    %v7444 = vsub.f32 %v7279, %v7396
    %v7445 = vsub.f32 %v6897, %v7384
    %v7446 = vsub.f32 %v6899, %v7388
    %v7447 = vsub.f32 %v7283, %v7392
    %v7448 = vsub.f32 %v7285, %v7396
    %v7449 = vsub.f32 %v6901, %v7384
    %v7450 = vsub.f32 %v6903, %v7388
    %v7451 = vsub.f32 %v7287, %v7392
    %v7452 = vsub.f32 %v7289, %v7396
    %v7453 = vsub.f32 %v6907, %v7384
    %v7454 = vsub.f32 %v6909, %v7388
    %v7455 = vsub.f32 %v7293, %v7392
    %v7456 = vsub.f32 %v7295, %v7396
    %v7457 = vsub.f32 %v6911, %v7384
    %v7458 = vsub.f32 %v6913, %v7388
    %v7459 = vsub.f32 %v7297, %v7392
    %v7460 = vsub.f32 %v7299, %v7396
    %v7461 = vsub.f32 %v6917, %v7384
    %v7462 = vsub.f32 %v6919, %v7388
    %v7463 = vsub.f32 %v7303, %v7392
    %v7464 = vsub.f32 %v7305, %v7396
    %v7465 = vsub.f32 %v6921, %v7384
    %v7466 = vsub.f32 %v6923, %v7388
    %v7467 = vsub.f32 %v7307, %v7392
    %v7468 = vsub.f32 %v7309, %v7396
    %v7469 = vsub.f32 %v6927, %v7384
    %v7470 = vsub.f32 %v6929, %v7388
    %v7471 = vsub.f32 %v7313, %v7392
    %v7472 = vsub.f32 %v7315, %v7396
    %v7473 = vsub.f32 %v6931, %v7384
    %v7474 = vsub.f32 %v6933, %v7388
    %v7475 = vsub.f32 %v7317, %v7392
    %v7476 = vsub.f32 %v7319, %v7396
    %v7477 = vsub.f32 %v6937, %v7384
    %v7478 = vsub.f32 %v6939, %v7388
    %v7479 = vsub.f32 %v7323, %v7392
    %v7480 = vsub.f32 %v7325, %v7396
    %v7481 = vsub.f32 %v6941, %v7384
    %v7482 = vsub.f32 %v6943, %v7388
    %v7483 = vsub.f32 %v7327, %v7392
    %v7484 = vsub.f32 %v7329, %v7396
    %v7485 = vsub.f32 %v6947, %v7384
    %v7486 = vsub.f32 %v6949, %v7388
    %v7487 = vsub.f32 %v7333, %v7392
    %v7488 = vsub.f32 %v7335, %v7396
    %v7489 = vsub.f32 %v6951, %v7384
    %v7490 = vsub.f32 %v6953, %v7388
    %v7491 = vsub.f32 %v7337, %v7392
    %v7492 = vsub.f32 %v7339, %v7396
    %v7493 = vsub.f32 %v6957, %v7384
    %v7494 = vsub.f32 %v6959, %v7388
    %v7495 = vsub.f32 %v7343, %v7392
    %v7496 = vsub.f32 %v7345, %v7396
    %v7497 = vsub.f32 %v6961, %v7384
    %v7498 = vsub.f32 %v6963, %v7388
    %v7499 = vsub.f32 %v7347, %v7392
    %v7500 = vsub.f32 %v7349, %v7396
    %v7501 = vsub.f32 %v6967, %v7384
    %v7502 = vsub.f32 %v6969, %v7388
    %v7503 = vsub.f32 %v7353, %v7392
    %v7504 = vsub.f32 %v7355, %v7396
    %v7505 = vsub.f32 %v6971, %v7384
    %v7506 = vsub.f32 %v6973, %v7388
    %v7507 = vsub.f32 %v7357, %v7392
    %v7508 = vsub.f32 %v7359, %v7396
    %v7509 = vsub.f32 %v6977, %v7384
    %v7510 = vsub.f32 %v6979, %v7388
    %v7511 = vsub.f32 %v7363, %v7392
    %v7512 = vsub.f32 %v7365, %v7396
    %v7513 = vsub.f32 %v6981, %v7384
    %v7514 = vsub.f32 %v6983, %v7388
    %v7515 = vsub.f32 %v7367, %v7392
    %v7516 = vsub.f32 %v7369, %v7396
    %v7517 = vsub.f32 %v6987, %v7384
    %v7518 = vsub.f32 %v6989, %v7388
    %v7519 = vsub.f32 %v7373, %v7392
    %v7520 = vsub.f32 %v7375, %v7396
    %v7521 = vsub.f32 %v6991, %v7384
    %v7522 = vsub.f32 %v6993, %v7388
    %v7523 = vsub.f32 %v7377, %v7392
    %v7524 = vsub.f32 %v7379, %v7396
    %v7525 = vadd.f32 %v7397, %v7401
    %v7526 = vadd.f32 %v7525, %v7405
    %v7527 = vadd.f32 %v7526, %v7409
    %v7528 = vadd.f32 %v7527, %v7413
    %v7529 = vadd.f32 %v7528, %v7417
    %v7530 = vadd.f32 %v7529, %v7421
    %v7531 = vadd.f32 %v7530, %v7425
    %v7532 = vadd.f32 %v7531, %v7429
    %v7533 = vadd.f32 %v7532, %v7433
    %v7534 = vadd.f32 %v7533, %v7437
    %v7535 = vadd.f32 %v7534, %v7441
    %v7536 = vadd.f32 %v7535, %v7445
    %v7537 = vadd.f32 %v7536, %v7449
    %v7538 = vadd.f32 %v7537, %v7453
    %v7539 = vadd.f32 %v7538, %v7457
    %v7540 = vadd.f32 %v7539, %v7461
    %v7541 = vadd.f32 %v7540, %v7465
    %v7542 = vadd.f32 %v7541, %v7469
    %v7543 = vadd.f32 %v7542, %v7473
    %v7544 = vadd.f32 %v7543, %v7477
    %v7545 = vadd.f32 %v7544, %v7481
    %v7546 = vadd.f32 %v7545, %v7485
    %v7547 = vadd.f32 %v7546, %v7489
    %v7548 = vadd.f32 %v7547, %v7493
    %v7549 = vadd.f32 %v7548, %v7497
    %v7550 = vadd.f32 %v7549, %v7501
    %v7551 = vadd.f32 %v7550, %v7505
    %v7552 = vadd.f32 %v7551, %v7509
    %v7553 = vadd.f32 %v7552, %v7513
    %v7554 = vadd.f32 %v7553, %v7517
    %v7555 = vadd.f32 %v7554, %v7521
    %v7556 = vrot.slane %v7555, 4
    %v7557 = vadd.f32 %v7555, %v7556
    %v7558 = vrot.slane %v7557, 2
    %v7559 = vadd.f32 %v7557, %v7558
    %v7560 = vrot.slane %v7559, 1
    %v7561 = vadd.f32 %v7559, %v7560
    %v7562 = vadd.f32 %v7398, %v7402
    %v7563 = vadd.f32 %v7562, %v7406
    %v7564 = vadd.f32 %v7563, %v7410
    %v7565 = vadd.f32 %v7564, %v7414
    %v7566 = vadd.f32 %v7565, %v7418
    %v7567 = vadd.f32 %v7566, %v7422
    %v7568 = vadd.f32 %v7567, %v7426
    %v7569 = vadd.f32 %v7568, %v7430
    %v7570 = vadd.f32 %v7569, %v7434
    %v7571 = vadd.f32 %v7570, %v7438
    %v7572 = vadd.f32 %v7571, %v7442
    %v7573 = vadd.f32 %v7572, %v7446
    %v7574 = vadd.f32 %v7573, %v7450
    %v7575 = vadd.f32 %v7574, %v7454
    %v7576 = vadd.f32 %v7575, %v7458
    %v7577 = vadd.f32 %v7576, %v7462
    %v7578 = vadd.f32 %v7577, %v7466
    %v7579 = vadd.f32 %v7578, %v7470
    %v7580 = vadd.f32 %v7579, %v7474
    %v7581 = vadd.f32 %v7580, %v7478
    %v7582 = vadd.f32 %v7581, %v7482
    %v7583 = vadd.f32 %v7582, %v7486
    %v7584 = vadd.f32 %v7583, %v7490
    %v7585 = vadd.f32 %v7584, %v7494
    %v7586 = vadd.f32 %v7585, %v7498
    %v7587 = vadd.f32 %v7586, %v7502
    %v7588 = vadd.f32 %v7587, %v7506
    %v7589 = vadd.f32 %v7588, %v7510
    %v7590 = vadd.f32 %v7589, %v7514
    %v7591 = vadd.f32 %v7590, %v7518
    %v7592 = vadd.f32 %v7591, %v7522
    %v7593 = vrot.slane %v7592, 4
    %v7594 = vadd.f32 %v7592, %v7593
    %v7595 = vrot.slane %v7594, 2
    %v7596 = vadd.f32 %v7594, %v7595
    %v7597 = vrot.slane %v7596, 1
    %v7598 = vadd.f32 %v7596, %v7597
    %v7599 = vadd.f32 %v7399, %v7403
    %v7600 = vadd.f32 %v7599, %v7407
    %v7601 = vadd.f32 %v7600, %v7411
    %v7602 = vadd.f32 %v7601, %v7415
    %v7603 = vadd.f32 %v7602, %v7419
    %v7604 = vadd.f32 %v7603, %v7423
    %v7605 = vadd.f32 %v7604, %v7427
    %v7606 = vadd.f32 %v7605, %v7431
    %v7607 = vadd.f32 %v7606, %v7435
    %v7608 = vadd.f32 %v7607, %v7439
    %v7609 = vadd.f32 %v7608, %v7443
    %v7610 = vadd.f32 %v7609, %v7447
    %v7611 = vadd.f32 %v7610, %v7451
    %v7612 = vadd.f32 %v7611, %v7455
    %v7613 = vadd.f32 %v7612, %v7459
    %v7614 = vadd.f32 %v7613, %v7463
    %v7615 = vadd.f32 %v7614, %v7467
    %v7616 = vadd.f32 %v7615, %v7471
    %v7617 = vadd.f32 %v7616, %v7475
    %v7618 = vadd.f32 %v7617, %v7479
    %v7619 = vadd.f32 %v7618, %v7483
    %v7620 = vadd.f32 %v7619, %v7487
    %v7621 = vadd.f32 %v7620, %v7491
    %v7622 = vadd.f32 %v7621, %v7495
    %v7623 = vadd.f32 %v7622, %v7499
    %v7624 = vadd.f32 %v7623, %v7503
    %v7625 = vadd.f32 %v7624, %v7507
    %v7626 = vadd.f32 %v7625, %v7511
    %v7627 = vadd.f32 %v7626, %v7515
    %v7628 = vadd.f32 %v7627, %v7519
    %v7629 = vadd.f32 %v7628, %v7523
    %v7630 = vrot.slane %v7629, 4
    %v7631 = vadd.f32 %v7629, %v7630
    %v7632 = vrot.slane %v7631, 2
    %v7633 = vadd.f32 %v7631, %v7632
    %v7634 = vrot.slane %v7633, 1
    %v7635 = vadd.f32 %v7633, %v7634
    %v7636 = vadd.f32 %v7400, %v7404
    %v7637 = vadd.f32 %v7636, %v7408
    %v7638 = vadd.f32 %v7637, %v7412
    %v7639 = vadd.f32 %v7638, %v7416
    %v7640 = vadd.f32 %v7639, %v7420
    %v7641 = vadd.f32 %v7640, %v7424
    %v7642 = vadd.f32 %v7641, %v7428
    %v7643 = vadd.f32 %v7642, %v7432
    %v7644 = vadd.f32 %v7643, %v7436
    %v7645 = vadd.f32 %v7644, %v7440
    %v7646 = vadd.f32 %v7645, %v7444
    %v7647 = vadd.f32 %v7646, %v7448
    %v7648 = vadd.f32 %v7647, %v7452
    %v7649 = vadd.f32 %v7648, %v7456
    %v7650 = vadd.f32 %v7649, %v7460
    %v7651 = vadd.f32 %v7650, %v7464
    %v7652 = vadd.f32 %v7651, %v7468
    %v7653 = vadd.f32 %v7652, %v7472
    %v7654 = vadd.f32 %v7653, %v7476
    %v7655 = vadd.f32 %v7654, %v7480
    %v7656 = vadd.f32 %v7655, %v7484
    %v7657 = vadd.f32 %v7656, %v7488
    %v7658 = vadd.f32 %v7657, %v7492
    %v7659 = vadd.f32 %v7658, %v7496
    %v7660 = vadd.f32 %v7659, %v7500
    %v7661 = vadd.f32 %v7660, %v7504
    %v7662 = vadd.f32 %v7661, %v7508
    %v7663 = vadd.f32 %v7662, %v7512
    %v7664 = vadd.f32 %v7663, %v7516
    %v7665 = vadd.f32 %v7664, %v7520
    %v7666 = vadd.f32 %v7665, %v7524
    %v7667 = vrot.slane %v7666, 4
    %v7668 = vadd.f32 %v7666, %v7667
    %v7669 = vrot.slane %v7668, 2
    %v7670 = vadd.f32 %v7668, %v7669
    %v7671 = vrot.slane %v7670, 1
    %v7672 = vadd.f32 %v7670, %v7671
    %v7673 = vmul.f32 %v7561, 0.00390625
    %v7674 = vmul.f32 %v7598, 0.00390625
    %v7675 = vmul.f32 %v7635, 0.00390625
    %v7676 = vmul.f32 %v7672, 0.00390625
    %v7677 = vmul.f32 %v7397, %v7397
    %v7678 = vmul.f32 %v7398, %v7398
    %v7679 = vmul.f32 %v7399, %v7399
    %v7680 = vmul.f32 %v7400, %v7400
    %v7681 = vmul.f32 %v7401, %v7401
    %v7682 = vmul.f32 %v7402, %v7402
    %v7683 = vmul.f32 %v7403, %v7403
    %v7684 = vmul.f32 %v7404, %v7404
    %v7685 = vmul.f32 %v7405, %v7405
    %v7686 = vmul.f32 %v7406, %v7406
    %v7687 = vmul.f32 %v7407, %v7407
    %v7688 = vmul.f32 %v7408, %v7408
    %v7689 = vmul.f32 %v7409, %v7409
    %v7690 = vmul.f32 %v7410, %v7410
    %v7691 = vmul.f32 %v7411, %v7411
    %v7692 = vmul.f32 %v7412, %v7412
    %v7693 = vmul.f32 %v7413, %v7413
    %v7694 = vmul.f32 %v7414, %v7414
    %v7695 = vmul.f32 %v7415, %v7415
    %v7696 = vmul.f32 %v7416, %v7416
    %v7697 = vmul.f32 %v7417, %v7417
    %v7698 = vmul.f32 %v7418, %v7418
    %v7699 = vmul.f32 %v7419, %v7419
    %v7700 = vmul.f32 %v7420, %v7420
    %v7701 = vmul.f32 %v7421, %v7421
    %v7702 = vmul.f32 %v7422, %v7422
    %v7703 = vmul.f32 %v7423, %v7423
    %v7704 = vmul.f32 %v7424, %v7424
    %v7705 = vmul.f32 %v7425, %v7425
    %v7706 = vmul.f32 %v7426, %v7426
    %v7707 = vmul.f32 %v7427, %v7427
    %v7708 = vmul.f32 %v7428, %v7428
    %v7709 = vmul.f32 %v7429, %v7429
    %v7710 = vmul.f32 %v7430, %v7430
    %v7711 = vmul.f32 %v7431, %v7431
    %v7712 = vmul.f32 %v7432, %v7432
    %v7713 = vmul.f32 %v7433, %v7433
    %v7714 = vmul.f32 %v7434, %v7434
    %v7715 = vmul.f32 %v7435, %v7435
    %v7716 = vmul.f32 %v7436, %v7436
    %v7717 = vmul.f32 %v7437, %v7437
    %v7718 = vmul.f32 %v7438, %v7438
    %v7719 = vmul.f32 %v7439, %v7439
    %v7720 = vmul.f32 %v7440, %v7440
    %v7721 = vmul.f32 %v7441, %v7441
    %v7722 = vmul.f32 %v7442, %v7442
    %v7723 = vmul.f32 %v7443, %v7443
    %v7724 = vmul.f32 %v7444, %v7444
    %v7725 = vmul.f32 %v7445, %v7445
    %v7726 = vmul.f32 %v7446, %v7446
    %v7727 = vmul.f32 %v7447, %v7447
    %v7728 = vmul.f32 %v7448, %v7448
    %v7729 = vmul.f32 %v7449, %v7449
    %v7730 = vmul.f32 %v7450, %v7450
    %v7731 = vmul.f32 %v7451, %v7451
    %v7732 = vmul.f32 %v7452, %v7452
    %v7733 = vmul.f32 %v7453, %v7453
    %v7734 = vmul.f32 %v7454, %v7454
    %v7735 = vmul.f32 %v7455, %v7455
    %v7736 = vmul.f32 %v7456, %v7456
    %v7737 = vmul.f32 %v7457, %v7457
    %v7738 = vmul.f32 %v7458, %v7458
    %v7739 = vmul.f32 %v7459, %v7459
    %v7740 = vmul.f32 %v7460, %v7460
    %v7741 = vmul.f32 %v7461, %v7461
    %v7742 = vmul.f32 %v7462, %v7462
    %v7743 = vmul.f32 %v7463, %v7463
    %v7744 = vmul.f32 %v7464, %v7464
    %v7745 = vmul.f32 %v7465, %v7465
    %v7746 = vmul.f32 %v7466, %v7466
    %v7747 = vmul.f32 %v7467, %v7467
    %v7748 = vmul.f32 %v7468, %v7468
    %v7749 = vmul.f32 %v7469, %v7469
    %v7750 = vmul.f32 %v7470, %v7470
    %v7751 = vmul.f32 %v7471, %v7471
    %v7752 = vmul.f32 %v7472, %v7472
    %v7753 = vmul.f32 %v7473, %v7473
    %v7754 = vmul.f32 %v7474, %v7474
    %v7755 = vmul.f32 %v7475, %v7475
    %v7756 = vmul.f32 %v7476, %v7476
    %v7757 = vmul.f32 %v7477, %v7477
    %v7758 = vmul.f32 %v7478, %v7478
    %v7759 = vmul.f32 %v7479, %v7479
    %v7760 = vmul.f32 %v7480, %v7480
    %v7761 = vmul.f32 %v7481, %v7481
    %v7762 = vmul.f32 %v7482, %v7482
    %v7763 = vmul.f32 %v7483, %v7483
    %v7764 = vmul.f32 %v7484, %v7484
    %v7765 = vmul.f32 %v7485, %v7485
    %v7766 = vmul.f32 %v7486, %v7486
    %v7767 = vmul.f32 %v7487, %v7487
    %v7768 = vmul.f32 %v7488, %v7488
    %v7769 = vmul.f32 %v7489, %v7489
    %v7770 = vmul.f32 %v7490, %v7490
    %v7771 = vmul.f32 %v7491, %v7491
    %v7772 = vmul.f32 %v7492, %v7492
    %v7773 = vmul.f32 %v7493, %v7493
    %v7774 = vmul.f32 %v7494, %v7494
    %v7775 = vmul.f32 %v7495, %v7495
    %v7776 = vmul.f32 %v7496, %v7496
    %v7777 = vmul.f32 %v7497, %v7497
    %v7778 = vmul.f32 %v7498, %v7498
    %v7779 = vmul.f32 %v7499, %v7499
    %v7780 = vmul.f32 %v7500, %v7500
    %v7781 = vmul.f32 %v7501, %v7501
    %v7782 = vmul.f32 %v7502, %v7502
    %v7783 = vmul.f32 %v7503, %v7503
    %v7784 = vmul.f32 %v7504, %v7504
    %v7785 = vmul.f32 %v7505, %v7505
    %v7786 = vmul.f32 %v7506, %v7506
    %v7787 = vmul.f32 %v7507, %v7507
    %v7788 = vmul.f32 %v7508, %v7508
    %v7789 = vmul.f32 %v7509, %v7509
    %v7790 = vmul.f32 %v7510, %v7510
    %v7791 = vmul.f32 %v7511, %v7511
    %v7792 = vmul.f32 %v7512, %v7512
    %v7793 = vmul.f32 %v7513, %v7513
    %v7794 = vmul.f32 %v7514, %v7514
    %v7795 = vmul.f32 %v7515, %v7515
    %v7796 = vmul.f32 %v7516, %v7516
    %v7797 = vmul.f32 %v7517, %v7517
    %v7798 = vmul.f32 %v7518, %v7518
    %v7799 = vmul.f32 %v7519, %v7519
    %v7800 = vmul.f32 %v7520, %v7520
    %v7801 = vmul.f32 %v7521, %v7521
    %v7802 = vmul.f32 %v7522, %v7522
    %v7803 = vmul.f32 %v7523, %v7523
    %v7804 = vmul.f32 %v7524, %v7524
    %v7805 = vadd.f32 %v7677, %v7681
    %v7806 = vadd.f32 %v7805, %v7685
    %v7807 = vadd.f32 %v7806, %v7689
    %v7808 = vadd.f32 %v7807, %v7693
    %v7809 = vadd.f32 %v7808, %v7697
    %v7810 = vadd.f32 %v7809, %v7701
    %v7811 = vadd.f32 %v7810, %v7705
    %v7812 = vadd.f32 %v7811, %v7709
    %v7813 = vadd.f32 %v7812, %v7713
    %v7814 = vadd.f32 %v7813, %v7717
    %v7815 = vadd.f32 %v7814, %v7721
    %v7816 = vadd.f32 %v7815, %v7725
    %v7817 = vadd.f32 %v7816, %v7729
    %v7818 = vadd.f32 %v7817, %v7733
    %v7819 = vadd.f32 %v7818, %v7737
    %v7820 = vadd.f32 %v7819, %v7741
    %v7821 = vadd.f32 %v7820, %v7745
    %v7822 = vadd.f32 %v7821, %v7749
    %v7823 = vadd.f32 %v7822, %v7753
    %v7824 = vadd.f32 %v7823, %v7757
    %v7825 = vadd.f32 %v7824, %v7761
    %v7826 = vadd.f32 %v7825, %v7765
    %v7827 = vadd.f32 %v7826, %v7769
    %v7828 = vadd.f32 %v7827, %v7773
    %v7829 = vadd.f32 %v7828, %v7777
    %v7830 = vadd.f32 %v7829, %v7781
    %v7831 = vadd.f32 %v7830, %v7785
    %v7832 = vadd.f32 %v7831, %v7789
    %v7833 = vadd.f32 %v7832, %v7793
    %v7834 = vadd.f32 %v7833, %v7797
    %v7835 = vadd.f32 %v7834, %v7801
    %v7836 = vrot.slane %v7835, 4
    %v7837 = vadd.f32 %v7835, %v7836
    %v7838 = vrot.slane %v7837, 2
    %v7839 = vadd.f32 %v7837, %v7838
    %v7840 = vrot.slane %v7839, 1
    %v7841 = vadd.f32 %v7839, %v7840
    %v7842 = vadd.f32 %v7678, %v7682
    %v7843 = vadd.f32 %v7842, %v7686
    %v7844 = vadd.f32 %v7843, %v7690
    %v7845 = vadd.f32 %v7844, %v7694
    %v7846 = vadd.f32 %v7845, %v7698
    %v7847 = vadd.f32 %v7846, %v7702
    %v7848 = vadd.f32 %v7847, %v7706
    %v7849 = vadd.f32 %v7848, %v7710
    %v7850 = vadd.f32 %v7849, %v7714
    %v7851 = vadd.f32 %v7850, %v7718
    %v7852 = vadd.f32 %v7851, %v7722
    %v7853 = vadd.f32 %v7852, %v7726
    %v7854 = vadd.f32 %v7853, %v7730
    %v7855 = vadd.f32 %v7854, %v7734
    %v7856 = vadd.f32 %v7855, %v7738
    %v7857 = vadd.f32 %v7856, %v7742
    %v7858 = vadd.f32 %v7857, %v7746
    %v7859 = vadd.f32 %v7858, %v7750
    %v7860 = vadd.f32 %v7859, %v7754
    %v7861 = vadd.f32 %v7860, %v7758
    %v7862 = vadd.f32 %v7861, %v7762
    %v7863 = vadd.f32 %v7862, %v7766
    %v7864 = vadd.f32 %v7863, %v7770
    %v7865 = vadd.f32 %v7864, %v7774
    %v7866 = vadd.f32 %v7865, %v7778
    %v7867 = vadd.f32 %v7866, %v7782
    %v7868 = vadd.f32 %v7867, %v7786
    %v7869 = vadd.f32 %v7868, %v7790
    %v7870 = vadd.f32 %v7869, %v7794
    %v7871 = vadd.f32 %v7870, %v7798
    %v7872 = vadd.f32 %v7871, %v7802
    %v7873 = vrot.slane %v7872, 4
    %v7874 = vadd.f32 %v7872, %v7873
    %v7875 = vrot.slane %v7874, 2
    %v7876 = vadd.f32 %v7874, %v7875
    %v7877 = vrot.slane %v7876, 1
    %v7878 = vadd.f32 %v7876, %v7877
    %v7879 = vadd.f32 %v7679, %v7683
    %v7880 = vadd.f32 %v7879, %v7687
    %v7881 = vadd.f32 %v7880, %v7691
    %v7882 = vadd.f32 %v7881, %v7695
    %v7883 = vadd.f32 %v7882, %v7699
    %v7884 = vadd.f32 %v7883, %v7703
    %v7885 = vadd.f32 %v7884, %v7707
    %v7886 = vadd.f32 %v7885, %v7711
    %v7887 = vadd.f32 %v7886, %v7715
    %v7888 = vadd.f32 %v7887, %v7719
    %v7889 = vadd.f32 %v7888, %v7723
    %v7890 = vadd.f32 %v7889, %v7727
    %v7891 = vadd.f32 %v7890, %v7731
    %v7892 = vadd.f32 %v7891, %v7735
    %v7893 = vadd.f32 %v7892, %v7739
    %v7894 = vadd.f32 %v7893, %v7743
    %v7895 = vadd.f32 %v7894, %v7747
    %v7896 = vadd.f32 %v7895, %v7751
    %v7897 = vadd.f32 %v7896, %v7755
    %v7898 = vadd.f32 %v7897, %v7759
    %v7899 = vadd.f32 %v7898, %v7763
    %v7900 = vadd.f32 %v7899, %v7767
    %v7901 = vadd.f32 %v7900, %v7771
    %v7902 = vadd.f32 %v7901, %v7775
    %v7903 = vadd.f32 %v7902, %v7779
    %v7904 = vadd.f32 %v7903, %v7783
    %v7905 = vadd.f32 %v7904, %v7787
    %v7906 = vadd.f32 %v7905, %v7791
    %v7907 = vadd.f32 %v7906, %v7795
    %v7908 = vadd.f32 %v7907, %v7799
    %v7909 = vadd.f32 %v7908, %v7803
    %v7910 = vrot.slane %v7909, 4
    %v7911 = vadd.f32 %v7909, %v7910
    %v7912 = vrot.slane %v7911, 2
    %v7913 = vadd.f32 %v7911, %v7912
    %v7914 = vrot.slane %v7913, 1
    %v7915 = vadd.f32 %v7913, %v7914
    %v7916 = vadd.f32 %v7680, %v7684
    %v7917 = vadd.f32 %v7916, %v7688
    %v7918 = vadd.f32 %v7917, %v7692
    %v7919 = vadd.f32 %v7918, %v7696
    %v7920 = vadd.f32 %v7919, %v7700
    %v7921 = vadd.f32 %v7920, %v7704
    %v7922 = vadd.f32 %v7921, %v7708
    %v7923 = vadd.f32 %v7922, %v7712
    %v7924 = vadd.f32 %v7923, %v7716
    %v7925 = vadd.f32 %v7924, %v7720
    %v7926 = vadd.f32 %v7925, %v7724
    %v7927 = vadd.f32 %v7926, %v7728
    %v7928 = vadd.f32 %v7927, %v7732
    %v7929 = vadd.f32 %v7928, %v7736
    %v7930 = vadd.f32 %v7929, %v7740
    %v7931 = vadd.f32 %v7930, %v7744
    %v7932 = vadd.f32 %v7931, %v7748
    %v7933 = vadd.f32 %v7932, %v7752
    %v7934 = vadd.f32 %v7933, %v7756
    %v7935 = vadd.f32 %v7934, %v7760
    %v7936 = vadd.f32 %v7935, %v7764
    %v7937 = vadd.f32 %v7936, %v7768
    %v7938 = vadd.f32 %v7937, %v7772
    %v7939 = vadd.f32 %v7938, %v7776
    %v7940 = vadd.f32 %v7939, %v7780
    %v7941 = vadd.f32 %v7940, %v7784
    %v7942 = vadd.f32 %v7941, %v7788
    %v7943 = vadd.f32 %v7942, %v7792
    %v7944 = vadd.f32 %v7943, %v7796
    %v7945 = vadd.f32 %v7944, %v7800
    %v7946 = vadd.f32 %v7945, %v7804
    %v7947 = vrot.slane %v7946, 4
    %v7948 = vadd.f32 %v7946, %v7947
    %v7949 = vrot.slane %v7948, 2
    %v7950 = vadd.f32 %v7948, %v7949
    %v7951 = vrot.slane %v7950, 1
    %v7952 = vadd.f32 %v7950, %v7951
    %v7953 = vmul.f32 %v7841, 0.00390625
    %v7954 = vmul.f32 %v7878, 0.00390625
    %v7955 = vmul.f32 %v7915, 0.00390625
    %v7956 = vmul.f32 %v7952, 0.00390625
    %v7957 = vmul.f32 %v7673, %v7673
    %v7958 = vmul.f32 %v7674, %v7674
    %v7959 = vmul.f32 %v7675, %v7675
    %v7960 = vmul.f32 %v7676, %v7676
    %v7961 = vsub.f32 %v7953, %v7957
    %v7962 = vsub.f32 %v7954, %v7958
    %v7963 = vsub.f32 %v7955, %v7959
    %v7964 = vsub.f32 %v7956, %v7960
    %v7965 = vmax.f32 %v7961, 0.0
    %v7966 = vmax.f32 %v7962, 0.0
    %v7967 = vmax.f32 %v7963, 0.0
    %v7968 = vmax.f32 %v7964, 0.0
    %v7969 = vadd.f32 %v6837, %v7673
    %v7970 = vadd.f32 %v6839, %v7674
    %v7971 = vadd.f32 %v7223, %v7675
    %v7972 = vadd.f32 %v7225, %v7676
    %v7973 = vadd.f32 %v7965, 1e-05
    %v7974 = vadd.f32 %v7966, 1e-05
    %v7975 = vadd.f32 %v7967, 1e-05
    %v7976 = vadd.f32 %v7968, 1e-05
    %v7977 = vrsqrt.pop %v7973
    %v7978 = vrsqrt.pop %v7974
    %v7979 = vrsqrt.pop %v7975
    %v7980 = vrsqrt.pop %v7976
    %v7981 = vmul.f32 %v154, %v7977
    %v7982 = vmul.f32 %v155, %v7978
    %v7983 = vmul.f32 %v156, %v7979
    %v7984 = vmul.f32 %v157, %v7980
    %v7989 = vrot.slane %v7981, 4
    %v7990 = vrot.slane %v7982, 4
    %v7991 = vrot.slane %v7983, 4
    %v7992 = vrot.slane %v7984, 4
    %v7997 = vmul.f32 %v7969, %v7989
    %v7998 = vmul.f32 %v7970, %v7990
    %v7999 = vmul.f32 %v7971, %v7991
    %v8000 = vmul.f32 %v7972, %v7992
    %v8005 = vrot.slane %v7997, 3
    %v8006 = vrot.slane %v7998, 3
    %v8007 = vrot.slane %v7999, 3
    %v8008 = vrot.slane %v8000, 3
    %v8013 = vsub.f32 %v154, %v8005
    %v8014 = vsub.f32 %v155, %v8006
    %v8015 = vsub.f32 %v156, %v8007
    %v8016 = vsub.f32 %v157, %v8008
    %v8017 = vmul.f32 %v7981, %v7981
    %v8018 = vmul.f32 %v7982, %v7982
    %v8019 = vmul.f32 %v7983, %v7983
    %v8020 = vmul.f32 %v7984, %v7984
    %v8021 = vmul.f32 %v8017, %v7965
    %v8022 = vmul.f32 %v8018, %v7966
    %v8023 = vmul.f32 %v8019, %v7967
    %v8024 = vmul.f32 %v8020, %v7968
    %v8025 = vadd.f32 %v8021, 1e-05
    %v8026 = vadd.f32 %v8022, 1e-05
    %v8027 = vadd.f32 %v8023, 1e-05
    %v8028 = vadd.f32 %v8024, 1e-05
    %v8029 = vrsqrt.pop %v8025
    %v8030 = vrsqrt.pop %v8026
    %v8031 = vrsqrt.pop %v8027
    %v8032 = vrsqrt.pop %v8028
    %v8037 = vrot.slane %v8029, 6
    %v8038 = vrot.slane %v8030, 6
    %v8039 = vrot.slane %v8031, 6
    %v8040 = vrot.slane %v8032, 6
    %v8045 = vmul.f32 %v154, %v8037
    %v8046 = vmul.f32 %v155, %v8038
    %v8047 = vmul.f32 %v156, %v8039
    %v8048 = vmul.f32 %v157, %v8040
    %v8053 = vrot.slane %v8045, 1
    %v8054 = vrot.slane %v8046, 1
    %v8055 = vrot.slane %v8047, 1
    %v8056 = vrot.slane %v8048, 1
    %v8061 = vmul.f32 %v154, %v8053
    %v8062 = vmul.f32 %v155, %v8054
    %v8063 = vmul.f32 %v156, %v8055
    %v8064 = vmul.f32 %v157, %v8056
    %v8069 = vrot.slane %v8061, 6
    %v8070 = vrot.slane %v8062, 6
    %v8071 = vrot.slane %v8063, 6
    %v8072 = vrot.slane %v8064, 6
    %v8077 = vsub.f32 %v154, %v8069
    %v8078 = vsub.f32 %v155, %v8070
    %v8079 = vsub.f32 %v156, %v8071
    %v8080 = vsub.f32 %v157, %v8072
    %v8081 = vrot.slane %v8045, 2
    %v8082 = vrot.slane %v8046, 2
    %v8083 = vrot.slane %v8047, 2
    %v8084 = vrot.slane %v8048, 2
    %v8089 = vmul.f32 %v7981, %v8081
    %v8090 = vmul.f32 %v7982, %v8082
    %v8091 = vmul.f32 %v7983, %v8083
    %v8092 = vmul.f32 %v7984, %v8084
    %v8093 = vlaneseq
    %v8094 = vshrl.u32 %v8093, 7
    %v8095 = vsub.s32 4, %v8094
    %v8096 = vrot.slane %v8089, %v8095
    %v8097 = vlaneseq
    %v8098 = vshrl.u32 %v8097, 7
    %v8099 = vsub.s32 4, %v8098
    %v8100 = vrot.slane %v8090, %v8099
    %v8101 = vlaneseq
    %v8102 = vshrl.u32 %v8101, 7
    %v8103 = vsub.s32 4, %v8102
    %v8104 = vrot.slane %v8091, %v8103
    %v8105 = vlaneseq
    %v8106 = vshrl.u32 %v8105, 7
    %v8107 = vsub.s32 4, %v8106
    %v8108 = vrot.slane %v8092, %v8107
    %v8109 = vmul.f32 %v6837, %v8096
    %v8110 = vmul.f32 %v6839, %v8100
    %v8111 = vmul.f32 %v7223, %v8104
    %v8112 = vmul.f32 %v7225, %v8108
    %v8113 = vmul.f32 %v6841, %v8096
    %v8114 = vmul.f32 %v6843, %v8100
    %v8115 = vmul.f32 %v7227, %v8104
    %v8116 = vmul.f32 %v7229, %v8108
    %v8117 = vmul.f32 %v6847, %v8096
    %v8118 = vmul.f32 %v6849, %v8100
    %v8119 = vmul.f32 %v7233, %v8104
    %v8120 = vmul.f32 %v7235, %v8108
    %v8121 = vmul.f32 %v6851, %v8096
    %v8122 = vmul.f32 %v6853, %v8100
    %v8123 = vmul.f32 %v7237, %v8104
    %v8124 = vmul.f32 %v7239, %v8108
    %v8125 = vmul.f32 %v6857, %v8096
    %v8126 = vmul.f32 %v6859, %v8100
    %v8127 = vmul.f32 %v7243, %v8104
    %v8128 = vmul.f32 %v7245, %v8108
    %v8129 = vmul.f32 %v6861, %v8096
    %v8130 = vmul.f32 %v6863, %v8100
    %v8131 = vmul.f32 %v7247, %v8104
    %v8132 = vmul.f32 %v7249, %v8108
    %v8133 = vmul.f32 %v6867, %v8096
    %v8134 = vmul.f32 %v6869, %v8100
    %v8135 = vmul.f32 %v7253, %v8104
    %v8136 = vmul.f32 %v7255, %v8108
    %v8137 = vmul.f32 %v6871, %v8096
    %v8138 = vmul.f32 %v6873, %v8100
    %v8139 = vmul.f32 %v7257, %v8104
    %v8140 = vmul.f32 %v7259, %v8108
    %v8141 = vmul.f32 %v6877, %v8096
    %v8142 = vmul.f32 %v6879, %v8100
    %v8143 = vmul.f32 %v7263, %v8104
    %v8144 = vmul.f32 %v7265, %v8108
    %v8145 = vmul.f32 %v6881, %v8096
    %v8146 = vmul.f32 %v6883, %v8100
    %v8147 = vmul.f32 %v7267, %v8104
    %v8148 = vmul.f32 %v7269, %v8108
    %v8149 = vmul.f32 %v6887, %v8096
    %v8150 = vmul.f32 %v6889, %v8100
    %v8151 = vmul.f32 %v7273, %v8104
    %v8152 = vmul.f32 %v7275, %v8108
    %v8153 = vmul.f32 %v6891, %v8096
    %v8154 = vmul.f32 %v6893, %v8100
    %v8155 = vmul.f32 %v7277, %v8104
    %v8156 = vmul.f32 %v7279, %v8108
    %v8157 = vmul.f32 %v6897, %v8096
    %v8158 = vmul.f32 %v6899, %v8100
    %v8159 = vmul.f32 %v7283, %v8104
    %v8160 = vmul.f32 %v7285, %v8108
    %v8161 = vmul.f32 %v6901, %v8096
    %v8162 = vmul.f32 %v6903, %v8100
    %v8163 = vmul.f32 %v7287, %v8104
    %v8164 = vmul.f32 %v7289, %v8108
    %v8165 = vmul.f32 %v6907, %v8096
    %v8166 = vmul.f32 %v6909, %v8100
    %v8167 = vmul.f32 %v7293, %v8104
    %v8168 = vmul.f32 %v7295, %v8108
    %v8169 = vmul.f32 %v6911, %v8096
    %v8170 = vmul.f32 %v6913, %v8100
    %v8171 = vmul.f32 %v7297, %v8104
    %v8172 = vmul.f32 %v7299, %v8108
    %v8173 = vmul.f32 %v6917, %v8096
    %v8174 = vmul.f32 %v6919, %v8100
    %v8175 = vmul.f32 %v7303, %v8104
    %v8176 = vmul.f32 %v7305, %v8108
    %v8177 = vmul.f32 %v6921, %v8096
    %v8178 = vmul.f32 %v6923, %v8100
    %v8179 = vmul.f32 %v7307, %v8104
    %v8180 = vmul.f32 %v7309, %v8108
    %v8181 = vmul.f32 %v6927, %v8096
    %v8182 = vmul.f32 %v6929, %v8100
    %v8183 = vmul.f32 %v7313, %v8104
    %v8184 = vmul.f32 %v7315, %v8108
    %v8185 = vmul.f32 %v6931, %v8096
    %v8186 = vmul.f32 %v6933, %v8100
    %v8187 = vmul.f32 %v7317, %v8104
    %v8188 = vmul.f32 %v7319, %v8108
    %v8189 = vmul.f32 %v6937, %v8096
    %v8190 = vmul.f32 %v6939, %v8100
    %v8191 = vmul.f32 %v7323, %v8104
    %v8192 = vmul.f32 %v7325, %v8108
    %v8193 = vmul.f32 %v6941, %v8096
    %v8194 = vmul.f32 %v6943, %v8100
    %v8195 = vmul.f32 %v7327, %v8104
    %v8196 = vmul.f32 %v7329, %v8108
    %v8197 = vmul.f32 %v6947, %v8096
    %v8198 = vmul.f32 %v6949, %v8100
    %v8199 = vmul.f32 %v7333, %v8104
    %v8200 = vmul.f32 %v7335, %v8108
    %v8201 = vmul.f32 %v6951, %v8096
    %v8202 = vmul.f32 %v6953, %v8100
    %v8203 = vmul.f32 %v7337, %v8104
    %v8204 = vmul.f32 %v7339, %v8108
    %v8205 = vmul.f32 %v6957, %v8096
    %v8206 = vmul.f32 %v6959, %v8100
    %v8207 = vmul.f32 %v7343, %v8104
    %v8208 = vmul.f32 %v7345, %v8108
    %v8209 = vmul.f32 %v6961, %v8096
    %v8210 = vmul.f32 %v6963, %v8100
    %v8211 = vmul.f32 %v7347, %v8104
    %v8212 = vmul.f32 %v7349, %v8108
    %v8213 = vmul.f32 %v6967, %v8096
    %v8214 = vmul.f32 %v6969, %v8100
    %v8215 = vmul.f32 %v7353, %v8104
    %v8216 = vmul.f32 %v7355, %v8108
    %v8217 = vmul.f32 %v6971, %v8096
    %v8218 = vmul.f32 %v6973, %v8100
    %v8219 = vmul.f32 %v7357, %v8104
    %v8220 = vmul.f32 %v7359, %v8108
    %v8221 = vmul.f32 %v6977, %v8096
    %v8222 = vmul.f32 %v6979, %v8100
    %v8223 = vmul.f32 %v7363, %v8104
    %v8224 = vmul.f32 %v7365, %v8108
    %v8225 = vmul.f32 %v6981, %v8096
    %v8226 = vmul.f32 %v6983, %v8100
    %v8227 = vmul.f32 %v7367, %v8104
    %v8228 = vmul.f32 %v7369, %v8108
    %v8229 = vmul.f32 %v6987, %v8096
    %v8230 = vmul.f32 %v6989, %v8100
    %v8231 = vmul.f32 %v7373, %v8104
    %v8232 = vmul.f32 %v7375, %v8108
    %v8233 = vmul.f32 %v6991, %v8096
    %v8234 = vmul.f32 %v6993, %v8100
    %v8235 = vmul.f32 %v7377, %v8104
    %v8236 = vmul.f32 %v7379, %v8108
    %v8237 = vmul.f32 %v8013, %v8053
    %v8238 = vmul.f32 %v8014, %v8054
    %v8239 = vmul.f32 %v8015, %v8055
    %v8240 = vmul.f32 %v8016, %v8056
    %v8245 = vrot.slane %v8077, 2
    %v8246 = vrot.slane %v8078, 2
    %v8247 = vrot.slane %v8079, 2
    %v8248 = vrot.slane %v8080, 2
    %v8253 = vadd.f32 %v8237, %v8245
    %v8254 = vadd.f32 %v8238, %v8246
    %v8255 = vadd.f32 %v8239, %v8247
    %v8256 = vadd.f32 %v8240, %v8248
    %v8257 = vlaneseq
    %v8258 = vshrl.u32 %v8257, 7
    %v8259 = vsub.s32 5, %v8258
    %v8260 = vrot.slane %v8253, %v8259
    %v8261 = vlaneseq
    %v8262 = vshrl.u32 %v8261, 7
    %v8263 = vsub.s32 5, %v8262
    %v8264 = vrot.slane %v8254, %v8263
    %v8265 = vlaneseq
    %v8266 = vshrl.u32 %v8265, 7
    %v8267 = vsub.s32 5, %v8266
    %v8268 = vrot.slane %v8255, %v8267
    %v8269 = vlaneseq
    %v8270 = vshrl.u32 %v8269, 7
    %v8271 = vsub.s32 5, %v8270
    %v8272 = vrot.slane %v8256, %v8271
    %v8273 = vadd.f32 %v8109, %v8260
    %v8274 = vadd.f32 %v8110, %v8264
    %v8275 = vadd.f32 %v8111, %v8268
    %v8276 = vadd.f32 %v8112, %v8272
    %v8277 = vadd.f32 %v8113, %v8260
    %v8278 = vadd.f32 %v8114, %v8264
    %v8279 = vadd.f32 %v8115, %v8268
    %v8280 = vadd.f32 %v8116, %v8272
    %v8281 = vadd.f32 %v8117, %v8260
    %v8282 = vadd.f32 %v8118, %v8264
    %v8283 = vadd.f32 %v8119, %v8268
    %v8284 = vadd.f32 %v8120, %v8272
    %v8285 = vadd.f32 %v8121, %v8260
    %v8286 = vadd.f32 %v8122, %v8264
    %v8287 = vadd.f32 %v8123, %v8268
    %v8288 = vadd.f32 %v8124, %v8272
    %v8289 = vadd.f32 %v8125, %v8260
    %v8290 = vadd.f32 %v8126, %v8264
    %v8291 = vadd.f32 %v8127, %v8268
    %v8292 = vadd.f32 %v8128, %v8272
    %v8293 = vadd.f32 %v8129, %v8260
    %v8294 = vadd.f32 %v8130, %v8264
    %v8295 = vadd.f32 %v8131, %v8268
    %v8296 = vadd.f32 %v8132, %v8272
    %v8297 = vadd.f32 %v8133, %v8260
    %v8298 = vadd.f32 %v8134, %v8264
    %v8299 = vadd.f32 %v8135, %v8268
    %v8300 = vadd.f32 %v8136, %v8272
    %v8301 = vadd.f32 %v8137, %v8260
    %v8302 = vadd.f32 %v8138, %v8264
    %v8303 = vadd.f32 %v8139, %v8268
    %v8304 = vadd.f32 %v8140, %v8272
    %v8305 = vadd.f32 %v8141, %v8260
    %v8306 = vadd.f32 %v8142, %v8264
    %v8307 = vadd.f32 %v8143, %v8268
    %v8308 = vadd.f32 %v8144, %v8272
    %v8309 = vadd.f32 %v8145, %v8260
    %v8310 = vadd.f32 %v8146, %v8264
    %v8311 = vadd.f32 %v8147, %v8268
    %v8312 = vadd.f32 %v8148, %v8272
    %v8313 = vadd.f32 %v8149, %v8260
    %v8314 = vadd.f32 %v8150, %v8264
    %v8315 = vadd.f32 %v8151, %v8268
    %v8316 = vadd.f32 %v8152, %v8272
    %v8317 = vadd.f32 %v8153, %v8260
    %v8318 = vadd.f32 %v8154, %v8264
    %v8319 = vadd.f32 %v8155, %v8268
    %v8320 = vadd.f32 %v8156, %v8272
    %v8321 = vadd.f32 %v8157, %v8260
    %v8322 = vadd.f32 %v8158, %v8264
    %v8323 = vadd.f32 %v8159, %v8268
    %v8324 = vadd.f32 %v8160, %v8272
    %v8325 = vadd.f32 %v8161, %v8260
    %v8326 = vadd.f32 %v8162, %v8264
    %v8327 = vadd.f32 %v8163, %v8268
    %v8328 = vadd.f32 %v8164, %v8272
    %v8329 = vadd.f32 %v8165, %v8260
    %v8330 = vadd.f32 %v8166, %v8264
    %v8331 = vadd.f32 %v8167, %v8268
    %v8332 = vadd.f32 %v8168, %v8272
    %v8333 = vadd.f32 %v8169, %v8260
    %v8334 = vadd.f32 %v8170, %v8264
    %v8335 = vadd.f32 %v8171, %v8268
    %v8336 = vadd.f32 %v8172, %v8272
    %v8337 = vadd.f32 %v8173, %v8260
    %v8338 = vadd.f32 %v8174, %v8264
    %v8339 = vadd.f32 %v8175, %v8268
    %v8340 = vadd.f32 %v8176, %v8272
    %v8341 = vadd.f32 %v8177, %v8260
    %v8342 = vadd.f32 %v8178, %v8264
    %v8343 = vadd.f32 %v8179, %v8268
    %v8344 = vadd.f32 %v8180, %v8272
    %v8345 = vadd.f32 %v8181, %v8260
    %v8346 = vadd.f32 %v8182, %v8264
    %v8347 = vadd.f32 %v8183, %v8268
    %v8348 = vadd.f32 %v8184, %v8272
    %v8349 = vadd.f32 %v8185, %v8260
    %v8350 = vadd.f32 %v8186, %v8264
    %v8351 = vadd.f32 %v8187, %v8268
    %v8352 = vadd.f32 %v8188, %v8272
    %v8353 = vadd.f32 %v8189, %v8260
    %v8354 = vadd.f32 %v8190, %v8264
    %v8355 = vadd.f32 %v8191, %v8268
    %v8356 = vadd.f32 %v8192, %v8272
    %v8357 = vadd.f32 %v8193, %v8260
    %v8358 = vadd.f32 %v8194, %v8264
    %v8359 = vadd.f32 %v8195, %v8268
    %v8360 = vadd.f32 %v8196, %v8272
    %v8361 = vadd.f32 %v8197, %v8260
    %v8362 = vadd.f32 %v8198, %v8264
    %v8363 = vadd.f32 %v8199, %v8268
    %v8364 = vadd.f32 %v8200, %v8272
    %v8365 = vadd.f32 %v8201, %v8260
    %v8366 = vadd.f32 %v8202, %v8264
    %v8367 = vadd.f32 %v8203, %v8268
    %v8368 = vadd.f32 %v8204, %v8272
    %v8369 = vadd.f32 %v8205, %v8260
    %v8370 = vadd.f32 %v8206, %v8264
    %v8371 = vadd.f32 %v8207, %v8268
    %v8372 = vadd.f32 %v8208, %v8272
    %v8373 = vadd.f32 %v8209, %v8260
    %v8374 = vadd.f32 %v8210, %v8264
    %v8375 = vadd.f32 %v8211, %v8268
    %v8376 = vadd.f32 %v8212, %v8272
    %v8377 = vadd.f32 %v8213, %v8260
    %v8378 = vadd.f32 %v8214, %v8264
    %v8379 = vadd.f32 %v8215, %v8268
    %v8380 = vadd.f32 %v8216, %v8272
    %v8381 = vadd.f32 %v8217, %v8260
    %v8382 = vadd.f32 %v8218, %v8264
    %v8383 = vadd.f32 %v8219, %v8268
    %v8384 = vadd.f32 %v8220, %v8272
    %v8385 = vadd.f32 %v8221, %v8260
    %v8386 = vadd.f32 %v8222, %v8264
    %v8387 = vadd.f32 %v8223, %v8268
    %v8388 = vadd.f32 %v8224, %v8272
    %v8389 = vadd.f32 %v8225, %v8260
    %v8390 = vadd.f32 %v8226, %v8264
    %v8391 = vadd.f32 %v8227, %v8268
    %v8392 = vadd.f32 %v8228, %v8272
    %v8393 = vadd.f32 %v8229, %v8260
    %v8394 = vadd.f32 %v8230, %v8264
    %v8395 = vadd.f32 %v8231, %v8268
    %v8396 = vadd.f32 %v8232, %v8272
    %v8397 = vadd.f32 %v8233, %v8260
    %v8398 = vadd.f32 %v8234, %v8264
    %v8399 = vadd.f32 %v8235, %v8268
    %v8400 = vadd.f32 %v8236, %v8272
    %v8401 = vpack.c.bf16 %v8277, %v8273
    %v8402 = vpack.c.bf16 %v8278, %v8274
    %v8403 = vpack.c.bf16 %v8279, %v8275
    %v8404 = vpack.c.bf16 %v8280, %v8276
    %v8405 = vpack.c.bf16 %v8285, %v8281
    %v8406 = vpack.c.bf16 %v8286, %v8282
    %v8407 = vpack.c.bf16 %v8287, %v8283
    %v8408 = vpack.c.bf16 %v8288, %v8284
    %v8409 = vpack.c.bf16 %v8293, %v8289
    %v8410 = vpack.c.bf16 %v8294, %v8290
    %v8411 = vpack.c.bf16 %v8295, %v8291
    %v8412 = vpack.c.bf16 %v8296, %v8292
    %v8413 = vpack.c.bf16 %v8301, %v8297
    %v8414 = vpack.c.bf16 %v8302, %v8298
    %v8415 = vpack.c.bf16 %v8303, %v8299
    %v8416 = vpack.c.bf16 %v8304, %v8300
    %v8417 = vpack.c.bf16 %v8309, %v8305
    %v8418 = vpack.c.bf16 %v8310, %v8306
    %v8419 = vpack.c.bf16 %v8311, %v8307
    %v8420 = vpack.c.bf16 %v8312, %v8308
    %v8421 = vpack.c.bf16 %v8317, %v8313
    %v8422 = vpack.c.bf16 %v8318, %v8314
    %v8423 = vpack.c.bf16 %v8319, %v8315
    %v8424 = vpack.c.bf16 %v8320, %v8316
    %v8425 = vpack.c.bf16 %v8325, %v8321
    %v8426 = vpack.c.bf16 %v8326, %v8322
    %v8427 = vpack.c.bf16 %v8327, %v8323
    %v8428 = vpack.c.bf16 %v8328, %v8324
    %v8429 = vpack.c.bf16 %v8333, %v8329
    %v8430 = vpack.c.bf16 %v8334, %v8330
    %v8431 = vpack.c.bf16 %v8335, %v8331
    %v8432 = vpack.c.bf16 %v8336, %v8332
    %v8433 = vpack.c.bf16 %v8341, %v8337
    %v8434 = vpack.c.bf16 %v8342, %v8338
    %v8435 = vpack.c.bf16 %v8343, %v8339
    %v8436 = vpack.c.bf16 %v8344, %v8340
    %v8437 = vpack.c.bf16 %v8349, %v8345
    %v8438 = vpack.c.bf16 %v8350, %v8346
    %v8439 = vpack.c.bf16 %v8351, %v8347
    %v8440 = vpack.c.bf16 %v8352, %v8348
    %v8441 = vpack.c.bf16 %v8357, %v8353
    %v8442 = vpack.c.bf16 %v8358, %v8354
    %v8443 = vpack.c.bf16 %v8359, %v8355
    %v8444 = vpack.c.bf16 %v8360, %v8356
    %v8445 = vpack.c.bf16 %v8365, %v8361
    %v8446 = vpack.c.bf16 %v8366, %v8362
    %v8447 = vpack.c.bf16 %v8367, %v8363
    %v8448 = vpack.c.bf16 %v8368, %v8364
    %v8449 = vpack.c.bf16 %v8373, %v8369
    %v8450 = vpack.c.bf16 %v8374, %v8370
    %v8451 = vpack.c.bf16 %v8375, %v8371
    %v8452 = vpack.c.bf16 %v8376, %v8372
    %v8453 = vpack.c.bf16 %v8381, %v8377
    %v8454 = vpack.c.bf16 %v8382, %v8378
    %v8455 = vpack.c.bf16 %v8383, %v8379
    %v8456 = vpack.c.bf16 %v8384, %v8380
    %v8457 = vpack.c.bf16 %v8389, %v8385
    %v8458 = vpack.c.bf16 %v8390, %v8386
    %v8459 = vpack.c.bf16 %v8391, %v8387
    %v8460 = vpack.c.bf16 %v8392, %v8388
    %v8461 = vpack.c.bf16 %v8397, %v8393
    %v8462 = vpack.c.bf16 %v8398, %v8394
    %v8463 = vpack.c.bf16 %v8399, %v8395
    %v8464 = vpack.c.bf16 %v8400, %v8396
    %v8465 = vld [vmem:[#allocation9] sm:$0xf]
    %v8466 = vld [vmem:[#allocation9 + $0x4] sm:$0xf]
    %v8467 = vld [vmem:[#allocation9 + $0x8] sm:$0xf]
    %v8468 = vld [vmem:[#allocation9 + $0xc] sm:$0xf]
    %v8469 = vld [vmem:[#allocation9 + $0x10] sm:$0xf]
    %v8470 = vld [vmem:[#allocation9 + $0x14] sm:$0xf]
    %v8471 = vld [vmem:[#allocation9 + $0x18] sm:$0xf]
    %v8472 = vld [vmem:[#allocation9 + $0x1c] sm:$0xf]
    %v8473 = vld [vmem:[#allocation9 + $0x20] sm:$0xf]
    %v8474 = vld [vmem:[#allocation9 + $0x24] sm:$0xf]
    %v8475 = vld [vmem:[#allocation9 + $0x28] sm:$0xf]
    %v8476 = vld [vmem:[#allocation9 + $0x2c] sm:$0xf]
    %v8477 = vld [vmem:[#allocation9 + $0x30] sm:$0xf]
    %v8478 = vld [vmem:[#allocation9 + $0x34] sm:$0xf]
    %v8479 = vld [vmem:[#allocation9 + $0x38] sm:$0xf]
    %v8480 = vld [vmem:[#allocation9 + $0x3c] sm:$0xf]
    %v8481 = vld [vmem:[#allocation9 + $0x40] sm:$0xf]
    %v8482 = vld [vmem:[#allocation9 + $0x44] sm:$0xf]
    %v8483 = vld [vmem:[#allocation9 + $0x48] sm:$0xf]
    %v8484 = vld [vmem:[#allocation9 + $0x4c] sm:$0xf]
    %v8485 = vld [vmem:[#allocation9 + $0x50] sm:$0xf]
    %v8486 = vld [vmem:[#allocation9 + $0x54] sm:$0xf]
    %v8487 = vld [vmem:[#allocation9 + $0x58] sm:$0xf]
    %v8488 = vld [vmem:[#allocation9 + $0x5c] sm:$0xf]
    %v8489 = vld [vmem:[#allocation9 + $0x60] sm:$0xf]
    %v8490 = vld [vmem:[#allocation9 + $0x64] sm:$0xf]
    %v8491 = vld [vmem:[#allocation9 + $0x68] sm:$0xf]
    %v8492 = vld [vmem:[#allocation9 + $0x6c] sm:$0xf]
    %v8493 = vld [vmem:[#allocation9 + $0x70] sm:$0xf]
    %v8494 = vld [vmem:[#allocation9 + $0x74] sm:$0xf]
    %v8495 = vld [vmem:[#allocation9 + $0x78] sm:$0xf]
    %v8496 = vld [vmem:[#allocation9 + $0x7c] sm:$0xf]
    %v8497 = vld [vmem:[#allocation9 + $0x80] sm:$0xf]
    %v8498 = vld [vmem:[#allocation9 + $0x84] sm:$0xf]
    %v8499 = vld [vmem:[#allocation9 + $0x88] sm:$0xf]
    %v8500 = vld [vmem:[#allocation9 + $0x8c] sm:$0xf]
    %v8501 = vld [vmem:[#allocation9 + $0x90] sm:$0xf]
    %v8502 = vld [vmem:[#allocation9 + $0x94] sm:$0xf]
    %v8503 = vld [vmem:[#allocation9 + $0x98] sm:$0xf]
    %v8504 = vld [vmem:[#allocation9 + $0x9c] sm:$0xf]
    %v8505 = vld [vmem:[#allocation9 + $0xa0] sm:$0xf]
    %v8506 = vld [vmem:[#allocation9 + $0xa4] sm:$0xf]
    %v8507 = vld [vmem:[#allocation9 + $0xa8] sm:$0xf]
    %v8508 = vld [vmem:[#allocation9 + $0xac] sm:$0xf]
    %v8509 = vld [vmem:[#allocation9 + $0xb0] sm:$0xf]
    %v8510 = vld [vmem:[#allocation9 + $0xb4] sm:$0xf]
    %v8511 = vld [vmem:[#allocation9 + $0xb8] sm:$0xf]
    %v8512 = vld [vmem:[#allocation9 + $0xbc] sm:$0xf]
    %v8513 = vld [vmem:[#allocation9 + $0xc0] sm:$0xf]
    %v8514 = vld [vmem:[#allocation9 + $0xc4] sm:$0xf]
    %v8515 = vld [vmem:[#allocation9 + $0xc8] sm:$0xf]
    %v8516 = vld [vmem:[#allocation9 + $0xcc] sm:$0xf]
    %v8517 = vld [vmem:[#allocation9 + $0xd0] sm:$0xf]
    %v8518 = vld [vmem:[#allocation9 + $0xd4] sm:$0xf]
    %v8519 = vld [vmem:[#allocation9 + $0xd8] sm:$0xf]
    %v8520 = vld [vmem:[#allocation9 + $0xdc] sm:$0xf]
    %v8521 = vld [vmem:[#allocation9 + $0xe0] sm:$0xf]
    %v8522 = vld [vmem:[#allocation9 + $0xe4] sm:$0xf]
    %v8523 = vld [vmem:[#allocation9 + $0xe8] sm:$0xf]
    %v8524 = vld [vmem:[#allocation9 + $0xec] sm:$0xf]
    %v8525 = vld [vmem:[#allocation9 + $0xf0] sm:$0xf]
    %v8526 = vld [vmem:[#allocation9 + $0xf4] sm:$0xf]
    %v8527 = vld [vmem:[#allocation9 + $0xf8] sm:$0xf]
    %v8528 = vld [vmem:[#allocation9 + $0xfc] sm:$0xf]
    %v8593 = vunpack.c.l.b16 %v8465
    %v8594 = vunpack.c.l.b16 %v8466
    %v8595 = vunpack.c.l.b16 %v8467
    %v8596 = vunpack.c.l.b16 %v8468
    %v8597 = vunpack.c.l.b16 %v8469
    %v8598 = vunpack.c.l.b16 %v8470
    %v8599 = vunpack.c.l.b16 %v8471
    %v8600 = vunpack.c.l.b16 %v8472
    %v8601 = vunpack.c.l.b16 %v8473
    %v8602 = vunpack.c.l.b16 %v8474
    %v8603 = vunpack.c.l.b16 %v8475
    %v8604 = vunpack.c.l.b16 %v8476
    %v8605 = vunpack.c.l.b16 %v8477
    %v8606 = vunpack.c.l.b16 %v8478
    %v8607 = vunpack.c.l.b16 %v8479
    %v8608 = vunpack.c.l.b16 %v8480
    %v8609 = vunpack.c.l.b16 %v8481
    %v8610 = vunpack.c.l.b16 %v8482
    %v8611 = vunpack.c.l.b16 %v8483
    %v8612 = vunpack.c.l.b16 %v8484
    %v8613 = vunpack.c.l.b16 %v8485
    %v8614 = vunpack.c.l.b16 %v8486
    %v8615 = vunpack.c.l.b16 %v8487
    %v8616 = vunpack.c.l.b16 %v8488
    %v8617 = vunpack.c.l.b16 %v8489
    %v8618 = vunpack.c.l.b16 %v8490
    %v8619 = vunpack.c.l.b16 %v8491
    %v8620 = vunpack.c.l.b16 %v8492
    %v8621 = vunpack.c.l.b16 %v8493
    %v8622 = vunpack.c.l.b16 %v8494
    %v8623 = vunpack.c.l.b16 %v8495
    %v8624 = vunpack.c.l.b16 %v8496
    %v8625 = vunpack.c.l.b16 %v8497
    %v8626 = vunpack.c.l.b16 %v8498
    %v8627 = vunpack.c.l.b16 %v8499
    %v8628 = vunpack.c.l.b16 %v8500
    %v8629 = vunpack.c.l.b16 %v8501
    %v8630 = vunpack.c.l.b16 %v8502
    %v8631 = vunpack.c.l.b16 %v8503
    %v8632 = vunpack.c.l.b16 %v8504
    %v8633 = vunpack.c.l.b16 %v8505
    %v8634 = vunpack.c.l.b16 %v8506
    %v8635 = vunpack.c.l.b16 %v8507
    %v8636 = vunpack.c.l.b16 %v8508
    %v8637 = vunpack.c.l.b16 %v8509
    %v8638 = vunpack.c.l.b16 %v8510
    %v8639 = vunpack.c.l.b16 %v8511
    %v8640 = vunpack.c.l.b16 %v8512
    %v8641 = vunpack.c.l.b16 %v8513
    %v8642 = vunpack.c.l.b16 %v8514
    %v8643 = vunpack.c.l.b16 %v8515
    %v8644 = vunpack.c.l.b16 %v8516
    %v8645 = vunpack.c.l.b16 %v8517
    %v8646 = vunpack.c.l.b16 %v8518
    %v8647 = vunpack.c.l.b16 %v8519
    %v8648 = vunpack.c.l.b16 %v8520
    %v8649 = vunpack.c.l.b16 %v8521
    %v8650 = vunpack.c.l.b16 %v8522
    %v8651 = vunpack.c.l.b16 %v8523
    %v8652 = vunpack.c.l.b16 %v8524
    %v8653 = vunpack.c.l.b16 %v8525
    %v8654 = vunpack.c.l.b16 %v8526
    %v8655 = vunpack.c.l.b16 %v8527
    %v8656 = vunpack.c.l.b16 %v8528
    %v8657 = vpack.c.b16 %v8594, %v8593
    %v8658 = vpack.c.b16 %v8596, %v8595
    %v8659 = vpack.c.b16 %v8598, %v8597
    %v8660 = vpack.c.b16 %v8600, %v8599
    %v8661 = vpack.c.b16 %v8602, %v8601
    %v8662 = vpack.c.b16 %v8604, %v8603
    %v8663 = vpack.c.b16 %v8606, %v8605
    %v8664 = vpack.c.b16 %v8608, %v8607
    %v8665 = vpack.c.b16 %v8610, %v8609
    %v8666 = vpack.c.b16 %v8612, %v8611
    %v8667 = vpack.c.b16 %v8614, %v8613
    %v8668 = vpack.c.b16 %v8616, %v8615
    %v8669 = vpack.c.b16 %v8618, %v8617
    %v8670 = vpack.c.b16 %v8620, %v8619
    %v8671 = vpack.c.b16 %v8622, %v8621
    %v8672 = vpack.c.b16 %v8624, %v8623
    %v8673 = vpack.c.b16 %v8626, %v8625
    %v8674 = vpack.c.b16 %v8628, %v8627
    %v8675 = vpack.c.b16 %v8630, %v8629
    %v8676 = vpack.c.b16 %v8632, %v8631
    %v8677 = vpack.c.b16 %v8634, %v8633
    %v8678 = vpack.c.b16 %v8636, %v8635
    %v8679 = vpack.c.b16 %v8638, %v8637
    %v8680 = vpack.c.b16 %v8640, %v8639
    %v8681 = vpack.c.b16 %v8642, %v8641
    %v8682 = vpack.c.b16 %v8644, %v8643
    %v8683 = vpack.c.b16 %v8646, %v8645
    %v8684 = vpack.c.b16 %v8648, %v8647
    %v8685 = vpack.c.b16 %v8650, %v8649
    %v8686 = vpack.c.b16 %v8652, %v8651
    %v8687 = vpack.c.b16 %v8654, %v8653
    %v8688 = vpack.c.b16 %v8656, %v8655
    %8721 = vmatprep.subr.bf16.mxu0 0
    %8722 = vmatpush1.bf16.msra.mxu0 %v8657
    %8723 = vmatprep.subr.bf16.mxu0 0
    %8724 = vmatpush1.bf16.msra.mxu0 %v8658
    %8725 = vmatprep.subr.bf16.mxu0 0
    %8726 = vmatpush1.bf16.msra.mxu0 %v8659
    %8727 = vmatprep.subr.bf16.mxu0 0
    %8728 = vmatpush1.bf16.msra.mxu0 %v8660
    %8729 = vmatprep.subr.bf16.mxu0 0
    %8730 = vmatpush1.bf16.msra.mxu0 %v8661
    %8731 = vmatprep.subr.bf16.mxu0 0
    %8732 = vmatpush1.bf16.msra.mxu0 %v8662
    %8733 = vmatprep.subr.bf16.mxu0 0
    %8734 = vmatpush1.bf16.msra.mxu0 %v8663
    %8735 = vmatprep.subr.bf16.mxu0 0
    %8736 = vmatpush1.bf16.msra.mxu0 %v8664
    %8737 = vmatprep.subr.bf16.mxu0 0
    %8738 = vmatpush1.bf16.msra.mxu0 %v8665
    %8739 = vmatprep.subr.bf16.mxu0 0
    %8740 = vmatpush1.bf16.msra.mxu0 %v8666
    %8741 = vmatprep.subr.bf16.mxu0 0
    %8742 = vmatpush1.bf16.msra.mxu0 %v8667
    %8743 = vmatprep.subr.bf16.mxu0 0
    %8744 = vmatpush1.bf16.msra.mxu0 %v8668
    %8745 = vmatprep.subr.bf16.mxu0 0
    %8746 = vmatpush1.bf16.msra.mxu0 %v8669
    %8747 = vmatprep.subr.bf16.mxu0 0
    %8748 = vmatpush1.bf16.msra.mxu0 %v8670
    %8749 = vmatprep.subr.bf16.mxu0 0
    %8750 = vmatpush1.bf16.msra.mxu0 %v8671
    %8751 = vmatprep.subr.bf16.mxu0 0
    %8752 = vmatpush1.bf16.msra.mxu0 %v8672
    %8753 = vmatprep.mubr.bf16.mxu0 %v8402
    %8754 = vmatmul.mubr.bf16.gmra.mrb[0].mxu0 %v8401
    %v8755 = vpop.f32.mrb[0].mxu0
    %v8756 = vadd.f32 0.0, %v8755
    %v8757 = vpop.f32.mrb[0].mxu0
    %v8758 = vpop.f32.mrb[0].mxu0
    %v8759 = vadd.f32 0.0, %v8758
    %v8760 = vpop.f32.mrb[0].mxu0
    %8761 = vmatprep.mubr.bf16.mxu0 %v8406
    %8762 = vmatmul.mubr.bf16.gmra.mrb[0].mxu0 %v8405
    %v8763 = vpop.f32.mrb[0].mxu0
    %v8764 = vadd.f32 0.0, %v8763
    %v8765 = vpop.f32.mrb[0].mxu0
    %v8766 = vpop.f32.mrb[0].mxu0
    %v8767 = vadd.f32 0.0, %v8766
    %v8768 = vpop.f32.mrb[0].mxu0
    %8769 = vmatprep.mubr.bf16.mxu0 %v8410
    %8770 = vmatmul.mubr.bf16.gmra.mrb[0].mxu0 %v8409
    %v8771 = vpop.f32.mrb[0].mxu0
    %v8772 = vadd.f32 0.0, %v8771
    %v8773 = vpop.f32.mrb[0].mxu0
    %v8774 = vpop.f32.mrb[0].mxu0
    %v8775 = vadd.f32 0.0, %v8774
    %v8776 = vpop.f32.mrb[0].mxu0
    %8777 = vmatprep.mubr.bf16.mxu0 %v8414
    %8778 = vmatmul.mubr.bf16.gmra.mrb[0].mxu0 %v8413
    %v8779 = vpop.f32.mrb[0].mxu0
    %v8780 = vadd.f32 0.0, %v8779
    %v8781 = vpop.f32.mrb[0].mxu0
    %v8782 = vpop.f32.mrb[0].mxu0
    %v8783 = vadd.f32 0.0, %v8782
    %v8784 = vpop.f32.mrb[0].mxu0
    %8785 = vmatprep.mubr.bf16.mxu0 %v8418
    %8786 = vmatmul.mubr.bf16.gmra.mrb[0].mxu0 %v8417
    %v8787 = vpop.f32.mrb[0].mxu0
    %v8788 = vadd.f32 0.0, %v8787
    %v8789 = vpop.f32.mrb[0].mxu0
    %v8790 = vpop.f32.mrb[0].mxu0
    %v8791 = vadd.f32 0.0, %v8790
    %v8792 = vpop.f32.mrb[0].mxu0
    %8793 = vmatprep.mubr.bf16.mxu0 %v8422
    %8794 = vmatmul.mubr.bf16.gmra.mrb[0].mxu0 %v8421
    %v8795 = vpop.f32.mrb[0].mxu0
    %v8796 = vadd.f32 0.0, %v8795
    %v8797 = vpop.f32.mrb[0].mxu0
    %v8798 = vpop.f32.mrb[0].mxu0
    %v8799 = vadd.f32 0.0, %v8798
    %v8800 = vpop.f32.mrb[0].mxu0
    %8801 = vmatprep.mubr.bf16.mxu0 %v8426
    %8802 = vmatmul.mubr.bf16.gmra.mrb[0].mxu0 %v8425
    %v8803 = vpop.f32.mrb[0].mxu0
    %v8804 = vadd.f32 0.0, %v8803
    %v8805 = vpop.f32.mrb[0].mxu0
    %v8806 = vpop.f32.mrb[0].mxu0
    %v8807 = vadd.f32 0.0, %v8806
    %v8808 = vpop.f32.mrb[0].mxu0
    %8809 = vmatprep.mubr.bf16.mxu0 %v8430
    %8810 = vmatmul.mubr.bf16.gmra.mrb[0].mxu0 %v8429
    %v8811 = vpop.f32.mrb[0].mxu0
    %v8812 = vadd.f32 0.0, %v8811
    %v8813 = vpop.f32.mrb[0].mxu0
    %v8814 = vpop.f32.mrb[0].mxu0
    %v8815 = vadd.f32 0.0, %v8814
    %v8816 = vpop.f32.mrb[0].mxu0
    %8817 = vmatprep.mubr.bf16.mxu0 %v8434
    %8818 = vmatmul.mubr.bf16.gmra.mrb[0].mxu0 %v8433
    %v8819 = vpop.f32.mrb[0].mxu0
    %v8820 = vadd.f32 0.0, %v8819
    %v8821 = vpop.f32.mrb[0].mxu0
    %v8822 = vpop.f32.mrb[0].mxu0
    %v8823 = vadd.f32 0.0, %v8822
    %v8824 = vpop.f32.mrb[0].mxu0
    %8825 = vmatprep.mubr.bf16.mxu0 %v8438
    %8826 = vmatmul.mubr.bf16.gmra.mrb[0].mxu0 %v8437
    %v8827 = vpop.f32.mrb[0].mxu0
    %v8828 = vadd.f32 0.0, %v8827
    %v8829 = vpop.f32.mrb[0].mxu0
    %v8830 = vpop.f32.mrb[0].mxu0
    %v8831 = vadd.f32 0.0, %v8830
    %v8832 = vpop.f32.mrb[0].mxu0
    %8833 = vmatprep.mubr.bf16.mxu0 %v8442
    %8834 = vmatmul.mubr.bf16.gmra.mrb[0].mxu0 %v8441
    %v8835 = vpop.f32.mrb[0].mxu0
    %v8836 = vadd.f32 0.0, %v8835
    %v8837 = vpop.f32.mrb[0].mxu0
    %v8838 = vpop.f32.mrb[0].mxu0
    %v8839 = vadd.f32 0.0, %v8838
    %v8840 = vpop.f32.mrb[0].mxu0
    %8841 = vmatprep.mubr.bf16.mxu0 %v8446
    %8842 = vmatmul.mubr.bf16.gmra.mrb[0].mxu0 %v8445
    %v8843 = vpop.f32.mrb[0].mxu0
    %v8844 = vadd.f32 0.0, %v8843
    %v8845 = vpop.f32.mrb[0].mxu0
    %v8846 = vpop.f32.mrb[0].mxu0
    %v8847 = vadd.f32 0.0, %v8846
    %v8848 = vpop.f32.mrb[0].mxu0
    %8849 = vmatprep.mubr.bf16.mxu0 %v8450
    %8850 = vmatmul.mubr.bf16.gmra.mrb[0].mxu0 %v8449
    %v8851 = vpop.f32.mrb[0].mxu0
    %v8852 = vadd.f32 0.0, %v8851
    %v8853 = vpop.f32.mrb[0].mxu0
    %v8854 = vpop.f32.mrb[0].mxu0
    %v8855 = vadd.f32 0.0, %v8854
    %v8856 = vpop.f32.mrb[0].mxu0
    %8857 = vmatprep.mubr.bf16.mxu0 %v8454
    %8858 = vmatmul.mubr.bf16.gmra.mrb[0].mxu0 %v8453
    %v8859 = vpop.f32.mrb[0].mxu0
    %v8860 = vadd.f32 0.0, %v8859
    %v8861 = vpop.f32.mrb[0].mxu0
    %v8862 = vpop.f32.mrb[0].mxu0
    %v8863 = vadd.f32 0.0, %v8862
    %v8864 = vpop.f32.mrb[0].mxu0
    %8865 = vmatprep.mubr.bf16.mxu0 %v8458
    %8866 = vmatmul.mubr.bf16.gmra.mrb[0].mxu0 %v8457
    %v8867 = vpop.f32.mrb[0].mxu0
    %v8868 = vadd.f32 0.0, %v8867
    %v8869 = vpop.f32.mrb[0].mxu0
    %v8870 = vpop.f32.mrb[0].mxu0
    %v8871 = vadd.f32 0.0, %v8870
    %v8872 = vpop.f32.mrb[0].mxu0
    %8873 = vmatprep.mubr.bf16.mxu0 %v8462
    %8874 = vmatmul.mubr.bf16.gmra.mrb[0].mxu0 %v8461
    %v8875 = vpop.f32.mrb[0].mxu0
    %v8876 = vadd.f32 0.0, %v8875
    %v8877 = vpop.f32.mrb[0].mxu0
    %v8878 = vpop.f32.mrb[0].mxu0
    %v8879 = vadd.f32 0.0, %v8878
    %v8880 = vpop.f32.mrb[0].mxu0
    %8881 = vdwg.mxu0
    %8882 = vmatprep.subr.bf16.mxu0 0
    %8883 = vmatpush1.bf16.msra.mxu0 %v8673
    %8884 = vmatprep.subr.bf16.mxu0 0
    %8885 = vmatpush1.bf16.msra.mxu0 %v8674
    %8886 = vmatprep.subr.bf16.mxu0 0
    %8887 = vmatpush1.bf16.msra.mxu0 %v8675
    %8888 = vmatprep.subr.bf16.mxu0 0
    %8889 = vmatpush1.bf16.msra.mxu0 %v8676
    %8890 = vmatprep.subr.bf16.mxu0 0
    %8891 = vmatpush1.bf16.msra.mxu0 %v8677
    %8892 = vmatprep.subr.bf16.mxu0 0
    %8893 = vmatpush1.bf16.msra.mxu0 %v8678
    %8894 = vmatprep.subr.bf16.mxu0 0
    %8895 = vmatpush1.bf16.msra.mxu0 %v8679
    %8896 = vmatprep.subr.bf16.mxu0 0
    %8897 = vmatpush1.bf16.msra.mxu0 %v8680
    %8898 = vmatprep.subr.bf16.mxu0 0
    %8899 = vmatpush1.bf16.msra.mxu0 %v8681
    %8900 = vmatprep.subr.bf16.mxu0 0
    %8901 = vmatpush1.bf16.msra.mxu0 %v8682
    %8902 = vmatprep.subr.bf16.mxu0 0
    %8903 = vmatpush1.bf16.msra.mxu0 %v8683
    %8904 = vmatprep.subr.bf16.mxu0 0
    %8905 = vmatpush1.bf16.msra.mxu0 %v8684
    %8906 = vmatprep.subr.bf16.mxu0 0
    %8907 = vmatpush1.bf16.msra.mxu0 %v8685
    %8908 = vmatprep.subr.bf16.mxu0 0
    %8909 = vmatpush1.bf16.msra.mxu0 %v8686
    %8910 = vmatprep.subr.bf16.mxu0 0
    %8911 = vmatpush1.bf16.msra.mxu0 %v8687
    %8912 = vmatprep.subr.bf16.mxu0 0
    %8913 = vmatpush1.bf16.msra.mxu0 %v8688
    %8914 = vmatprep.mubr.bf16.mxu0 %v8404
    %8915 = vmatmul.mubr.bf16.gmra.mrb[0].mxu0 %v8403
    %v8916 = vpop.f32.mrb[0].mxu0
    %v8917 = vadd.f32 %v8756, %v8916
    %v8918 = vpop.f32.mrb[0].mxu0
    %v8919 = vpop.f32.mrb[0].mxu0
    %v8920 = vadd.f32 %v8759, %v8919
    %v8921 = vpop.f32.mrb[0].mxu0
    %8922 = vmatprep.mubr.bf16.mxu0 %v8408
    %8923 = vmatmul.mubr.bf16.gmra.mrb[0].mxu0 %v8407
    %v8924 = vpop.f32.mrb[0].mxu0
    %v8925 = vadd.f32 %v8764, %v8924
    %v8926 = vpop.f32.mrb[0].mxu0
    %v8927 = vpop.f32.mrb[0].mxu0
    %v8928 = vadd.f32 %v8767, %v8927
    %v8929 = vpop.f32.mrb[0].mxu0
    %8930 = vmatprep.mubr.bf16.mxu0 %v8412
    %8931 = vmatmul.mubr.bf16.gmra.mrb[0].mxu0 %v8411
    %v8932 = vpop.f32.mrb[0].mxu0
    %v8933 = vadd.f32 %v8772, %v8932
    %v8934 = vpop.f32.mrb[0].mxu0
    %v8935 = vpop.f32.mrb[0].mxu0
    %v8936 = vadd.f32 %v8775, %v8935
    %v8937 = vpop.f32.mrb[0].mxu0
    %8938 = vmatprep.mubr.bf16.mxu0 %v8416
    %8939 = vmatmul.mubr.bf16.gmra.mrb[0].mxu0 %v8415
    %v8940 = vpop.f32.mrb[0].mxu0
    %v8941 = vadd.f32 %v8780, %v8940
    %v8942 = vpop.f32.mrb[0].mxu0
    %v8943 = vpop.f32.mrb[0].mxu0
    %v8944 = vadd.f32 %v8783, %v8943
    %v8945 = vpop.f32.mrb[0].mxu0
    %8946 = vmatprep.mubr.bf16.mxu0 %v8420
    %8947 = vmatmul.mubr.bf16.gmra.mrb[0].mxu0 %v8419
    %v8948 = vpop.f32.mrb[0].mxu0
    %v8949 = vadd.f32 %v8788, %v8948
    %v8950 = vpop.f32.mrb[0].mxu0
    %v8951 = vpop.f32.mrb[0].mxu0
    %v8952 = vadd.f32 %v8791, %v8951
    %v8953 = vpop.f32.mrb[0].mxu0
    %8954 = vmatprep.mubr.bf16.mxu0 %v8424
    %8955 = vmatmul.mubr.bf16.gmra.mrb[0].mxu0 %v8423
    %v8956 = vpop.f32.mrb[0].mxu0
    %v8957 = vadd.f32 %v8796, %v8956
    %v8958 = vpop.f32.mrb[0].mxu0
    %v8959 = vpop.f32.mrb[0].mxu0
    %v8960 = vadd.f32 %v8799, %v8959
    %v8961 = vpop.f32.mrb[0].mxu0
    %8962 = vmatprep.mubr.bf16.mxu0 %v8428
    %8963 = vmatmul.mubr.bf16.gmra.mrb[0].mxu0 %v8427
    %v8964 = vpop.f32.mrb[0].mxu0
    %v8965 = vadd.f32 %v8804, %v8964
    %v8966 = vpop.f32.mrb[0].mxu0
    %v8967 = vpop.f32.mrb[0].mxu0
    %v8968 = vadd.f32 %v8807, %v8967
    %v8969 = vpop.f32.mrb[0].mxu0
    %8970 = vmatprep.mubr.bf16.mxu0 %v8432
    %8971 = vmatmul.mubr.bf16.gmra.mrb[0].mxu0 %v8431
    %v8972 = vpop.f32.mrb[0].mxu0
    %v8973 = vadd.f32 %v8812, %v8972
    %v8974 = vpop.f32.mrb[0].mxu0
    %v8975 = vpop.f32.mrb[0].mxu0
    %v8976 = vadd.f32 %v8815, %v8975
    %v8977 = vpop.f32.mrb[0].mxu0
    %8978 = vmatprep.mubr.bf16.mxu0 %v8436
    %8979 = vmatmul.mubr.bf16.gmra.mrb[0].mxu0 %v8435
    %v8980 = vpop.f32.mrb[0].mxu0
    %v8981 = vadd.f32 %v8820, %v8980
    %v8982 = vpop.f32.mrb[0].mxu0
    %v8983 = vpop.f32.mrb[0].mxu0
    %v8984 = vadd.f32 %v8823, %v8983
    %v8985 = vpop.f32.mrb[0].mxu0
    %8986 = vmatprep.mubr.bf16.mxu0 %v8440
    %8987 = vmatmul.mubr.bf16.gmra.mrb[0].mxu0 %v8439
    %v8988 = vpop.f32.mrb[0].mxu0
    %v8989 = vadd.f32 %v8828, %v8988
    %v8990 = vpop.f32.mrb[0].mxu0
    %v8991 = vpop.f32.mrb[0].mxu0
    %v8992 = vadd.f32 %v8831, %v8991
    %v8993 = vpop.f32.mrb[0].mxu0
    %8994 = vmatprep.mubr.bf16.mxu0 %v8444
    %8995 = vmatmul.mubr.bf16.gmra.mrb[0].mxu0 %v8443
    %v8996 = vpop.f32.mrb[0].mxu0
    %v8997 = vadd.f32 %v8836, %v8996
    %v8998 = vpop.f32.mrb[0].mxu0
    %v8999 = vpop.f32.mrb[0].mxu0
    %v9000 = vadd.f32 %v8839, %v8999
    %v9001 = vpop.f32.mrb[0].mxu0
    %9002 = vmatprep.mubr.bf16.mxu0 %v8448
    %9003 = vmatmul.mubr.bf16.gmra.mrb[0].mxu0 %v8447
    %v9004 = vpop.f32.mrb[0].mxu0
    %v9005 = vadd.f32 %v8844, %v9004
    %v9006 = vpop.f32.mrb[0].mxu0
    %v9007 = vpop.f32.mrb[0].mxu0
    %v9008 = vadd.f32 %v8847, %v9007
    %v9009 = vpop.f32.mrb[0].mxu0
    %9010 = vmatprep.mubr.bf16.mxu0 %v8452
    %9011 = vmatmul.mubr.bf16.gmra.mrb[0].mxu0 %v8451
    %v9012 = vpop.f32.mrb[0].mxu0
    %v9013 = vadd.f32 %v8852, %v9012
    %v9014 = vpop.f32.mrb[0].mxu0
    %v9015 = vpop.f32.mrb[0].mxu0
    %v9016 = vadd.f32 %v8855, %v9015
    %v9017 = vpop.f32.mrb[0].mxu0
    %9018 = vmatprep.mubr.bf16.mxu0 %v8456
    %9019 = vmatmul.mubr.bf16.gmra.mrb[0].mxu0 %v8455
    %v9020 = vpop.f32.mrb[0].mxu0
    %v9021 = vadd.f32 %v8860, %v9020
    %v9022 = vpop.f32.mrb[0].mxu0
    %v9023 = vpop.f32.mrb[0].mxu0
    %v9024 = vadd.f32 %v8863, %v9023
    %v9025 = vpop.f32.mrb[0].mxu0
    %9026 = vmatprep.mubr.bf16.mxu0 %v8460
    %9027 = vmatmul.mubr.bf16.gmra.mrb[0].mxu0 %v8459
    %v9028 = vpop.f32.mrb[0].mxu0
    %v9029 = vadd.f32 %v8868, %v9028
    %v9030 = vpop.f32.mrb[0].mxu0
    %v9031 = vpop.f32.mrb[0].mxu0
    %v9032 = vadd.f32 %v8871, %v9031
    %v9033 = vpop.f32.mrb[0].mxu0
    %9034 = vmatprep.mubr.bf16.mxu0 %v8464
    %9035 = vmatmul.mubr.bf16.gmra.mrb[0].mxu0 %v8463
    %v9036 = vpop.f32.mrb[0].mxu0
    %v9037 = vadd.f32 %v8876, %v9036
    %v9038 = vpop.f32.mrb[0].mxu0
    %v9039 = vpop.f32.mrb[0].mxu0
    %v9040 = vadd.f32 %v8879, %v9039
    %v9041 = vpop.f32.mrb[0].mxu0
    %9042 = vdwg.mxu0
    %v9043 = vlaneseq
    %v9044 = vshrl.u32 %v9043, 7
    %v9045 = vsub.s32 0, %v9044
    %v9046 = vrot.slane %v8917, %v9045
    %v9047 = vsub.f32 %v8917, %v9046
    %v9048 = vsub.f32 %v8920, %v9046
    %v9049 = vsub.f32 %v8925, %v9046
    %v9050 = vsub.f32 %v8928, %v9046
    %v9051 = vsub.f32 %v8933, %v9046
    %v9052 = vsub.f32 %v8936, %v9046
    %v9053 = vsub.f32 %v8941, %v9046
    %v9054 = vsub.f32 %v8944, %v9046
    %v9055 = vsub.f32 %v8949, %v9046
    %v9056 = vsub.f32 %v8952, %v9046
    %v9057 = vsub.f32 %v8957, %v9046
    %v9058 = vsub.f32 %v8960, %v9046
    %v9059 = vsub.f32 %v8965, %v9046
    %v9060 = vsub.f32 %v8968, %v9046
    %v9061 = vsub.f32 %v8973, %v9046
    %v9062 = vsub.f32 %v8976, %v9046
    %v9063 = vsub.f32 %v8981, %v9046
    %v9064 = vsub.f32 %v8984, %v9046
    %v9065 = vsub.f32 %v8989, %v9046
    %v9066 = vsub.f32 %v8992, %v9046
    %v9067 = vsub.f32 %v8997, %v9046
    %v9068 = vsub.f32 %v9000, %v9046
    %v9069 = vsub.f32 %v9005, %v9046
    %v9070 = vsub.f32 %v9008, %v9046
    %v9071 = vsub.f32 %v9013, %v9046
    %v9072 = vsub.f32 %v9016, %v9046
    %v9073 = vsub.f32 %v9021, %v9046
    %v9074 = vsub.f32 %v9024, %v9046
    %v9075 = vsub.f32 %v9029, %v9046
    %v9076 = vsub.f32 %v9032, %v9046
    %v9077 = vsub.f32 %v9037, %v9046
    %v9078 = vsub.f32 %v9040, %v9046
    %v9079 = vadd.f32 %v9047, %v9048
    %v9080 = vadd.f32 %v9079, %v9049
    %v9081 = vadd.f32 %v9080, %v9050
    %v9082 = vadd.f32 %v9081, %v9051
    %v9083 = vadd.f32 %v9082, %v9052
    %v9084 = vadd.f32 %v9083, %v9053
    %v9085 = vadd.f32 %v9084, %v9054
    %v9086 = vadd.f32 %v9085, %v9055
    %v9087 = vadd.f32 %v9086, %v9056
    %v9088 = vadd.f32 %v9087, %v9057
    %v9089 = vadd.f32 %v9088, %v9058
    %v9090 = vadd.f32 %v9089, %v9059
    %v9091 = vadd.f32 %v9090, %v9060
    %v9092 = vadd.f32 %v9091, %v9061
    %v9093 = vadd.f32 %v9092, %v9062
    %v9094 = vadd.f32 %v9093, %v9063
    %v9095 = vadd.f32 %v9094, %v9064
    %v9096 = vadd.f32 %v9095, %v9065
    %v9097 = vadd.f32 %v9096, %v9066
    %v9098 = vadd.f32 %v9097, %v9067
    %v9099 = vadd.f32 %v9098, %v9068
    %v9100 = vadd.f32 %v9099, %v9069
    %v9101 = vadd.f32 %v9100, %v9070
    %v9102 = vadd.f32 %v9101, %v9071
    %v9103 = vadd.f32 %v9102, %v9072
    %v9104 = vadd.f32 %v9103, %v9073
    %v9105 = vadd.f32 %v9104, %v9074
    %v9106 = vadd.f32 %v9105, %v9075
    %v9107 = vadd.f32 %v9106, %v9076
    %v9108 = vadd.f32 %v9107, %v9077
    %v9109 = vadd.f32 %v9108, %v9078
    %v9110 = vrot.slane %v9109, 4
    %v9111 = vadd.f32 %v9109, %v9110
    %v9112 = vrot.slane %v9111, 2
    %v9113 = vadd.f32 %v9111, %v9112
    %v9114 = vrot.slane %v9113, 1
    %v9115 = vadd.f32 %v9113, %v9114
    %v9116 = vmul.f32 %v9115, 0.00390625
    %v9117 = vmul.f32 %v9047, %v9047
    %v9118 = vmul.f32 %v9048, %v9048
    %v9119 = vmul.f32 %v9049, %v9049
    %v9120 = vmul.f32 %v9050, %v9050
    %v9121 = vmul.f32 %v9051, %v9051
    %v9122 = vmul.f32 %v9052, %v9052
    %v9123 = vmul.f32 %v9053, %v9053
    %v9124 = vmul.f32 %v9054, %v9054
    %v9125 = vmul.f32 %v9055, %v9055
    %v9126 = vmul.f32 %v9056, %v9056
    %v9127 = vmul.f32 %v9057, %v9057
    %v9128 = vmul.f32 %v9058, %v9058
    %v9129 = vmul.f32 %v9059, %v9059
    %v9130 = vmul.f32 %v9060, %v9060
    %v9131 = vmul.f32 %v9061, %v9061
    %v9132 = vmul.f32 %v9062, %v9062
    %v9133 = vmul.f32 %v9063, %v9063
    %v9134 = vmul.f32 %v9064, %v9064
    %v9135 = vmul.f32 %v9065, %v9065
    %v9136 = vmul.f32 %v9066, %v9066
    %v9137 = vmul.f32 %v9067, %v9067
    %v9138 = vmul.f32 %v9068, %v9068
    %v9139 = vmul.f32 %v9069, %v9069
    %v9140 = vmul.f32 %v9070, %v9070
    %v9141 = vmul.f32 %v9071, %v9071
    %v9142 = vmul.f32 %v9072, %v9072
    %v9143 = vmul.f32 %v9073, %v9073
    %v9144 = vmul.f32 %v9074, %v9074
    %v9145 = vmul.f32 %v9075, %v9075
    %v9146 = vmul.f32 %v9076, %v9076
    %v9147 = vmul.f32 %v9077, %v9077
    %v9148 = vmul.f32 %v9078, %v9078
    %v9149 = vadd.f32 %v9117, %v9118
    %v9150 = vadd.f32 %v9149, %v9119
    %v9151 = vadd.f32 %v9150, %v9120
    %v9152 = vadd.f32 %v9151, %v9121
    %v9153 = vadd.f32 %v9152, %v9122
    %v9154 = vadd.f32 %v9153, %v9123
    %v9155 = vadd.f32 %v9154, %v9124
    %v9156 = vadd.f32 %v9155, %v9125
    %v9157 = vadd.f32 %v9156, %v9126
    %v9158 = vadd.f32 %v9157, %v9127
    %v9159 = vadd.f32 %v9158, %v9128
    %v9160 = vadd.f32 %v9159, %v9129
    %v9161 = vadd.f32 %v9160, %v9130
    %v9162 = vadd.f32 %v9161, %v9131
    %v9163 = vadd.f32 %v9162, %v9132
    %v9164 = vadd.f32 %v9163, %v9133
    %v9165 = vadd.f32 %v9164, %v9134
    %v9166 = vadd.f32 %v9165, %v9135
    %v9167 = vadd.f32 %v9166, %v9136
    %v9168 = vadd.f32 %v9167, %v9137
    %v9169 = vadd.f32 %v9168, %v9138
    %v9170 = vadd.f32 %v9169, %v9139
    %v9171 = vadd.f32 %v9170, %v9140
    %v9172 = vadd.f32 %v9171, %v9141
    %v9173 = vadd.f32 %v9172, %v9142
    %v9174 = vadd.f32 %v9173, %v9143
    %v9175 = vadd.f32 %v9174, %v9144
    %v9176 = vadd.f32 %v9175, %v9145
    %v9177 = vadd.f32 %v9176, %v9146
    %v9178 = vadd.f32 %v9177, %v9147
    %v9179 = vadd.f32 %v9178, %v9148
    %v9180 = vrot.slane %v9179, 4
    %v9181 = vadd.f32 %v9179, %v9180
    %v9182 = vrot.slane %v9181, 2
    %v9183 = vadd.f32 %v9181, %v9182
    %v9184 = vrot.slane %v9183, 1
    %v9185 = vadd.f32 %v9183, %v9184
    %v9186 = vmul.f32 %v9185, 0.00390625
    %v9187 = vmul.f32 %v9116, %v9116
    %v9188 = vsub.f32 %v9186, %v9187
    %v9189 = vmax.f32 %v9188, 0.0
    %v9190 = vadd.f32 %v8917, %v9116
    %v9191 = vadd.f32 %v9189, 1e-05
    %v9192 = vrsqrt.pop %v9191
    %v9193 = vmul.f32 %v158, %v9192
    %v9194 = vmul.f32 %v9190, %v9193
    %v9196 = vrot.slane %v9194, 7
    %v9198 = vsub.f32 %v158, %v9196
    %v9199 = vlaneseq
    %v9200 = vshrl.u32 %v9199, 7
    %v9201 = vsub.s32 0, %v9200
    %v9202 = vrot.slane %v9193, %v9201
    %v9203 = vmul.f32 %v8917, %v9202
    %v9204 = vmul.f32 %v8920, %v9202
    %v9205 = vmul.f32 %v8925, %v9202
    %v9206 = vmul.f32 %v8928, %v9202
    %v9207 = vmul.f32 %v8933, %v9202
    %v9208 = vmul.f32 %v8936, %v9202
    %v9209 = vmul.f32 %v8941, %v9202
    %v9210 = vmul.f32 %v8944, %v9202
    %v9211 = vmul.f32 %v8949, %v9202
    %v9212 = vmul.f32 %v8952, %v9202
    %v9213 = vmul.f32 %v8957, %v9202
    %v9214 = vmul.f32 %v8960, %v9202
    %v9215 = vmul.f32 %v8965, %v9202
    %v9216 = vmul.f32 %v8968, %v9202
    %v9217 = vmul.f32 %v8973, %v9202
    %v9218 = vmul.f32 %v8976, %v9202
    %v9219 = vmul.f32 %v8981, %v9202
    %v9220 = vmul.f32 %v8984, %v9202
    %v9221 = vmul.f32 %v8989, %v9202
    %v9222 = vmul.f32 %v8992, %v9202
    %v9223 = vmul.f32 %v8997, %v9202
    %v9224 = vmul.f32 %v9000, %v9202
    %v9225 = vmul.f32 %v9005, %v9202
    %v9226 = vmul.f32 %v9008, %v9202
    %v9227 = vmul.f32 %v9013, %v9202
    %v9228 = vmul.f32 %v9016, %v9202
    %v9229 = vmul.f32 %v9021, %v9202
    %v9230 = vmul.f32 %v9024, %v9202
    %v9231 = vmul.f32 %v9029, %v9202
    %v9232 = vmul.f32 %v9032, %v9202
    %v9233 = vmul.f32 %v9037, %v9202
    %v9234 = vmul.f32 %v9040, %v9202
    %v9235 = vlaneseq
    %v9236 = vshrl.u32 %v9235, 7
    %v9237 = vsub.s32 1, %v9236
    %v9238 = vrot.slane %v9198, %v9237
    %v9239 = vadd.f32 %v9203, %v9238
    %v9240 = vadd.f32 %v9204, %v9238
    %v9241 = vadd.f32 %v9205, %v9238
    %v9242 = vadd.f32 %v9206, %v9238
    %v9243 = vadd.f32 %v9207, %v9238
    %v9244 = vadd.f32 %v9208, %v9238
    %v9245 = vadd.f32 %v9209, %v9238
    %v9246 = vadd.f32 %v9210, %v9238
    %v9247 = vadd.f32 %v9211, %v9238
    %v9248 = vadd.f32 %v9212, %v9238
    %v9249 = vadd.f32 %v9213, %v9238
    %v9250 = vadd.f32 %v9214, %v9238
    %v9251 = vadd.f32 %v9215, %v9238
    %v9252 = vadd.f32 %v9216, %v9238
    %v9253 = vadd.f32 %v9217, %v9238
    %v9254 = vadd.f32 %v9218, %v9238
    %v9255 = vadd.f32 %v9219, %v9238
    %v9256 = vadd.f32 %v9220, %v9238
    %v9257 = vadd.f32 %v9221, %v9238
    %v9258 = vadd.f32 %v9222, %v9238
    %v9259 = vadd.f32 %v9223, %v9238
    %v9260 = vadd.f32 %v9224, %v9238
    %v9261 = vadd.f32 %v9225, %v9238
    %v9262 = vadd.f32 %v9226, %v9238
    %v9263 = vadd.f32 %v9227, %v9238
    %v9264 = vadd.f32 %v9228, %v9238
    %v9265 = vadd.f32 %v9229, %v9238
    %v9266 = vadd.f32 %v9230, %v9238
    %v9267 = vadd.f32 %v9231, %v9238
    %v9268 = vadd.f32 %v9232, %v9238
    %v9269 = vadd.f32 %v9233, %v9238
    %v9270 = vadd.f32 %v9234, %v9238
    %v9271 = vadd.f32 %v9239, %v118
    %v9272 = vadd.f32 %v9240, %v119
    %v9273 = vadd.f32 %v9241, %v120
    %v9274 = vadd.f32 %v9242, %v121
    %v9275 = vadd.f32 %v9243, %v122
    %v9276 = vadd.f32 %v9244, %v123
    %v9277 = vadd.f32 %v9245, %v124
    %v9278 = vadd.f32 %v9246, %v125
    %v9279 = vadd.f32 %v9247, %v126
    %v9280 = vadd.f32 %v9248, %v127
    %v9281 = vadd.f32 %v9249, %v128
    %v9282 = vadd.f32 %v9250, %v129
    %v9283 = vadd.f32 %v9251, %v130
    %v9284 = vadd.f32 %v9252, %v131
    %v9285 = vadd.f32 %v9253, %v132
    %v9286 = vadd.f32 %v9254, %v133
    %v9287 = vadd.f32 %v9255, %v134
    %v9288 = vadd.f32 %v9256, %v135
    %v9289 = vadd.f32 %v9257, %v136
    %v9290 = vadd.f32 %v9258, %v137
    %v9291 = vadd.f32 %v9259, %v138
    %v9292 = vadd.f32 %v9260, %v139
    %v9293 = vadd.f32 %v9261, %v140
    %v9294 = vadd.f32 %v9262, %v141
    %v9295 = vadd.f32 %v9263, %v142
    %v9296 = vadd.f32 %v9264, %v143
    %v9297 = vadd.f32 %v9265, %v144
    %v9298 = vadd.f32 %v9266, %v145
    %v9299 = vadd.f32 %v9267, %v146
    %v9300 = vadd.f32 %v9268, %v147
    %v9301 = vadd.f32 %v9269, %v148
    %v9302 = vadd.f32 %v9270, %v149
    %v9303 = vmax.f32 %v9271, 0.0
    %v9304 = vmax.f32 %v9272, 0.0
    %v9305 = vmax.f32 %v9273, 0.0
    %v9306 = vmax.f32 %v9274, 0.0
    %v9307 = vmax.f32 %v9275, 0.0
    %v9308 = vmax.f32 %v9276, 0.0
    %v9309 = vmax.f32 %v9277, 0.0
    %v9310 = vmax.f32 %v9278, 0.0
    %v9311 = vmax.f32 %v9279, 0.0
    %v9312 = vmax.f32 %v9280, 0.0
    %v9313 = vmax.f32 %v9281, 0.0
    %v9314 = vmax.f32 %v9282, 0.0
    %v9315 = vmax.f32 %v9283, 0.0
    %v9316 = vmax.f32 %v9284, 0.0
    %v9317 = vmax.f32 %v9285, 0.0
    %v9318 = vmax.f32 %v9286, 0.0
    %v9319 = vmax.f32 %v9287, 0.0
    %v9320 = vmax.f32 %v9288, 0.0
    %v9321 = vmax.f32 %v9289, 0.0
    %v9322 = vmax.f32 %v9290, 0.0
    %v9323 = vmax.f32 %v9291, 0.0
    %v9324 = vmax.f32 %v9292, 0.0
    %v9325 = vmax.f32 %v9293, 0.0
    %v9326 = vmax.f32 %v9294, 0.0
    %v9327 = vmax.f32 %v9295, 0.0
    %v9328 = vmax.f32 %v9296, 0.0
    %v9329 = vmax.f32 %v9297, 0.0
    %v9330 = vmax.f32 %v9298, 0.0
    %v9331 = vmax.f32 %v9299, 0.0
    %v9332 = vmax.f32 %v9300, 0.0
    %v9333 = vmax.f32 %v9301, 0.0
    %v9334 = vmax.f32 %v9302, 0.0
    %v9335 = vpack.c.bf16 %v9304, %v9303
    %v9336 = vpack.c.bf16 %v9306, %v9305
    %v9337 = vpack.c.bf16 %v9308, %v9307
    %v9338 = vpack.c.bf16 %v9310, %v9309
    %v9339 = vpack.c.bf16 %v9312, %v9311
    %v9340 = vpack.c.bf16 %v9314, %v9313
    %v9341 = vpack.c.bf16 %v9316, %v9315
    %v9342 = vpack.c.bf16 %v9318, %v9317
    %v9343 = vpack.c.bf16 %v9320, %v9319
    %v9344 = vpack.c.bf16 %v9322, %v9321
    %v9345 = vpack.c.bf16 %v9324, %v9323
    %v9346 = vpack.c.bf16 %v9326, %v9325
    %v9347 = vpack.c.bf16 %v9328, %v9327
    %v9348 = vpack.c.bf16 %v9330, %v9329
    %v9349 = vpack.c.bf16 %v9332, %v9331
    %v9350 = vpack.c.bf16 %v9334, %v9333
    %v9351 = vld [vmem:[%s5] sm:$0xf]
    %v9352 = vld [vmem:[%s5 + $0x4] sm:$0xf]
    %v9353 = vld [vmem:[%s5 + $0x8] sm:$0xf]
    %v9354 = vld [vmem:[%s5 + $0xc] sm:$0xf]
    %v9355 = vld [vmem:[%s5 + $0x10] sm:$0xf]
    %v9356 = vld [vmem:[%s5 + $0x14] sm:$0xf]
    %v9357 = vld [vmem:[%s5 + $0x18] sm:$0xf]
    %v9358 = vld [vmem:[%s5 + $0x1c] sm:$0xf]
    %v9359 = vld [vmem:[%s5 + $0x20] sm:$0xf]
    %v9360 = vld [vmem:[%s5 + $0x24] sm:$0xf]
    %v9361 = vld [vmem:[%s5 + $0x28] sm:$0xf]
    %v9362 = vld [vmem:[%s5 + $0x2c] sm:$0xf]
    %v9363 = vld [vmem:[%s5 + $0x30] sm:$0xf]
    %v9364 = vld [vmem:[%s5 + $0x34] sm:$0xf]
    %v9365 = vld [vmem:[%s5 + $0x38] sm:$0xf]
    %v9366 = vld [vmem:[%s5 + $0x3c] sm:$0xf]
    %v9383 = vunpack.c.l.b16 %v9351
    %v9384 = vunpack.c.l.b16 %v9352
    %v9385 = vunpack.c.l.b16 %v9353
    %v9386 = vunpack.c.l.b16 %v9354
    %v9387 = vunpack.c.l.b16 %v9355
    %v9388 = vunpack.c.l.b16 %v9356
    %v9389 = vunpack.c.l.b16 %v9357
    %v9390 = vunpack.c.l.b16 %v9358
    %v9391 = vunpack.c.l.b16 %v9359
    %v9392 = vunpack.c.l.b16 %v9360
    %v9393 = vunpack.c.l.b16 %v9361
    %v9394 = vunpack.c.l.b16 %v9362
    %v9395 = vunpack.c.l.b16 %v9363
    %v9396 = vunpack.c.l.b16 %v9364
    %v9397 = vunpack.c.l.b16 %v9365
    %v9398 = vunpack.c.l.b16 %v9366
    %v9399 = vpack.c.b16 %v9384, %v9383
    %v9400 = vpack.c.b16 %v9386, %v9385
    %v9401 = vpack.c.b16 %v9388, %v9387
    %v9402 = vpack.c.b16 %v9390, %v9389
    %v9403 = vpack.c.b16 %v9392, %v9391
    %v9404 = vpack.c.b16 %v9394, %v9393
    %v9405 = vpack.c.b16 %v9396, %v9395
    %v9406 = vpack.c.b16 %v9398, %v9397
    %9415 = vmatprep.subr.bf16.mxu0 0
    %9416 = vmatpush1.bf16.msra.mxu0 %v9399
    %9417 = vmatprep.subr.bf16.mxu0 0
    %9418 = vmatpush1.bf16.msra.mxu0 %v9400
    %9419 = vmatprep.subr.bf16.mxu0 0
    %9420 = vmatpush1.bf16.msra.mxu0 %v9401
    %9421 = vmatprep.subr.bf16.mxu0 0
    %9422 = vmatpush1.bf16.msra.mxu0 %v9402
    %9423 = vmatprep.subr.bf16.mxu0 0
    %9424 = vmatpush1.bf16.msra.mxu0 %v9403
    %9425 = vmatprep.subr.bf16.mxu0 0
    %9426 = vmatpush1.bf16.msra.mxu0 %v9404
    %9427 = vmatprep.subr.bf16.mxu0 0
    %9428 = vmatpush1.bf16.msra.mxu0 %v9405
    %9429 = vmatprep.subr.bf16.mxu0 0
    %9430 = vmatpush1.bf16.msra.mxu0 %v9406
    %9431 = vmatprep.subr.bf16.mxu0 0
    %9432 = vmatpush1.bf16.msra.mxu0 0
    %9433 = vmatprep.subr.bf16.mxu0 0
    %9434 = vmatpush1.bf16.msra.mxu0 0
    %9435 = vmatprep.subr.bf16.mxu0 0
    %9436 = vmatpush1.bf16.msra.mxu0 0
    %9437 = vmatprep.subr.bf16.mxu0 0
    %9438 = vmatpush1.bf16.msra.mxu0 0
    %9439 = vmatprep.subr.bf16.mxu0 0
    %9440 = vmatpush1.bf16.msra.mxu0 0
    %9441 = vmatprep.subr.bf16.mxu0 0
    %9442 = vmatpush1.bf16.msra.mxu0 0
    %9443 = vmatprep.subr.bf16.mxu0 0
    %9444 = vmatpush1.bf16.msra.mxu0 0
    %9445 = vmatprep.subr.bf16.mxu0 0
    %9446 = vmatpush1.bf16.msra.mxu0 0
    %9447 = vmatprep.mubr.bf16.mxu0 0
    %9448 = vmatmul.mubr.bf16.gmra.mrb[0].mxu0 %v9335
    %v9449 = vpop.f32.mrb[0].mxu0
    %v9450 = vadd.f32 0.0, %v9449
    %v9451 = vpop.f32.mrb[0].mxu0
    %v9452 = vpop.f32.mrb[0].mxu0
    %v9453 = vadd.f32 0.0, %v9452
    %v9454 = vpop.f32.mrb[0].mxu0
    %9455 = vmatprep.mubr.bf16.mxu0 0
    %9456 = vmatmul.mubr.bf16.gmra.mrb[0].mxu0 %v9336
    %v9457 = vpop.f32.mrb[0].mxu0
    %v9458 = vadd.f32 0.0, %v9457
    %v9459 = vpop.f32.mrb[0].mxu0
    %v9460 = vpop.f32.mrb[0].mxu0
    %v9461 = vadd.f32 0.0, %v9460
    %v9462 = vpop.f32.mrb[0].mxu0
    %9463 = vmatprep.mubr.bf16.mxu0 0
    %9464 = vmatmul.mubr.bf16.gmra.mrb[0].mxu0 %v9337
    %v9465 = vpop.f32.mrb[0].mxu0
    %v9466 = vadd.f32 0.0, %v9465
    %v9467 = vpop.f32.mrb[0].mxu0
    %v9468 = vpop.f32.mrb[0].mxu0
    %v9469 = vadd.f32 0.0, %v9468
    %v9470 = vpop.f32.mrb[0].mxu0
    %9471 = vmatprep.mubr.bf16.mxu0 0
    %9472 = vmatmul.mubr.bf16.gmra.mrb[0].mxu0 %v9338
    %v9473 = vpop.f32.mrb[0].mxu0
    %v9474 = vadd.f32 0.0, %v9473
    %v9475 = vpop.f32.mrb[0].mxu0
    %v9476 = vpop.f32.mrb[0].mxu0
    %v9477 = vadd.f32 0.0, %v9476
    %v9478 = vpop.f32.mrb[0].mxu0
    %9479 = vmatprep.mubr.bf16.mxu0 0
    %9480 = vmatmul.mubr.bf16.gmra.mrb[0].mxu0 %v9339
    %v9481 = vpop.f32.mrb[0].mxu0
    %v9482 = vadd.f32 0.0, %v9481
    %v9483 = vpop.f32.mrb[0].mxu0
    %v9484 = vpop.f32.mrb[0].mxu0
    %v9485 = vadd.f32 0.0, %v9484
    %v9486 = vpop.f32.mrb[0].mxu0
    %9487 = vmatprep.mubr.bf16.mxu0 0
    %9488 = vmatmul.mubr.bf16.gmra.mrb[0].mxu0 %v9340
    %v9489 = vpop.f32.mrb[0].mxu0
    %v9490 = vadd.f32 0.0, %v9489
    %v9491 = vpop.f32.mrb[0].mxu0
    %v9492 = vpop.f32.mrb[0].mxu0
    %v9493 = vadd.f32 0.0, %v9492
    %v9494 = vpop.f32.mrb[0].mxu0
    %9495 = vmatprep.mubr.bf16.mxu0 0
    %9496 = vmatmul.mubr.bf16.gmra.mrb[0].mxu0 %v9341
    %v9497 = vpop.f32.mrb[0].mxu0
    %v9498 = vadd.f32 0.0, %v9497
    %v9499 = vpop.f32.mrb[0].mxu0
    %v9500 = vpop.f32.mrb[0].mxu0
    %v9501 = vadd.f32 0.0, %v9500
    %v9502 = vpop.f32.mrb[0].mxu0
    %9503 = vmatprep.mubr.bf16.mxu0 0
    %9504 = vmatmul.mubr.bf16.gmra.mrb[0].mxu0 %v9342
    %v9505 = vpop.f32.mrb[0].mxu0
    %v9506 = vadd.f32 0.0, %v9505
    %v9507 = vpop.f32.mrb[0].mxu0
    %v9508 = vpop.f32.mrb[0].mxu0
    %v9509 = vadd.f32 0.0, %v9508
    %v9510 = vpop.f32.mrb[0].mxu0
    %9511 = vmatprep.mubr.bf16.mxu0 0
    %9512 = vmatmul.mubr.bf16.gmra.mrb[0].mxu0 %v9343
    %v9513 = vpop.f32.mrb[0].mxu0
    %v9514 = vadd.f32 0.0, %v9513
    %v9515 = vpop.f32.mrb[0].mxu0
    %v9516 = vpop.f32.mrb[0].mxu0
    %v9517 = vadd.f32 0.0, %v9516
    %v9518 = vpop.f32.mrb[0].mxu0
    %9519 = vmatprep.mubr.bf16.mxu0 0
    %9520 = vmatmul.mubr.bf16.gmra.mrb[0].mxu0 %v9344
    %v9521 = vpop.f32.mrb[0].mxu0
    %v9522 = vadd.f32 0.0, %v9521
    %v9523 = vpop.f32.mrb[0].mxu0
    %v9524 = vpop.f32.mrb[0].mxu0
    %v9525 = vadd.f32 0.0, %v9524
    %v9526 = vpop.f32.mrb[0].mxu0
    %9527 = vmatprep.mubr.bf16.mxu0 0
    %9528 = vmatmul.mubr.bf16.gmra.mrb[0].mxu0 %v9345
    %v9529 = vpop.f32.mrb[0].mxu0
    %v9530 = vadd.f32 0.0, %v9529
    %v9531 = vpop.f32.mrb[0].mxu0
    %v9532 = vpop.f32.mrb[0].mxu0
    %v9533 = vadd.f32 0.0, %v9532
    %v9534 = vpop.f32.mrb[0].mxu0
    %9535 = vmatprep.mubr.bf16.mxu0 0
    %9536 = vmatmul.mubr.bf16.gmra.mrb[0].mxu0 %v9346
    %v9537 = vpop.f32.mrb[0].mxu0
    %v9538 = vadd.f32 0.0, %v9537
    %v9539 = vpop.f32.mrb[0].mxu0
    %v9540 = vpop.f32.mrb[0].mxu0
    %v9541 = vadd.f32 0.0, %v9540
    %v9542 = vpop.f32.mrb[0].mxu0
    %9543 = vmatprep.mubr.bf16.mxu0 0
    %9544 = vmatmul.mubr.bf16.gmra.mrb[0].mxu0 %v9347
    %v9545 = vpop.f32.mrb[0].mxu0
    %v9546 = vadd.f32 0.0, %v9545
    %v9547 = vpop.f32.mrb[0].mxu0
    %v9548 = vpop.f32.mrb[0].mxu0
    %v9549 = vadd.f32 0.0, %v9548
    %v9550 = vpop.f32.mrb[0].mxu0
    %9551 = vmatprep.mubr.bf16.mxu0 0
    %9552 = vmatmul.mubr.bf16.gmra.mrb[0].mxu0 %v9348
    %v9553 = vpop.f32.mrb[0].mxu0
    %v9554 = vadd.f32 0.0, %v9553
    %v9555 = vpop.f32.mrb[0].mxu0
    %v9556 = vpop.f32.mrb[0].mxu0
    %v9557 = vadd.f32 0.0, %v9556
    %v9558 = vpop.f32.mrb[0].mxu0
    %9559 = vmatprep.mubr.bf16.mxu0 0
    %9560 = vmatmul.mubr.bf16.gmra.mrb[0].mxu0 %v9349
    %v9561 = vpop.f32.mrb[0].mxu0
    %v9562 = vadd.f32 0.0, %v9561
    %v9563 = vpop.f32.mrb[0].mxu0
    %v9564 = vpop.f32.mrb[0].mxu0
    %v9565 = vadd.f32 0.0, %v9564
    %v9566 = vpop.f32.mrb[0].mxu0
    %9567 = vmatprep.mubr.bf16.mxu0 0
    %9568 = vmatmul.mubr.bf16.gmra.mrb[0].mxu0 %v9350
    %v9569 = vpop.f32.mrb[0].mxu0
    %v9570 = vadd.f32 0.0, %v9569
    %v9571 = vpop.f32.mrb[0].mxu0
    %v9572 = vpop.f32.mrb[0].mxu0
    %v9573 = vadd.f32 0.0, %v9572
    %v9574 = vpop.f32.mrb[0].mxu0
    %9575 = vdwg.mxu0
    %v9576 = vlaneseq
    %v9577 = vshrl.u32 %v9576, 7
    %v9578 = vsub.s32 0, %v9577
    %v9579 = vrot.slane %v9450, %v9578
    %v9580 = vsub.f32 %v9450, %v9579
    %v9581 = vsub.f32 %v9453, %v9579
    %v9582 = vsub.f32 %v9458, %v9579
    %v9583 = vsub.f32 %v9461, %v9579
    %v9584 = vsub.f32 %v9466, %v9579
    %v9585 = vsub.f32 %v9469, %v9579
    %v9586 = vsub.f32 %v9474, %v9579
    %v9587 = vsub.f32 %v9477, %v9579
    %v9588 = vsub.f32 %v9482, %v9579
    %v9589 = vsub.f32 %v9485, %v9579
    %v9590 = vsub.f32 %v9490, %v9579
    %v9591 = vsub.f32 %v9493, %v9579
    %v9592 = vsub.f32 %v9498, %v9579
    %v9593 = vsub.f32 %v9501, %v9579
    %v9594 = vsub.f32 %v9506, %v9579
    %v9595 = vsub.f32 %v9509, %v9579
    %v9596 = vsub.f32 %v9514, %v9579
    %v9597 = vsub.f32 %v9517, %v9579
    %v9598 = vsub.f32 %v9522, %v9579
    %v9599 = vsub.f32 %v9525, %v9579
    %v9600 = vsub.f32 %v9530, %v9579
    %v9601 = vsub.f32 %v9533, %v9579
    %v9602 = vsub.f32 %v9538, %v9579
    %v9603 = vsub.f32 %v9541, %v9579
    %v9604 = vsub.f32 %v9546, %v9579
    %v9605 = vsub.f32 %v9549, %v9579
    %v9606 = vsub.f32 %v9554, %v9579
    %v9607 = vsub.f32 %v9557, %v9579
    %v9608 = vsub.f32 %v9562, %v9579
    %v9609 = vsub.f32 %v9565, %v9579
    %v9610 = vsub.f32 %v9570, %v9579
    %v9611 = vsub.f32 %v9573, %v9579
    %v9612 = vadd.f32 %v9580, %v9581
    %v9613 = vadd.f32 %v9612, %v9582
    %v9614 = vadd.f32 %v9613, %v9583
    %v9615 = vadd.f32 %v9614, %v9584
    %v9616 = vadd.f32 %v9615, %v9585
    %v9617 = vadd.f32 %v9616, %v9586
    %v9618 = vadd.f32 %v9617, %v9587
    %v9619 = vadd.f32 %v9618, %v9588
    %v9620 = vadd.f32 %v9619, %v9589
    %v9621 = vadd.f32 %v9620, %v9590
    %v9622 = vadd.f32 %v9621, %v9591
    %v9623 = vadd.f32 %v9622, %v9592
    %v9624 = vadd.f32 %v9623, %v9593
    %v9625 = vadd.f32 %v9624, %v9594
    %v9626 = vadd.f32 %v9625, %v9595
    %v9627 = vadd.f32 %v9626, %v9596
    %v9628 = vadd.f32 %v9627, %v9597
    %v9629 = vadd.f32 %v9628, %v9598
    %v9630 = vadd.f32 %v9629, %v9599
    %v9631 = vadd.f32 %v9630, %v9600
    %v9632 = vadd.f32 %v9631, %v9601
    %v9633 = vadd.f32 %v9632, %v9602
    %v9634 = vadd.f32 %v9633, %v9603
    %v9635 = vadd.f32 %v9634, %v9604
    %v9636 = vadd.f32 %v9635, %v9605
    %v9637 = vadd.f32 %v9636, %v9606
    %v9638 = vadd.f32 %v9637, %v9607
    %v9639 = vadd.f32 %v9638, %v9608
    %v9640 = vadd.f32 %v9639, %v9609
    %v9641 = vadd.f32 %v9640, %v9610
    %v9642 = vadd.f32 %v9641, %v9611
    %v9643 = vrot.slane %v9642, 4
    %v9644 = vadd.f32 %v9642, %v9643
    %v9645 = vrot.slane %v9644, 2
    %v9646 = vadd.f32 %v9644, %v9645
    %v9647 = vrot.slane %v9646, 1
    %v9648 = vadd.f32 %v9646, %v9647
    %v9649 = vmul.f32 %v9648, 0.00390625
    %v9650 = vmul.f32 %v9580, %v9580
    %v9651 = vmul.f32 %v9581, %v9581
    %v9652 = vmul.f32 %v9582, %v9582
    %v9653 = vmul.f32 %v9583, %v9583
    %v9654 = vmul.f32 %v9584, %v9584
    %v9655 = vmul.f32 %v9585, %v9585
    %v9656 = vmul.f32 %v9586, %v9586
    %v9657 = vmul.f32 %v9587, %v9587
    %v9658 = vmul.f32 %v9588, %v9588
    %v9659 = vmul.f32 %v9589, %v9589
    %v9660 = vmul.f32 %v9590, %v9590
    %v9661 = vmul.f32 %v9591, %v9591
    %v9662 = vmul.f32 %v9592, %v9592
    %v9663 = vmul.f32 %v9593, %v9593
    %v9664 = vmul.f32 %v9594, %v9594
    %v9665 = vmul.f32 %v9595, %v9595
    %v9666 = vmul.f32 %v9596, %v9596
    %v9667 = vmul.f32 %v9597, %v9597
    %v9668 = vmul.f32 %v9598, %v9598
    %v9669 = vmul.f32 %v9599, %v9599
    %v9670 = vmul.f32 %v9600, %v9600
    %v9671 = vmul.f32 %v9601, %v9601
    %v9672 = vmul.f32 %v9602, %v9602
    %v9673 = vmul.f32 %v9603, %v9603
    %v9674 = vmul.f32 %v9604, %v9604
    %v9675 = vmul.f32 %v9605, %v9605
    %v9676 = vmul.f32 %v9606, %v9606
    %v9677 = vmul.f32 %v9607, %v9607
    %v9678 = vmul.f32 %v9608, %v9608
    %v9679 = vmul.f32 %v9609, %v9609
    %v9680 = vmul.f32 %v9610, %v9610
    %v9681 = vmul.f32 %v9611, %v9611
    %v9682 = vadd.f32 %v9650, %v9651
    %v9683 = vadd.f32 %v9682, %v9652
    %v9684 = vadd.f32 %v9683, %v9653
    %v9685 = vadd.f32 %v9684, %v9654
    %v9686 = vadd.f32 %v9685, %v9655
    %v9687 = vadd.f32 %v9686, %v9656
    %v9688 = vadd.f32 %v9687, %v9657
    %v9689 = vadd.f32 %v9688, %v9658
    %v9690 = vadd.f32 %v9689, %v9659
    %v9691 = vadd.f32 %v9690, %v9660
    %v9692 = vadd.f32 %v9691, %v9661
    %v9693 = vadd.f32 %v9692, %v9662
    %v9694 = vadd.f32 %v9693, %v9663
    %v9695 = vadd.f32 %v9694, %v9664
    %v9696 = vadd.f32 %v9695, %v9665
    %v9697 = vadd.f32 %v9696, %v9666
    %v9698 = vadd.f32 %v9697, %v9667
    %v9699 = vadd.f32 %v9698, %v9668
    %v9700 = vadd.f32 %v9699, %v9669
    %v9701 = vadd.f32 %v9700, %v9670
    %v9702 = vadd.f32 %v9701, %v9671
    %v9703 = vadd.f32 %v9702, %v9672
    %v9704 = vadd.f32 %v9703, %v9673
    %v9705 = vadd.f32 %v9704, %v9674
    %v9706 = vadd.f32 %v9705, %v9675
    %v9707 = vadd.f32 %v9706, %v9676
    %v9708 = vadd.f32 %v9707, %v9677
    %v9709 = vadd.f32 %v9708, %v9678
    %v9710 = vadd.f32 %v9709, %v9679
    %v9711 = vadd.f32 %v9710, %v9680
    %v9712 = vadd.f32 %v9711, %v9681
    %v9713 = vrot.slane %v9712, 4
    %v9714 = vadd.f32 %v9712, %v9713
    %v9715 = vrot.slane %v9714, 2
    %v9716 = vadd.f32 %v9714, %v9715
    %v9717 = vrot.slane %v9716, 1
    %v9718 = vadd.f32 %v9716, %v9717
    %v9719 = vmul.f32 %v9718, 0.00390625
    %v9720 = vmul.f32 %v9649, %v9649
    %v9721 = vsub.f32 %v9719, %v9720
    %v9722 = vmax.f32 %v9721, 0.0
    %v9723 = vadd.f32 %v9450, %v9649
    %v9724 = vadd.f32 %v9722, 1e-05
    %v9725 = vrsqrt.pop %v9724
    %v9726 = vmul.f32 %v158, %v9725
    %v9728 = vrot.slane %v9726, 2
    %v9730 = vmul.f32 %v9723, %v9728
    %v9732 = vrot.slane %v9730, 5
    %v9734 = vsub.f32 %v158, %v9732
    %v9735 = vlaneseq
    %v9736 = vshrl.u32 %v9735, 7
    %v9737 = vsub.s32 2, %v9736
    %v9738 = vrot.slane %v9726, %v9737
    %v9739 = vmul.f32 %v9450, %v9738
    %v9740 = vmul.f32 %v9453, %v9738
    %v9741 = vmul.f32 %v9458, %v9738
    %v9742 = vmul.f32 %v9461, %v9738
    %v9743 = vmul.f32 %v9466, %v9738
    %v9744 = vmul.f32 %v9469, %v9738
    %v9745 = vmul.f32 %v9474, %v9738
    %v9746 = vmul.f32 %v9477, %v9738
    %v9747 = vmul.f32 %v9482, %v9738
    %v9748 = vmul.f32 %v9485, %v9738
    %v9749 = vmul.f32 %v9490, %v9738
    %v9750 = vmul.f32 %v9493, %v9738
    %v9751 = vmul.f32 %v9498, %v9738
    %v9752 = vmul.f32 %v9501, %v9738
    %v9753 = vmul.f32 %v9506, %v9738
    %v9754 = vmul.f32 %v9509, %v9738
    %v9755 = vmul.f32 %v9514, %v9738
    %v9756 = vmul.f32 %v9517, %v9738
    %v9757 = vmul.f32 %v9522, %v9738
    %v9758 = vmul.f32 %v9525, %v9738
    %v9759 = vmul.f32 %v9530, %v9738
    %v9760 = vmul.f32 %v9533, %v9738
    %v9761 = vmul.f32 %v9538, %v9738
    %v9762 = vmul.f32 %v9541, %v9738
    %v9763 = vmul.f32 %v9546, %v9738
    %v9764 = vmul.f32 %v9549, %v9738
    %v9765 = vmul.f32 %v9554, %v9738
    %v9766 = vmul.f32 %v9557, %v9738
    %v9767 = vmul.f32 %v9562, %v9738
    %v9768 = vmul.f32 %v9565, %v9738
    %v9769 = vmul.f32 %v9570, %v9738
    %v9770 = vmul.f32 %v9573, %v9738
    %v9771 = vlaneseq
    %v9772 = vshrl.u32 %v9771, 7
    %v9773 = vsub.s32 3, %v9772
    %v9774 = vrot.slane %v9734, %v9773
    %v9775 = vadd.f32 %v9739, %v9774
    %v9776 = vadd.f32 %v9740, %v9774
    %v9777 = vadd.f32 %v9741, %v9774
    %v9778 = vadd.f32 %v9742, %v9774
    %v9779 = vadd.f32 %v9743, %v9774
    %v9780 = vadd.f32 %v9744, %v9774
    %v9781 = vadd.f32 %v9745, %v9774
    %v9782 = vadd.f32 %v9746, %v9774
    %v9783 = vadd.f32 %v9747, %v9774
    %v9784 = vadd.f32 %v9748, %v9774
    %v9785 = vadd.f32 %v9749, %v9774
    %v9786 = vadd.f32 %v9750, %v9774
    %v9787 = vadd.f32 %v9751, %v9774
    %v9788 = vadd.f32 %v9752, %v9774
    %v9789 = vadd.f32 %v9753, %v9774
    %v9790 = vadd.f32 %v9754, %v9774
    %v9791 = vadd.f32 %v9755, %v9774
    %v9792 = vadd.f32 %v9756, %v9774
    %v9793 = vadd.f32 %v9757, %v9774
    %v9794 = vadd.f32 %v9758, %v9774
    %v9795 = vadd.f32 %v9759, %v9774
    %v9796 = vadd.f32 %v9760, %v9774
    %v9797 = vadd.f32 %v9761, %v9774
    %v9798 = vadd.f32 %v9762, %v9774
    %v9799 = vadd.f32 %v9763, %v9774
    %v9800 = vadd.f32 %v9764, %v9774
    %v9801 = vadd.f32 %v9765, %v9774
    %v9802 = vadd.f32 %v9766, %v9774
    %v9803 = vadd.f32 %v9767, %v9774
    %v9804 = vadd.f32 %v9768, %v9774
    %v9805 = vadd.f32 %v9769, %v9774
    %v9806 = vadd.f32 %v9770, %v9774
    %v9807 = vmax.f32 %v9775, 0.0
    %v9808 = vmax.f32 %v9776, 0.0
    %v9809 = vmax.f32 %v9777, 0.0
    %v9810 = vmax.f32 %v9778, 0.0
    %v9811 = vmax.f32 %v9779, 0.0
    %v9812 = vmax.f32 %v9780, 0.0
    %v9813 = vmax.f32 %v9781, 0.0
    %v9814 = vmax.f32 %v9782, 0.0
    %v9815 = vmax.f32 %v9783, 0.0
    %v9816 = vmax.f32 %v9784, 0.0
    %v9817 = vmax.f32 %v9785, 0.0
    %v9818 = vmax.f32 %v9786, 0.0
    %v9819 = vmax.f32 %v9787, 0.0
    %v9820 = vmax.f32 %v9788, 0.0
    %v9821 = vmax.f32 %v9789, 0.0
    %v9822 = vmax.f32 %v9790, 0.0
    %v9823 = vmax.f32 %v9791, 0.0
    %v9824 = vmax.f32 %v9792, 0.0
    %v9825 = vmax.f32 %v9793, 0.0
    %v9826 = vmax.f32 %v9794, 0.0
    %v9827 = vmax.f32 %v9795, 0.0
    %v9828 = vmax.f32 %v9796, 0.0
    %v9829 = vmax.f32 %v9797, 0.0
    %v9830 = vmax.f32 %v9798, 0.0
    %v9831 = vmax.f32 %v9799, 0.0
    %v9832 = vmax.f32 %v9800, 0.0
    %v9833 = vmax.f32 %v9801, 0.0
    %v9834 = vmax.f32 %v9802, 0.0
    %v9835 = vmax.f32 %v9803, 0.0
    %v9836 = vmax.f32 %v9804, 0.0
    %v9837 = vmax.f32 %v9805, 0.0
    %v9838 = vmax.f32 %v9806, 0.0
    %v9839 = vpack.c.bf16 %v9808, %v9807
    %v9840 = vpack.c.bf16 %v9810, %v9809
    %v9841 = vpack.c.bf16 %v9812, %v9811
    %v9842 = vpack.c.bf16 %v9814, %v9813
    %v9843 = vpack.c.bf16 %v9816, %v9815
    %v9844 = vpack.c.bf16 %v9818, %v9817
    %v9845 = vpack.c.bf16 %v9820, %v9819
    %v9846 = vpack.c.bf16 %v9822, %v9821
    %v9847 = vpack.c.bf16 %v9824, %v9823
    %v9848 = vpack.c.bf16 %v9826, %v9825
    %v9849 = vpack.c.bf16 %v9828, %v9827
    %v9850 = vpack.c.bf16 %v9830, %v9829
    %v9851 = vpack.c.bf16 %v9832, %v9831
    %v9852 = vpack.c.bf16 %v9834, %v9833
    %v9853 = vpack.c.bf16 %v9836, %v9835
    %v9854 = vpack.c.bf16 %v9838, %v9837
    %v9855 = vld [vmem:[%s6] sm:$0xf]
    %v9856 = vld [vmem:[%s6 + $0x4] sm:$0xf]
    %v9857 = vld [vmem:[%s6 + $0x8] sm:$0xf]
    %v9858 = vld [vmem:[%s6 + $0xc] sm:$0xf]
    %v9859 = vld [vmem:[%s6 + $0x10] sm:$0xf]
    %v9860 = vld [vmem:[%s6 + $0x14] sm:$0xf]
    %v9861 = vld [vmem:[%s6 + $0x18] sm:$0xf]
    %v9862 = vld [vmem:[%s6 + $0x1c] sm:$0xf]
    %v9863 = vld [vmem:[%s6 + $0x20] sm:$0xf]
    %v9864 = vld [vmem:[%s6 + $0x24] sm:$0xf]
    %v9865 = vld [vmem:[%s6 + $0x28] sm:$0xf]
    %v9866 = vld [vmem:[%s6 + $0x2c] sm:$0xf]
    %v9867 = vld [vmem:[%s6 + $0x30] sm:$0xf]
    %v9868 = vld [vmem:[%s6 + $0x34] sm:$0xf]
    %v9869 = vld [vmem:[%s6 + $0x38] sm:$0xf]
    %v9870 = vld [vmem:[%s6 + $0x3c] sm:$0xf]
    %v9871 = vld [vmem:[%s9] sm:$0x1]
    %v9873 = vlaneseq
    %v9874 = vshrl.u32 %v9873, 7
    %v9875 = vsub.s32 0, %v9874
    %v9876 = vrot.slane %v9871, %v9875
    %v9894 = vunpack.c.l.b16 %v9855
    %v9895 = vunpack.c.l.b16 %v9856
    %v9896 = vunpack.c.l.b16 %v9857
    %v9897 = vunpack.c.l.b16 %v9858
    %v9898 = vunpack.c.l.b16 %v9859
    %v9899 = vunpack.c.l.b16 %v9860
    %v9900 = vunpack.c.l.b16 %v9861
    %v9901 = vunpack.c.l.b16 %v9862
    %v9902 = vunpack.c.l.b16 %v9863
    %v9903 = vunpack.c.l.b16 %v9864
    %v9904 = vunpack.c.l.b16 %v9865
    %v9905 = vunpack.c.l.b16 %v9866
    %v9906 = vunpack.c.l.b16 %v9867
    %v9907 = vunpack.c.l.b16 %v9868
    %v9908 = vunpack.c.l.b16 %v9869
    %v9909 = vunpack.c.l.b16 %v9870
    %v9910 = vpack.c.b16 %v9895, %v9894
    %v9911 = vpack.c.b16 %v9897, %v9896
    %v9912 = vpack.c.b16 %v9899, %v9898
    %v9913 = vpack.c.b16 %v9901, %v9900
    %v9914 = vpack.c.b16 %v9903, %v9902
    %v9915 = vpack.c.b16 %v9905, %v9904
    %v9916 = vpack.c.b16 %v9907, %v9906
    %v9917 = vpack.c.b16 %v9909, %v9908
    %9926 = vmatprep.subr.bf16.mxu0 0
    %9927 = vmatpush1.bf16.msra.mxu0 %v9910
    %9928 = vmatprep.subr.bf16.mxu0 0
    %9929 = vmatpush1.bf16.msra.mxu0 %v9911
    %9930 = vmatprep.subr.bf16.mxu0 0
    %9931 = vmatpush1.bf16.msra.mxu0 %v9912
    %9932 = vmatprep.subr.bf16.mxu0 0
    %9933 = vmatpush1.bf16.msra.mxu0 %v9913
    %9934 = vmatprep.subr.bf16.mxu0 0
    %9935 = vmatpush1.bf16.msra.mxu0 %v9914
    %9936 = vmatprep.subr.bf16.mxu0 0
    %9937 = vmatpush1.bf16.msra.mxu0 %v9915
    %9938 = vmatprep.subr.bf16.mxu0 0
    %9939 = vmatpush1.bf16.msra.mxu0 %v9916
    %9940 = vmatprep.subr.bf16.mxu0 0
    %9941 = vmatpush1.bf16.msra.mxu0 %v9917
    %9942 = vmatprep.subr.bf16.mxu0 0
    %9943 = vmatpush1.bf16.msra.mxu0 0
    %9944 = vmatprep.subr.bf16.mxu0 0
    %9945 = vmatpush1.bf16.msra.mxu0 0
    %9946 = vmatprep.subr.bf16.mxu0 0
    %9947 = vmatpush1.bf16.msra.mxu0 0
    %9948 = vmatprep.subr.bf16.mxu0 0
    %9949 = vmatpush1.bf16.msra.mxu0 0
    %9950 = vmatprep.subr.bf16.mxu0 0
    %9951 = vmatpush1.bf16.msra.mxu0 0
    %9952 = vmatprep.subr.bf16.mxu0 0
    %9953 = vmatpush1.bf16.msra.mxu0 0
    %9954 = vmatprep.subr.bf16.mxu0 0
    %9955 = vmatpush1.bf16.msra.mxu0 0
    %9956 = vmatprep.subr.bf16.mxu0 0
    %9957 = vmatpush1.bf16.msra.mxu0 0
    %9958 = vmatprep.mubr.bf16.mxu0 0
    %9959 = vmatmul.mubr.bf16.gmra.mrb[0].mxu0 %v9839
    %v9960 = vpop.f32.mrb[0].mxu0
    %v9961 = vadd.f32 %v9876, %v9960
    %v9962 = vpop.f32.mrb[0].mxu0
    %v9963 = vpop.f32.mrb[0].mxu0
    %v9964 = vadd.f32 %v9876, %v9963
    %v9965 = vpop.f32.mrb[0].mxu0
    %9966 = vmatprep.mubr.bf16.mxu0 0
    %9967 = vmatmul.mubr.bf16.gmra.mrb[0].mxu0 %v9840
    %v9968 = vpop.f32.mrb[0].mxu0
    %v9969 = vadd.f32 %v9876, %v9968
    %v9970 = vpop.f32.mrb[0].mxu0
    %v9971 = vpop.f32.mrb[0].mxu0
    %v9972 = vadd.f32 %v9876, %v9971
    %v9973 = vpop.f32.mrb[0].mxu0
    %9974 = vmatprep.mubr.bf16.mxu0 0
    %9975 = vmatmul.mubr.bf16.gmra.mrb[0].mxu0 %v9841
    %v9976 = vpop.f32.mrb[0].mxu0
    %v9977 = vadd.f32 %v9876, %v9976
    %v9978 = vpop.f32.mrb[0].mxu0
    %v9979 = vpop.f32.mrb[0].mxu0
    %v9980 = vadd.f32 %v9876, %v9979
    %v9981 = vpop.f32.mrb[0].mxu0
    %9982 = vmatprep.mubr.bf16.mxu0 0
    %9983 = vmatmul.mubr.bf16.gmra.mrb[0].mxu0 %v9842
    %v9984 = vpop.f32.mrb[0].mxu0
    %v9985 = vadd.f32 %v9876, %v9984
    %v9986 = vpop.f32.mrb[0].mxu0
    %v9987 = vpop.f32.mrb[0].mxu0
    %v9988 = vadd.f32 %v9876, %v9987
    %v9989 = vpop.f32.mrb[0].mxu0
    %9990 = vmatprep.mubr.bf16.mxu0 0
    %9991 = vmatmul.mubr.bf16.gmra.mrb[0].mxu0 %v9843
    %v9992 = vpop.f32.mrb[0].mxu0
    %v9993 = vadd.f32 %v9876, %v9992
    %v9994 = vpop.f32.mrb[0].mxu0
    %v9995 = vpop.f32.mrb[0].mxu0
    %v9996 = vadd.f32 %v9876, %v9995
    %v9997 = vpop.f32.mrb[0].mxu0
    %9998 = vmatprep.mubr.bf16.mxu0 0
    %9999 = vmatmul.mubr.bf16.gmra.mrb[0].mxu0 %v9844
    %v10000 = vpop.f32.mrb[0].mxu0
    %v10001 = vadd.f32 %v9876, %v10000
    %v10002 = vpop.f32.mrb[0].mxu0
    %v10003 = vpop.f32.mrb[0].mxu0
    %v10004 = vadd.f32 %v9876, %v10003
    %v10005 = vpop.f32.mrb[0].mxu0
    %10006 = vmatprep.mubr.bf16.mxu0 0
    %10007 = vmatmul.mubr.bf16.gmra.mrb[0].mxu0 %v9845
    %v10008 = vpop.f32.mrb[0].mxu0
    %v10009 = vadd.f32 %v9876, %v10008
    %v10010 = vpop.f32.mrb[0].mxu0
    %v10011 = vpop.f32.mrb[0].mxu0
    %v10012 = vadd.f32 %v9876, %v10011
    %v10013 = vpop.f32.mrb[0].mxu0
    %10014 = vmatprep.mubr.bf16.mxu0 0
    %10015 = vmatmul.mubr.bf16.gmra.mrb[0].mxu0 %v9846
    %v10016 = vpop.f32.mrb[0].mxu0
    %v10017 = vadd.f32 %v9876, %v10016
    %v10018 = vpop.f32.mrb[0].mxu0
    %v10019 = vpop.f32.mrb[0].mxu0
    %v10020 = vadd.f32 %v9876, %v10019
    %v10021 = vpop.f32.mrb[0].mxu0
    %10022 = vmatprep.mubr.bf16.mxu0 0
    %10023 = vmatmul.mubr.bf16.gmra.mrb[0].mxu0 %v9847
    %v10024 = vpop.f32.mrb[0].mxu0
    %v10025 = vadd.f32 %v9876, %v10024
    %v10026 = vpop.f32.mrb[0].mxu0
    %v10027 = vpop.f32.mrb[0].mxu0
    %v10028 = vadd.f32 %v9876, %v10027
    %v10029 = vpop.f32.mrb[0].mxu0
    %10030 = vmatprep.mubr.bf16.mxu0 0
    %10031 = vmatmul.mubr.bf16.gmra.mrb[0].mxu0 %v9848
    %v10032 = vpop.f32.mrb[0].mxu0
    %v10033 = vadd.f32 %v9876, %v10032
    %v10034 = vpop.f32.mrb[0].mxu0
    %v10035 = vpop.f32.mrb[0].mxu0
    %v10036 = vadd.f32 %v9876, %v10035
    %v10037 = vpop.f32.mrb[0].mxu0
    %10038 = vmatprep.mubr.bf16.mxu0 0
    %10039 = vmatmul.mubr.bf16.gmra.mrb[0].mxu0 %v9849
    %v10040 = vpop.f32.mrb[0].mxu0
    %v10041 = vadd.f32 %v9876, %v10040
    %v10042 = vpop.f32.mrb[0].mxu0
    %v10043 = vpop.f32.mrb[0].mxu0
    %v10044 = vadd.f32 %v9876, %v10043
    %v10045 = vpop.f32.mrb[0].mxu0
    %10046 = vmatprep.mubr.bf16.mxu0 0
    %10047 = vmatmul.mubr.bf16.gmra.mrb[0].mxu0 %v9850
    %v10048 = vpop.f32.mrb[0].mxu0
    %v10049 = vadd.f32 %v9876, %v10048
    %v10050 = vpop.f32.mrb[0].mxu0
    %v10051 = vpop.f32.mrb[0].mxu0
    %v10052 = vadd.f32 %v9876, %v10051
    %v10053 = vpop.f32.mrb[0].mxu0
    %10054 = vmatprep.mubr.bf16.mxu0 0
    %10055 = vmatmul.mubr.bf16.gmra.mrb[0].mxu0 %v9851
    %v10056 = vpop.f32.mrb[0].mxu0
    %v10057 = vadd.f32 %v9876, %v10056
    %v10058 = vpop.f32.mrb[0].mxu0
    %v10059 = vpop.f32.mrb[0].mxu0
    %v10060 = vadd.f32 %v9876, %v10059
    %v10061 = vpop.f32.mrb[0].mxu0
    %10062 = vmatprep.mubr.bf16.mxu0 0
    %10063 = vmatmul.mubr.bf16.gmra.mrb[0].mxu0 %v9852
    %v10064 = vpop.f32.mrb[0].mxu0
    %v10065 = vadd.f32 %v9876, %v10064
    %v10066 = vpop.f32.mrb[0].mxu0
    %v10067 = vpop.f32.mrb[0].mxu0
    %v10068 = vadd.f32 %v9876, %v10067
    %v10069 = vpop.f32.mrb[0].mxu0
    %10070 = vmatprep.mubr.bf16.mxu0 0
    %10071 = vmatmul.mubr.bf16.gmra.mrb[0].mxu0 %v9853
    %v10072 = vpop.f32.mrb[0].mxu0
    %v10073 = vadd.f32 %v9876, %v10072
    %v10074 = vpop.f32.mrb[0].mxu0
    %v10075 = vpop.f32.mrb[0].mxu0
    %v10076 = vadd.f32 %v9876, %v10075
    %v10077 = vpop.f32.mrb[0].mxu0
    %10078 = vmatprep.mubr.bf16.mxu0 0
    %10079 = vmatmul.mubr.bf16.gmra.mrb[0].mxu0 %v9854
    %v10080 = vpop.f32.mrb[0].mxu0
    %v10081 = vadd.f32 %v9876, %v10080
    %v10082 = vpop.f32.mrb[0].mxu0
    %v10083 = vpop.f32.mrb[0].mxu0
    %v10084 = vadd.f32 %v9876, %v10083
    %v10085 = vpop.f32.mrb[0].mxu0
    %10086 = vdwg.mxu0
    %vm10087 = vcmask 15360
    %10088 = vst.msk [vmem:[%s10] sm:$0xff] %vm10087, %v9961
    %10089 = vst.msk [vmem:[%s10 + $0x8] sm:$0xff] %vm10087, %v9964
    %10090 = vst.msk [vmem:[%s10 + $0x10] sm:$0xff] %vm10087, %v9969
    %10091 = vst.msk [vmem:[%s10 + $0x18] sm:$0xff] %vm10087, %v9972
    %10092 = vst.msk [vmem:[%s10 + $0x20] sm:$0xff] %vm10087, %v9977
    %10093 = vst.msk [vmem:[%s10 + $0x28] sm:$0xff] %vm10087, %v9980
    %10094 = vst.msk [vmem:[%s10 + $0x30] sm:$0xff] %vm10087, %v9985
    %10095 = vst.msk [vmem:[%s10 + $0x38] sm:$0xff] %vm10087, %v9988
    %10096 = vst.msk [vmem:[%s10 + $0x40] sm:$0xff] %vm10087, %v9993
    %10097 = vst.msk [vmem:[%s10 + $0x48] sm:$0xff] %vm10087, %v9996
    %10098 = vst.msk [vmem:[%s10 + $0x50] sm:$0xff] %vm10087, %v10001
    %10099 = vst.msk [vmem:[%s10 + $0x58] sm:$0xff] %vm10087, %v10004
    %10100 = vst.msk [vmem:[%s10 + $0x60] sm:$0xff] %vm10087, %v10009
    %10101 = vst.msk [vmem:[%s10 + $0x68] sm:$0xff] %vm10087, %v10012
    %10102 = vst.msk [vmem:[%s10 + $0x70] sm:$0xff] %vm10087, %v10017
    %10103 = vst.msk [vmem:[%s10 + $0x78] sm:$0xff] %vm10087, %v10020
    %10104 = vst.msk [vmem:[%s10 + $0x80] sm:$0xff] %vm10087, %v10025
    %10105 = vst.msk [vmem:[%s10 + $0x88] sm:$0xff] %vm10087, %v10028
    %10106 = vst.msk [vmem:[%s10 + $0x90] sm:$0xff] %vm10087, %v10033
    %10107 = vst.msk [vmem:[%s10 + $0x98] sm:$0xff] %vm10087, %v10036
    %10108 = vst.msk [vmem:[%s10 + $0xa0] sm:$0xff] %vm10087, %v10041
    %10109 = vst.msk [vmem:[%s10 + $0xa8] sm:$0xff] %vm10087, %v10044
    %10110 = vst.msk [vmem:[%s10 + $0xb0] sm:$0xff] %vm10087, %v10049
    %10111 = vst.msk [vmem:[%s10 + $0xb8] sm:$0xff] %vm10087, %v10052
    %10112 = vst.msk [vmem:[%s10 + $0xc0] sm:$0xff] %vm10087, %v10057
    %10113 = vst.msk [vmem:[%s10 + $0xc8] sm:$0xff] %vm10087, %v10060
    %10114 = vst.msk [vmem:[%s10 + $0xd0] sm:$0xff] %vm10087, %v10065
    %10115 = vst.msk [vmem:[%s10 + $0xd8] sm:$0xff] %vm10087, %v10068
    %10116 = vst.msk [vmem:[%s10 + $0xe0] sm:$0xff] %vm10087, %v10073
    %10117 = vst.msk [vmem:[%s10 + $0xe8] sm:$0xff] %vm10087, %v10076
    %10118 = vst.msk [vmem:[%s10 + $0xf0] sm:$0xff] %vm10087, %v10081
    %10119 = vst.msk [vmem:[%s10 + $0xf8] sm:$0xff] %vm10087, %v10084
    // Predicated region
    $region66: #{forward.1} parent=1 // pred_check
      _
    $region67: #{forward.1} parent=1 // pred_check_branch
      %10121 = sbr.rel (0) target = $region69
    $region68: #{forward.1} parent=1 // pred_region
      _
    $region69: #{forward.1} parent=1 // pred_fallthru
      _
    // Predicated region
    $region70: #{forward.1} parent=1 // pred_check
      _
    $region71: #{forward.1} parent=1 // pred_check_branch
      %10123 = sbr.rel (0) target = $region73
    $region72: #{forward.1} parent=1 // pred_region
      _
    $region73: #{forward.1} parent=1 // pred_fallthru
      _
    %10124 = vsyncpa [#allocation3], 1
    %10125 = vsyncpa [#allocation5], 1
    %10126 = vsyncpa [#allocation8], 1
    %10127 = vsyncpa [#allocation11], 1

</llo_original>
